<compile_context>
chip_gen: v6e
topology: v6e:2x2x1
jax: 0.10.0
libtpu: 0.0.40
codegen_flags: <defaults>
</compile_context>

<pallas_src>
import functools

import numpy as np
import jax
import jax.numpy as jnp
from jax.experimental import pallas as pl
from jax.experimental.pallas import tpu as pltpu


VMEM_SPEC = pl.BlockSpec(memory_space=pltpu.MemorySpace.VMEM)


# ----------------------------- Pallas kernels ------------------------------ #

def _encoder_init_state_kernel(*refs, T, B, E, He, n_enc_layers, n_dec_layers, Hd):
    it = iter(refs)
    x_ref = next(it)                         # (T*B, E)   time-major rows
    hw_w = next(it); hw_b = next(it)         # (E, 2E), (1, 2E)
    layers = [(next(it), next(it), next(it)) for _ in range(n_enc_layers)]
    h2i_w = next(it); h2i_b = next(it)       # (2He, Ld*Hd), (1, Ld*Hd)
    h_init_ref = next(it); c_init_ref = next(it)   # (Ld, B, Hd) each

    H = He
    # ---- highway (single layer, ReLU), one fused (E, 2E) matmul ------------
    x = x_ref[...].astype(jnp.float32)
    gh = jnp.dot(x, hw_w[...], preferred_element_type=jnp.float32) + hw_b[...]
    gate = jax.nn.sigmoid(gh[:, :E])
    cur = gate * jnp.maximum(gh[:, E:], 0.0) + (1.0 - gate) * x       # (T*B, E)

    h_cat = c_cat = None
    for l, (w_ih, w_hh_blk, b) in enumerate(layers):
        # hoisted input projection for BOTH directions at once (bias folded in)
        xw = jnp.dot(cur, w_ih[...], preferred_element_type=jnp.float32) + b[...]
        w_hh = w_hh_blk[...]     # (2H, 8H) block-diag: [[Whh_f, 0], [0, Whh_b]]
        last = (l == n_enc_layers - 1)

        zero = jnp.zeros((B, H), jnp.float32)
        h_f = c_f = h_b = c_b = zero
        outs_f = [None] * T
        outs_b = [None] * T
        # fully-unrolled time loop: fwd consumes time s, bwd consumes time T-1-s,
        # sharing a single 256-lane recurrent matmul per step.
        for s in range(T):
            rec = jnp.dot(jnp.concatenate([h_f, h_b], axis=-1), w_hh,
                          preferred_element_type=jnp.float32)          # (B, 8H)
            g_f = xw[s * B:(s + 1) * B, :4 * H] + rec[:, :4 * H]
            g_b = xw[(T - 1 - s) * B:(T - s) * B, 4 * H:] + rec[:, 4 * H:]
            # packed gate order within each 4H block: (i, f, o, g)
            sf = jax.nn.sigmoid(g_f[:, :3 * H]); gf = jnp.tanh(g_f[:, 3 * H:])
            sb = jax.nn.sigmoid(g_b[:, :3 * H]); gb = jnp.tanh(g_b[:, 3 * H:])
            c_f = sf[:, H:2 * H] * c_f + sf[:, :H] * gf
            c_b = sb[:, H:2 * H] * c_b + sb[:, :H] * gb
            h_f = sf[:, 2 * H:] * jnp.tanh(c_f)
            h_b = sb[:, 2 * H:] * jnp.tanh(c_b)
            if not last:
                outs_f[s] = h_f
                outs_b[T - 1 - s] = h_b
        h_cat = jnp.concatenate([h_f, h_b], axis=-1)                   # (B, 2He)
        c_cat = jnp.concatenate([c_f, c_b], axis=-1)
        if not last:
            cur = jnp.concatenate([jnp.concatenate(outs_f, axis=0),
                                   jnp.concatenate(outs_b, axis=0)], axis=-1)

    # ---- h/c -> decoder initial state.  PyTorch reuses h_to_initial_state for
    # the c state (c_to_initial_state is unused): reproduced faithfully, and the
    # two identical linears are merged into one (2B, 2He) matmul. --------------
    hc = jnp.concatenate([h_cat, c_cat], axis=0)                       # (2B, 2He)
    init = jnp.dot(hc, h2i_w[...], preferred_element_type=jnp.float32) + h2i_b[...]
    for l in range(n_dec_layers):
        h_init_ref[l] = init[:B, l * Hd:(l + 1) * Hd].astype(h_init_ref.dtype)
        c_init_ref[l] = init[B:, l * Hd:(l + 1) * Hd].astype(c_init_ref.dtype)


def _decoder_stack_kernel(*refs, T, B, Hd, V, n_layers):
    it = iter(refs)
    x_ref = next(it)                         # (T*B, E)  time-major rows
    z_ref = next(it)                         # (B, Lz)
    w_x = next(it); w_z = next(it); w_hh0 = next(it); b0 = next(it)
    upper = [(next(it), next(it), next(it)) for _ in range(n_layers - 1)]
    fc_w = next(it); fc_b = next(it)
    h_init = next(it); c_init = next(it)     # (n_layers, B, Hd)
    out_ref = next(it); hT_ref = next(it); cT_ref = next(it)

    H = Hd
    x = x_ref[...].astype(jnp.float32)
    # z is time-invariant: fold (z @ Wz + bias) into one per-batch additive term
    # instead of concatenating z onto every time step.
    z_bias = jnp.dot(z_ref[...].astype(jnp.float32), w_z[...],
                     preferred_element_type=jnp.float32) + b0[...]     # (B, 4H)

    cur = x
    for l in range(n_layers):
        if l == 0:
            xw = jnp.dot(cur, w_x[...], preferred_element_type=jnp.float32)
            extra = z_bias
            w_hh = w_hh0[...]
        else:
            w_ih_l, w_hh_l, b_l = upper[l - 1]
            xw = (jnp.dot(cur, w_ih_l[...], preferred_element_type=jnp.float32)
                  + b_l[...])
            extra = None
            w_hh = w_hh_l[...]

        h = h_init[l].astype(jnp.float32)
        c = c_init[l].astype(jnp.float32)
        outs = [None] * T
        for t in range(T):                   # fully unrolled (T small & static)
            gates = xw[t * B:(t + 1) * B, :] + jnp.dot(
                h, w_hh, preferred_element_type=jnp.float32)
            if extra is not None:
                gates = gates + extra
            # packed gate order: (i, f, o, g)
            s = jax.nn.sigmoid(gates[:, :3 * H])
            g = jnp.tanh(gates[:, 3 * H:])
            c = s[:, H:2 * H] * c + s[:, :H] * g
            h = s[:, 2 * H:] * jnp.tanh(c)
            outs[t] = h
        hT_ref[l] = h.astype(hT_ref.dtype)
        cT_ref[l] = c.astype(cT_ref.dtype)
        cur = jnp.concatenate(outs, axis=0)                            # (T*B, H)

    logits = jnp.dot(cur, fc_w[...], preferred_element_type=jnp.float32) + fc_b[...]
    out_ref[...] = logits.astype(out_ref.dtype)


# ------------------------------- wrappers ----------------------------------- #

def encoder_initial_state(packed, p, encoder_input):
    B, T, E = encoder_input.shape
    He, Hd, Ld = p.encoder_rnn_size, p.decoder_rnn_size, p.decoder_num_layers
    x_tm = jnp.transpose(encoder_input, (1, 0, 2)).reshape(T * B, E)
    ins = [x_tm, packed["hw_w"], packed["hw_b"]]
    for lp in packed["enc"]:
        ins += [lp["w_ih"], lp["w_hh_blk"], lp["b"]]
    ins += [packed["h2i_w"], packed["h2i_b"]]
    kernel = functools.partial(_encoder_init_state_kernel, T=T, B=B, E=E, He=He,
                               n_enc_layers=p.encoder_num_layers,
                               n_dec_layers=Ld, Hd=Hd)
    h_init, c_init = pl.pallas_call(
        kernel,
        out_shape=(jax.ShapeDtypeStruct((Ld, B, Hd), jnp.float32),
                   jax.ShapeDtypeStruct((Ld, B, Hd), jnp.float32)),
        in_specs=[VMEM_SPEC] * len(ins),
        out_specs=(VMEM_SPEC, VMEM_SPEC),
    )(*ins)
    return h_init, c_init


def decoder_forward(packed, p, encoder_input, decoder_input, z, drop_prob,
                    initial_state=None):
    # drop_prob accepted but unused, exactly like the PyTorch forward.
    if initial_state is None:
        assert encoder_input is not None
        initial_state = encoder_initial_state(packed, p, encoder_input)
    h_init, c_init = initial_state
    B, T, E = decoder_input.shape
    Hd, V, Ld = p.decoder_rnn_size, p.vocab_size, p.decoder_num_layers
    x_tm = jnp.transpose(decoder_input, (1, 0, 2)).reshape(T * B, E)
    d = packed["dec"]
    ins = [x_tm, z, d[0]["w_x"], d[0]["w_z"], d[0]["w_hh"], d[0]["b"]]
    for lp in d[1:]:
        ins += [lp["w_ih"], lp["w_hh"], lp["b"]]
    ins += [packed["fc_w"], packed["fc_b"], h_init, c_init]
    kernel = functools.partial(_decoder_stack_kernel, T=T, B=B, Hd=Hd, V=V,
                               n_layers=Ld)
    logits, hT, cT = pl.pallas_call(
        kernel,
        out_shape=(jax.ShapeDtypeStruct((T * B, V), jnp.float32),
                   jax.ShapeDtypeStruct((Ld, B, Hd), jnp.float32),
                   jax.ShapeDtypeStruct((Ld, B, Hd), jnp.float32)),
        in_specs=[VMEM_SPEC] * len(ins),
        out_specs=(VMEM_SPEC, VMEM_SPEC, VMEM_SPEC),
    )(*ins)
    result = logits.reshape(T, B, V).transpose(1, 0, 2)
    return result, (hT, cT)


# ---------------------- parameters: raw (PyTorch) + packed ------------------- #

class Params:
    word_embed_size = 32
    encoder_rnn_size = 32
    encoder_num_layers = 2
    decoder_rnn_size = 32
    decoder_num_layers = 2
    latent_variable_size = 16
    vocab_size = 64


def _init_linear_raw(key, in_f, out_f, scale=0.08):
    k1, k2 = jax.random.split(key)
    return dict(w=jax.random.normal(k1, (out_f, in_f), jnp.float32) * scale,
                b=jax.random.normal(k2, (out_f,), jnp.float32) * scale)


def _init_lstm_raw(key, in_f, H, scale=0.08):
    k1, k2, k3, k4 = jax.random.split(key, 4)
    return dict(w_ih=jax.random.normal(k1, (4 * H, in_f), jnp.float32) * scale,
                w_hh=jax.random.normal(k2, (4 * H, H), jnp.float32) * scale,
                b_ih=jax.random.normal(k3, (4 * H,), jnp.float32) * scale,
                b_hh=jax.random.normal(k4, (4 * H,), jnp.float32) * scale)


def _gate_perm(H):
    # PyTorch gate order (i, f, g, o)  ->  kernel-packed order (i, f, o, g)
    return np.concatenate([np.arange(0, 2 * H), np.arange(3 * H, 4 * H),
                           np.arange(2 * H, 3 * H)])


def _pack_uni_lstm(raw, H):
    perm = _gate_perm(H)
    return dict(w_ih=raw["w_ih"][perm].T, w_hh=raw["w_hh"][perm].T,
                b=(raw["b_ih"] + raw["b_hh"])[perm][None, :])


def _pack_dec_layer0(raw, E, Lz, H):
    perm = _gate_perm(H)
    w = raw["w_ih"][perm]                           # (4H, E+Lz)
    return dict(w_x=w[:, :E].T, w_z=w[:, E:].T, w_hh=raw["w_hh"][perm].T,
                b=(raw["b_ih"] + raw["b_hh"])[perm][None, :])


def _pack_bidir_lstm(raw_f, raw_b, H):
    perm = _gate_perm(H)
    w_ih = jnp.concatenate([raw_f["w_ih"][perm].T, raw_b["w_ih"][perm].T], axis=1)
    whf = raw_f["w_hh"][perm].T
    whb = raw_b["w_hh"][perm].T
    z = jnp.zeros_like(whf)
    w_hh_blk = jnp.concatenate(
        [jnp.concatenate([whf, z], axis=1),
         jnp.concatenate([z, whb], axis=1)], axis=0)          # (2H, 8H) block-diag
    b = jnp.concatenate([(raw_f["b_ih"] + raw_f["b_hh"])[perm],
                         (raw_b["b_ih"] + raw_b["b_hh"])[perm]])[None, :]
    return dict(w_ih=w_ih, w_hh_blk=w_hh_blk, b=b)


def init_decoder_params(key, p):
    ki = iter(jax.random.split(key, 32))
    raw = {}
    raw["hw_g"] = _init_linear_raw(next(ki), p.word_embed_size, p.word_embed_size)
    raw["hw_h"] = _init_linear_raw(next(ki), p.word_embed_size, p.word_embed_size)
    raw["enc"] = []
    for l in range(p.encoder_num_layers):
        in_size = p.word_embed_size if l == 0 else 2 * p.encoder_rnn_size
        raw["enc"].append(dict(fwd=_init_lstm_raw(next(ki), in_size, p.encoder_rnn_size),
                               bwd=_init_lstm_raw(next(ki), in_size, p.encoder_rnn_size)))
    raw["dec"] = []
    for l in range(p.decoder_num_layers):
        in_size = (p.latent_variable_size + p.word_embed_size) if l == 0 \
            else p.decoder_rnn_size
        raw["dec"].append(_init_lstm_raw(next(ki), in_size, p.decoder_rnn_size))
    raw["h_to_init"] = _init_linear_raw(next(ki), 2 * p.encoder_rnn_size,
                                        p.decoder_num_layers * p.decoder_rnn_size)
    # present in the PyTorch module but unused in forward (h_to_initial_state reused)
    raw["c_to_init"] = _init_linear_raw(next(ki), 2 * p.encoder_rnn_size,
                                        p.decoder_num_layers * p.decoder_rnn_size)
    raw["fc"] = _init_linear_raw(next(ki), p.decoder_rnn_size, p.vocab_size)

    packed = {}
    packed["hw_w"] = jnp.concatenate([raw["hw_g"]["w"].T, raw["hw_h"]["w"].T], axis=1)
    packed["hw_b"] = jnp.concatenate([raw["hw_g"]["b"], raw["hw_h"]["b"]])[None, :]
    packed["enc"] = [_pack_bidir_lstm(lp["fwd"], lp["bwd"], p.encoder_rnn_size)
                     for lp in raw["enc"]]
    dec_packed = [_pack_dec_layer0(raw["dec"][0], p.word_embed_size,
                                   p.latent_variable_size, p.decoder_rnn_size)]
    for lp in raw["dec"][1:]:
        dec_packed.append(_pack_uni_lstm(lp, p.decoder_rnn_size))
    packed["dec"] = dec_packed
    packed["h2i_w"] = raw["h_to_init"]["w"].T
    packed["h2i_b"] = raw["h_to_init"]["b"][None, :]
    packed["fc_w"] = raw["fc"]["w"].T
    packed["fc_b"] = raw["fc"]["b"][None, :]
    return raw, packed


# ------------------------- pure-JAX reference (checks) ----------------------- #

def _lstm_cell_ref(x_t, h, c, lp, H):
    gates = x_t @ lp["w_ih"].T + lp["b_ih"] + h @ lp["w_hh"].T + lp["b_hh"]
    i = jax.nn.sigmoid(gates[:, :H])
    f = jax.nn.sigmoid(gates[:, H:2 * H])
    g = jnp.tanh(gates[:, 2 * H:3 * H])
    o = jax.nn.sigmoid(gates[:, 3 * H:])
    c = f * c + i * g
    return o * jnp.tanh(c), c


def reference_forward(raw, p, encoder_input, decoder_input, z):
    B, T, E = encoder_input.shape
    He, Hd = p.encoder_rnn_size, p.decoder_rnn_size
    xf = encoder_input.reshape(-1, E)
    gate = jax.nn.sigmoid(xf @ raw["hw_g"]["w"].T + raw["hw_g"]["b"])
    nl = jax.nn.relu(xf @ raw["hw_h"]["w"].T + raw["hw_h"]["b"])
    inp = (gate * nl + (1 - gate) * xf).reshape(B, T, E)
    hf = cf = hb = cb = None
    for lp in raw["enc"]:
        of, ob = [], []
        h = jnp.zeros((B, He)); c = jnp.zeros((B, He))
        for t in range(T):
            h, c = _lstm_cell_ref(inp[:, t], h, c, lp["fwd"], He)
            of.append(h)
        hf, cf = h, c
        h = jnp.zeros((B, He)); c = jnp.zeros((B, He))
        for t in range(T - 1, -1, -1):
            h, c = _lstm_cell_ref(inp[:, t], h, c, lp["bwd"], He)
            ob.append(h)
        hb, cb = h, c
        ob = ob[::-1]
        inp = jnp.stack([jnp.concatenate([a, b2], axis=-1) for a, b2 in zip(of, ob)],
                        axis=1)
    h_state = jnp.concatenate([hf, hb], axis=-1)
    c_state = jnp.concatenate([cf, cb], axis=-1)
    w, b = raw["h_to_init"]["w"], raw["h_to_init"]["b"]
    h_initial = (h_state @ w.T + b).reshape(B, p.decoder_num_layers, Hd).transpose(1, 0, 2)
    c_initial = (c_state @ w.T + b).reshape(B, p.decoder_num_layers, Hd).transpose(1, 0, 2)

    z_rep = jnp.broadcast_to(z[:, None, :], (B, T, p.latent_variable_size))
    inp = jnp.concatenate([decoder_input, z_rep], axis=2)
    h_fin, c_fin = [], []
    for l, lp in enumerate(raw["dec"]):
        outs = []
        h, c = h_initial[l], c_initial[l]
        for t in range(T):
            h, c = _lstm_cell_ref(inp[:, t], h, c, lp, Hd)
            outs.append(h)
        h_fin.append(h); c_fin.append(c)
        inp = jnp.stack(outs, axis=1)
    rnn_out = inp.reshape(-1, Hd)
    result = (rnn_out @ raw["fc"]["w"].T + raw["fc"]["b"]).reshape(B, T, p.vocab_size)
    return result, (jnp.stack(h_fin), jnp.stack(c_fin))


# ---------------------------------- main ------------------------------------ #

if __name__ == "__main__":
    p = Params()
    key = jax.random.PRNGKey(0)
    kp, k1, k2, k3 = jax.random.split(key, 4)
    raw, packed = init_decoder_params(kp, p)

    B, T = 2, 8
    encoder_input = jax.random.normal(k1, (B, T, p.word_embed_size), jnp.float32)
    decoder_input = jax.random.normal(k2, (B, T, p.word_embed_size), jnp.float32)
    z = jax.random.normal(k3, (B, p.latent_variable_size), jnp.float32)

    run = jax.jit(lambda prm, ei, di, zz: decoder_forward(prm, p, ei, di, zz, 0.3))
    result, final_state = run(packed, encoder_input, decoder_input, z)
    jax.block_until_ready(result)
    jax.block_until_ready(final_state)

    assert result.shape == (B, T, p.vocab_size)
    assert final_state[0].shape == (p.decoder_num_layers, B, p.decoder_rnn_size)
    assert final_state[1].shape == (p.decoder_num_layers, B, p.decoder_rnn_size)

    # lightweight numerical check against a pure-JAX (PyTorch-layout) reference
    ref_fn = jax.jit(lambda r, ei, di, zz: reference_forward(r, p, ei, di, zz))
    ref_result, ref_final = ref_fn(raw, encoder_input, decoder_input, z)
    assert float(jnp.max(jnp.abs(result - ref_result))) < 2e-2
    assert float(jnp.max(jnp.abs(final_state[0] - ref_final[0]))) < 2e-2
    assert float(jnp.max(jnp.abs(final_state[1] - ref_final[1]))) < 2e-2

    print("KERNEL_OK")
</pallas_src>

<mosaic_0001>
module attributes {stable_mosaic.version = 11 : i64} {
  func.func @_decoder_stack_kernel(%arg0: memref<16x32xf32, #tpu.memory_space<vmem>>, %arg1: memref<2x16xf32, #tpu.memory_space<vmem>>, %arg2: memref<32x128xf32, #tpu.memory_space<vmem>>, %arg3: memref<16x128xf32, #tpu.memory_space<vmem>>, %arg4: memref<32x128xf32, #tpu.memory_space<vmem>>, %arg5: memref<1x128xf32, #tpu.memory_space<vmem>>, %arg6: memref<32x128xf32, #tpu.memory_space<vmem>>, %arg7: memref<32x128xf32, #tpu.memory_space<vmem>>, %arg8: memref<1x128xf32, #tpu.memory_space<vmem>>, %arg9: memref<32x64xf32, #tpu.memory_space<vmem>>, %arg10: memref<1x64xf32, #tpu.memory_space<vmem>>, %arg11: memref<2x2x32xf32, #tpu.memory_space<vmem>>, %arg12: memref<2x2x32xf32, #tpu.memory_space<vmem>>, %arg13: memref<16x64xf32, #tpu.memory_space<vmem>>, %arg14: memref<2x2x32xf32, #tpu.memory_space<vmem>>, %arg15: memref<2x2x32xf32, #tpu.memory_space<vmem>>) attributes {dimension_semantics = [], scalar_prefetch = 0 : i64, scratch_operands = 0 : i64, tpu.core_type = #tpu.core_type<tc>} {
    %c0 = arith.constant 0 : index
    %c0_0 = arith.constant 0 : index
    %0 = vector.load %arg0[%c0, %c0_0] : memref<16x32xf32, #tpu.memory_space<vmem>>, vector<16x32xf32>
    %c0_1 = arith.constant 0 : index
    %c0_2 = arith.constant 0 : index
    %1 = vector.load %arg1[%c0_1, %c0_2] : memref<2x16xf32, #tpu.memory_space<vmem>>, vector<2x16xf32>
    %c0_3 = arith.constant 0 : index
    %c0_4 = arith.constant 0 : index
    %2 = vector.load %arg3[%c0_3, %c0_4] : memref<16x128xf32, #tpu.memory_space<vmem>>, vector<16x128xf32>
    %cst = arith.constant dense<0.000000e+00> : vector<2x128xf32>
    %3 = tpu.matmul %1, %2, %cst {dimension_numbers = #tpu.dot_dimension_numbers<[1], [0], [0], [1], [0, 0, 1, 1], [], []>} : vector<2x16xf32>, vector<16x128xf32>, vector<2x128xf32> -> vector<2x128xf32>
    %c0_5 = arith.constant 0 : index
    %c0_6 = arith.constant 0 : index
    %4 = vector.load %arg5[%c0_5, %c0_6] : memref<1x128xf32, #tpu.memory_space<vmem>>, vector<1x128xf32>
    %5 = vector.broadcast %4 : vector<1x128xf32> to vector<2x128xf32>
    %6 = arith.addf %3, %5 : vector<2x128xf32>
    %c0_7 = arith.constant 0 : index
    %c0_8 = arith.constant 0 : index
    %7 = vector.load %arg2[%c0_7, %c0_8] : memref<32x128xf32, #tpu.memory_space<vmem>>, vector<32x128xf32>
    %cst_9 = arith.constant dense<0.000000e+00> : vector<16x128xf32>
    %8 = tpu.matmul %0, %7, %cst_9 {dimension_numbers = #tpu.dot_dimension_numbers<[1], [0], [0], [1], [0, 0, 1, 1], [], []>} : vector<16x32xf32>, vector<32x128xf32>, vector<16x128xf32> -> vector<16x128xf32>
    %c0_10 = arith.constant 0 : index
    %c0_11 = arith.constant 0 : index
    %9 = vector.load %arg4[%c0_10, %c0_11] : memref<32x128xf32, #tpu.memory_space<vmem>>, vector<32x128xf32>
    %c0_12 = arith.constant 0 : index
    %c0_13 = arith.constant 0 : index
    %c0_14 = arith.constant 0 : index
    %10 = vector.load %arg11[%c0_12, %c0_13, %c0_14] : memref<2x2x32xf32, #tpu.memory_space<vmem>>, vector<1x2x32xf32>
    %11 = vector.shape_cast %10 : vector<1x2x32xf32> to vector<2x32xf32>
    %c0_15 = arith.constant 0 : index
    %c0_16 = arith.constant 0 : index
    %c0_17 = arith.constant 0 : index
    %12 = vector.load %arg12[%c0_15, %c0_16, %c0_17] : memref<2x2x32xf32, #tpu.memory_space<vmem>>, vector<1x2x32xf32>
    %13 = vector.shape_cast %12 : vector<1x2x32xf32> to vector<2x32xf32>
    %14 = vector.extract_strided_slice %8 {offsets = [0, 0], sizes = [2, 128], strides = [1, 1]} : vector<16x128xf32> to vector<2x128xf32>
    %cst_18 = arith.constant dense<0.000000e+00> : vector<2x128xf32>
    %15 = tpu.matmul %11, %9, %cst_18 {dimension_numbers = #tpu.dot_dimension_numbers<[1], [0], [0], [1], [0, 0, 1, 1], [], []>} : vector<2x32xf32>, vector<32x128xf32>, vector<2x128xf32> -> vector<2x128xf32>
    %16 = arith.addf %14, %15 : vector<2x128xf32>
    %17 = arith.addf %16, %6 : vector<2x128xf32>
    %18 = vector.extract_strided_slice %17 {offsets = [0, 0], sizes = [2, 96], strides = [1, 1]} : vector<2x128xf32> to vector<2x96xf32>
    %19 = arith.negf %18 : vector<2x96xf32>
    %20 = math.exp %19 : vector<2x96xf32>
    %cst_19 = arith.constant 1.000000e+00 : f32
    %21 = vector.broadcast %cst_19 : f32 to vector<2x96xf32>
    %22 = arith.addf %21, %20 : vector<2x96xf32>
    %23 = arith.divf %21, %22 : vector<2x96xf32>
    %24 = vector.extract_strided_slice %17 {offsets = [0, 96], sizes = [2, 32], strides = [1, 1]} : vector<2x128xf32> to vector<2x32xf32>
    %25 = math.tanh %24 : vector<2x32xf32>
    %26 = vector.extract_strided_slice %23 {offsets = [0, 32], sizes = [2, 32], strides = [1, 1]} : vector<2x96xf32> to vector<2x32xf32>
    %27 = arith.mulf %26, %13 : vector<2x32xf32>
    %28 = vector.extract_strided_slice %23 {offsets = [0, 0], sizes = [2, 32], strides = [1, 1]} : vector<2x96xf32> to vector<2x32xf32>
    %29 = arith.mulf %28, %25 : vector<2x32xf32>
    %30 = arith.addf %27, %29 : vector<2x32xf32>
    %31 = vector.extract_strided_slice %23 {offsets = [0, 64], sizes = [2, 32], strides = [1, 1]} : vector<2x96xf32> to vector<2x32xf32>
    %32 = math.tanh %30 : vector<2x32xf32>
    %33 = arith.mulf %31, %32 : vector<2x32xf32>
    %34 = vector.extract_strided_slice %8 {offsets = [2, 0], sizes = [2, 128], strides = [1, 1]} : vector<16x128xf32> to vector<2x128xf32>
    %cst_20 = arith.constant dense<0.000000e+00> : vector<2x128xf32>
    %35 = tpu.matmul %33, %9, %cst_20 {dimension_numbers = #tpu.dot_dimension_numbers<[1], [0], [0], [1], [0, 0, 1, 1], [], []>} : vector<2x32xf32>, vector<32x128xf32>, vector<2x128xf32> -> vector<2x128xf32>
    %36 = arith.addf %34, %35 : vector<2x128xf32>
    %37 = arith.addf %36, %6 : vector<2x128xf32>
    %38 = vector.extract_strided_slice %37 {offsets = [0, 0], sizes = [2, 96], strides = [1, 1]} : vector<2x128xf32> to vector<2x96xf32>
    %39 = arith.negf %38 : vector<2x96xf32>
    %40 = math.exp %39 : vector<2x96xf32>
    %cst_21 = arith.constant 1.000000e+00 : f32
    %41 = vector.broadcast %cst_21 : f32 to vector<2x96xf32>
    %42 = arith.addf %41, %40 : vector<2x96xf32>
    %43 = arith.divf %41, %42 : vector<2x96xf32>
    %44 = vector.extract_strided_slice %37 {offsets = [0, 96], sizes = [2, 32], strides = [1, 1]} : vector<2x128xf32> to vector<2x32xf32>
    %45 = math.tanh %44 : vector<2x32xf32>
    %46 = vector.extract_strided_slice %43 {offsets = [0, 32], sizes = [2, 32], strides = [1, 1]} : vector<2x96xf32> to vector<2x32xf32>
    %47 = arith.mulf %46, %30 : vector<2x32xf32>
    %48 = vector.extract_strided_slice %43 {offsets = [0, 0], sizes = [2, 32], strides = [1, 1]} : vector<2x96xf32> to vector<2x32xf32>
    %49 = arith.mulf %48, %45 : vector<2x32xf32>
    %50 = arith.addf %47, %49 : vector<2x32xf32>
    %51 = vector.extract_strided_slice %43 {offsets = [0, 64], sizes = [2, 32], strides = [1, 1]} : vector<2x96xf32> to vector<2x32xf32>
    %52 = math.tanh %50 : vector<2x32xf32>
    %53 = arith.mulf %51, %52 : vector<2x32xf32>
    %54 = vector.extract_strided_slice %8 {offsets = [4, 0], sizes = [2, 128], strides = [1, 1]} : vector<16x128xf32> to vector<2x128xf32>
    %cst_22 = arith.constant dense<0.000000e+00> : vector<2x128xf32>
    %55 = tpu.matmul %53, %9, %cst_22 {dimension_numbers = #tpu.dot_dimension_numbers<[1], [0], [0], [1], [0, 0, 1, 1], [], []>} : vector<2x32xf32>, vector<32x128xf32>, vector<2x128xf32> -> vector<2x128xf32>
    %56 = arith.addf %54, %55 : vector<2x128xf32>
    %57 = arith.addf %56, %6 : vector<2x128xf32>
    %58 = vector.extract_strided_slice %57 {offsets = [0, 0], sizes = [2, 96], strides = [1, 1]} : vector<2x128xf32> to vector<2x96xf32>
    %59 = arith.negf %58 : vector<2x96xf32>
    %60 = math.exp %59 : vector<2x96xf32>
    %cst_23 = arith.constant 1.000000e+00 : f32
    %61 = vector.broadcast %cst_23 : f32 to vector<2x96xf32>
    %62 = arith.addf %61, %60 : vector<2x96xf32>
    %63 = arith.divf %61, %62 : vector<2x96xf32>
    %64 = vector.extract_strided_slice %57 {offsets = [0, 96], sizes = [2, 32], strides = [1, 1]} : vector<2x128xf32> to vector<2x32xf32>
    %65 = math.tanh %64 : vector<2x32xf32>
    %66 = vector.extract_strided_slice %63 {offsets = [0, 32], sizes = [2, 32], strides = [1, 1]} : vector<2x96xf32> to vector<2x32xf32>
    %67 = arith.mulf %66, %50 : vector<2x32xf32>
    %68 = vector.extract_strided_slice %63 {offsets = [0, 0], sizes = [2, 32], strides = [1, 1]} : vector<2x96xf32> to vector<2x32xf32>
    %69 = arith.mulf %68, %65 : vector<2x32xf32>
    %70 = arith.addf %67, %69 : vector<2x32xf32>
    %71 = vector.extract_strided_slice %63 {offsets = [0, 64], sizes = [2, 32], strides = [1, 1]} : vector<2x96xf32> to vector<2x32xf32>
    %72 = math.tanh %70 : vector<2x32xf32>
    %73 = arith.mulf %71, %72 : vector<2x32xf32>
    %74 = vector.extract_strided_slice %8 {offsets = [6, 0], sizes = [2, 128], strides = [1, 1]} : vector<16x128xf32> to vector<2x128xf32>
    %cst_24 = arith.constant dense<0.000000e+00> : vector<2x128xf32>
    %75 = tpu.matmul %73, %9, %cst_24 {dimension_numbers = #tpu.dot_dimension_numbers<[1], [0], [0], [1], [0, 0, 1, 1], [], []>} : vector<2x32xf32>, vector<32x128xf32>, vector<2x128xf32> -> vector<2x128xf32>
    %76 = arith.addf %74, %75 : vector<2x128xf32>
    %77 = arith.addf %76, %6 : vector<2x128xf32>
    %78 = vector.extract_strided_slice %77 {offsets = [0, 0], sizes = [2, 96], strides = [1, 1]} : vector<2x128xf32> to vector<2x96xf32>
    %79 = arith.negf %78 : vector<2x96xf32>
    %80 = math.exp %79 : vector<2x96xf32>
    %cst_25 = arith.constant 1.000000e+00 : f32
    %81 = vector.broadcast %cst_25 : f32 to vector<2x96xf32>
    %82 = arith.addf %81, %80 : vector<2x96xf32>
    %83 = arith.divf %81, %82 : vector<2x96xf32>
    %84 = vector.extract_strided_slice %77 {offsets = [0, 96], sizes = [2, 32], strides = [1, 1]} : vector<2x128xf32> to vector<2x32xf32>
    %85 = math.tanh %84 : vector<2x32xf32>
    %86 = vector.extract_strided_slice %83 {offsets = [0, 32], sizes = [2, 32], strides = [1, 1]} : vector<2x96xf32> to vector<2x32xf32>
    %87 = arith.mulf %86, %70 : vector<2x32xf32>
    %88 = vector.extract_strided_slice %83 {offsets = [0, 0], sizes = [2, 32], strides = [1, 1]} : vector<2x96xf32> to vector<2x32xf32>
    %89 = arith.mulf %88, %85 : vector<2x32xf32>
    %90 = arith.addf %87, %89 : vector<2x32xf32>
    %91 = vector.extract_strided_slice %83 {offsets = [0, 64], sizes = [2, 32], strides = [1, 1]} : vector<2x96xf32> to vector<2x32xf32>
    %92 = math.tanh %90 : vector<2x32xf32>
    %93 = arith.mulf %91, %92 : vector<2x32xf32>
    %94 = vector.extract_strided_slice %8 {offsets = [8, 0], sizes = [2, 128], strides = [1, 1]} : vector<16x128xf32> to vector<2x128xf32>
    %cst_26 = arith.constant dense<0.000000e+00> : vector<2x128xf32>
    %95 = tpu.matmul %93, %9, %cst_26 {dimension_numbers = #tpu.dot_dimension_numbers<[1], [0], [0], [1], [0, 0, 1, 1], [], []>} : vector<2x32xf32>, vector<32x128xf32>, vector<2x128xf32> -> vector<2x128xf32>
    %96 = arith.addf %94, %95 : vector<2x128xf32>
    %97 = arith.addf %96, %6 : vector<2x128xf32>
    %98 = vector.extract_strided_slice %97 {offsets = [0, 0], sizes = [2, 96], strides = [1, 1]} : vector<2x128xf32> to vector<2x96xf32>
    %99 = arith.negf %98 : vector<2x96xf32>
    %100 = math.exp %99 : vector<2x96xf32>
    %cst_27 = arith.constant 1.000000e+00 : f32
    %101 = vector.broadcast %cst_27 : f32 to vector<2x96xf32>
    %102 = arith.addf %101, %100 : vector<2x96xf32>
    %103 = arith.divf %101, %102 : vector<2x96xf32>
    %104 = vector.extract_strided_slice %97 {offsets = [0, 96], sizes = [2, 32], strides = [1, 1]} : vector<2x128xf32> to vector<2x32xf32>
    %105 = math.tanh %104 : vector<2x32xf32>
    %106 = vector.extract_strided_slice %103 {offsets = [0, 32], sizes = [2, 32], strides = [1, 1]} : vector<2x96xf32> to vector<2x32xf32>
    %107 = arith.mulf %106, %90 : vector<2x32xf32>
    %108 = vector.extract_strided_slice %103 {offsets = [0, 0], sizes = [2, 32], strides = [1, 1]} : vector<2x96xf32> to vector<2x32xf32>
    %109 = arith.mulf %108, %105 : vector<2x32xf32>
    %110 = arith.addf %107, %109 : vector<2x32xf32>
    %111 = vector.extract_strided_slice %103 {offsets = [0, 64], sizes = [2, 32], strides = [1, 1]} : vector<2x96xf32> to vector<2x32xf32>
    %112 = math.tanh %110 : vector<2x32xf32>
    %113 = arith.mulf %111, %112 : vector<2x32xf32>
    %114 = vector.extract_strided_slice %8 {offsets = [10, 0], sizes = [2, 128], strides = [1, 1]} : vector<16x128xf32> to vector<2x128xf32>
    %cst_28 = arith.constant dense<0.000000e+00> : vector<2x128xf32>
    %115 = tpu.matmul %113, %9, %cst_28 {dimension_numbers = #tpu.dot_dimension_numbers<[1], [0], [0], [1], [0, 0, 1, 1], [], []>} : vector<2x32xf32>, vector<32x128xf32>, vector<2x128xf32> -> vector<2x128xf32>
    %116 = arith.addf %114, %115 : vector<2x128xf32>
    %117 = arith.addf %116, %6 : vector<2x128xf32>
    %118 = vector.extract_strided_slice %117 {offsets = [0, 0], sizes = [2, 96], strides = [1, 1]} : vector<2x128xf32> to vector<2x96xf32>
    %119 = arith.negf %118 : vector<2x96xf32>
    %120 = math.exp %119 : vector<2x96xf32>
    %cst_29 = arith.constant 1.000000e+00 : f32
    %121 = vector.broadcast %cst_29 : f32 to vector<2x96xf32>
    %122 = arith.addf %121, %120 : vector<2x96xf32>
    %123 = arith.divf %121, %122 : vector<2x96xf32>
    %124 = vector.extract_strided_slice %117 {offsets = [0, 96], sizes = [2, 32], strides = [1, 1]} : vector<2x128xf32> to vector<2x32xf32>
    %125 = math.tanh %124 : vector<2x32xf32>
    %126 = vector.extract_strided_slice %123 {offsets = [0, 32], sizes = [2, 32], strides = [1, 1]} : vector<2x96xf32> to vector<2x32xf32>
    %127 = arith.mulf %126, %110 : vector<2x32xf32>
    %128 = vector.extract_strided_slice %123 {offsets = [0, 0], sizes = [2, 32], strides = [1, 1]} : vector<2x96xf32> to vector<2x32xf32>
    %129 = arith.mulf %128, %125 : vector<2x32xf32>
    %130 = arith.addf %127, %129 : vector<2x32xf32>
    %131 = vector.extract_strided_slice %123 {offsets = [0, 64], sizes = [2, 32], strides = [1, 1]} : vector<2x96xf32> to vector<2x32xf32>
    %132 = math.tanh %130 : vector<2x32xf32>
    %133 = arith.mulf %131, %132 : vector<2x32xf32>
    %134 = vector.extract_strided_slice %8 {offsets = [12, 0], sizes = [2, 128], strides = [1, 1]} : vector<16x128xf32> to vector<2x128xf32>
    %cst_30 = arith.constant dense<0.000000e+00> : vector<2x128xf32>
    %135 = tpu.matmul %133, %9, %cst_30 {dimension_numbers = #tpu.dot_dimension_numbers<[1], [0], [0], [1], [0, 0, 1, 1], [], []>} : vector<2x32xf32>, vector<32x128xf32>, vector<2x128xf32> -> vector<2x128xf32>
    %136 = arith.addf %134, %135 : vector<2x128xf32>
    %137 = arith.addf %136, %6 : vector<2x128xf32>
    %138 = vector.extract_strided_slice %137 {offsets = [0, 0], sizes = [2, 96], strides = [1, 1]} : vector<2x128xf32> to vector<2x96xf32>
    %139 = arith.negf %138 : vector<2x96xf32>
    %140 = math.exp %139 : vector<2x96xf32>
    %cst_31 = arith.constant 1.000000e+00 : f32
    %141 = vector.broadcast %cst_31 : f32 to vector<2x96xf32>
    %142 = arith.addf %141, %140 : vector<2x96xf32>
    %143 = arith.divf %141, %142 : vector<2x96xf32>
    %144 = vector.extract_strided_slice %137 {offsets = [0, 96], sizes = [2, 32], strides = [1, 1]} : vector<2x128xf32> to vector<2x32xf32>
    %145 = math.tanh %144 : vector<2x32xf32>
    %146 = vector.extract_strided_slice %143 {offsets = [0, 32], sizes = [2, 32], strides = [1, 1]} : vector<2x96xf32> to vector<2x32xf32>
    %147 = arith.mulf %146, %130 : vector<2x32xf32>
    %148 = vector.extract_strided_slice %143 {offsets = [0, 0], sizes = [2, 32], strides = [1, 1]} : vector<2x96xf32> to vector<2x32xf32>
    %149 = arith.mulf %148, %145 : vector<2x32xf32>
    %150 = arith.addf %147, %149 : vector<2x32xf32>
    %151 = vector.extract_strided_slice %143 {offsets = [0, 64], sizes = [2, 32], strides = [1, 1]} : vector<2x96xf32> to vector<2x32xf32>
    %152 = math.tanh %150 : vector<2x32xf32>
    %153 = arith.mulf %151, %152 : vector<2x32xf32>
    %154 = vector.extract_strided_slice %8 {offsets = [14, 0], sizes = [2, 128], strides = [1, 1]} : vector<16x128xf32> to vector<2x128xf32>
    %cst_32 = arith.constant dense<0.000000e+00> : vector<2x128xf32>
    %155 = tpu.matmul %153, %9, %cst_32 {dimension_numbers = #tpu.dot_dimension_numbers<[1], [0], [0], [1], [0, 0, 1, 1], [], []>} : vector<2x32xf32>, vector<32x128xf32>, vector<2x128xf32> -> vector<2x128xf32>
    %156 = arith.addf %154, %155 : vector<2x128xf32>
    %157 = arith.addf %156, %6 : vector<2x128xf32>
    %158 = vector.extract_strided_slice %157 {offsets = [0, 0], sizes = [2, 96], strides = [1, 1]} : vector<2x128xf32> to vector<2x96xf32>
    %159 = arith.negf %158 : vector<2x96xf32>
    %160 = math.exp %159 : vector<2x96xf32>
    %cst_33 = arith.constant 1.000000e+00 : f32
    %161 = vector.broadcast %cst_33 : f32 to vector<2x96xf32>
    %162 = arith.addf %161, %160 : vector<2x96xf32>
    %163 = arith.divf %161, %162 : vector<2x96xf32>
    %164 = vector.extract_strided_slice %157 {offsets = [0, 96], sizes = [2, 32], strides = [1, 1]} : vector<2x128xf32> to vector<2x32xf32>
    %165 = math.tanh %164 : vector<2x32xf32>
    %166 = vector.extract_strided_slice %163 {offsets = [0, 32], sizes = [2, 32], strides = [1, 1]} : vector<2x96xf32> to vector<2x32xf32>
    %167 = arith.mulf %166, %150 : vector<2x32xf32>
    %168 = vector.extract_strided_slice %163 {offsets = [0, 0], sizes = [2, 32], strides = [1, 1]} : vector<2x96xf32> to vector<2x32xf32>
    %169 = arith.mulf %168, %165 : vector<2x32xf32>
    %170 = arith.addf %167, %169 : vector<2x32xf32>
    %171 = vector.extract_strided_slice %163 {offsets = [0, 64], sizes = [2, 32], strides = [1, 1]} : vector<2x96xf32> to vector<2x32xf32>
    %172 = math.tanh %170 : vector<2x32xf32>
    %173 = arith.mulf %171, %172 : vector<2x32xf32>
    %c0_34 = arith.constant 0 : index
    %c0_35 = arith.constant 0 : index
    %c0_36 = arith.constant 0 : index
    %174 = vector.load %arg14[%c0_34, %c0_35, %c0_36] : memref<2x2x32xf32, #tpu.memory_space<vmem>>, vector<1x2x32xf32>
    %175 = vector.shape_cast %174 : vector<1x2x32xf32> to vector<2x32xf32>
    %176 = vector.shape_cast %173 : vector<2x32xf32> to vector<1x2x32xf32>
    tpu.vector_store %arg14[%c0_34, %c0_35, %c0_36], %176 {strides = array<i32>} : memref<2x2x32xf32, #tpu.memory_space<vmem>>, vector<1x2x32xf32>,
    %c0_37 = arith.constant 0 : index
    %c0_38 = arith.constant 0 : index
    %c0_39 = arith.constant 0 : index
    %177 = vector.load %arg15[%c0_37, %c0_38, %c0_39] : memref<2x2x32xf32, #tpu.memory_space<vmem>>, vector<1x2x32xf32>
    %178 = vector.shape_cast %177 : vector<1x2x32xf32> to vector<2x32xf32>
    %179 = vector.shape_cast %170 : vector<2x32xf32> to vector<1x2x32xf32>
    tpu.vector_store %arg15[%c0_37, %c0_38, %c0_39], %179 {strides = array<i32>} : memref<2x2x32xf32, #tpu.memory_space<vmem>>, vector<1x2x32xf32>,
    %180 = tpu.concatenate %33, %53, %73, %93, %113, %133, %153, %173 in 0 : vector<2x32xf32>, vector<2x32xf32>, vector<2x32xf32>, vector<2x32xf32>, vector<2x32xf32>, vector<2x32xf32>, vector<2x32xf32>, vector<2x32xf32> -> vector<16x32xf32>
    %c0_40 = arith.constant 0 : index
    %c0_41 = arith.constant 0 : index
    %181 = vector.load %arg6[%c0_40, %c0_41] : memref<32x128xf32, #tpu.memory_space<vmem>>, vector<32x128xf32>
    %cst_42 = arith.constant dense<0.000000e+00> : vector<16x128xf32>
    %182 = tpu.matmul %180, %181, %cst_42 {dimension_numbers = #tpu.dot_dimension_numbers<[1], [0], [0], [1], [0, 0, 1, 1], [], []>} : vector<16x32xf32>, vector<32x128xf32>, vector<16x128xf32> -> vector<16x128xf32>
    %c0_43 = arith.constant 0 : index
    %c0_44 = arith.constant 0 : index
    %183 = vector.load %arg8[%c0_43, %c0_44] : memref<1x128xf32, #tpu.memory_space<vmem>>, vector<1x128xf32>
    %184 = vector.broadcast %183 : vector<1x128xf32> to vector<16x128xf32>
    %185 = arith.addf %182, %184 : vector<16x128xf32>
    %c0_45 = arith.constant 0 : index
    %c0_46 = arith.constant 0 : index
    %186 = vector.load %arg7[%c0_45, %c0_46] : memref<32x128xf32, #tpu.memory_space<vmem>>, vector<32x128xf32>
    %c1 = arith.constant 1 : index
    %c0_47 = arith.constant 0 : index
    %c0_48 = arith.constant 0 : index
    %187 = vector.load %arg11[%c1, %c0_47, %c0_48] : memref<2x2x32xf32, #tpu.memory_space<vmem>>, vector<1x2x32xf32>
    %188 = vector.shape_cast %187 : vector<1x2x32xf32> to vector<2x32xf32>
    %c1_49 = arith.constant 1 : index
    %c0_50 = arith.constant 0 : index
    %c0_51 = arith.constant 0 : index
    %189 = vector.load %arg12[%c1_49, %c0_50, %c0_51] : memref<2x2x32xf32, #tpu.memory_space<vmem>>, vector<1x2x32xf32>
    %190 = vector.shape_cast %189 : vector<1x2x32xf32> to vector<2x32xf32>
    %191 = vector.extract_strided_slice %185 {offsets = [0, 0], sizes = [2, 128], strides = [1, 1]} : vector<16x128xf32> to vector<2x128xf32>
    %cst_52 = arith.constant dense<0.000000e+00> : vector<2x128xf32>
    %192 = tpu.matmul %188, %186, %cst_52 {dimension_numbers = #tpu.dot_dimension_numbers<[1], [0], [0], [1], [0, 0, 1, 1], [], []>} : vector<2x32xf32>, vector<32x128xf32>, vector<2x128xf32> -> vector<2x128xf32>
    %193 = arith.addf %191, %192 : vector<2x128xf32>
    %194 = vector.extract_strided_slice %193 {offsets = [0, 0], sizes = [2, 96], strides = [1, 1]} : vector<2x128xf32> to vector<2x96xf32>
    %195 = arith.negf %194 : vector<2x96xf32>
    %196 = math.exp %195 : vector<2x96xf32>
    %cst_53 = arith.constant 1.000000e+00 : f32
    %197 = vector.broadcast %cst_53 : f32 to vector<2x96xf32>
    %198 = arith.addf %197, %196 : vector<2x96xf32>
    %199 = arith.divf %197, %198 : vector<2x96xf32>
    %200 = vector.extract_strided_slice %193 {offsets = [0, 96], sizes = [2, 32], strides = [1, 1]} : vector<2x128xf32> to vector<2x32xf32>
    %201 = math.tanh %200 : vector<2x32xf32>
    %202 = vector.extract_strided_slice %199 {offsets = [0, 32], sizes = [2, 32], strides = [1, 1]} : vector<2x96xf32> to vector<2x32xf32>
    %203 = arith.mulf %202, %190 : vector<2x32xf32>
    %204 = vector.extract_strided_slice %199 {offsets = [0, 0], sizes = [2, 32], strides = [1, 1]} : vector<2x96xf32> to vector<2x32xf32>
    %205 = arith.mulf %204, %201 : vector<2x32xf32>
    %206 = arith.addf %203, %205 : vector<2x32xf32>
    %207 = vector.extract_strided_slice %199 {offsets = [0, 64], sizes = [2, 32], strides = [1, 1]} : vector<2x96xf32> to vector<2x32xf32>
    %208 = math.tanh %206 : vector<2x32xf32>
    %209 = arith.mulf %207, %208 : vector<2x32xf32>
    %210 = vector.extract_strided_slice %185 {offsets = [2, 0], sizes = [2, 128], strides = [1, 1]} : vector<16x128xf32> to vector<2x128xf32>
    %cst_54 = arith.constant dense<0.000000e+00> : vector<2x128xf32>
    %211 = tpu.matmul %209, %186, %cst_54 {dimension_numbers = #tpu.dot_dimension_numbers<[1], [0], [0], [1], [0, 0, 1, 1], [], []>} : vector<2x32xf32>, vector<32x128xf32>, vector<2x128xf32> -> vector<2x128xf32>
    %212 = arith.addf %210, %211 : vector<2x128xf32>
    %213 = vector.extract_strided_slice %212 {offsets = [0, 0], sizes = [2, 96], strides = [1, 1]} : vector<2x128xf32> to vector<2x96xf32>
    %214 = arith.negf %213 : vector<2x96xf32>
    %215 = math.exp %214 : vector<2x96xf32>
    %cst_55 = arith.constant 1.000000e+00 : f32
    %216 = vector.broadcast %cst_55 : f32 to vector<2x96xf32>
    %217 = arith.addf %216, %215 : vector<2x96xf32>
    %218 = arith.divf %216, %217 : vector<2x96xf32>
    %219 = vector.extract_strided_slice %212 {offsets = [0, 96], sizes = [2, 32], strides = [1, 1]} : vector<2x128xf32> to vector<2x32xf32>
    %220 = math.tanh %219 : vector<2x32xf32>
    %221 = vector.extract_strided_slice %218 {offsets = [0, 32], sizes = [2, 32], strides = [1, 1]} : vector<2x96xf32> to vector<2x32xf32>
    %222 = arith.mulf %221, %206 : vector<2x32xf32>
    %223 = vector.extract_strided_slice %218 {offsets = [0, 0], sizes = [2, 32], strides = [1, 1]} : vector<2x96xf32> to vector<2x32xf32>
    %224 = arith.mulf %223, %220 : vector<2x32xf32>
    %225 = arith.addf %222, %224 : vector<2x32xf32>
    %226 = vector.extract_strided_slice %218 {offsets = [0, 64], sizes = [2, 32], strides = [1, 1]} : vector<2x96xf32> to vector<2x32xf32>
    %227 = math.tanh %225 : vector<2x32xf32>
    %228 = arith.mulf %226, %227 : vector<2x32xf32>
    %229 = vector.extract_strided_slice %185 {offsets = [4, 0], sizes = [2, 128], strides = [1, 1]} : vector<16x128xf32> to vector<2x128xf32>
    %cst_56 = arith.constant dense<0.000000e+00> : vector<2x128xf32>
    %230 = tpu.matmul %228, %186, %cst_56 {dimension_numbers = #tpu.dot_dimension_numbers<[1], [0], [0], [1], [0, 0, 1, 1], [], []>} : vector<2x32xf32>, vector<32x128xf32>, vector<2x128xf32> -> vector<2x128xf32>
    %231 = arith.addf %229, %230 : vector<2x128xf32>
    %232 = vector.extract_strided_slice %231 {offsets = [0, 0], sizes = [2, 96], strides = [1, 1]} : vector<2x128xf32> to vector<2x96xf32>
    %233 = arith.negf %232 : vector<2x96xf32>
    %234 = math.exp %233 : vector<2x96xf32>
    %cst_57 = arith.constant 1.000000e+00 : f32
    %235 = vector.broadcast %cst_57 : f32 to vector<2x96xf32>
    %236 = arith.addf %235, %234 : vector<2x96xf32>
    %237 = arith.divf %235, %236 : vector<2x96xf32>
    %238 = vector.extract_strided_slice %231 {offsets = [0, 96], sizes = [2, 32], strides = [1, 1]} : vector<2x128xf32> to vector<2x32xf32>
    %239 = math.tanh %238 : vector<2x32xf32>
    %240 = vector.extract_strided_slice %237 {offsets = [0, 32], sizes = [2, 32], strides = [1, 1]} : vector<2x96xf32> to vector<2x32xf32>
    %241 = arith.mulf %240, %225 : vector<2x32xf32>
    %242 = vector.extract_strided_slice %237 {offsets = [0, 0], sizes = [2, 32], strides = [1, 1]} : vector<2x96xf32> to vector<2x32xf32>
    %243 = arith.mulf %242, %239 : vector<2x32xf32>
    %244 = arith.addf %241, %243 : vector<2x32xf32>
    %245 = vector.extract_strided_slice %237 {offsets = [0, 64], sizes = [2, 32], strides = [1, 1]} : vector<2x96xf32> to vector<2x32xf32>
    %246 = math.tanh %244 : vector<2x32xf32>
    %247 = arith.mulf %245, %246 : vector<2x32xf32>
    %248 = vector.extract_strided_slice %185 {offsets = [6, 0], sizes = [2, 128], strides = [1, 1]} : vector<16x128xf32> to vector<2x128xf32>
    %cst_58 = arith.constant dense<0.000000e+00> : vector<2x128xf32>
    %249 = tpu.matmul %247, %186, %cst_58 {dimension_numbers = #tpu.dot_dimension_numbers<[1], [0], [0], [1], [0, 0, 1, 1], [], []>} : vector<2x32xf32>, vector<32x128xf32>, vector<2x128xf32> -> vector<2x128xf32>
    %250 = arith.addf %248, %249 : vector<2x128xf32>
    %251 = vector.extract_strided_slice %250 {offsets = [0, 0], sizes = [2, 96], strides = [1, 1]} : vector<2x128xf32> to vector<2x96xf32>
    %252 = arith.negf %251 : vector<2x96xf32>
    %253 = math.exp %252 : vector<2x96xf32>
    %cst_59 = arith.constant 1.000000e+00 : f32
    %254 = vector.broadcast %cst_59 : f32 to vector<2x96xf32>
    %255 = arith.addf %254, %253 : vector<2x96xf32>
    %256 = arith.divf %254, %255 : vector<2x96xf32>
    %257 = vector.extract_strided_slice %250 {offsets = [0, 96], sizes = [2, 32], strides = [1, 1]} : vector<2x128xf32> to vector<2x32xf32>
    %258 = math.tanh %257 : vector<2x32xf32>
    %259 = vector.extract_strided_slice %256 {offsets = [0, 32], sizes = [2, 32], strides = [1, 1]} : vector<2x96xf32> to vector<2x32xf32>
    %260 = arith.mulf %259, %244 : vector<2x32xf32>
    %261 = vector.extract_strided_slice %256 {offsets = [0, 0], sizes = [2, 32], strides = [1, 1]} : vector<2x96xf32> to vector<2x32xf32>
    %262 = arith.mulf %261, %258 : vector<2x32xf32>
    %263 = arith.addf %260, %262 : vector<2x32xf32>
    %264 = vector.extract_strided_slice %256 {offsets = [0, 64], sizes = [2, 32], strides = [1, 1]} : vector<2x96xf32> to vector<2x32xf32>
    %265 = math.tanh %263 : vector<2x32xf32>
    %266 = arith.mulf %264, %265 : vector<2x32xf32>
    %267 = vector.extract_strided_slice %185 {offsets = [8, 0], sizes = [2, 128], strides = [1, 1]} : vector<16x128xf32> to vector<2x128xf32>
    %cst_60 = arith.constant dense<0.000000e+00> : vector<2x128xf32>
    %268 = tpu.matmul %266, %186, %cst_60 {dimension_numbers = #tpu.dot_dimension_numbers<[1], [0], [0], [1], [0, 0, 1, 1], [], []>} : vector<2x32xf32>, vector<32x128xf32>, vector<2x128xf32> -> vector<2x128xf32>
    %269 = arith.addf %267, %268 : vector<2x128xf32>
    %270 = vector.extract_strided_slice %269 {offsets = [0, 0], sizes = [2, 96], strides = [1, 1]} : vector<2x128xf32> to vector<2x96xf32>
    %271 = arith.negf %270 : vector<2x96xf32>
    %272 = math.exp %271 : vector<2x96xf32>
    %cst_61 = arith.constant 1.000000e+00 : f32
    %273 = vector.broadcast %cst_61 : f32 to vector<2x96xf32>
    %274 = arith.addf %273, %272 : vector<2x96xf32>
    %275 = arith.divf %273, %274 : vector<2x96xf32>
    %276 = vector.extract_strided_slice %269 {offsets = [0, 96], sizes = [2, 32], strides = [1, 1]} : vector<2x128xf32> to vector<2x32xf32>
    %277 = math.tanh %276 : vector<2x32xf32>
    %278 = vector.extract_strided_slice %275 {offsets = [0, 32], sizes = [2, 32], strides = [1, 1]} : vector<2x96xf32> to vector<2x32xf32>
    %279 = arith.mulf %278, %263 : vector<2x32xf32>
    %280 = vector.extract_strided_slice %275 {offsets = [0, 0], sizes = [2, 32], strides = [1, 1]} : vector<2x96xf32> to vector<2x32xf32>
    %281 = arith.mulf %280, %277 : vector<2x32xf32>
    %282 = arith.addf %279, %281 : vector<2x32xf32>
    %283 = vector.extract_strided_slice %275 {offsets = [0, 64], sizes = [2, 32], strides = [1, 1]} : vector<2x96xf32> to vector<2x32xf32>
    %284 = math.tanh %282 : vector<2x32xf32>
    %285 = arith.mulf %283, %284 : vector<2x32xf32>
    %286 = vector.extract_strided_slice %185 {offsets = [10, 0], sizes = [2, 128], strides = [1, 1]} : vector<16x128xf32> to vector<2x128xf32>
    %cst_62 = arith.constant dense<0.000000e+00> : vector<2x128xf32>
    %287 = tpu.matmul %285, %186, %cst_62 {dimension_numbers = #tpu.dot_dimension_numbers<[1], [0], [0], [1], [0, 0, 1, 1], [], []>} : vector<2x32xf32>, vector<32x128xf32>, vector<2x128xf32> -> vector<2x128xf32>
    %288 = arith.addf %286, %287 : vector<2x128xf32>
    %289 = vector.extract_strided_slice %288 {offsets = [0, 0], sizes = [2, 96], strides = [1, 1]} : vector<2x128xf32> to vector<2x96xf32>
    %290 = arith.negf %289 : vector<2x96xf32>
    %291 = math.exp %290 : vector<2x96xf32>
    %cst_63 = arith.constant 1.000000e+00 : f32
    %292 = vector.broadcast %cst_63 : f32 to vector<2x96xf32>
    %293 = arith.addf %292, %291 : vector<2x96xf32>
    %294 = arith.divf %292, %293 : vector<2x96xf32>
    %295 = vector.extract_strided_slice %288 {offsets = [0, 96], sizes = [2, 32], strides = [1, 1]} : vector<2x128xf32> to vector<2x32xf32>
    %296 = math.tanh %295 : vector<2x32xf32>
    %297 = vector.extract_strided_slice %294 {offsets = [0, 32], sizes = [2, 32], strides = [1, 1]} : vector<2x96xf32> to vector<2x32xf32>
    %298 = arith.mulf %297, %282 : vector<2x32xf32>
    %299 = vector.extract_strided_slice %294 {offsets = [0, 0], sizes = [2, 32], strides = [1, 1]} : vector<2x96xf32> to vector<2x32xf32>
    %300 = arith.mulf %299, %296 : vector<2x32xf32>
    %301 = arith.addf %298, %300 : vector<2x32xf32>
    %302 = vector.extract_strided_slice %294 {offsets = [0, 64], sizes = [2, 32], strides = [1, 1]} : vector<2x96xf32> to vector<2x32xf32>
    %303 = math.tanh %301 : vector<2x32xf32>
    %304 = arith.mulf %302, %303 : vector<2x32xf32>
    %305 = vector.extract_strided_slice %185 {offsets = [12, 0], sizes = [2, 128], strides = [1, 1]} : vector<16x128xf32> to vector<2x128xf32>
    %cst_64 = arith.constant dense<0.000000e+00> : vector<2x128xf32>
    %306 = tpu.matmul %304, %186, %cst_64 {dimension_numbers = #tpu.dot_dimension_numbers<[1], [0], [0], [1], [0, 0, 1, 1], [], []>} : vector<2x32xf32>, vector<32x128xf32>, vector<2x128xf32> -> vector<2x128xf32>
    %307 = arith.addf %305, %306 : vector<2x128xf32>
    %308 = vector.extract_strided_slice %307 {offsets = [0, 0], sizes = [2, 96], strides = [1, 1]} : vector<2x128xf32> to vector<2x96xf32>
    %309 = arith.negf %308 : vector<2x96xf32>
    %310 = math.exp %309 : vector<2x96xf32>
    %cst_65 = arith.constant 1.000000e+00 : f32
    %311 = vector.broadcast %cst_65 : f32 to vector<2x96xf32>
    %312 = arith.addf %311, %310 : vector<2x96xf32>
    %313 = arith.divf %311, %312 : vector<2x96xf32>
    %314 = vector.extract_strided_slice %307 {offsets = [0, 96], sizes = [2, 32], strides = [1, 1]} : vector<2x128xf32> to vector<2x32xf32>
    %315 = math.tanh %314 : vector<2x32xf32>
    %316 = vector.extract_strided_slice %313 {offsets = [0, 32], sizes = [2, 32], strides = [1, 1]} : vector<2x96xf32> to vector<2x32xf32>
    %317 = arith.mulf %316, %301 : vector<2x32xf32>
    %318 = vector.extract_strided_slice %313 {offsets = [0, 0], sizes = [2, 32], strides = [1, 1]} : vector<2x96xf32> to vector<2x32xf32>
    %319 = arith.mulf %318, %315 : vector<2x32xf32>
    %320 = arith.addf %317, %319 : vector<2x32xf32>
    %321 = vector.extract_strided_slice %313 {offsets = [0, 64], sizes = [2, 32], strides = [1, 1]} : vector<2x96xf32> to vector<2x32xf32>
    %322 = math.tanh %320 : vector<2x32xf32>
    %323 = arith.mulf %321, %322 : vector<2x32xf32>
    %324 = vector.extract_strided_slice %185 {offsets = [14, 0], sizes = [2, 128], strides = [1, 1]} : vector<16x128xf32> to vector<2x128xf32>
    %cst_66 = arith.constant dense<0.000000e+00> : vector<2x128xf32>
    %325 = tpu.matmul %323, %186, %cst_66 {dimension_numbers = #tpu.dot_dimension_numbers<[1], [0], [0], [1], [0, 0, 1, 1], [], []>} : vector<2x32xf32>, vector<32x128xf32>, vector<2x128xf32> -> vector<2x128xf32>
    %326 = arith.addf %324, %325 : vector<2x128xf32>
    %327 = vector.extract_strided_slice %326 {offsets = [0, 0], sizes = [2, 96], strides = [1, 1]} : vector<2x128xf32> to vector<2x96xf32>
    %328 = arith.negf %327 : vector<2x96xf32>
    %329 = math.exp %328 : vector<2x96xf32>
    %cst_67 = arith.constant 1.000000e+00 : f32
    %330 = vector.broadcast %cst_67 : f32 to vector<2x96xf32>
    %331 = arith.addf %330, %329 : vector<2x96xf32>
    %332 = arith.divf %330, %331 : vector<2x96xf32>
    %333 = vector.extract_strided_slice %326 {offsets = [0, 96], sizes = [2, 32], strides = [1, 1]} : vector<2x128xf32> to vector<2x32xf32>
    %334 = math.tanh %333 : vector<2x32xf32>
    %335 = vector.extract_strided_slice %332 {offsets = [0, 32], sizes = [2, 32], strides = [1, 1]} : vector<2x96xf32> to vector<2x32xf32>
    %336 = arith.mulf %335, %320 : vector<2x32xf32>
    %337 = vector.extract_strided_slice %332 {offsets = [0, 0], sizes = [2, 32], strides = [1, 1]} : vector<2x96xf32> to vector<2x32xf32>
    %338 = arith.mulf %337, %334 : vector<2x32xf32>
    %339 = arith.addf %336, %338 : vector<2x32xf32>
    %340 = vector.extract_strided_slice %332 {offsets = [0, 64], sizes = [2, 32], strides = [1, 1]} : vector<2x96xf32> to vector<2x32xf32>
    %341 = math.tanh %339 : vector<2x32xf32>
    %342 = arith.mulf %340, %341 : vector<2x32xf32>
    %c1_68 = arith.constant 1 : index
    %c0_69 = arith.constant 0 : index
    %c0_70 = arith.constant 0 : index
    %343 = vector.load %arg14[%c1_68, %c0_69, %c0_70] : memref<2x2x32xf32, #tpu.memory_space<vmem>>, vector<1x2x32xf32>
    %344 = vector.shape_cast %343 : vector<1x2x32xf32> to vector<2x32xf32>
    %345 = vector.shape_cast %342 : vector<2x32xf32> to vector<1x2x32xf32>
    tpu.vector_store %arg14[%c1_68, %c0_69, %c0_70], %345 {strides = array<i32>} : memref<2x2x32xf32, #tpu.memory_space<vmem>>, vector<1x2x32xf32>,
    %c1_71 = arith.constant 1 : index
    %c0_72 = arith.constant 0 : index
    %c0_73 = arith.constant 0 : index
    %346 = vector.load %arg15[%c1_71, %c0_72, %c0_73] : memref<2x2x32xf32, #tpu.memory_space<vmem>>, vector<1x2x32xf32>
    %347 = vector.shape_cast %346 : vector<1x2x32xf32> to vector<2x32xf32>
    %348 = vector.shape_cast %339 : vector<2x32xf32> to vector<1x2x32xf32>
    tpu.vector_store %arg15[%c1_71, %c0_72, %c0_73], %348 {strides = array<i32>} : memref<2x2x32xf32, #tpu.memory_space<vmem>>, vector<1x2x32xf32>,
    %349 = tpu.concatenate %209, %228, %247, %266, %285, %304, %323, %342 in 0 : vector<2x32xf32>, vector<2x32xf32>, vector<2x32xf32>, vector<2x32xf32>, vector<2x32xf32>, vector<2x32xf32>, vector<2x32xf32>, vector<2x32xf32> -> vector<16x32xf32>
    %c0_74 = arith.constant 0 : index
    %c0_75 = arith.constant 0 : index
    %350 = vector.load %arg9[%c0_74, %c0_75] : memref<32x64xf32, #tpu.memory_space<vmem>>, vector<32x64xf32>
    %cst_76 = arith.constant dense<0.000000e+00> : vector<16x64xf32>
    %351 = tpu.matmul %349, %350, %cst_76 {dimension_numbers = #tpu.dot_dimension_numbers<[1], [0], [0], [1], [0, 0, 1, 1], [], []>} : vector<16x32xf32>, vector<32x64xf32>, vector<16x64xf32> -> vector<16x64xf32>
    %c0_77 = arith.constant 0 : index
    %c0_78 = arith.constant 0 : index
    %352 = vector.load %arg10[%c0_77, %c0_78] : memref<1x64xf32, #tpu.memory_space<vmem>>, vector<1x64xf32>
    %353 = vector.broadcast %352 : vector<1x64xf32> to vector<16x64xf32>
    %354 = arith.addf %351, %353 : vector<16x64xf32>
    %c0_79 = arith.constant 0 : index
    %c0_80 = arith.constant 0 : index
    %355 = vector.load %arg13[%c0_79, %c0_80] : memref<16x64xf32, #tpu.memory_space<vmem>>, vector<16x64xf32>
    tpu.vector_store %arg13[%c0_79, %c0_80], %354 {strides = array<i32>} : memref<16x64xf32, #tpu.memory_space<vmem>>, vector<16x64xf32>,
    return
  }
}

module attributes {stable_mosaic.version = 11 : i64} {
  func.func @_encoder_init_state_kernel(%arg0: memref<16x32xf32, #tpu.memory_space<vmem>>, %arg1: memref<32x64xf32, #tpu.memory_space<vmem>>, %arg2: memref<1x64xf32, #tpu.memory_space<vmem>>, %arg3: memref<32x256xf32, #tpu.memory_space<vmem>>, %arg4: memref<64x256xf32, #tpu.memory_space<vmem>>, %arg5: memref<1x256xf32, #tpu.memory_space<vmem>>, %arg6: memref<64x256xf32, #tpu.memory_space<vmem>>, %arg7: memref<64x256xf32, #tpu.memory_space<vmem>>, %arg8: memref<1x256xf32, #tpu.memory_space<vmem>>, %arg9: memref<64x64xf32, #tpu.memory_space<vmem>>, %arg10: memref<1x64xf32, #tpu.memory_space<vmem>>, %arg11: memref<2x2x32xf32, #tpu.memory_space<vmem>>, %arg12: memref<2x2x32xf32, #tpu.memory_space<vmem>>) attributes {dimension_semantics = [], scalar_prefetch = 0 : i64, scratch_operands = 0 : i64, tpu.core_type = #tpu.core_type<tc>} {
    %c0 = arith.constant 0 : index
    %c0_0 = arith.constant 0 : index
    %0 = vector.load %arg0[%c0, %c0_0] : memref<16x32xf32, #tpu.memory_space<vmem>>, vector<16x32xf32>
    %c0_1 = arith.constant 0 : index
    %c0_2 = arith.constant 0 : index
    %1 = vector.load %arg1[%c0_1, %c0_2] : memref<32x64xf32, #tpu.memory_space<vmem>>, vector<32x64xf32>
    %cst = arith.constant dense<0.000000e+00> : vector<16x64xf32>
    %2 = tpu.matmul %0, %1, %cst {dimension_numbers = #tpu.dot_dimension_numbers<[1], [0], [0], [1], [0, 0, 1, 1], [], []>} : vector<16x32xf32>, vector<32x64xf32>, vector<16x64xf32> -> vector<16x64xf32>
    %c0_3 = arith.constant 0 : index
    %c0_4 = arith.constant 0 : index
    %3 = vector.load %arg2[%c0_3, %c0_4] : memref<1x64xf32, #tpu.memory_space<vmem>>, vector<1x64xf32>
    %4 = vector.broadcast %3 : vector<1x64xf32> to vector<16x64xf32>
    %5 = arith.addf %2, %4 : vector<16x64xf32>
    %6 = vector.extract_strided_slice %5 {offsets = [0, 0], sizes = [16, 32], strides = [1, 1]} : vector<16x64xf32> to vector<16x32xf32>
    %7 = arith.negf %6 : vector<16x32xf32>
    %8 = math.exp %7 : vector<16x32xf32>
    %cst_5 = arith.constant 1.000000e+00 : f32
    %9 = vector.broadcast %cst_5 : f32 to vector<16x32xf32>
    %10 = arith.addf %9, %8 : vector<16x32xf32>
    %11 = arith.divf %9, %10 : vector<16x32xf32>
    %12 = vector.extract_strided_slice %5 {offsets = [0, 32], sizes = [16, 32], strides = [1, 1]} : vector<16x64xf32> to vector<16x32xf32>
    %cst_6 = arith.constant 0.000000e+00 : f32
    %13 = vector.broadcast %cst_6 : f32 to vector<16x32xf32>
    %14 = arith.maximumf %12, %13 : vector<16x32xf32>
    %15 = arith.mulf %11, %14 : vector<16x32xf32>
    %cst_7 = arith.constant 1.000000e+00 : f32
    %16 = vector.broadcast %cst_7 : f32 to vector<16x32xf32>
    %17 = arith.subf %16, %11 : vector<16x32xf32>
    %18 = arith.mulf %17, %0 : vector<16x32xf32>
    %19 = arith.addf %15, %18 : vector<16x32xf32>
    %c0_8 = arith.constant 0 : index
    %c0_9 = arith.constant 0 : index
    %20 = vector.load %arg3[%c0_8, %c0_9] : memref<32x256xf32, #tpu.memory_space<vmem>>, vector<32x256xf32>
    %cst_10 = arith.constant dense<0.000000e+00> : vector<16x256xf32>
    %21 = tpu.matmul %19, %20, %cst_10 {dimension_numbers = #tpu.dot_dimension_numbers<[1], [0], [0], [1], [0, 0, 1, 1], [], []>} : vector<16x32xf32>, vector<32x256xf32>, vector<16x256xf32> -> vector<16x256xf32>
    %c0_11 = arith.constant 0 : index
    %c0_12 = arith.constant 0 : index
    %22 = vector.load %arg5[%c0_11, %c0_12] : memref<1x256xf32, #tpu.memory_space<vmem>>, vector<1x256xf32>
    %23 = vector.broadcast %22 : vector<1x256xf32> to vector<16x256xf32>
    %24 = arith.addf %21, %23 : vector<16x256xf32>
    %c0_13 = arith.constant 0 : index
    %c0_14 = arith.constant 0 : index
    %25 = vector.load %arg4[%c0_13, %c0_14] : memref<64x256xf32, #tpu.memory_space<vmem>>, vector<64x256xf32>
    %cst_15 = arith.constant 0.000000e+00 : f32
    %26 = vector.broadcast %cst_15 : f32 to vector<2x32xf32>
    %27 = tpu.concatenate %26, %26 in 1 : vector<2x32xf32>, vector<2x32xf32> -> vector<2x64xf32>
    %cst_16 = arith.constant dense<0.000000e+00> : vector<2x256xf32>
    %28 = tpu.matmul %27, %25, %cst_16 {dimension_numbers = #tpu.dot_dimension_numbers<[1], [0], [0], [1], [0, 0, 1, 1], [], []>} : vector<2x64xf32>, vector<64x256xf32>, vector<2x256xf32> -> vector<2x256xf32>
    %29 = vector.extract_strided_slice %24 {offsets = [0, 0], sizes = [2, 128], strides = [1, 1]} : vector<16x256xf32> to vector<2x128xf32>
    %30 = vector.extract_strided_slice %28 {offsets = [0, 0], sizes = [2, 128], strides = [1, 1]} : vector<2x256xf32> to vector<2x128xf32>
    %31 = arith.addf %29, %30 : vector<2x128xf32>
    %32 = vector.extract_strided_slice %24 {offsets = [14, 128], sizes = [2, 128], strides = [1, 1]} : vector<16x256xf32> to vector<2x128xf32>
    %33 = vector.extract_strided_slice %28 {offsets = [0, 128], sizes = [2, 128], strides = [1, 1]} : vector<2x256xf32> to vector<2x128xf32>
    %34 = arith.addf %32, %33 : vector<2x128xf32>
    %35 = vector.extract_strided_slice %31 {offsets = [0, 0], sizes = [2, 96], strides = [1, 1]} : vector<2x128xf32> to vector<2x96xf32>
    %36 = arith.negf %35 : vector<2x96xf32>
    %37 = math.exp %36 : vector<2x96xf32>
    %cst_17 = arith.constant 1.000000e+00 : f32
    %38 = vector.broadcast %cst_17 : f32 to vector<2x96xf32>
    %39 = arith.addf %38, %37 : vector<2x96xf32>
    %40 = arith.divf %38, %39 : vector<2x96xf32>
    %41 = vector.extract_strided_slice %31 {offsets = [0, 96], sizes = [2, 32], strides = [1, 1]} : vector<2x128xf32> to vector<2x32xf32>
    %42 = math.tanh %41 : vector<2x32xf32>
    %43 = vector.extract_strided_slice %34 {offsets = [0, 0], sizes = [2, 96], strides = [1, 1]} : vector<2x128xf32> to vector<2x96xf32>
    %44 = arith.negf %43 : vector<2x96xf32>
    %45 = math.exp %44 : vector<2x96xf32>
    %cst_18 = arith.constant 1.000000e+00 : f32
    %46 = vector.broadcast %cst_18 : f32 to vector<2x96xf32>
    %47 = arith.addf %46, %45 : vector<2x96xf32>
    %48 = arith.divf %46, %47 : vector<2x96xf32>
    %49 = vector.extract_strided_slice %34 {offsets = [0, 96], sizes = [2, 32], strides = [1, 1]} : vector<2x128xf32> to vector<2x32xf32>
    %50 = math.tanh %49 : vector<2x32xf32>
    %51 = vector.extract_strided_slice %40 {offsets = [0, 32], sizes = [2, 32], strides = [1, 1]} : vector<2x96xf32> to vector<2x32xf32>
    %52 = arith.mulf %51, %26 : vector<2x32xf32>
    %53 = vector.extract_strided_slice %40 {offsets = [0, 0], sizes = [2, 32], strides = [1, 1]} : vector<2x96xf32> to vector<2x32xf32>
    %54 = arith.mulf %53, %42 : vector<2x32xf32>
    %55 = arith.addf %52, %54 : vector<2x32xf32>
    %56 = vector.extract_strided_slice %48 {offsets = [0, 32], sizes = [2, 32], strides = [1, 1]} : vector<2x96xf32> to vector<2x32xf32>
    %57 = arith.mulf %56, %26 : vector<2x32xf32>
    %58 = vector.extract_strided_slice %48 {offsets = [0, 0], sizes = [2, 32], strides = [1, 1]} : vector<2x96xf32> to vector<2x32xf32>
    %59 = arith.mulf %58, %50 : vector<2x32xf32>
    %60 = arith.addf %57, %59 : vector<2x32xf32>
    %61 = vector.extract_strided_slice %40 {offsets = [0, 64], sizes = [2, 32], strides = [1, 1]} : vector<2x96xf32> to vector<2x32xf32>
    %62 = math.tanh %55 : vector<2x32xf32>
    %63 = arith.mulf %61, %62 : vector<2x32xf32>
    %64 = vector.extract_strided_slice %48 {offsets = [0, 64], sizes = [2, 32], strides = [1, 1]} : vector<2x96xf32> to vector<2x32xf32>
    %65 = math.tanh %60 : vector<2x32xf32>
    %66 = arith.mulf %64, %65 : vector<2x32xf32>
    %67 = tpu.concatenate %63, %66 in 1 : vector<2x32xf32>, vector<2x32xf32> -> vector<2x64xf32>
    %cst_19 = arith.constant dense<0.000000e+00> : vector<2x256xf32>
    %68 = tpu.matmul %67, %25, %cst_19 {dimension_numbers = #tpu.dot_dimension_numbers<[1], [0], [0], [1], [0, 0, 1, 1], [], []>} : vector<2x64xf32>, vector<64x256xf32>, vector<2x256xf32> -> vector<2x256xf32>
    %69 = vector.extract_strided_slice %24 {offsets = [2, 0], sizes = [2, 128], strides = [1, 1]} : vector<16x256xf32> to vector<2x128xf32>
    %70 = vector.extract_strided_slice %68 {offsets = [0, 0], sizes = [2, 128], strides = [1, 1]} : vector<2x256xf32> to vector<2x128xf32>
    %71 = arith.addf %69, %70 : vector<2x128xf32>
    %72 = vector.extract_strided_slice %24 {offsets = [12, 128], sizes = [2, 128], strides = [1, 1]} : vector<16x256xf32> to vector<2x128xf32>
    %73 = vector.extract_strided_slice %68 {offsets = [0, 128], sizes = [2, 128], strides = [1, 1]} : vector<2x256xf32> to vector<2x128xf32>
    %74 = arith.addf %72, %73 : vector<2x128xf32>
    %75 = vector.extract_strided_slice %71 {offsets = [0, 0], sizes = [2, 96], strides = [1, 1]} : vector<2x128xf32> to vector<2x96xf32>
    %76 = arith.negf %75 : vector<2x96xf32>
    %77 = math.exp %76 : vector<2x96xf32>
    %cst_20 = arith.constant 1.000000e+00 : f32
    %78 = vector.broadcast %cst_20 : f32 to vector<2x96xf32>
    %79 = arith.addf %78, %77 : vector<2x96xf32>
    %80 = arith.divf %78, %79 : vector<2x96xf32>
    %81 = vector.extract_strided_slice %71 {offsets = [0, 96], sizes = [2, 32], strides = [1, 1]} : vector<2x128xf32> to vector<2x32xf32>
    %82 = math.tanh %81 : vector<2x32xf32>
    %83 = vector.extract_strided_slice %74 {offsets = [0, 0], sizes = [2, 96], strides = [1, 1]} : vector<2x128xf32> to vector<2x96xf32>
    %84 = arith.negf %83 : vector<2x96xf32>
    %85 = math.exp %84 : vector<2x96xf32>
    %cst_21 = arith.constant 1.000000e+00 : f32
    %86 = vector.broadcast %cst_21 : f32 to vector<2x96xf32>
    %87 = arith.addf %86, %85 : vector<2x96xf32>
    %88 = arith.divf %86, %87 : vector<2x96xf32>
    %89 = vector.extract_strided_slice %74 {offsets = [0, 96], sizes = [2, 32], strides = [1, 1]} : vector<2x128xf32> to vector<2x32xf32>
    %90 = math.tanh %89 : vector<2x32xf32>
    %91 = vector.extract_strided_slice %80 {offsets = [0, 32], sizes = [2, 32], strides = [1, 1]} : vector<2x96xf32> to vector<2x32xf32>
    %92 = arith.mulf %91, %55 : vector<2x32xf32>
    %93 = vector.extract_strided_slice %80 {offsets = [0, 0], sizes = [2, 32], strides = [1, 1]} : vector<2x96xf32> to vector<2x32xf32>
    %94 = arith.mulf %93, %82 : vector<2x32xf32>
    %95 = arith.addf %92, %94 : vector<2x32xf32>
    %96 = vector.extract_strided_slice %88 {offsets = [0, 32], sizes = [2, 32], strides = [1, 1]} : vector<2x96xf32> to vector<2x32xf32>
    %97 = arith.mulf %96, %60 : vector<2x32xf32>
    %98 = vector.extract_strided_slice %88 {offsets = [0, 0], sizes = [2, 32], strides = [1, 1]} : vector<2x96xf32> to vector<2x32xf32>
    %99 = arith.mulf %98, %90 : vector<2x32xf32>
    %100 = arith.addf %97, %99 : vector<2x32xf32>
    %101 = vector.extract_strided_slice %80 {offsets = [0, 64], sizes = [2, 32], strides = [1, 1]} : vector<2x96xf32> to vector<2x32xf32>
    %102 = math.tanh %95 : vector<2x32xf32>
    %103 = arith.mulf %101, %102 : vector<2x32xf32>
    %104 = vector.extract_strided_slice %88 {offsets = [0, 64], sizes = [2, 32], strides = [1, 1]} : vector<2x96xf32> to vector<2x32xf32>
    %105 = math.tanh %100 : vector<2x32xf32>
    %106 = arith.mulf %104, %105 : vector<2x32xf32>
    %107 = tpu.concatenate %103, %106 in 1 : vector<2x32xf32>, vector<2x32xf32> -> vector<2x64xf32>
    %cst_22 = arith.constant dense<0.000000e+00> : vector<2x256xf32>
    %108 = tpu.matmul %107, %25, %cst_22 {dimension_numbers = #tpu.dot_dimension_numbers<[1], [0], [0], [1], [0, 0, 1, 1], [], []>} : vector<2x64xf32>, vector<64x256xf32>, vector<2x256xf32> -> vector<2x256xf32>
    %109 = vector.extract_strided_slice %24 {offsets = [4, 0], sizes = [2, 128], strides = [1, 1]} : vector<16x256xf32> to vector<2x128xf32>
    %110 = vector.extract_strided_slice %108 {offsets = [0, 0], sizes = [2, 128], strides = [1, 1]} : vector<2x256xf32> to vector<2x128xf32>
    %111 = arith.addf %109, %110 : vector<2x128xf32>
    %112 = vector.extract_strided_slice %24 {offsets = [10, 128], sizes = [2, 128], strides = [1, 1]} : vector<16x256xf32> to vector<2x128xf32>
    %113 = vector.extract_strided_slice %108 {offsets = [0, 128], sizes = [2, 128], strides = [1, 1]} : vector<2x256xf32> to vector<2x128xf32>
    %114 = arith.addf %112, %113 : vector<2x128xf32>
    %115 = vector.extract_strided_slice %111 {offsets = [0, 0], sizes = [2, 96], strides = [1, 1]} : vector<2x128xf32> to vector<2x96xf32>
    %116 = arith.negf %115 : vector<2x96xf32>
    %117 = math.exp %116 : vector<2x96xf32>
    %cst_23 = arith.constant 1.000000e+00 : f32
    %118 = vector.broadcast %cst_23 : f32 to vector<2x96xf32>
    %119 = arith.addf %118, %117 : vector<2x96xf32>
    %120 = arith.divf %118, %119 : vector<2x96xf32>
    %121 = vector.extract_strided_slice %111 {offsets = [0, 96], sizes = [2, 32], strides = [1, 1]} : vector<2x128xf32> to vector<2x32xf32>
    %122 = math.tanh %121 : vector<2x32xf32>
    %123 = vector.extract_strided_slice %114 {offsets = [0, 0], sizes = [2, 96], strides = [1, 1]} : vector<2x128xf32> to vector<2x96xf32>
    %124 = arith.negf %123 : vector<2x96xf32>
    %125 = math.exp %124 : vector<2x96xf32>
    %cst_24 = arith.constant 1.000000e+00 : f32
    %126 = vector.broadcast %cst_24 : f32 to vector<2x96xf32>
    %127 = arith.addf %126, %125 : vector<2x96xf32>
    %128 = arith.divf %126, %127 : vector<2x96xf32>
    %129 = vector.extract_strided_slice %114 {offsets = [0, 96], sizes = [2, 32], strides = [1, 1]} : vector<2x128xf32> to vector<2x32xf32>
    %130 = math.tanh %129 : vector<2x32xf32>
    %131 = vector.extract_strided_slice %120 {offsets = [0, 32], sizes = [2, 32], strides = [1, 1]} : vector<2x96xf32> to vector<2x32xf32>
    %132 = arith.mulf %131, %95 : vector<2x32xf32>
    %133 = vector.extract_strided_slice %120 {offsets = [0, 0], sizes = [2, 32], strides = [1, 1]} : vector<2x96xf32> to vector<2x32xf32>
    %134 = arith.mulf %133, %122 : vector<2x32xf32>
    %135 = arith.addf %132, %134 : vector<2x32xf32>
    %136 = vector.extract_strided_slice %128 {offsets = [0, 32], sizes = [2, 32], strides = [1, 1]} : vector<2x96xf32> to vector<2x32xf32>
    %137 = arith.mulf %136, %100 : vector<2x32xf32>
    %138 = vector.extract_strided_slice %128 {offsets = [0, 0], sizes = [2, 32], strides = [1, 1]} : vector<2x96xf32> to vector<2x32xf32>
    %139 = arith.mulf %138, %130 : vector<2x32xf32>
    %140 = arith.addf %137, %139 : vector<2x32xf32>
    %141 = vector.extract_strided_slice %120 {offsets = [0, 64], sizes = [2, 32], strides = [1, 1]} : vector<2x96xf32> to vector<2x32xf32>
    %142 = math.tanh %135 : vector<2x32xf32>
    %143 = arith.mulf %141, %142 : vector<2x32xf32>
    %144 = vector.extract_strided_slice %128 {offsets = [0, 64], sizes = [2, 32], strides = [1, 1]} : vector<2x96xf32> to vector<2x32xf32>
    %145 = math.tanh %140 : vector<2x32xf32>
    %146 = arith.mulf %144, %145 : vector<2x32xf32>
    %147 = tpu.concatenate %143, %146 in 1 : vector<2x32xf32>, vector<2x32xf32> -> vector<2x64xf32>
    %cst_25 = arith.constant dense<0.000000e+00> : vector<2x256xf32>
    %148 = tpu.matmul %147, %25, %cst_25 {dimension_numbers = #tpu.dot_dimension_numbers<[1], [0], [0], [1], [0, 0, 1, 1], [], []>} : vector<2x64xf32>, vector<64x256xf32>, vector<2x256xf32> -> vector<2x256xf32>
    %149 = vector.extract_strided_slice %24 {offsets = [6, 0], sizes = [2, 128], strides = [1, 1]} : vector<16x256xf32> to vector<2x128xf32>
    %150 = vector.extract_strided_slice %148 {offsets = [0, 0], sizes = [2, 128], strides = [1, 1]} : vector<2x256xf32> to vector<2x128xf32>
    %151 = arith.addf %149, %150 : vector<2x128xf32>
    %152 = vector.extract_strided_slice %24 {offsets = [8, 128], sizes = [2, 128], strides = [1, 1]} : vector<16x256xf32> to vector<2x128xf32>
    %153 = vector.extract_strided_slice %148 {offsets = [0, 128], sizes = [2, 128], strides = [1, 1]} : vector<2x256xf32> to vector<2x128xf32>
    %154 = arith.addf %152, %153 : vector<2x128xf32>
    %155 = vector.extract_strided_slice %151 {offsets = [0, 0], sizes = [2, 96], strides = [1, 1]} : vector<2x128xf32> to vector<2x96xf32>
    %156 = arith.negf %155 : vector<2x96xf32>
    %157 = math.exp %156 : vector<2x96xf32>
    %cst_26 = arith.constant 1.000000e+00 : f32
    %158 = vector.broadcast %cst_26 : f32 to vector<2x96xf32>
    %159 = arith.addf %158, %157 : vector<2x96xf32>
    %160 = arith.divf %158, %159 : vector<2x96xf32>
    %161 = vector.extract_strided_slice %151 {offsets = [0, 96], sizes = [2, 32], strides = [1, 1]} : vector<2x128xf32> to vector<2x32xf32>
    %162 = math.tanh %161 : vector<2x32xf32>
    %163 = vector.extract_strided_slice %154 {offsets = [0, 0], sizes = [2, 96], strides = [1, 1]} : vector<2x128xf32> to vector<2x96xf32>
    %164 = arith.negf %163 : vector<2x96xf32>
    %165 = math.exp %164 : vector<2x96xf32>
    %cst_27 = arith.constant 1.000000e+00 : f32
    %166 = vector.broadcast %cst_27 : f32 to vector<2x96xf32>
    %167 = arith.addf %166, %165 : vector<2x96xf32>
    %168 = arith.divf %166, %167 : vector<2x96xf32>
    %169 = vector.extract_strided_slice %154 {offsets = [0, 96], sizes = [2, 32], strides = [1, 1]} : vector<2x128xf32> to vector<2x32xf32>
    %170 = math.tanh %169 : vector<2x32xf32>
    %171 = vector.extract_strided_slice %160 {offsets = [0, 32], sizes = [2, 32], strides = [1, 1]} : vector<2x96xf32> to vector<2x32xf32>
    %172 = arith.mulf %171, %135 : vector<2x32xf32>
    %173 = vector.extract_strided_slice %160 {offsets = [0, 0], sizes = [2, 32], strides = [1, 1]} : vector<2x96xf32> to vector<2x32xf32>
    %174 = arith.mulf %173, %162 : vector<2x32xf32>
    %175 = arith.addf %172, %174 : vector<2x32xf32>
    %176 = vector.extract_strided_slice %168 {offsets = [0, 32], sizes = [2, 32], strides = [1, 1]} : vector<2x96xf32> to vector<2x32xf32>
    %177 = arith.mulf %176, %140 : vector<2x32xf32>
    %178 = vector.extract_strided_slice %168 {offsets = [0, 0], sizes = [2, 32], strides = [1, 1]} : vector<2x96xf32> to vector<2x32xf32>
    %179 = arith.mulf %178, %170 : vector<2x32xf32>
    %180 = arith.addf %177, %179 : vector<2x32xf32>
    %181 = vector.extract_strided_slice %160 {offsets = [0, 64], sizes = [2, 32], strides = [1, 1]} : vector<2x96xf32> to vector<2x32xf32>
    %182 = math.tanh %175 : vector<2x32xf32>
    %183 = arith.mulf %181, %182 : vector<2x32xf32>
    %184 = vector.extract_strided_slice %168 {offsets = [0, 64], sizes = [2, 32], strides = [1, 1]} : vector<2x96xf32> to vector<2x32xf32>
    %185 = math.tanh %180 : vector<2x32xf32>
    %186 = arith.mulf %184, %185 : vector<2x32xf32>
    %187 = tpu.concatenate %183, %186 in 1 : vector<2x32xf32>, vector<2x32xf32> -> vector<2x64xf32>
    %cst_28 = arith.constant dense<0.000000e+00> : vector<2x256xf32>
    %188 = tpu.matmul %187, %25, %cst_28 {dimension_numbers = #tpu.dot_dimension_numbers<[1], [0], [0], [1], [0, 0, 1, 1], [], []>} : vector<2x64xf32>, vector<64x256xf32>, vector<2x256xf32> -> vector<2x256xf32>
    %189 = vector.extract_strided_slice %24 {offsets = [8, 0], sizes = [2, 128], strides = [1, 1]} : vector<16x256xf32> to vector<2x128xf32>
    %190 = vector.extract_strided_slice %188 {offsets = [0, 0], sizes = [2, 128], strides = [1, 1]} : vector<2x256xf32> to vector<2x128xf32>
    %191 = arith.addf %189, %190 : vector<2x128xf32>
    %192 = vector.extract_strided_slice %24 {offsets = [6, 128], sizes = [2, 128], strides = [1, 1]} : vector<16x256xf32> to vector<2x128xf32>
    %193 = vector.extract_strided_slice %188 {offsets = [0, 128], sizes = [2, 128], strides = [1, 1]} : vector<2x256xf32> to vector<2x128xf32>
    %194 = arith.addf %192, %193 : vector<2x128xf32>
    %195 = vector.extract_strided_slice %191 {offsets = [0, 0], sizes = [2, 96], strides = [1, 1]} : vector<2x128xf32> to vector<2x96xf32>
    %196 = arith.negf %195 : vector<2x96xf32>
    %197 = math.exp %196 : vector<2x96xf32>
    %cst_29 = arith.constant 1.000000e+00 : f32
    %198 = vector.broadcast %cst_29 : f32 to vector<2x96xf32>
    %199 = arith.addf %198, %197 : vector<2x96xf32>
    %200 = arith.divf %198, %199 : vector<2x96xf32>
    %201 = vector.extract_strided_slice %191 {offsets = [0, 96], sizes = [2, 32], strides = [1, 1]} : vector<2x128xf32> to vector<2x32xf32>
    %202 = math.tanh %201 : vector<2x32xf32>
    %203 = vector.extract_strided_slice %194 {offsets = [0, 0], sizes = [2, 96], strides = [1, 1]} : vector<2x128xf32> to vector<2x96xf32>
    %204 = arith.negf %203 : vector<2x96xf32>
    %205 = math.exp %204 : vector<2x96xf32>
    %cst_30 = arith.constant 1.000000e+00 : f32
    %206 = vector.broadcast %cst_30 : f32 to vector<2x96xf32>
    %207 = arith.addf %206, %205 : vector<2x96xf32>
    %208 = arith.divf %206, %207 : vector<2x96xf32>
    %209 = vector.extract_strided_slice %194 {offsets = [0, 96], sizes = [2, 32], strides = [1, 1]} : vector<2x128xf32> to vector<2x32xf32>
    %210 = math.tanh %209 : vector<2x32xf32>
    %211 = vector.extract_strided_slice %200 {offsets = [0, 32], sizes = [2, 32], strides = [1, 1]} : vector<2x96xf32> to vector<2x32xf32>
    %212 = arith.mulf %211, %175 : vector<2x32xf32>
    %213 = vector.extract_strided_slice %200 {offsets = [0, 0], sizes = [2, 32], strides = [1, 1]} : vector<2x96xf32> to vector<2x32xf32>
    %214 = arith.mulf %213, %202 : vector<2x32xf32>
    %215 = arith.addf %212, %214 : vector<2x32xf32>
    %216 = vector.extract_strided_slice %208 {offsets = [0, 32], sizes = [2, 32], strides = [1, 1]} : vector<2x96xf32> to vector<2x32xf32>
    %217 = arith.mulf %216, %180 : vector<2x32xf32>
    %218 = vector.extract_strided_slice %208 {offsets = [0, 0], sizes = [2, 32], strides = [1, 1]} : vector<2x96xf32> to vector<2x32xf32>
    %219 = arith.mulf %218, %210 : vector<2x32xf32>
    %220 = arith.addf %217, %219 : vector<2x32xf32>
    %221 = vector.extract_strided_slice %200 {offsets = [0, 64], sizes = [2, 32], strides = [1, 1]} : vector<2x96xf32> to vector<2x32xf32>
    %222 = math.tanh %215 : vector<2x32xf32>
    %223 = arith.mulf %221, %222 : vector<2x32xf32>
    %224 = vector.extract_strided_slice %208 {offsets = [0, 64], sizes = [2, 32], strides = [1, 1]} : vector<2x96xf32> to vector<2x32xf32>
    %225 = math.tanh %220 : vector<2x32xf32>
    %226 = arith.mulf %224, %225 : vector<2x32xf32>
    %227 = tpu.concatenate %223, %226 in 1 : vector<2x32xf32>, vector<2x32xf32> -> vector<2x64xf32>
    %cst_31 = arith.constant dense<0.000000e+00> : vector<2x256xf32>
    %228 = tpu.matmul %227, %25, %cst_31 {dimension_numbers = #tpu.dot_dimension_numbers<[1], [0], [0], [1], [0, 0, 1, 1], [], []>} : vector<2x64xf32>, vector<64x256xf32>, vector<2x256xf32> -> vector<2x256xf32>
    %229 = vector.extract_strided_slice %24 {offsets = [10, 0], sizes = [2, 128], strides = [1, 1]} : vector<16x256xf32> to vector<2x128xf32>
    %230 = vector.extract_strided_slice %228 {offsets = [0, 0], sizes = [2, 128], strides = [1, 1]} : vector<2x256xf32> to vector<2x128xf32>
    %231 = arith.addf %229, %230 : vector<2x128xf32>
    %232 = vector.extract_strided_slice %24 {offsets = [4, 128], sizes = [2, 128], strides = [1, 1]} : vector<16x256xf32> to vector<2x128xf32>
    %233 = vector.extract_strided_slice %228 {offsets = [0, 128], sizes = [2, 128], strides = [1, 1]} : vector<2x256xf32> to vector<2x128xf32>
    %234 = arith.addf %232, %233 : vector<2x128xf32>
    %235 = vector.extract_strided_slice %231 {offsets = [0, 0], sizes = [2, 96], strides = [1, 1]} : vector<2x128xf32> to vector<2x96xf32>
    %236 = arith.negf %235 : vector<2x96xf32>
    %237 = math.exp %236 : vector<2x96xf32>
    %cst_32 = arith.constant 1.000000e+00 : f32
    %238 = vector.broadcast %cst_32 : f32 to vector<2x96xf32>
    %239 = arith.addf %238, %237 : vector<2x96xf32>
    %240 = arith.divf %238, %239 : vector<2x96xf32>
    %241 = vector.extract_strided_slice %231 {offsets = [0, 96], sizes = [2, 32], strides = [1, 1]} : vector<2x128xf32> to vector<2x32xf32>
    %242 = math.tanh %241 : vector<2x32xf32>
    %243 = vector.extract_strided_slice %234 {offsets = [0, 0], sizes = [2, 96], strides = [1, 1]} : vector<2x128xf32> to vector<2x96xf32>
    %244 = arith.negf %243 : vector<2x96xf32>
    %245 = math.exp %244 : vector<2x96xf32>
    %cst_33 = arith.constant 1.000000e+00 : f32
    %246 = vector.broadcast %cst_33 : f32 to vector<2x96xf32>
    %247 = arith.addf %246, %245 : vector<2x96xf32>
    %248 = arith.divf %246, %247 : vector<2x96xf32>
    %249 = vector.extract_strided_slice %234 {offsets = [0, 96], sizes = [2, 32], strides = [1, 1]} : vector<2x128xf32> to vector<2x32xf32>
    %250 = math.tanh %249 : vector<2x32xf32>
    %251 = vector.extract_strided_slice %240 {offsets = [0, 32], sizes = [2, 32], strides = [1, 1]} : vector<2x96xf32> to vector<2x32xf32>
    %252 = arith.mulf %251, %215 : vector<2x32xf32>
    %253 = vector.extract_strided_slice %240 {offsets = [0, 0], sizes = [2, 32], strides = [1, 1]} : vector<2x96xf32> to vector<2x32xf32>
    %254 = arith.mulf %253, %242 : vector<2x32xf32>
    %255 = arith.addf %252, %254 : vector<2x32xf32>
    %256 = vector.extract_strided_slice %248 {offsets = [0, 32], sizes = [2, 32], strides = [1, 1]} : vector<2x96xf32> to vector<2x32xf32>
    %257 = arith.mulf %256, %220 : vector<2x32xf32>
    %258 = vector.extract_strided_slice %248 {offsets = [0, 0], sizes = [2, 32], strides = [1, 1]} : vector<2x96xf32> to vector<2x32xf32>
    %259 = arith.mulf %258, %250 : vector<2x32xf32>
    %260 = arith.addf %257, %259 : vector<2x32xf32>
    %261 = vector.extract_strided_slice %240 {offsets = [0, 64], sizes = [2, 32], strides = [1, 1]} : vector<2x96xf32> to vector<2x32xf32>
    %262 = math.tanh %255 : vector<2x32xf32>
    %263 = arith.mulf %261, %262 : vector<2x32xf32>
    %264 = vector.extract_strided_slice %248 {offsets = [0, 64], sizes = [2, 32], strides = [1, 1]} : vector<2x96xf32> to vector<2x32xf32>
    %265 = math.tanh %260 : vector<2x32xf32>
    %266 = arith.mulf %264, %265 : vector<2x32xf32>
    %267 = tpu.concatenate %263, %266 in 1 : vector<2x32xf32>, vector<2x32xf32> -> vector<2x64xf32>
    %cst_34 = arith.constant dense<0.000000e+00> : vector<2x256xf32>
    %268 = tpu.matmul %267, %25, %cst_34 {dimension_numbers = #tpu.dot_dimension_numbers<[1], [0], [0], [1], [0, 0, 1, 1], [], []>} : vector<2x64xf32>, vector<64x256xf32>, vector<2x256xf32> -> vector<2x256xf32>
    %269 = vector.extract_strided_slice %24 {offsets = [12, 0], sizes = [2, 128], strides = [1, 1]} : vector<16x256xf32> to vector<2x128xf32>
    %270 = vector.extract_strided_slice %268 {offsets = [0, 0], sizes = [2, 128], strides = [1, 1]} : vector<2x256xf32> to vector<2x128xf32>
    %271 = arith.addf %269, %270 : vector<2x128xf32>
    %272 = vector.extract_strided_slice %24 {offsets = [2, 128], sizes = [2, 128], strides = [1, 1]} : vector<16x256xf32> to vector<2x128xf32>
    %273 = vector.extract_strided_slice %268 {offsets = [0, 128], sizes = [2, 128], strides = [1, 1]} : vector<2x256xf32> to vector<2x128xf32>
    %274 = arith.addf %272, %273 : vector<2x128xf32>
    %275 = vector.extract_strided_slice %271 {offsets = [0, 0], sizes = [2, 96], strides = [1, 1]} : vector<2x128xf32> to vector<2x96xf32>
    %276 = arith.negf %275 : vector<2x96xf32>
    %277 = math.exp %276 : vector<2x96xf32>
    %cst_35 = arith.constant 1.000000e+00 : f32
    %278 = vector.broadcast %cst_35 : f32 to vector<2x96xf32>
    %279 = arith.addf %278, %277 : vector<2x96xf32>
    %280 = arith.divf %278, %279 : vector<2x96xf32>
    %281 = vector.extract_strided_slice %271 {offsets = [0, 96], sizes = [2, 32], strides = [1, 1]} : vector<2x128xf32> to vector<2x32xf32>
    %282 = math.tanh %281 : vector<2x32xf32>
    %283 = vector.extract_strided_slice %274 {offsets = [0, 0], sizes = [2, 96], strides = [1, 1]} : vector<2x128xf32> to vector<2x96xf32>
    %284 = arith.negf %283 : vector<2x96xf32>
    %285 = math.exp %284 : vector<2x96xf32>
    %cst_36 = arith.constant 1.000000e+00 : f32
    %286 = vector.broadcast %cst_36 : f32 to vector<2x96xf32>
    %287 = arith.addf %286, %285 : vector<2x96xf32>
    %288 = arith.divf %286, %287 : vector<2x96xf32>
    %289 = vector.extract_strided_slice %274 {offsets = [0, 96], sizes = [2, 32], strides = [1, 1]} : vector<2x128xf32> to vector<2x32xf32>
    %290 = math.tanh %289 : vector<2x32xf32>
    %291 = vector.extract_strided_slice %280 {offsets = [0, 32], sizes = [2, 32], strides = [1, 1]} : vector<2x96xf32> to vector<2x32xf32>
    %292 = arith.mulf %291, %255 : vector<2x32xf32>
    %293 = vector.extract_strided_slice %280 {offsets = [0, 0], sizes = [2, 32], strides = [1, 1]} : vector<2x96xf32> to vector<2x32xf32>
    %294 = arith.mulf %293, %282 : vector<2x32xf32>
    %295 = arith.addf %292, %294 : vector<2x32xf32>
    %296 = vector.extract_strided_slice %288 {offsets = [0, 32], sizes = [2, 32], strides = [1, 1]} : vector<2x96xf32> to vector<2x32xf32>
    %297 = arith.mulf %296, %260 : vector<2x32xf32>
    %298 = vector.extract_strided_slice %288 {offsets = [0, 0], sizes = [2, 32], strides = [1, 1]} : vector<2x96xf32> to vector<2x32xf32>
    %299 = arith.mulf %298, %290 : vector<2x32xf32>
    %300 = arith.addf %297, %299 : vector<2x32xf32>
    %301 = vector.extract_strided_slice %280 {offsets = [0, 64], sizes = [2, 32], strides = [1, 1]} : vector<2x96xf32> to vector<2x32xf32>
    %302 = math.tanh %295 : vector<2x32xf32>
    %303 = arith.mulf %301, %302 : vector<2x32xf32>
    %304 = vector.extract_strided_slice %288 {offsets = [0, 64], sizes = [2, 32], strides = [1, 1]} : vector<2x96xf32> to vector<2x32xf32>
    %305 = math.tanh %300 : vector<2x32xf32>
    %306 = arith.mulf %304, %305 : vector<2x32xf32>
    %307 = tpu.concatenate %303, %306 in 1 : vector<2x32xf32>, vector<2x32xf32> -> vector<2x64xf32>
    %cst_37 = arith.constant dense<0.000000e+00> : vector<2x256xf32>
    %308 = tpu.matmul %307, %25, %cst_37 {dimension_numbers = #tpu.dot_dimension_numbers<[1], [0], [0], [1], [0, 0, 1, 1], [], []>} : vector<2x64xf32>, vector<64x256xf32>, vector<2x256xf32> -> vector<2x256xf32>
    %309 = vector.extract_strided_slice %24 {offsets = [14, 0], sizes = [2, 128], strides = [1, 1]} : vector<16x256xf32> to vector<2x128xf32>
    %310 = vector.extract_strided_slice %308 {offsets = [0, 0], sizes = [2, 128], strides = [1, 1]} : vector<2x256xf32> to vector<2x128xf32>
    %311 = arith.addf %309, %310 : vector<2x128xf32>
    %312 = vector.extract_strided_slice %24 {offsets = [0, 128], sizes = [2, 128], strides = [1, 1]} : vector<16x256xf32> to vector<2x128xf32>
    %313 = vector.extract_strided_slice %308 {offsets = [0, 128], sizes = [2, 128], strides = [1, 1]} : vector<2x256xf32> to vector<2x128xf32>
    %314 = arith.addf %312, %313 : vector<2x128xf32>
    %315 = vector.extract_strided_slice %311 {offsets = [0, 0], sizes = [2, 96], strides = [1, 1]} : vector<2x128xf32> to vector<2x96xf32>
    %316 = arith.negf %315 : vector<2x96xf32>
    %317 = math.exp %316 : vector<2x96xf32>
    %cst_38 = arith.constant 1.000000e+00 : f32
    %318 = vector.broadcast %cst_38 : f32 to vector<2x96xf32>
    %319 = arith.addf %318, %317 : vector<2x96xf32>
    %320 = arith.divf %318, %319 : vector<2x96xf32>
    %321 = vector.extract_strided_slice %311 {offsets = [0, 96], sizes = [2, 32], strides = [1, 1]} : vector<2x128xf32> to vector<2x32xf32>
    %322 = math.tanh %321 : vector<2x32xf32>
    %323 = vector.extract_strided_slice %314 {offsets = [0, 0], sizes = [2, 96], strides = [1, 1]} : vector<2x128xf32> to vector<2x96xf32>
    %324 = arith.negf %323 : vector<2x96xf32>
    %325 = math.exp %324 : vector<2x96xf32>
    %cst_39 = arith.constant 1.000000e+00 : f32
    %326 = vector.broadcast %cst_39 : f32 to vector<2x96xf32>
    %327 = arith.addf %326, %325 : vector<2x96xf32>
    %328 = arith.divf %326, %327 : vector<2x96xf32>
    %329 = vector.extract_strided_slice %314 {offsets = [0, 96], sizes = [2, 32], strides = [1, 1]} : vector<2x128xf32> to vector<2x32xf32>
    %330 = math.tanh %329 : vector<2x32xf32>
    %331 = vector.extract_strided_slice %320 {offsets = [0, 32], sizes = [2, 32], strides = [1, 1]} : vector<2x96xf32> to vector<2x32xf32>
    %332 = arith.mulf %331, %295 : vector<2x32xf32>
    %333 = vector.extract_strided_slice %320 {offsets = [0, 0], sizes = [2, 32], strides = [1, 1]} : vector<2x96xf32> to vector<2x32xf32>
    %334 = arith.mulf %333, %322 : vector<2x32xf32>
    %335 = arith.addf %332, %334 : vector<2x32xf32>
    %336 = vector.extract_strided_slice %328 {offsets = [0, 32], sizes = [2, 32], strides = [1, 1]} : vector<2x96xf32> to vector<2x32xf32>
    %337 = arith.mulf %336, %300 : vector<2x32xf32>
    %338 = vector.extract_strided_slice %328 {offsets = [0, 0], sizes = [2, 32], strides = [1, 1]} : vector<2x96xf32> to vector<2x32xf32>
    %339 = arith.mulf %338, %330 : vector<2x32xf32>
    %340 = arith.addf %337, %339 : vector<2x32xf32>
    %341 = vector.extract_strided_slice %320 {offsets = [0, 64], sizes = [2, 32], strides = [1, 1]} : vector<2x96xf32> to vector<2x32xf32>
    %342 = math.tanh %335 : vector<2x32xf32>
    %343 = arith.mulf %341, %342 : vector<2x32xf32>
    %344 = vector.extract_strided_slice %328 {offsets = [0, 64], sizes = [2, 32], strides = [1, 1]} : vector<2x96xf32> to vector<2x32xf32>
    %345 = math.tanh %340 : vector<2x32xf32>
    %346 = arith.mulf %344, %345 : vector<2x32xf32>
    %347 = tpu.concatenate %63, %103, %143, %183, %223, %263, %303, %343 in 0 : vector<2x32xf32>, vector<2x32xf32>, vector<2x32xf32>, vector<2x32xf32>, vector<2x32xf32>, vector<2x32xf32>, vector<2x32xf32>, vector<2x32xf32> -> vector<16x32xf32>
    %348 = tpu.concatenate %346, %306, %266, %226, %186, %146, %106, %66 in 0 : vector<2x32xf32>, vector<2x32xf32>, vector<2x32xf32>, vector<2x32xf32>, vector<2x32xf32>, vector<2x32xf32>, vector<2x32xf32>, vector<2x32xf32> -> vector<16x32xf32>
    %349 = tpu.concatenate %347, %348 in 1 : vector<16x32xf32>, vector<16x32xf32> -> vector<16x64xf32>
    %c0_40 = arith.constant 0 : index
    %c0_41 = arith.constant 0 : index
    %350 = vector.load %arg6[%c0_40, %c0_41] : memref<64x256xf32, #tpu.memory_space<vmem>>, vector<64x256xf32>
    %cst_42 = arith.constant dense<0.000000e+00> : vector<16x256xf32>
    %351 = tpu.matmul %349, %350, %cst_42 {dimension_numbers = #tpu.dot_dimension_numbers<[1], [0], [0], [1], [0, 0, 1, 1], [], []>} : vector<16x64xf32>, vector<64x256xf32>, vector<16x256xf32> -> vector<16x256xf32>
    %c0_43 = arith.constant 0 : index
    %c0_44 = arith.constant 0 : index
    %352 = vector.load %arg8[%c0_43, %c0_44] : memref<1x256xf32, #tpu.memory_space<vmem>>, vector<1x256xf32>
    %353 = vector.broadcast %352 : vector<1x256xf32> to vector<16x256xf32>
    %354 = arith.addf %351, %353 : vector<16x256xf32>
    %c0_45 = arith.constant 0 : index
    %c0_46 = arith.constant 0 : index
    %355 = vector.load %arg7[%c0_45, %c0_46] : memref<64x256xf32, #tpu.memory_space<vmem>>, vector<64x256xf32>
    %cst_47 = arith.constant 0.000000e+00 : f32
    %356 = vector.broadcast %cst_47 : f32 to vector<2x32xf32>
    %357 = tpu.concatenate %356, %356 in 1 : vector<2x32xf32>, vector<2x32xf32> -> vector<2x64xf32>
    %cst_48 = arith.constant dense<0.000000e+00> : vector<2x256xf32>
    %358 = tpu.matmul %357, %355, %cst_48 {dimension_numbers = #tpu.dot_dimension_numbers<[1], [0], [0], [1], [0, 0, 1, 1], [], []>} : vector<2x64xf32>, vector<64x256xf32>, vector<2x256xf32> -> vector<2x256xf32>
    %359 = vector.extract_strided_slice %354 {offsets = [0, 0], sizes = [2, 128], strides = [1, 1]} : vector<16x256xf32> to vector<2x128xf32>
    %360 = vector.extract_strided_slice %358 {offsets = [0, 0], sizes = [2, 128], strides = [1, 1]} : vector<2x256xf32> to vector<2x128xf32>
    %361 = arith.addf %359, %360 : vector<2x128xf32>
    %362 = vector.extract_strided_slice %354 {offsets = [14, 128], sizes = [2, 128], strides = [1, 1]} : vector<16x256xf32> to vector<2x128xf32>
    %363 = vector.extract_strided_slice %358 {offsets = [0, 128], sizes = [2, 128], strides = [1, 1]} : vector<2x256xf32> to vector<2x128xf32>
    %364 = arith.addf %362, %363 : vector<2x128xf32>
    %365 = vector.extract_strided_slice %361 {offsets = [0, 0], sizes = [2, 96], strides = [1, 1]} : vector<2x128xf32> to vector<2x96xf32>
    %366 = arith.negf %365 : vector<2x96xf32>
    %367 = math.exp %366 : vector<2x96xf32>
    %cst_49 = arith.constant 1.000000e+00 : f32
    %368 = vector.broadcast %cst_49 : f32 to vector<2x96xf32>
    %369 = arith.addf %368, %367 : vector<2x96xf32>
    %370 = arith.divf %368, %369 : vector<2x96xf32>
    %371 = vector.extract_strided_slice %361 {offsets = [0, 96], sizes = [2, 32], strides = [1, 1]} : vector<2x128xf32> to vector<2x32xf32>
    %372 = math.tanh %371 : vector<2x32xf32>
    %373 = vector.extract_strided_slice %364 {offsets = [0, 0], sizes = [2, 96], strides = [1, 1]} : vector<2x128xf32> to vector<2x96xf32>
    %374 = arith.negf %373 : vector<2x96xf32>
    %375 = math.exp %374 : vector<2x96xf32>
    %cst_50 = arith.constant 1.000000e+00 : f32
    %376 = vector.broadcast %cst_50 : f32 to vector<2x96xf32>
    %377 = arith.addf %376, %375 : vector<2x96xf32>
    %378 = arith.divf %376, %377 : vector<2x96xf32>
    %379 = vector.extract_strided_slice %364 {offsets = [0, 96], sizes = [2, 32], strides = [1, 1]} : vector<2x128xf32> to vector<2x32xf32>
    %380 = math.tanh %379 : vector<2x32xf32>
    %381 = vector.extract_strided_slice %370 {offsets = [0, 32], sizes = [2, 32], strides = [1, 1]} : vector<2x96xf32> to vector<2x32xf32>
    %382 = arith.mulf %381, %356 : vector<2x32xf32>
    %383 = vector.extract_strided_slice %370 {offsets = [0, 0], sizes = [2, 32], strides = [1, 1]} : vector<2x96xf32> to vector<2x32xf32>
    %384 = arith.mulf %383, %372 : vector<2x32xf32>
    %385 = arith.addf %382, %384 : vector<2x32xf32>
    %386 = vector.extract_strided_slice %378 {offsets = [0, 32], sizes = [2, 32], strides = [1, 1]} : vector<2x96xf32> to vector<2x32xf32>
    %387 = arith.mulf %386, %356 : vector<2x32xf32>
    %388 = vector.extract_strided_slice %378 {offsets = [0, 0], sizes = [2, 32], strides = [1, 1]} : vector<2x96xf32> to vector<2x32xf32>
    %389 = arith.mulf %388, %380 : vector<2x32xf32>
    %390 = arith.addf %387, %389 : vector<2x32xf32>
    %391 = vector.extract_strided_slice %370 {offsets = [0, 64], sizes = [2, 32], strides = [1, 1]} : vector<2x96xf32> to vector<2x32xf32>
    %392 = math.tanh %385 : vector<2x32xf32>
    %393 = arith.mulf %391, %392 : vector<2x32xf32>
    %394 = vector.extract_strided_slice %378 {offsets = [0, 64], sizes = [2, 32], strides = [1, 1]} : vector<2x96xf32> to vector<2x32xf32>
    %395 = math.tanh %390 : vector<2x32xf32>
    %396 = arith.mulf %394, %395 : vector<2x32xf32>
    %397 = tpu.concatenate %393, %396 in 1 : vector<2x32xf32>, vector<2x32xf32> -> vector<2x64xf32>
    %cst_51 = arith.constant dense<0.000000e+00> : vector<2x256xf32>
    %398 = tpu.matmul %397, %355, %cst_51 {dimension_numbers = #tpu.dot_dimension_numbers<[1], [0], [0], [1], [0, 0, 1, 1], [], []>} : vector<2x64xf32>, vector<64x256xf32>, vector<2x256xf32> -> vector<2x256xf32>
    %399 = vector.extract_strided_slice %354 {offsets = [2, 0], sizes = [2, 128], strides = [1, 1]} : vector<16x256xf32> to vector<2x128xf32>
    %400 = vector.extract_strided_slice %398 {offsets = [0, 0], sizes = [2, 128], strides = [1, 1]} : vector<2x256xf32> to vector<2x128xf32>
    %401 = arith.addf %399, %400 : vector<2x128xf32>
    %402 = vector.extract_strided_slice %354 {offsets = [12, 128], sizes = [2, 128], strides = [1, 1]} : vector<16x256xf32> to vector<2x128xf32>
    %403 = vector.extract_strided_slice %398 {offsets = [0, 128], sizes = [2, 128], strides = [1, 1]} : vector<2x256xf32> to vector<2x128xf32>
    %404 = arith.addf %402, %403 : vector<2x128xf32>
    %405 = vector.extract_strided_slice %401 {offsets = [0, 0], sizes = [2, 96], strides = [1, 1]} : vector<2x128xf32> to vector<2x96xf32>
    %406 = arith.negf %405 : vector<2x96xf32>
    %407 = math.exp %406 : vector<2x96xf32>
    %cst_52 = arith.constant 1.000000e+00 : f32
    %408 = vector.broadcast %cst_52 : f32 to vector<2x96xf32>
    %409 = arith.addf %408, %407 : vector<2x96xf32>
    %410 = arith.divf %408, %409 : vector<2x96xf32>
    %411 = vector.extract_strided_slice %401 {offsets = [0, 96], sizes = [2, 32], strides = [1, 1]} : vector<2x128xf32> to vector<2x32xf32>
    %412 = math.tanh %411 : vector<2x32xf32>
    %413 = vector.extract_strided_slice %404 {offsets = [0, 0], sizes = [2, 96], strides = [1, 1]} : vector<2x128xf32> to vector<2x96xf32>
    %414 = arith.negf %413 : vector<2x96xf32>
    %415 = math.exp %414 : vector<2x96xf32>
    %cst_53 = arith.constant 1.000000e+00 : f32
    %416 = vector.broadcast %cst_53 : f32 to vector<2x96xf32>
    %417 = arith.addf %416, %415 : vector<2x96xf32>
    %418 = arith.divf %416, %417 : vector<2x96xf32>
    %419 = vector.extract_strided_slice %404 {offsets = [0, 96], sizes = [2, 32], strides = [1, 1]} : vector<2x128xf32> to vector<2x32xf32>
    %420 = math.tanh %419 : vector<2x32xf32>
    %421 = vector.extract_strided_slice %410 {offsets = [0, 32], sizes = [2, 32], strides = [1, 1]} : vector<2x96xf32> to vector<2x32xf32>
    %422 = arith.mulf %421, %385 : vector<2x32xf32>
    %423 = vector.extract_strided_slice %410 {offsets = [0, 0], sizes = [2, 32], strides = [1, 1]} : vector<2x96xf32> to vector<2x32xf32>
    %424 = arith.mulf %423, %412 : vector<2x32xf32>
    %425 = arith.addf %422, %424 : vector<2x32xf32>
    %426 = vector.extract_strided_slice %418 {offsets = [0, 32], sizes = [2, 32], strides = [1, 1]} : vector<2x96xf32> to vector<2x32xf32>
    %427 = arith.mulf %426, %390 : vector<2x32xf32>
    %428 = vector.extract_strided_slice %418 {offsets = [0, 0], sizes = [2, 32], strides = [1, 1]} : vector<2x96xf32> to vector<2x32xf32>
    %429 = arith.mulf %428, %420 : vector<2x32xf32>
    %430 = arith.addf %427, %429 : vector<2x32xf32>
    %431 = vector.extract_strided_slice %410 {offsets = [0, 64], sizes = [2, 32], strides = [1, 1]} : vector<2x96xf32> to vector<2x32xf32>
    %432 = math.tanh %425 : vector<2x32xf32>
    %433 = arith.mulf %431, %432 : vector<2x32xf32>
    %434 = vector.extract_strided_slice %418 {offsets = [0, 64], sizes = [2, 32], strides = [1, 1]} : vector<2x96xf32> to vector<2x32xf32>
    %435 = math.tanh %430 : vector<2x32xf32>
    %436 = arith.mulf %434, %435 : vector<2x32xf32>
    %437 = tpu.concatenate %433, %436 in 1 : vector<2x32xf32>, vector<2x32xf32> -> vector<2x64xf32>
    %cst_54 = arith.constant dense<0.000000e+00> : vector<2x256xf32>
    %438 = tpu.matmul %437, %355, %cst_54 {dimension_numbers = #tpu.dot_dimension_numbers<[1], [0], [0], [1], [0, 0, 1, 1], [], []>} : vector<2x64xf32>, vector<64x256xf32>, vector<2x256xf32> -> vector<2x256xf32>
    %439 = vector.extract_strided_slice %354 {offsets = [4, 0], sizes = [2, 128], strides = [1, 1]} : vector<16x256xf32> to vector<2x128xf32>
    %440 = vector.extract_strided_slice %438 {offsets = [0, 0], sizes = [2, 128], strides = [1, 1]} : vector<2x256xf32> to vector<2x128xf32>
    %441 = arith.addf %439, %440 : vector<2x128xf32>
    %442 = vector.extract_strided_slice %354 {offsets = [10, 128], sizes = [2, 128], strides = [1, 1]} : vector<16x256xf32> to vector<2x128xf32>
    %443 = vector.extract_strided_slice %438 {offsets = [0, 128], sizes = [2, 128], strides = [1, 1]} : vector<2x256xf32> to vector<2x128xf32>
    %444 = arith.addf %442, %443 : vector<2x128xf32>
    %445 = vector.extract_strided_slice %441 {offsets = [0, 0], sizes = [2, 96], strides = [1, 1]} : vector<2x128xf32> to vector<2x96xf32>
    %446 = arith.negf %445 : vector<2x96xf32>
    %447 = math.exp %446 : vector<2x96xf32>
    %cst_55 = arith.constant 1.000000e+00 : f32
    %448 = vector.broadcast %cst_55 : f32 to vector<2x96xf32>
    %449 = arith.addf %448, %447 : vector<2x96xf32>
    %450 = arith.divf %448, %449 : vector<2x96xf32>
    %451 = vector.extract_strided_slice %441 {offsets = [0, 96], sizes = [2, 32], strides = [1, 1]} : vector<2x128xf32> to vector<2x32xf32>
    %452 = math.tanh %451 : vector<2x32xf32>
    %453 = vector.extract_strided_slice %444 {offsets = [0, 0], sizes = [2, 96], strides = [1, 1]} : vector<2x128xf32> to vector<2x96xf32>
    %454 = arith.negf %453 : vector<2x96xf32>
    %455 = math.exp %454 : vector<2x96xf32>
    %cst_56 = arith.constant 1.000000e+00 : f32
    %456 = vector.broadcast %cst_56 : f32 to vector<2x96xf32>
    %457 = arith.addf %456, %455 : vector<2x96xf32>
    %458 = arith.divf %456, %457 : vector<2x96xf32>
    %459 = vector.extract_strided_slice %444 {offsets = [0, 96], sizes = [2, 32], strides = [1, 1]} : vector<2x128xf32> to vector<2x32xf32>
    %460 = math.tanh %459 : vector<2x32xf32>
    %461 = vector.extract_strided_slice %450 {offsets = [0, 32], sizes = [2, 32], strides = [1, 1]} : vector<2x96xf32> to vector<2x32xf32>
    %462 = arith.mulf %461, %425 : vector<2x32xf32>
    %463 = vector.extract_strided_slice %450 {offsets = [0, 0], sizes = [2, 32], strides = [1, 1]} : vector<2x96xf32> to vector<2x32xf32>
    %464 = arith.mulf %463, %452 : vector<2x32xf32>
    %465 = arith.addf %462, %464 : vector<2x32xf32>
    %466 = vector.extract_strided_slice %458 {offsets = [0, 32], sizes = [2, 32], strides = [1, 1]} : vector<2x96xf32> to vector<2x32xf32>
    %467 = arith.mulf %466, %430 : vector<2x32xf32>
    %468 = vector.extract_strided_slice %458 {offsets = [0, 0], sizes = [2, 32], strides = [1, 1]} : vector<2x96xf32> to vector<2x32xf32>
    %469 = arith.mulf %468, %460 : vector<2x32xf32>
    %470 = arith.addf %467, %469 : vector<2x32xf32>
    %471 = vector.extract_strided_slice %450 {offsets = [0, 64], sizes = [2, 32], strides = [1, 1]} : vector<2x96xf32> to vector<2x32xf32>
    %472 = math.tanh %465 : vector<2x32xf32>
    %473 = arith.mulf %471, %472 : vector<2x32xf32>
    %474 = vector.extract_strided_slice %458 {offsets = [0, 64], sizes = [2, 32], strides = [1, 1]} : vector<2x96xf32> to vector<2x32xf32>
    %475 = math.tanh %470 : vector<2x32xf32>
    %476 = arith.mulf %474, %475 : vector<2x32xf32>
    %477 = tpu.concatenate %473, %476 in 1 : vector<2x32xf32>, vector<2x32xf32> -> vector<2x64xf32>
    %cst_57 = arith.constant dense<0.000000e+00> : vector<2x256xf32>
    %478 = tpu.matmul %477, %355, %cst_57 {dimension_numbers = #tpu.dot_dimension_numbers<[1], [0], [0], [1], [0, 0, 1, 1], [], []>} : vector<2x64xf32>, vector<64x256xf32>, vector<2x256xf32> -> vector<2x256xf32>
    %479 = vector.extract_strided_slice %354 {offsets = [6, 0], sizes = [2, 128], strides = [1, 1]} : vector<16x256xf32> to vector<2x128xf32>
    %480 = vector.extract_strided_slice %478 {offsets = [0, 0], sizes = [2, 128], strides = [1, 1]} : vector<2x256xf32> to vector<2x128xf32>
    %481 = arith.addf %479, %480 : vector<2x128xf32>
    %482 = vector.extract_strided_slice %354 {offsets = [8, 128], sizes = [2, 128], strides = [1, 1]} : vector<16x256xf32> to vector<2x128xf32>
    %483 = vector.extract_strided_slice %478 {offsets = [0, 128], sizes = [2, 128], strides = [1, 1]} : vector<2x256xf32> to vector<2x128xf32>
    %484 = arith.addf %482, %483 : vector<2x128xf32>
    %485 = vector.extract_strided_slice %481 {offsets = [0, 0], sizes = [2, 96], strides = [1, 1]} : vector<2x128xf32> to vector<2x96xf32>
    %486 = arith.negf %485 : vector<2x96xf32>
    %487 = math.exp %486 : vector<2x96xf32>
    %cst_58 = arith.constant 1.000000e+00 : f32
    %488 = vector.broadcast %cst_58 : f32 to vector<2x96xf32>
    %489 = arith.addf %488, %487 : vector<2x96xf32>
    %490 = arith.divf %488, %489 : vector<2x96xf32>
    %491 = vector.extract_strided_slice %481 {offsets = [0, 96], sizes = [2, 32], strides = [1, 1]} : vector<2x128xf32> to vector<2x32xf32>
    %492 = math.tanh %491 : vector<2x32xf32>
    %493 = vector.extract_strided_slice %484 {offsets = [0, 0], sizes = [2, 96], strides = [1, 1]} : vector<2x128xf32> to vector<2x96xf32>
    %494 = arith.negf %493 : vector<2x96xf32>
    %495 = math.exp %494 : vector<2x96xf32>
    %cst_59 = arith.constant 1.000000e+00 : f32
    %496 = vector.broadcast %cst_59 : f32 to vector<2x96xf32>
    %497 = arith.addf %496, %495 : vector<2x96xf32>
    %498 = arith.divf %496, %497 : vector<2x96xf32>
    %499 = vector.extract_strided_slice %484 {offsets = [0, 96], sizes = [2, 32], strides = [1, 1]} : vector<2x128xf32> to vector<2x32xf32>
    %500 = math.tanh %499 : vector<2x32xf32>
    %501 = vector.extract_strided_slice %490 {offsets = [0, 32], sizes = [2, 32], strides = [1, 1]} : vector<2x96xf32> to vector<2x32xf32>
    %502 = arith.mulf %501, %465 : vector<2x32xf32>
    %503 = vector.extract_strided_slice %490 {offsets = [0, 0], sizes = [2, 32], strides = [1, 1]} : vector<2x96xf32> to vector<2x32xf32>
    %504 = arith.mulf %503, %492 : vector<2x32xf32>
    %505 = arith.addf %502, %504 : vector<2x32xf32>
    %506 = vector.extract_strided_slice %498 {offsets = [0, 32], sizes = [2, 32], strides = [1, 1]} : vector<2x96xf32> to vector<2x32xf32>
    %507 = arith.mulf %506, %470 : vector<2x32xf32>
    %508 = vector.extract_strided_slice %498 {offsets = [0, 0], sizes = [2, 32], strides = [1, 1]} : vector<2x96xf32> to vector<2x32xf32>
    %509 = arith.mulf %508, %500 : vector<2x32xf32>
    %510 = arith.addf %507, %509 : vector<2x32xf32>
    %511 = vector.extract_strided_slice %490 {offsets = [0, 64], sizes = [2, 32], strides = [1, 1]} : vector<2x96xf32> to vector<2x32xf32>
    %512 = math.tanh %505 : vector<2x32xf32>
    %513 = arith.mulf %511, %512 : vector<2x32xf32>
    %514 = vector.extract_strided_slice %498 {offsets = [0, 64], sizes = [2, 32], strides = [1, 1]} : vector<2x96xf32> to vector<2x32xf32>
    %515 = math.tanh %510 : vector<2x32xf32>
    %516 = arith.mulf %514, %515 : vector<2x32xf32>
    %517 = tpu.concatenate %513, %516 in 1 : vector<2x32xf32>, vector<2x32xf32> -> vector<2x64xf32>
    %cst_60 = arith.constant dense<0.000000e+00> : vector<2x256xf32>
    %518 = tpu.matmul %517, %355, %cst_60 {dimension_numbers = #tpu.dot_dimension_numbers<[1], [0], [0], [1], [0, 0, 1, 1], [], []>} : vector<2x64xf32>, vector<64x256xf32>, vector<2x256xf32> -> vector<2x256xf32>
    %519 = vector.extract_strided_slice %354 {offsets = [8, 0], sizes = [2, 128], strides = [1, 1]} : vector<16x256xf32> to vector<2x128xf32>
    %520 = vector.extract_strided_slice %518 {offsets = [0, 0], sizes = [2, 128], strides = [1, 1]} : vector<2x256xf32> to vector<2x128xf32>
    %521 = arith.addf %519, %520 : vector<2x128xf32>
    %522 = vector.extract_strided_slice %354 {offsets = [6, 128], sizes = [2, 128], strides = [1, 1]} : vector<16x256xf32> to vector<2x128xf32>
    %523 = vector.extract_strided_slice %518 {offsets = [0, 128], sizes = [2, 128], strides = [1, 1]} : vector<2x256xf32> to vector<2x128xf32>
    %524 = arith.addf %522, %523 : vector<2x128xf32>
    %525 = vector.extract_strided_slice %521 {offsets = [0, 0], sizes = [2, 96], strides = [1, 1]} : vector<2x128xf32> to vector<2x96xf32>
    %526 = arith.negf %525 : vector<2x96xf32>
    %527 = math.exp %526 : vector<2x96xf32>
    %cst_61 = arith.constant 1.000000e+00 : f32
    %528 = vector.broadcast %cst_61 : f32 to vector<2x96xf32>
    %529 = arith.addf %528, %527 : vector<2x96xf32>
    %530 = arith.divf %528, %529 : vector<2x96xf32>
    %531 = vector.extract_strided_slice %521 {offsets = [0, 96], sizes = [2, 32], strides = [1, 1]} : vector<2x128xf32> to vector<2x32xf32>
    %532 = math.tanh %531 : vector<2x32xf32>
    %533 = vector.extract_strided_slice %524 {offsets = [0, 0], sizes = [2, 96], strides = [1, 1]} : vector<2x128xf32> to vector<2x96xf32>
    %534 = arith.negf %533 : vector<2x96xf32>
    %535 = math.exp %534 : vector<2x96xf32>
    %cst_62 = arith.constant 1.000000e+00 : f32
    %536 = vector.broadcast %cst_62 : f32 to vector<2x96xf32>
    %537 = arith.addf %536, %535 : vector<2x96xf32>
    %538 = arith.divf %536, %537 : vector<2x96xf32>
    %539 = vector.extract_strided_slice %524 {offsets = [0, 96], sizes = [2, 32], strides = [1, 1]} : vector<2x128xf32> to vector<2x32xf32>
    %540 = math.tanh %539 : vector<2x32xf32>
    %541 = vector.extract_strided_slice %530 {offsets = [0, 32], sizes = [2, 32], strides = [1, 1]} : vector<2x96xf32> to vector<2x32xf32>
    %542 = arith.mulf %541, %505 : vector<2x32xf32>
    %543 = vector.extract_strided_slice %530 {offsets = [0, 0], sizes = [2, 32], strides = [1, 1]} : vector<2x96xf32> to vector<2x32xf32>
    %544 = arith.mulf %543, %532 : vector<2x32xf32>
    %545 = arith.addf %542, %544 : vector<2x32xf32>
    %546 = vector.extract_strided_slice %538 {offsets = [0, 32], sizes = [2, 32], strides = [1, 1]} : vector<2x96xf32> to vector<2x32xf32>
    %547 = arith.mulf %546, %510 : vector<2x32xf32>
    %548 = vector.extract_strided_slice %538 {offsets = [0, 0], sizes = [2, 32], strides = [1, 1]} : vector<2x96xf32> to vector<2x32xf32>
    %549 = arith.mulf %548, %540 : vector<2x32xf32>
    %550 = arith.addf %547, %549 : vector<2x32xf32>
    %551 = vector.extract_strided_slice %530 {offsets = [0, 64], sizes = [2, 32], strides = [1, 1]} : vector<2x96xf32> to vector<2x32xf32>
    %552 = math.tanh %545 : vector<2x32xf32>
    %553 = arith.mulf %551, %552 : vector<2x32xf32>
    %554 = vector.extract_strided_slice %538 {offsets = [0, 64], sizes = [2, 32], strides = [1, 1]} : vector<2x96xf32> to vector<2x32xf32>
    %555 = math.tanh %550 : vector<2x32xf32>
    %556 = arith.mulf %554, %555 : vector<2x32xf32>
    %557 = tpu.concatenate %553, %556 in 1 : vector<2x32xf32>, vector<2x32xf32> -> vector<2x64xf32>
    %cst_63 = arith.constant dense<0.000000e+00> : vector<2x256xf32>
    %558 = tpu.matmul %557, %355, %cst_63 {dimension_numbers = #tpu.dot_dimension_numbers<[1], [0], [0], [1], [0, 0, 1, 1], [], []>} : vector<2x64xf32>, vector<64x256xf32>, vector<2x256xf32> -> vector<2x256xf32>
    %559 = vector.extract_strided_slice %354 {offsets = [10, 0], sizes = [2, 128], strides = [1, 1]} : vector<16x256xf32> to vector<2x128xf32>
    %560 = vector.extract_strided_slice %558 {offsets = [0, 0], sizes = [2, 128], strides = [1, 1]} : vector<2x256xf32> to vector<2x128xf32>
    %561 = arith.addf %559, %560 : vector<2x128xf32>
    %562 = vector.extract_strided_slice %354 {offsets = [4, 128], sizes = [2, 128], strides = [1, 1]} : vector<16x256xf32> to vector<2x128xf32>
    %563 = vector.extract_strided_slice %558 {offsets = [0, 128], sizes = [2, 128], strides = [1, 1]} : vector<2x256xf32> to vector<2x128xf32>
    %564 = arith.addf %562, %563 : vector<2x128xf32>
    %565 = vector.extract_strided_slice %561 {offsets = [0, 0], sizes = [2, 96], strides = [1, 1]} : vector<2x128xf32> to vector<2x96xf32>
    %566 = arith.negf %565 : vector<2x96xf32>
    %567 = math.exp %566 : vector<2x96xf32>
    %cst_64 = arith.constant 1.000000e+00 : f32
    %568 = vector.broadcast %cst_64 : f32 to vector<2x96xf32>
    %569 = arith.addf %568, %567 : vector<2x96xf32>
    %570 = arith.divf %568, %569 : vector<2x96xf32>
    %571 = vector.extract_strided_slice %561 {offsets = [0, 96], sizes = [2, 32], strides = [1, 1]} : vector<2x128xf32> to vector<2x32xf32>
    %572 = math.tanh %571 : vector<2x32xf32>
    %573 = vector.extract_strided_slice %564 {offsets = [0, 0], sizes = [2, 96], strides = [1, 1]} : vector<2x128xf32> to vector<2x96xf32>
    %574 = arith.negf %573 : vector<2x96xf32>
    %575 = math.exp %574 : vector<2x96xf32>
    %cst_65 = arith.constant 1.000000e+00 : f32
    %576 = vector.broadcast %cst_65 : f32 to vector<2x96xf32>
    %577 = arith.addf %576, %575 : vector<2x96xf32>
    %578 = arith.divf %576, %577 : vector<2x96xf32>
    %579 = vector.extract_strided_slice %564 {offsets = [0, 96], sizes = [2, 32], strides = [1, 1]} : vector<2x128xf32> to vector<2x32xf32>
    %580 = math.tanh %579 : vector<2x32xf32>
    %581 = vector.extract_strided_slice %570 {offsets = [0, 32], sizes = [2, 32], strides = [1, 1]} : vector<2x96xf32> to vector<2x32xf32>
    %582 = arith.mulf %581, %545 : vector<2x32xf32>
    %583 = vector.extract_strided_slice %570 {offsets = [0, 0], sizes = [2, 32], strides = [1, 1]} : vector<2x96xf32> to vector<2x32xf32>
    %584 = arith.mulf %583, %572 : vector<2x32xf32>
    %585 = arith.addf %582, %584 : vector<2x32xf32>
    %586 = vector.extract_strided_slice %578 {offsets = [0, 32], sizes = [2, 32], strides = [1, 1]} : vector<2x96xf32> to vector<2x32xf32>
    %587 = arith.mulf %586, %550 : vector<2x32xf32>
    %588 = vector.extract_strided_slice %578 {offsets = [0, 0], sizes = [2, 32], strides = [1, 1]} : vector<2x96xf32> to vector<2x32xf32>
    %589 = arith.mulf %588, %580 : vector<2x32xf32>
    %590 = arith.addf %587, %589 : vector<2x32xf32>
    %591 = vector.extract_strided_slice %570 {offsets = [0, 64], sizes = [2, 32], strides = [1, 1]} : vector<2x96xf32> to vector<2x32xf32>
    %592 = math.tanh %585 : vector<2x32xf32>
    %593 = arith.mulf %591, %592 : vector<2x32xf32>
    %594 = vector.extract_strided_slice %578 {offsets = [0, 64], sizes = [2, 32], strides = [1, 1]} : vector<2x96xf32> to vector<2x32xf32>
    %595 = math.tanh %590 : vector<2x32xf32>
    %596 = arith.mulf %594, %595 : vector<2x32xf32>
    %597 = tpu.concatenate %593, %596 in 1 : vector<2x32xf32>, vector<2x32xf32> -> vector<2x64xf32>
    %cst_66 = arith.constant dense<0.000000e+00> : vector<2x256xf32>
    %598 = tpu.matmul %597, %355, %cst_66 {dimension_numbers = #tpu.dot_dimension_numbers<[1], [0], [0], [1], [0, 0, 1, 1], [], []>} : vector<2x64xf32>, vector<64x256xf32>, vector<2x256xf32> -> vector<2x256xf32>
    %599 = vector.extract_strided_slice %354 {offsets = [12, 0], sizes = [2, 128], strides = [1, 1]} : vector<16x256xf32> to vector<2x128xf32>
    %600 = vector.extract_strided_slice %598 {offsets = [0, 0], sizes = [2, 128], strides = [1, 1]} : vector<2x256xf32> to vector<2x128xf32>
    %601 = arith.addf %599, %600 : vector<2x128xf32>
    %602 = vector.extract_strided_slice %354 {offsets = [2, 128], sizes = [2, 128], strides = [1, 1]} : vector<16x256xf32> to vector<2x128xf32>
    %603 = vector.extract_strided_slice %598 {offsets = [0, 128], sizes = [2, 128], strides = [1, 1]} : vector<2x256xf32> to vector<2x128xf32>
    %604 = arith.addf %602, %603 : vector<2x128xf32>
    %605 = vector.extract_strided_slice %601 {offsets = [0, 0], sizes = [2, 96], strides = [1, 1]} : vector<2x128xf32> to vector<2x96xf32>
    %606 = arith.negf %605 : vector<2x96xf32>
    %607 = math.exp %606 : vector<2x96xf32>
    %cst_67 = arith.constant 1.000000e+00 : f32
    %608 = vector.broadcast %cst_67 : f32 to vector<2x96xf32>
    %609 = arith.addf %608, %607 : vector<2x96xf32>
    %610 = arith.divf %608, %609 : vector<2x96xf32>
    %611 = vector.extract_strided_slice %601 {offsets = [0, 96], sizes = [2, 32], strides = [1, 1]} : vector<2x128xf32> to vector<2x32xf32>
    %612 = math.tanh %611 : vector<2x32xf32>
    %613 = vector.extract_strided_slice %604 {offsets = [0, 0], sizes = [2, 96], strides = [1, 1]} : vector<2x128xf32> to vector<2x96xf32>
    %614 = arith.negf %613 : vector<2x96xf32>
    %615 = math.exp %614 : vector<2x96xf32>
    %cst_68 = arith.constant 1.000000e+00 : f32
    %616 = vector.broadcast %cst_68 : f32 to vector<2x96xf32>
    %617 = arith.addf %616, %615 : vector<2x96xf32>
    %618 = arith.divf %616, %617 : vector<2x96xf32>
    %619 = vector.extract_strided_slice %604 {offsets = [0, 96], sizes = [2, 32], strides = [1, 1]} : vector<2x128xf32> to vector<2x32xf32>
    %620 = math.tanh %619 : vector<2x32xf32>
    %621 = vector.extract_strided_slice %610 {offsets = [0, 32], sizes = [2, 32], strides = [1, 1]} : vector<2x96xf32> to vector<2x32xf32>
    %622 = arith.mulf %621, %585 : vector<2x32xf32>
    %623 = vector.extract_strided_slice %610 {offsets = [0, 0], sizes = [2, 32], strides = [1, 1]} : vector<2x96xf32> to vector<2x32xf32>
    %624 = arith.mulf %623, %612 : vector<2x32xf32>
    %625 = arith.addf %622, %624 : vector<2x32xf32>
    %626 = vector.extract_strided_slice %618 {offsets = [0, 32], sizes = [2, 32], strides = [1, 1]} : vector<2x96xf32> to vector<2x32xf32>
    %627 = arith.mulf %626, %590 : vector<2x32xf32>
    %628 = vector.extract_strided_slice %618 {offsets = [0, 0], sizes = [2, 32], strides = [1, 1]} : vector<2x96xf32> to vector<2x32xf32>
    %629 = arith.mulf %628, %620 : vector<2x32xf32>
    %630 = arith.addf %627, %629 : vector<2x32xf32>
    %631 = vector.extract_strided_slice %610 {offsets = [0, 64], sizes = [2, 32], strides = [1, 1]} : vector<2x96xf32> to vector<2x32xf32>
    %632 = math.tanh %625 : vector<2x32xf32>
    %633 = arith.mulf %631, %632 : vector<2x32xf32>
    %634 = vector.extract_strided_slice %618 {offsets = [0, 64], sizes = [2, 32], strides = [1, 1]} : vector<2x96xf32> to vector<2x32xf32>
    %635 = math.tanh %630 : vector<2x32xf32>
    %636 = arith.mulf %634, %635 : vector<2x32xf32>
    %637 = tpu.concatenate %633, %636 in 1 : vector<2x32xf32>, vector<2x32xf32> -> vector<2x64xf32>
    %cst_69 = arith.constant dense<0.000000e+00> : vector<2x256xf32>
    %638 = tpu.matmul %637, %355, %cst_69 {dimension_numbers = #tpu.dot_dimension_numbers<[1], [0], [0], [1], [0, 0, 1, 1], [], []>} : vector<2x64xf32>, vector<64x256xf32>, vector<2x256xf32> -> vector<2x256xf32>
    %639 = vector.extract_strided_slice %354 {offsets = [14, 0], sizes = [2, 128], strides = [1, 1]} : vector<16x256xf32> to vector<2x128xf32>
    %640 = vector.extract_strided_slice %638 {offsets = [0, 0], sizes = [2, 128], strides = [1, 1]} : vector<2x256xf32> to vector<2x128xf32>
    %641 = arith.addf %639, %640 : vector<2x128xf32>
    %642 = vector.extract_strided_slice %354 {offsets = [0, 128], sizes = [2, 128], strides = [1, 1]} : vector<16x256xf32> to vector<2x128xf32>
    %643 = vector.extract_strided_slice %638 {offsets = [0, 128], sizes = [2, 128], strides = [1, 1]} : vector<2x256xf32> to vector<2x128xf32>
    %644 = arith.addf %642, %643 : vector<2x128xf32>
    %645 = vector.extract_strided_slice %641 {offsets = [0, 0], sizes = [2, 96], strides = [1, 1]} : vector<2x128xf32> to vector<2x96xf32>
    %646 = arith.negf %645 : vector<2x96xf32>
    %647 = math.exp %646 : vector<2x96xf32>
    %cst_70 = arith.constant 1.000000e+00 : f32
    %648 = vector.broadcast %cst_70 : f32 to vector<2x96xf32>
    %649 = arith.addf %648, %647 : vector<2x96xf32>
    %650 = arith.divf %648, %649 : vector<2x96xf32>
    %651 = vector.extract_strided_slice %641 {offsets = [0, 96], sizes = [2, 32], strides = [1, 1]} : vector<2x128xf32> to vector<2x32xf32>
    %652 = math.tanh %651 : vector<2x32xf32>
    %653 = vector.extract_strided_slice %644 {offsets = [0, 0], sizes = [2, 96], strides = [1, 1]} : vector<2x128xf32> to vector<2x96xf32>
    %654 = arith.negf %653 : vector<2x96xf32>
    %655 = math.exp %654 : vector<2x96xf32>
    %cst_71 = arith.constant 1.000000e+00 : f32
    %656 = vector.broadcast %cst_71 : f32 to vector<2x96xf32>
    %657 = arith.addf %656, %655 : vector<2x96xf32>
    %658 = arith.divf %656, %657 : vector<2x96xf32>
    %659 = vector.extract_strided_slice %644 {offsets = [0, 96], sizes = [2, 32], strides = [1, 1]} : vector<2x128xf32> to vector<2x32xf32>
    %660 = math.tanh %659 : vector<2x32xf32>
    %661 = vector.extract_strided_slice %650 {offsets = [0, 32], sizes = [2, 32], strides = [1, 1]} : vector<2x96xf32> to vector<2x32xf32>
    %662 = arith.mulf %661, %625 : vector<2x32xf32>
    %663 = vector.extract_strided_slice %650 {offsets = [0, 0], sizes = [2, 32], strides = [1, 1]} : vector<2x96xf32> to vector<2x32xf32>
    %664 = arith.mulf %663, %652 : vector<2x32xf32>
    %665 = arith.addf %662, %664 : vector<2x32xf32>
    %666 = vector.extract_strided_slice %658 {offsets = [0, 32], sizes = [2, 32], strides = [1, 1]} : vector<2x96xf32> to vector<2x32xf32>
    %667 = arith.mulf %666, %630 : vector<2x32xf32>
    %668 = vector.extract_strided_slice %658 {offsets = [0, 0], sizes = [2, 32], strides = [1, 1]} : vector<2x96xf32> to vector<2x32xf32>
    %669 = arith.mulf %668, %660 : vector<2x32xf32>
    %670 = arith.addf %667, %669 : vector<2x32xf32>
    %671 = vector.extract_strided_slice %650 {offsets = [0, 64], sizes = [2, 32], strides = [1, 1]} : vector<2x96xf32> to vector<2x32xf32>
    %672 = math.tanh %665 : vector<2x32xf32>
    %673 = arith.mulf %671, %672 : vector<2x32xf32>
    %674 = vector.extract_strided_slice %658 {offsets = [0, 64], sizes = [2, 32], strides = [1, 1]} : vector<2x96xf32> to vector<2x32xf32>
    %675 = math.tanh %670 : vector<2x32xf32>
    %676 = arith.mulf %674, %675 : vector<2x32xf32>
    %677 = tpu.concatenate %673, %676 in 1 : vector<2x32xf32>, vector<2x32xf32> -> vector<2x64xf32>
    %678 = tpu.concatenate %665, %670 in 1 : vector<2x32xf32>, vector<2x32xf32> -> vector<2x64xf32>
    %679 = tpu.concatenate %677, %678 in 0 : vector<2x64xf32>, vector<2x64xf32> -> vector<4x64xf32>
    %c0_72 = arith.constant 0 : index
    %c0_73 = arith.constant 0 : index
    %680 = vector.load %arg9[%c0_72, %c0_73] : memref<64x64xf32, #tpu.memory_space<vmem>>, vector<64x64xf32>
    %cst_74 = arith.constant dense<0.000000e+00> : vector<4x64xf32>
    %681 = tpu.matmul %679, %680, %cst_74 {dimension_numbers = #tpu.dot_dimension_numbers<[1], [0], [0], [1], [0, 0, 1, 1], [], []>} : vector<4x64xf32>, vector<64x64xf32>, vector<4x64xf32> -> vector<4x64xf32>
    %c0_75 = arith.constant 0 : index
    %c0_76 = arith.constant 0 : index
    %682 = vector.load %arg10[%c0_75, %c0_76] : memref<1x64xf32, #tpu.memory_space<vmem>>, vector<1x64xf32>
    %683 = vector.broadcast %682 : vector<1x64xf32> to vector<4x64xf32>
    %684 = arith.addf %681, %683 : vector<4x64xf32>
    %685 = vector.extract_strided_slice %684 {offsets = [0, 0], sizes = [2, 32], strides = [1, 1]} : vector<4x64xf32> to vector<2x32xf32>
    %c0_77 = arith.constant 0 : index
    %c0_78 = arith.constant 0 : index
    %c0_79 = arith.constant 0 : index
    %686 = vector.load %arg11[%c0_77, %c0_78, %c0_79] : memref<2x2x32xf32, #tpu.memory_space<vmem>>, vector<1x2x32xf32>
    %687 = vector.shape_cast %686 : vector<1x2x32xf32> to vector<2x32xf32>
    %688 = vector.shape_cast %685 : vector<2x32xf32> to vector<1x2x32xf32>
    tpu.vector_store %arg11[%c0_77, %c0_78, %c0_79], %688 {strides = array<i32>} : memref<2x2x32xf32, #tpu.memory_space<vmem>>, vector<1x2x32xf32>,
    %689 = vector.extract_strided_slice %684 {offsets = [2, 0], sizes = [2, 32], strides = [1, 1]} : vector<4x64xf32> to vector<2x32xf32>
    %c0_80 = arith.constant 0 : index
    %c0_81 = arith.constant 0 : index
    %c0_82 = arith.constant 0 : index
    %690 = vector.load %arg12[%c0_80, %c0_81, %c0_82] : memref<2x2x32xf32, #tpu.memory_space<vmem>>, vector<1x2x32xf32>
    %691 = vector.shape_cast %690 : vector<1x2x32xf32> to vector<2x32xf32>
    %692 = vector.shape_cast %689 : vector<2x32xf32> to vector<1x2x32xf32>
    tpu.vector_store %arg12[%c0_80, %c0_81, %c0_82], %692 {strides = array<i32>} : memref<2x2x32xf32, #tpu.memory_space<vmem>>, vector<1x2x32xf32>,
    %693 = vector.extract_strided_slice %684 {offsets = [0, 32], sizes = [2, 32], strides = [1, 1]} : vector<4x64xf32> to vector<2x32xf32>
    %c1 = arith.constant 1 : index
    %c0_83 = arith.constant 0 : index
    %c0_84 = arith.constant 0 : index
    %694 = vector.load %arg11[%c1, %c0_83, %c0_84] : memref<2x2x32xf32, #tpu.memory_space<vmem>>, vector<1x2x32xf32>
    %695 = vector.shape_cast %694 : vector<1x2x32xf32> to vector<2x32xf32>
    %696 = vector.shape_cast %693 : vector<2x32xf32> to vector<1x2x32xf32>
    tpu.vector_store %arg11[%c1, %c0_83, %c0_84], %696 {strides = array<i32>} : memref<2x2x32xf32, #tpu.memory_space<vmem>>, vector<1x2x32xf32>,
    %697 = vector.extract_strided_slice %684 {offsets = [2, 32], sizes = [2, 32], strides = [1, 1]} : vector<4x64xf32> to vector<2x32xf32>
    %c1_85 = arith.constant 1 : index
    %c0_86 = arith.constant 0 : index
    %c0_87 = arith.constant 0 : index
    %698 = vector.load %arg12[%c1_85, %c0_86, %c0_87] : memref<2x2x32xf32, #tpu.memory_space<vmem>>, vector<1x2x32xf32>
    %699 = vector.shape_cast %698 : vector<1x2x32xf32> to vector<2x32xf32>
    %700 = vector.shape_cast %697 : vector<2x32xf32> to vector<1x2x32xf32>
    tpu.vector_store %arg12[%c1_85, %c0_86, %c0_87], %700 {strides = array<i32>} : memref<2x2x32xf32, #tpu.memory_space<vmem>>, vector<1x2x32xf32>,
    return
  }
}

</mosaic_0001>

<llo_original>
// kernel: _lambda_.3
$region0: #{_lambda_.3}
  #allocation0 [shape = 'u32[]', space=smem, size = 0x4, offset = 0x4, fixed_abs, tag = 'smem constant byte address 0x4 - core index']
  #allocation1 [shape = 'u32[144,128]{1,0:T(1,128)}', space=vmem, size = 0x12000, scoped, tag = 'internal scratch']
  %s0 = inlined_call_operand.vmem [shape: f32[16,32], index: 0, kind: input, shape index: {}]
  %s1 = inlined_call_operand.vmem [shape: f32[2,16], index: 1, kind: input, shape index: {}]
  %s2 = inlined_call_operand.vmem [shape: f32[32,128], index: 2, kind: input, shape index: {}]
  %s3 = inlined_call_operand.vmem [shape: f32[16,128], index: 3, kind: input, shape index: {}]
  %s4 = inlined_call_operand.vmem [shape: f32[32,128], index: 4, kind: input, shape index: {}]
  %s5 = inlined_call_operand.vmem [shape: f32[1,128], index: 5, kind: input, shape index: {}]
  %s6 = inlined_call_operand.vmem [shape: f32[32,128], index: 6, kind: input, shape index: {}]
  %s7 = inlined_call_operand.vmem [shape: f32[32,128], index: 7, kind: input, shape index: {}]
  %s8 = inlined_call_operand.vmem [shape: f32[1,128], index: 8, kind: input, shape index: {}]
  %s9 = inlined_call_operand.vmem [shape: f32[32,64], index: 9, kind: input, shape index: {}]
  %s10 = inlined_call_operand.vmem [shape: f32[1,64], index: 10, kind: input, shape index: {}]
  %s11 = inlined_call_operand.vmem [shape: f32[2,2,32], index: 11, kind: input, shape index: {}]
  %s12 = inlined_call_operand.vmem [shape: f32[2,2,32], index: 12, kind: input, shape index: {}]
  %s13 = inlined_call_operand.vmem [shape: f32[16,64], index: 13, kind: output, shape index: {0}]
  %s14 = inlined_call_operand.hbm [shape: f32[2,2,32], index: 14, kind: output, shape index: {1}]
  %s15 = inlined_call_operand.hbm [shape: f32[2,2,32], index: 15, kind: output, shape index: {2}]
  %16 = xla_tuple %s13, %s14, %s15
  %s17 = sld [smem:[#allocation0]]
  $region78: #{_lambda_.3} parent=0
    _
  %s19 = ssub.s32 1, %s17
  %s20 = scalar_select 0, %s19, %s17
  $region1: #{_lambda_.3} parent=0
    #allocation2 [shape = 'u8[2048]{0}', space=vmem, size = 0x800, scoped, tag = 'output window, operand 1, single buffered']
    #allocation3 [shape = 's32[1]{0}', space=sflag, size = 0x4, scoped, tag = 'scoped memory for _lambda_.3']
    #allocation4 [shape = 'u8[2048]{0}', space=vmem, size = 0x800, scoped, tag = 'output window, operand 2, single buffered']
    #allocation5 [shape = 's32[1]{0}', space=sflag, size = 0x4, scoped, tag = 'scoped memory for _lambda_.3']
    %21 = vsyncpa [#allocation3], 0
    %22 = vsyncpa [#allocation5], 0
    // Predicated region
    $region2: #{_lambda_.3} parent=1 // pred_check
      _
    $region3: #{_lambda_.3} parent=1 // pred_check_branch
      %24 = sbr.rel (0) target = $region5
    $region4: #{_lambda_.3} parent=1 // pred_region
      _
    $region5: #{_lambda_.3} parent=1 // pred_fallthru
      _
    // Predicated region
    $region6: #{_lambda_.3} parent=1 // pred_check
      _
    $region7: #{_lambda_.3} parent=1 // pred_check_branch
      %26 = sbr.rel (0) target = $region9
    $region8: #{_lambda_.3} parent=1 // pred_region
      _
    $region9: #{_lambda_.3} parent=1 // pred_fallthru
      _
    // Predicated region
    $region10: #{_lambda_.3} parent=1 // pred_check
      _
    $region11: #{_lambda_.3} parent=1 // pred_check_branch
      %28 = sbr.rel (0) target = $region13
    $region12: #{_lambda_.3} parent=1 // pred_region
      _
    $region13: #{_lambda_.3} parent=1 // pred_fallthru
      _
    // Predicated region
    $region14: #{_lambda_.3} parent=1 // pred_check
      _
    $region15: #{_lambda_.3} parent=1 // pred_check_branch
      %30 = sbr.rel (0) target = $region17
    $region16: #{_lambda_.3} parent=1 // pred_region
      _
    $region17: #{_lambda_.3} parent=1 // pred_fallthru
      _
    // Predicated region
    $region18: #{_lambda_.3} parent=1 // pred_check
      _
    $region19: #{_lambda_.3} parent=1 // pred_check_branch
      %32 = sbr.rel (0) target = $region21
    $region20: #{_lambda_.3} parent=1 // pred_region
      _
    $region21: #{_lambda_.3} parent=1 // pred_fallthru
      _
    // Predicated region
    $region22: #{_lambda_.3} parent=1 // pred_check
      _
    $region23: #{_lambda_.3} parent=1 // pred_check_branch
      %34 = sbr.rel (0) target = $region25
    $region24: #{_lambda_.3} parent=1 // pred_region
      _
    $region25: #{_lambda_.3} parent=1 // pred_fallthru
      _
    // Predicated region
    $region26: #{_lambda_.3} parent=1 // pred_check
      _
    $region27: #{_lambda_.3} parent=1 // pred_check_branch
      %36 = sbr.rel (0) target = $region29
    $region28: #{_lambda_.3} parent=1 // pred_region
      _
    $region29: #{_lambda_.3} parent=1 // pred_fallthru
      _
    // Predicated region
    $region30: #{_lambda_.3} parent=1 // pred_check
      _
    $region31: #{_lambda_.3} parent=1 // pred_check_branch
      %38 = sbr.rel (0) target = $region33
    $region32: #{_lambda_.3} parent=1 // pred_region
      _
    $region33: #{_lambda_.3} parent=1 // pred_fallthru
      _
    // Predicated region
    $region34: #{_lambda_.3} parent=1 // pred_check
      _
    $region35: #{_lambda_.3} parent=1 // pred_check_branch
      %40 = sbr.rel (0) target = $region37
    $region36: #{_lambda_.3} parent=1 // pred_region
      _
    $region37: #{_lambda_.3} parent=1 // pred_fallthru
      _
    // Predicated region
    $region38: #{_lambda_.3} parent=1 // pred_check
      _
    $region39: #{_lambda_.3} parent=1 // pred_check_branch
      %42 = sbr.rel (0) target = $region41
    $region40: #{_lambda_.3} parent=1 // pred_region
      _
    $region41: #{_lambda_.3} parent=1 // pred_fallthru
      _
    // Predicated region
    $region42: #{_lambda_.3} parent=1 // pred_check
      _
    $region43: #{_lambda_.3} parent=1 // pred_check_branch
      %44 = sbr.rel (0) target = $region45
    $region44: #{_lambda_.3} parent=1 // pred_region
      _
    $region45: #{_lambda_.3} parent=1 // pred_fallthru
      _
    // Predicated region
    $region46: #{_lambda_.3} parent=1 // pred_check
      _
    $region47: #{_lambda_.3} parent=1 // pred_check_branch
      %46 = sbr.rel (0) target = $region49
    $region48: #{_lambda_.3} parent=1 // pred_region
      _
    $region49: #{_lambda_.3} parent=1 // pred_fallthru
      _
    // Predicated region
    $region50: #{_lambda_.3} parent=1 // pred_check
      _
    $region51: #{_lambda_.3} parent=1 // pred_check_branch
      %48 = sbr.rel (0) target = $region53
    $region52: #{_lambda_.3} parent=1 // pred_region
      _
    $region53: #{_lambda_.3} parent=1 // pred_fallthru
      _
    %v49 = vld [vmem:[%s0] sm:$0xff]
    %v50 = vld [vmem:[%s0 + $0x8] sm:$0xff]
    %v51 = vld [vmem:[%s1] sm:$0x3]
    %v52 = vld [vmem:[%s3] sm:$0xff]
    %v53 = vld [vmem:[%s3 + $0x8] sm:$0xff]
    %v54 = vld [vmem:[%s5] sm:$0x1]
    %v56 = vlaneseq
    %v57 = vshrl.u32 %v56, 7
    %v58 = vsub.s32 0, %v57
    %v59 = vrot.slane %v54, %v58
    %vm61 = vcmask 130048
    %v63 = vsel %vm61, %v51, 0
    %65 = vmatprep.subr.mxu0 0.0
    %66 = vmatpush1.msra.mxu0 0.0
    %67 = vmatprep.subr.mxu0 0.0
    %68 = vmatpush1.msra.mxu0 0.0
    %69 = vmatprep.subr.mxu0 0.0
    %70 = vmatpush1.msra.mxu0 0.0
    %71 = vmatprep.subr.mxu0 0.0
    %72 = vmatpush1.msra.mxu0 0.0
    %73 = vmatprep.subr.mxu0 0.0
    %74 = vmatpush1.msra.mxu0 0.0
    %75 = vmatprep.subr.mxu0 0.0
    %76 = vmatpush1.msra.mxu0 0.0
    %77 = vmatprep.subr.mxu0 0.0
    %78 = vmatpush1.msra.mxu0 0.0
    %79 = vmatprep.subr.mxu0 0.0
    %80 = vmatpush1.msra.mxu0 0.0
    %81 = vmatprep.subr.mxu0 0.0
    %82 = vmatpush1.msra.mxu0 0.0
    %83 = vmatprep.subr.mxu0 0.0
    %84 = vmatpush1.msra.mxu0 0.0
    %85 = vmatprep.subr.mxu0 0.0
    %86 = vmatpush1.msra.mxu0 0.0
    %87 = vmatprep.subr.mxu0 0.0
    %88 = vmatpush1.msra.mxu0 0.0
    %89 = vmatprep.subr.mxu0 0.0
    %90 = vmatpush1.msra.mxu0 0.0
    %91 = vmatprep.subr.mxu0 0.0
    %92 = vmatpush1.msra.mxu0 0.0
    %93 = vmatprep.subr.mxu0 0.0
    %94 = vmatpush1.msra.mxu0 %v53
    %95 = vmatprep.subr.mxu0 0.0
    %96 = vmatpush1.msra.mxu0 %v52
    %97 = vmatprep.subr.mxu0 0.0
    %98 = vmatpush2.msra.mxu0 0.0
    %99 = vmatprep.subr.mxu0 0.0
    %100 = vmatpush2.msra.mxu0 0.0
    %101 = vmatprep.subr.mxu0 0.0
    %102 = vmatpush2.msra.mxu0 0.0
    %103 = vmatprep.subr.mxu0 0.0
    %104 = vmatpush2.msra.mxu0 0.0
    %105 = vmatprep.subr.mxu0 0.0
    %106 = vmatpush2.msra.mxu0 0.0
    %107 = vmatprep.subr.mxu0 0.0
    %108 = vmatpush2.msra.mxu0 0.0
    %109 = vmatprep.subr.mxu0 0.0
    %110 = vmatpush2.msra.mxu0 0.0
    %111 = vmatprep.subr.mxu0 0.0
    %112 = vmatpush2.msra.mxu0 0.0
    %113 = vmatprep.subr.mxu0 0.0
    %114 = vmatpush2.msra.mxu0 0.0
    %115 = vmatprep.subr.mxu0 0.0
    %116 = vmatpush2.msra.mxu0 0.0
    %117 = vmatprep.subr.mxu0 0.0
    %118 = vmatpush2.msra.mxu0 0.0
    %119 = vmatprep.subr.mxu0 0.0
    %120 = vmatpush2.msra.mxu0 0.0
    %121 = vmatprep.subr.mxu0 0.0
    %122 = vmatpush2.msra.mxu0 0.0
    %123 = vmatprep.subr.mxu0 0.0
    %124 = vmatpush2.msra.mxu0 0.0
    %125 = vmatprep.subr.mxu0 0.0
    %126 = vmatpush2.msra.mxu0 0.0
    %127 = vmatprep.subr.mxu0 0.0
    %128 = vmatpush2.msra.mxu0 0.0
    %129 = vmatprep.mubr.f32.mxu0 0.0
    %130 = vmatmul.mubr.f32.gmra.mxu0 %v63
    %v131 = vpop.f32.mrf.mxu0
    %v132 = vadd.f32 %v59, %v131
    %v133 = vpop.f32.mrf.mxu0
    %134 = vdwg.mxu0
    %v135 = vld [vmem:[%s2] sm:$0xff]
    %v136 = vld [vmem:[%s2 + $0x8] sm:$0xff]
    %v137 = vld [vmem:[%s2 + $0x10] sm:$0xff]
    %v138 = vld [vmem:[%s2 + $0x18] sm:$0xff]
    %vm139 = vcmask 261120
    %v141 = vsel %vm139, %v49, 0
    %v144 = vsel %vm139, %v50, 0
    %146 = vmatprep.subr.mxu0 0.0
    %147 = vmatpush1.msra.mxu0 0.0
    %148 = vmatprep.subr.mxu0 0.0
    %149 = vmatpush1.msra.mxu0 0.0
    %150 = vmatprep.subr.mxu0 0.0
    %151 = vmatpush1.msra.mxu0 0.0
    %152 = vmatprep.subr.mxu0 0.0
    %153 = vmatpush1.msra.mxu0 0.0
    %154 = vmatprep.subr.mxu0 0.0
    %155 = vmatpush1.msra.mxu0 0.0
    %156 = vmatprep.subr.mxu0 0.0
    %157 = vmatpush1.msra.mxu0 0.0
    %158 = vmatprep.subr.mxu0 0.0
    %159 = vmatpush1.msra.mxu0 0.0
    %160 = vmatprep.subr.mxu0 0.0
    %161 = vmatpush1.msra.mxu0 0.0
    %162 = vmatprep.subr.mxu0 0.0
    %163 = vmatpush1.msra.mxu0 0.0
    %164 = vmatprep.subr.mxu0 0.0
    %165 = vmatpush1.msra.mxu0 0.0
    %166 = vmatprep.subr.mxu0 0.0
    %167 = vmatpush1.msra.mxu0 0.0
    %168 = vmatprep.subr.mxu0 0.0
    %169 = vmatpush1.msra.mxu0 0.0
    %170 = vmatprep.subr.mxu0 0.0
    %171 = vmatpush1.msra.mxu0 %v138
    %172 = vmatprep.subr.mxu0 0.0
    %173 = vmatpush1.msra.mxu0 %v137
    %174 = vmatprep.subr.mxu0 0.0
    %175 = vmatpush1.msra.mxu0 %v136
    %176 = vmatprep.subr.mxu0 0.0
    %177 = vmatpush1.msra.mxu0 %v135
    %178 = vmatprep.subr.mxu0 0.0
    %179 = vmatpush2.msra.mxu0 0.0
    %180 = vmatprep.subr.mxu0 0.0
    %181 = vmatpush2.msra.mxu0 0.0
    %182 = vmatprep.subr.mxu0 0.0
    %183 = vmatpush2.msra.mxu0 0.0
    %184 = vmatprep.subr.mxu0 0.0
    %185 = vmatpush2.msra.mxu0 0.0
    %186 = vmatprep.subr.mxu0 0.0
    %187 = vmatpush2.msra.mxu0 0.0
    %188 = vmatprep.subr.mxu0 0.0
    %189 = vmatpush2.msra.mxu0 0.0
    %190 = vmatprep.subr.mxu0 0.0
    %191 = vmatpush2.msra.mxu0 0.0
    %192 = vmatprep.subr.mxu0 0.0
    %193 = vmatpush2.msra.mxu0 0.0
    %194 = vmatprep.subr.mxu0 0.0
    %195 = vmatpush2.msra.mxu0 0.0
    %196 = vmatprep.subr.mxu0 0.0
    %197 = vmatpush2.msra.mxu0 0.0
    %198 = vmatprep.subr.mxu0 0.0
    %199 = vmatpush2.msra.mxu0 0.0
    %200 = vmatprep.subr.mxu0 0.0
    %201 = vmatpush2.msra.mxu0 0.0
    %202 = vmatprep.subr.mxu0 0.0
    %203 = vmatpush2.msra.mxu0 0.0
    %204 = vmatprep.subr.mxu0 0.0
    %205 = vmatpush2.msra.mxu0 0.0
    %206 = vmatprep.subr.mxu0 0.0
    %207 = vmatpush2.msra.mxu0 0.0
    %208 = vmatprep.subr.mxu0 0.0
    %209 = vmatpush2.msra.mxu0 0.0
    %210 = vmatprep.mubr.f32.mxu0 0.0
    %211 = vmatmul.mubr.f32.gmra.mxu0 %v141
    %v212 = vpop.f32.mrf.mxu0
    %v213 = vadd.f32 0.0, %v212
    %v214 = vpop.f32.mrf.mxu0
    %215 = vmatprep.mubr.f32.mxu0 0.0
    %216 = vmatmul.mubr.f32.gmra.mxu0 %v144
    %v217 = vpop.f32.mrf.mxu0
    %v218 = vadd.f32 0.0, %v217
    %v219 = vpop.f32.mrf.mxu0
    %220 = vdwg.mxu0
    %v221 = vld [vmem:[%s4] sm:$0xff]
    %v222 = vld [vmem:[%s4 + $0x8] sm:$0xff]
    %v223 = vld [vmem:[%s4 + $0x10] sm:$0xff]
    %v224 = vld [vmem:[%s4 + $0x18] sm:$0xff]
    %v225 = vld [vmem:[%s11] sm:$0x3]
    %v226 = vld [vmem:[%s12] sm:$0x3]
    %v228 = vsel %vm139, %v225, 0
    %230 = vmatprep.subr.mxu0 0.0
    %231 = vmatpush1.msra.mxu0 0.0
    %232 = vmatprep.subr.mxu0 0.0
    %233 = vmatpush1.msra.mxu0 0.0
    %234 = vmatprep.subr.mxu0 0.0
    %235 = vmatpush1.msra.mxu0 0.0
    %236 = vmatprep.subr.mxu0 0.0
    %237 = vmatpush1.msra.mxu0 0.0
    %238 = vmatprep.subr.mxu0 0.0
    %239 = vmatpush1.msra.mxu0 0.0
    %240 = vmatprep.subr.mxu0 0.0
    %241 = vmatpush1.msra.mxu0 0.0
    %242 = vmatprep.subr.mxu0 0.0
    %243 = vmatpush1.msra.mxu0 0.0
    %244 = vmatprep.subr.mxu0 0.0
    %245 = vmatpush1.msra.mxu0 0.0
    %246 = vmatprep.subr.mxu0 0.0
    %247 = vmatpush1.msra.mxu0 0.0
    %248 = vmatprep.subr.mxu0 0.0
    %249 = vmatpush1.msra.mxu0 0.0
    %250 = vmatprep.subr.mxu0 0.0
    %251 = vmatpush1.msra.mxu0 0.0
    %252 = vmatprep.subr.mxu0 0.0
    %253 = vmatpush1.msra.mxu0 0.0
    %254 = vmatprep.subr.mxu0 0.0
    %255 = vmatpush1.msra.mxu0 %v224
    %256 = vmatprep.subr.mxu0 0.0
    %257 = vmatpush1.msra.mxu0 %v223
    %258 = vmatprep.subr.mxu0 0.0
    %259 = vmatpush1.msra.mxu0 %v222
    %260 = vmatprep.subr.mxu0 0.0
    %261 = vmatpush1.msra.mxu0 %v221
    %262 = vmatprep.subr.mxu0 0.0
    %263 = vmatpush2.msra.mxu0 0.0
    %264 = vmatprep.subr.mxu0 0.0
    %265 = vmatpush2.msra.mxu0 0.0
    %266 = vmatprep.subr.mxu0 0.0
    %267 = vmatpush2.msra.mxu0 0.0
    %268 = vmatprep.subr.mxu0 0.0
    %269 = vmatpush2.msra.mxu0 0.0
    %270 = vmatprep.subr.mxu0 0.0
    %271 = vmatpush2.msra.mxu0 0.0
    %272 = vmatprep.subr.mxu0 0.0
    %273 = vmatpush2.msra.mxu0 0.0
    %274 = vmatprep.subr.mxu0 0.0
    %275 = vmatpush2.msra.mxu0 0.0
    %276 = vmatprep.subr.mxu0 0.0
    %277 = vmatpush2.msra.mxu0 0.0
    %278 = vmatprep.subr.mxu0 0.0
    %279 = vmatpush2.msra.mxu0 0.0
    %280 = vmatprep.subr.mxu0 0.0
    %281 = vmatpush2.msra.mxu0 0.0
    %282 = vmatprep.subr.mxu0 0.0
    %283 = vmatpush2.msra.mxu0 0.0
    %284 = vmatprep.subr.mxu0 0.0
    %285 = vmatpush2.msra.mxu0 0.0
    %286 = vmatprep.subr.mxu0 0.0
    %287 = vmatpush2.msra.mxu0 0.0
    %288 = vmatprep.subr.mxu0 0.0
    %289 = vmatpush2.msra.mxu0 0.0
    %290 = vmatprep.subr.mxu0 0.0
    %291 = vmatpush2.msra.mxu0 0.0
    %292 = vmatprep.subr.mxu0 0.0
    %293 = vmatpush2.msra.mxu0 0.0
    %294 = vmatprep.mubr.f32.mxu0 0.0
    %295 = vmatmul.mubr.f32.gmra.mxu0 %v228
    %v296 = vpop.f32.mrf.mxu0
    %v297 = vadd.f32 0.0, %v296
    %v298 = vpop.f32.mrf.mxu0
    %299 = vdwg.mxu0
    %v300 = vadd.f32 %v213, %v297
    %v301 = vadd.f32 %v300, %v132
    %v302 = vxor.u32 %v301, 2147483648
    %v303 = vmul.f32 %v302, 1.442695
    %v304 = vpow.pop %v303
    %v305 = vadd.f32 %v304, 1.0
    %v306 = vrcp.pop %v305
    %v307 = vmul.f32 1.0, %v306
    %v308 = vtanh.pop %v301
    %310 = vrot.lane.b32.xlu0 %v226, 32
    %v311 = vpop.permute.xlu0 %310
    %v313 = vmul.f32 %v307, %v311
    %315 = vrot.lane.b32.xlu0 %v308, 32
    %v316 = vpop.permute.xlu0 %315
    %v318 = vmul.f32 %v307, %v316
    %320 = vrot.lane.b32.xlu0 %v318, 32
    %v321 = vpop.permute.xlu0 %320
    %v323 = vadd.f32 %v313, %v321
    %v324 = vtanh.pop %v323
    %326 = vrot.lane.b32.xlu0 %v324, 32
    %v327 = vpop.permute.xlu0 %326
    %v329 = vmul.f32 %v307, %v327
    %331 = vrot.lane.b32.xlu0 %v329, 64
    %v332 = vpop.permute.xlu0 %331
    %v333 = vsel %vm139, %v332, 0
    %335 = vmatprep.subr.mxu0 0.0
    %336 = vmatpush1.msra.mxu0 0.0
    %337 = vmatprep.subr.mxu0 0.0
    %338 = vmatpush1.msra.mxu0 0.0
    %339 = vmatprep.subr.mxu0 0.0
    %340 = vmatpush1.msra.mxu0 0.0
    %341 = vmatprep.subr.mxu0 0.0
    %342 = vmatpush1.msra.mxu0 0.0
    %343 = vmatprep.subr.mxu0 0.0
    %344 = vmatpush1.msra.mxu0 0.0
    %345 = vmatprep.subr.mxu0 0.0
    %346 = vmatpush1.msra.mxu0 0.0
    %347 = vmatprep.subr.mxu0 0.0
    %348 = vmatpush1.msra.mxu0 0.0
    %349 = vmatprep.subr.mxu0 0.0
    %350 = vmatpush1.msra.mxu0 0.0
    %351 = vmatprep.subr.mxu0 0.0
    %352 = vmatpush1.msra.mxu0 0.0
    %353 = vmatprep.subr.mxu0 0.0
    %354 = vmatpush1.msra.mxu0 0.0
    %355 = vmatprep.subr.mxu0 0.0
    %356 = vmatpush1.msra.mxu0 0.0
    %357 = vmatprep.subr.mxu0 0.0
    %358 = vmatpush1.msra.mxu0 0.0
    %359 = vmatprep.subr.mxu0 0.0
    %360 = vmatpush1.msra.mxu0 %v224
    %361 = vmatprep.subr.mxu0 0.0
    %362 = vmatpush1.msra.mxu0 %v223
    %363 = vmatprep.subr.mxu0 0.0
    %364 = vmatpush1.msra.mxu0 %v222
    %365 = vmatprep.subr.mxu0 0.0
    %366 = vmatpush1.msra.mxu0 %v221
    %367 = vmatprep.subr.mxu0 0.0
    %368 = vmatpush2.msra.mxu0 0.0
    %369 = vmatprep.subr.mxu0 0.0
    %370 = vmatpush2.msra.mxu0 0.0
    %371 = vmatprep.subr.mxu0 0.0
    %372 = vmatpush2.msra.mxu0 0.0
    %373 = vmatprep.subr.mxu0 0.0
    %374 = vmatpush2.msra.mxu0 0.0
    %375 = vmatprep.subr.mxu0 0.0
    %376 = vmatpush2.msra.mxu0 0.0
    %377 = vmatprep.subr.mxu0 0.0
    %378 = vmatpush2.msra.mxu0 0.0
    %379 = vmatprep.subr.mxu0 0.0
    %380 = vmatpush2.msra.mxu0 0.0
    %381 = vmatprep.subr.mxu0 0.0
    %382 = vmatpush2.msra.mxu0 0.0
    %383 = vmatprep.subr.mxu0 0.0
    %384 = vmatpush2.msra.mxu0 0.0
    %385 = vmatprep.subr.mxu0 0.0
    %386 = vmatpush2.msra.mxu0 0.0
    %387 = vmatprep.subr.mxu0 0.0
    %388 = vmatpush2.msra.mxu0 0.0
    %389 = vmatprep.subr.mxu0 0.0
    %390 = vmatpush2.msra.mxu0 0.0
    %391 = vmatprep.subr.mxu0 0.0
    %392 = vmatpush2.msra.mxu0 0.0
    %393 = vmatprep.subr.mxu0 0.0
    %394 = vmatpush2.msra.mxu0 0.0
    %395 = vmatprep.subr.mxu0 0.0
    %396 = vmatpush2.msra.mxu0 0.0
    %397 = vmatprep.subr.mxu0 0.0
    %398 = vmatpush2.msra.mxu0 0.0
    %399 = vmatprep.mubr.f32.mxu0 0.0
    %400 = vmatmul.mubr.f32.gmra.mxu0 %v333
    %v401 = vpop.f32.mrf.mxu0
    %v402 = vadd.f32 0.0, %v401
    %v403 = vpop.f32.mrf.mxu0
    %404 = vdwg.mxu0
    %v406 = vrot.slane %v402, 6
    %v408 = vadd.f32 %v213, %v406
    %v410 = vrot.slane %v132, 6
    %v412 = vadd.f32 %v408, %v410
    %v413 = vxor.u32 %v412, 2147483648
    %v414 = vmul.f32 %v413, 1.442695
    %v415 = vpow.pop %v414
    %v416 = vadd.f32 %v415, 1.0
    %v417 = vrcp.pop %v416
    %v418 = vmul.f32 1.0, %v417
    %v419 = vtanh.pop %v412
    %v421 = vrot.slane %v323, 6
    %v423 = vmul.f32 %v418, %v421
    %425 = vrot.lane.b32.xlu0 %v419, 32
    %v426 = vpop.permute.xlu0 %425
    %v428 = vmul.f32 %v418, %v426
    %430 = vrot.lane.b32.xlu0 %v428, 32
    %v431 = vpop.permute.xlu0 %430
    %v433 = vadd.f32 %v423, %v431
    %v434 = vtanh.pop %v433
    %436 = vrot.lane.b32.xlu0 %v434, 32
    %v437 = vpop.permute.xlu0 %436
    %v439 = vmul.f32 %v418, %v437
    %v441 = vrot.slane %v439, 2
    %442 = vrot.lane.b32.xlu0 %v441, 64
    %v443 = vpop.permute.xlu0 %442
    %v444 = vsel %vm139, %v443, 0
    %446 = vmatprep.subr.mxu0 0.0
    %447 = vmatpush1.msra.mxu0 0.0
    %448 = vmatprep.subr.mxu0 0.0
    %449 = vmatpush1.msra.mxu0 0.0
    %450 = vmatprep.subr.mxu0 0.0
    %451 = vmatpush1.msra.mxu0 0.0
    %452 = vmatprep.subr.mxu0 0.0
    %453 = vmatpush1.msra.mxu0 0.0
    %454 = vmatprep.subr.mxu0 0.0
    %455 = vmatpush1.msra.mxu0 0.0
    %456 = vmatprep.subr.mxu0 0.0
    %457 = vmatpush1.msra.mxu0 0.0
    %458 = vmatprep.subr.mxu0 0.0
    %459 = vmatpush1.msra.mxu0 0.0
    %460 = vmatprep.subr.mxu0 0.0
    %461 = vmatpush1.msra.mxu0 0.0
    %462 = vmatprep.subr.mxu0 0.0
    %463 = vmatpush1.msra.mxu0 0.0
    %464 = vmatprep.subr.mxu0 0.0
    %465 = vmatpush1.msra.mxu0 0.0
    %466 = vmatprep.subr.mxu0 0.0
    %467 = vmatpush1.msra.mxu0 0.0
    %468 = vmatprep.subr.mxu0 0.0
    %469 = vmatpush1.msra.mxu0 0.0
    %470 = vmatprep.subr.mxu0 0.0
    %471 = vmatpush1.msra.mxu0 %v224
    %472 = vmatprep.subr.mxu0 0.0
    %473 = vmatpush1.msra.mxu0 %v223
    %474 = vmatprep.subr.mxu0 0.0
    %475 = vmatpush1.msra.mxu0 %v222
    %476 = vmatprep.subr.mxu0 0.0
    %477 = vmatpush1.msra.mxu0 %v221
    %478 = vmatprep.subr.mxu0 0.0
    %479 = vmatpush2.msra.mxu0 0.0
    %480 = vmatprep.subr.mxu0 0.0
    %481 = vmatpush2.msra.mxu0 0.0
    %482 = vmatprep.subr.mxu0 0.0
    %483 = vmatpush2.msra.mxu0 0.0
    %484 = vmatprep.subr.mxu0 0.0
    %485 = vmatpush2.msra.mxu0 0.0
    %486 = vmatprep.subr.mxu0 0.0
    %487 = vmatpush2.msra.mxu0 0.0
    %488 = vmatprep.subr.mxu0 0.0
    %489 = vmatpush2.msra.mxu0 0.0
    %490 = vmatprep.subr.mxu0 0.0
    %491 = vmatpush2.msra.mxu0 0.0
    %492 = vmatprep.subr.mxu0 0.0
    %493 = vmatpush2.msra.mxu0 0.0
    %494 = vmatprep.subr.mxu0 0.0
    %495 = vmatpush2.msra.mxu0 0.0
    %496 = vmatprep.subr.mxu0 0.0
    %497 = vmatpush2.msra.mxu0 0.0
    %498 = vmatprep.subr.mxu0 0.0
    %499 = vmatpush2.msra.mxu0 0.0
    %500 = vmatprep.subr.mxu0 0.0
    %501 = vmatpush2.msra.mxu0 0.0
    %502 = vmatprep.subr.mxu0 0.0
    %503 = vmatpush2.msra.mxu0 0.0
    %504 = vmatprep.subr.mxu0 0.0
    %505 = vmatpush2.msra.mxu0 0.0
    %506 = vmatprep.subr.mxu0 0.0
    %507 = vmatpush2.msra.mxu0 0.0
    %508 = vmatprep.subr.mxu0 0.0
    %509 = vmatpush2.msra.mxu0 0.0
    %510 = vmatprep.mubr.f32.mxu0 0.0
    %511 = vmatmul.mubr.f32.gmra.mxu0 %v444
    %v512 = vpop.f32.mrf.mxu0
    %v513 = vadd.f32 0.0, %v512
    %v514 = vpop.f32.mrf.mxu0
    %515 = vdwg.mxu0
    %v517 = vrot.slane %v513, 4
    %v519 = vadd.f32 %v213, %v517
    %v520 = vrot.slane %v132, 4
    %v522 = vadd.f32 %v519, %v520
    %v523 = vxor.u32 %v522, 2147483648
    %v524 = vmul.f32 %v523, 1.442695
    %v525 = vpow.pop %v524
    %v526 = vadd.f32 %v525, 1.0
    %v527 = vrcp.pop %v526
    %v528 = vmul.f32 1.0, %v527
    %v529 = vtanh.pop %v522
    %v531 = vrot.slane %v433, 6
    %v533 = vmul.f32 %v528, %v531
    %535 = vrot.lane.b32.xlu0 %v529, 32
    %v536 = vpop.permute.xlu0 %535
    %v538 = vmul.f32 %v528, %v536
    %540 = vrot.lane.b32.xlu0 %v538, 32
    %v541 = vpop.permute.xlu0 %540
    %v543 = vadd.f32 %v533, %v541
    %v544 = vtanh.pop %v543
    %546 = vrot.lane.b32.xlu0 %v544, 32
    %v547 = vpop.permute.xlu0 %546
    %v549 = vmul.f32 %v528, %v547
    %v551 = vrot.slane %v549, 4
    %552 = vrot.lane.b32.xlu0 %v551, 64
    %v553 = vpop.permute.xlu0 %552
    %v554 = vsel %vm139, %v553, 0
    %556 = vmatprep.subr.mxu0 0.0
    %557 = vmatpush1.msra.mxu0 0.0
    %558 = vmatprep.subr.mxu0 0.0
    %559 = vmatpush1.msra.mxu0 0.0
    %560 = vmatprep.subr.mxu0 0.0
    %561 = vmatpush1.msra.mxu0 0.0
    %562 = vmatprep.subr.mxu0 0.0
    %563 = vmatpush1.msra.mxu0 0.0
    %564 = vmatprep.subr.mxu0 0.0
    %565 = vmatpush1.msra.mxu0 0.0
    %566 = vmatprep.subr.mxu0 0.0
    %567 = vmatpush1.msra.mxu0 0.0
    %568 = vmatprep.subr.mxu0 0.0
    %569 = vmatpush1.msra.mxu0 0.0
    %570 = vmatprep.subr.mxu0 0.0
    %571 = vmatpush1.msra.mxu0 0.0
    %572 = vmatprep.subr.mxu0 0.0
    %573 = vmatpush1.msra.mxu0 0.0
    %574 = vmatprep.subr.mxu0 0.0
    %575 = vmatpush1.msra.mxu0 0.0
    %576 = vmatprep.subr.mxu0 0.0
    %577 = vmatpush1.msra.mxu0 0.0
    %578 = vmatprep.subr.mxu0 0.0
    %579 = vmatpush1.msra.mxu0 0.0
    %580 = vmatprep.subr.mxu0 0.0
    %581 = vmatpush1.msra.mxu0 %v224
    %582 = vmatprep.subr.mxu0 0.0
    %583 = vmatpush1.msra.mxu0 %v223
    %584 = vmatprep.subr.mxu0 0.0
    %585 = vmatpush1.msra.mxu0 %v222
    %586 = vmatprep.subr.mxu0 0.0
    %587 = vmatpush1.msra.mxu0 %v221
    %588 = vmatprep.subr.mxu0 0.0
    %589 = vmatpush2.msra.mxu0 0.0
    %590 = vmatprep.subr.mxu0 0.0
    %591 = vmatpush2.msra.mxu0 0.0
    %592 = vmatprep.subr.mxu0 0.0
    %593 = vmatpush2.msra.mxu0 0.0
    %594 = vmatprep.subr.mxu0 0.0
    %595 = vmatpush2.msra.mxu0 0.0
    %596 = vmatprep.subr.mxu0 0.0
    %597 = vmatpush2.msra.mxu0 0.0
    %598 = vmatprep.subr.mxu0 0.0
    %599 = vmatpush2.msra.mxu0 0.0
    %600 = vmatprep.subr.mxu0 0.0
    %601 = vmatpush2.msra.mxu0 0.0
    %602 = vmatprep.subr.mxu0 0.0
    %603 = vmatpush2.msra.mxu0 0.0
    %604 = vmatprep.subr.mxu0 0.0
    %605 = vmatpush2.msra.mxu0 0.0
    %606 = vmatprep.subr.mxu0 0.0
    %607 = vmatpush2.msra.mxu0 0.0
    %608 = vmatprep.subr.mxu0 0.0
    %609 = vmatpush2.msra.mxu0 0.0
    %610 = vmatprep.subr.mxu0 0.0
    %611 = vmatpush2.msra.mxu0 0.0
    %612 = vmatprep.subr.mxu0 0.0
    %613 = vmatpush2.msra.mxu0 0.0
    %614 = vmatprep.subr.mxu0 0.0
    %615 = vmatpush2.msra.mxu0 0.0
    %616 = vmatprep.subr.mxu0 0.0
    %617 = vmatpush2.msra.mxu0 0.0
    %618 = vmatprep.subr.mxu0 0.0
    %619 = vmatpush2.msra.mxu0 0.0
    %620 = vmatprep.mubr.f32.mxu0 0.0
    %621 = vmatmul.mubr.f32.gmra.mxu0 %v554
    %v622 = vpop.f32.mrf.mxu0
    %v623 = vadd.f32 0.0, %v622
    %v624 = vpop.f32.mrf.mxu0
    %625 = vdwg.mxu0
    %v627 = vrot.slane %v623, 2
    %v629 = vadd.f32 %v213, %v627
    %v630 = vrot.slane %v132, 2
    %v632 = vadd.f32 %v629, %v630
    %v633 = vxor.u32 %v632, 2147483648
    %v634 = vmul.f32 %v633, 1.442695
    %v635 = vpow.pop %v634
    %v636 = vadd.f32 %v635, 1.0
    %v637 = vrcp.pop %v636
    %v638 = vmul.f32 1.0, %v637
    %v639 = vtanh.pop %v632
    %v641 = vrot.slane %v543, 6
    %v643 = vmul.f32 %v638, %v641
    %645 = vrot.lane.b32.xlu0 %v639, 32
    %v646 = vpop.permute.xlu0 %645
    %v648 = vmul.f32 %v638, %v646
    %650 = vrot.lane.b32.xlu0 %v648, 32
    %v651 = vpop.permute.xlu0 %650
    %v653 = vadd.f32 %v643, %v651
    %v654 = vtanh.pop %v653
    %656 = vrot.lane.b32.xlu0 %v654, 32
    %v657 = vpop.permute.xlu0 %656
    %v659 = vmul.f32 %v638, %v657
    %v661 = vrot.slane %v659, 6
    %662 = vrot.lane.b32.xlu0 %v661, 64
    %v663 = vpop.permute.xlu0 %662
    %v664 = vsel %vm139, %v663, 0
    %666 = vmatprep.subr.mxu0 0.0
    %667 = vmatpush1.msra.mxu0 0.0
    %668 = vmatprep.subr.mxu0 0.0
    %669 = vmatpush1.msra.mxu0 0.0
    %670 = vmatprep.subr.mxu0 0.0
    %671 = vmatpush1.msra.mxu0 0.0
    %672 = vmatprep.subr.mxu0 0.0
    %673 = vmatpush1.msra.mxu0 0.0
    %674 = vmatprep.subr.mxu0 0.0
    %675 = vmatpush1.msra.mxu0 0.0
    %676 = vmatprep.subr.mxu0 0.0
    %677 = vmatpush1.msra.mxu0 0.0
    %678 = vmatprep.subr.mxu0 0.0
    %679 = vmatpush1.msra.mxu0 0.0
    %680 = vmatprep.subr.mxu0 0.0
    %681 = vmatpush1.msra.mxu0 0.0
    %682 = vmatprep.subr.mxu0 0.0
    %683 = vmatpush1.msra.mxu0 0.0
    %684 = vmatprep.subr.mxu0 0.0
    %685 = vmatpush1.msra.mxu0 0.0
    %686 = vmatprep.subr.mxu0 0.0
    %687 = vmatpush1.msra.mxu0 0.0
    %688 = vmatprep.subr.mxu0 0.0
    %689 = vmatpush1.msra.mxu0 0.0
    %690 = vmatprep.subr.mxu0 0.0
    %691 = vmatpush1.msra.mxu0 %v224
    %692 = vmatprep.subr.mxu0 0.0
    %693 = vmatpush1.msra.mxu0 %v223
    %694 = vmatprep.subr.mxu0 0.0
    %695 = vmatpush1.msra.mxu0 %v222
    %696 = vmatprep.subr.mxu0 0.0
    %697 = vmatpush1.msra.mxu0 %v221
    %698 = vmatprep.subr.mxu0 0.0
    %699 = vmatpush2.msra.mxu0 0.0
    %700 = vmatprep.subr.mxu0 0.0
    %701 = vmatpush2.msra.mxu0 0.0
    %702 = vmatprep.subr.mxu0 0.0
    %703 = vmatpush2.msra.mxu0 0.0
    %704 = vmatprep.subr.mxu0 0.0
    %705 = vmatpush2.msra.mxu0 0.0
    %706 = vmatprep.subr.mxu0 0.0
    %707 = vmatpush2.msra.mxu0 0.0
    %708 = vmatprep.subr.mxu0 0.0
    %709 = vmatpush2.msra.mxu0 0.0
    %710 = vmatprep.subr.mxu0 0.0
    %711 = vmatpush2.msra.mxu0 0.0
    %712 = vmatprep.subr.mxu0 0.0
    %713 = vmatpush2.msra.mxu0 0.0
    %714 = vmatprep.subr.mxu0 0.0
    %715 = vmatpush2.msra.mxu0 0.0
    %716 = vmatprep.subr.mxu0 0.0
    %717 = vmatpush2.msra.mxu0 0.0
    %718 = vmatprep.subr.mxu0 0.0
    %719 = vmatpush2.msra.mxu0 0.0
    %720 = vmatprep.subr.mxu0 0.0
    %721 = vmatpush2.msra.mxu0 0.0
    %722 = vmatprep.subr.mxu0 0.0
    %723 = vmatpush2.msra.mxu0 0.0
    %724 = vmatprep.subr.mxu0 0.0
    %725 = vmatpush2.msra.mxu0 0.0
    %726 = vmatprep.subr.mxu0 0.0
    %727 = vmatpush2.msra.mxu0 0.0
    %728 = vmatprep.subr.mxu0 0.0
    %729 = vmatpush2.msra.mxu0 0.0
    %730 = vmatprep.mubr.f32.mxu0 0.0
    %731 = vmatmul.mubr.f32.gmra.mxu0 %v664
    %v732 = vpop.f32.mrf.mxu0
    %v733 = vadd.f32 0.0, %v732
    %v734 = vpop.f32.mrf.mxu0
    %735 = vdwg.mxu0
    %v736 = vadd.f32 %v218, %v733
    %v737 = vadd.f32 %v736, %v132
    %v738 = vxor.u32 %v737, 2147483648
    %v739 = vmul.f32 %v738, 1.442695
    %v740 = vpow.pop %v739
    %v741 = vadd.f32 %v740, 1.0
    %v742 = vrcp.pop %v741
    %v743 = vmul.f32 1.0, %v742
    %v744 = vtanh.pop %v737
    %v746 = vrot.slane %v653, 6
    %v748 = vmul.f32 %v743, %v746
    %750 = vrot.lane.b32.xlu0 %v744, 32
    %v751 = vpop.permute.xlu0 %750
    %v753 = vmul.f32 %v743, %v751
    %755 = vrot.lane.b32.xlu0 %v753, 32
    %v756 = vpop.permute.xlu0 %755
    %v758 = vadd.f32 %v748, %v756
    %v759 = vtanh.pop %v758
    %761 = vrot.lane.b32.xlu0 %v759, 32
    %v762 = vpop.permute.xlu0 %761
    %v764 = vmul.f32 %v743, %v762
    %766 = vrot.lane.b32.xlu0 %v764, 64
    %v767 = vpop.permute.xlu0 %766
    %v768 = vsel %vm139, %v767, 0
    %770 = vmatprep.subr.mxu0 0.0
    %771 = vmatpush1.msra.mxu0 0.0
    %772 = vmatprep.subr.mxu0 0.0
    %773 = vmatpush1.msra.mxu0 0.0
    %774 = vmatprep.subr.mxu0 0.0
    %775 = vmatpush1.msra.mxu0 0.0
    %776 = vmatprep.subr.mxu0 0.0
    %777 = vmatpush1.msra.mxu0 0.0
    %778 = vmatprep.subr.mxu0 0.0
    %779 = vmatpush1.msra.mxu0 0.0
    %780 = vmatprep.subr.mxu0 0.0
    %781 = vmatpush1.msra.mxu0 0.0
    %782 = vmatprep.subr.mxu0 0.0
    %783 = vmatpush1.msra.mxu0 0.0
    %784 = vmatprep.subr.mxu0 0.0
    %785 = vmatpush1.msra.mxu0 0.0
    %786 = vmatprep.subr.mxu0 0.0
    %787 = vmatpush1.msra.mxu0 0.0
    %788 = vmatprep.subr.mxu0 0.0
    %789 = vmatpush1.msra.mxu0 0.0
    %790 = vmatprep.subr.mxu0 0.0
    %791 = vmatpush1.msra.mxu0 0.0
    %792 = vmatprep.subr.mxu0 0.0
    %793 = vmatpush1.msra.mxu0 0.0
    %794 = vmatprep.subr.mxu0 0.0
    %795 = vmatpush1.msra.mxu0 %v224
    %796 = vmatprep.subr.mxu0 0.0
    %797 = vmatpush1.msra.mxu0 %v223
    %798 = vmatprep.subr.mxu0 0.0
    %799 = vmatpush1.msra.mxu0 %v222
    %800 = vmatprep.subr.mxu0 0.0
    %801 = vmatpush1.msra.mxu0 %v221
    %802 = vmatprep.subr.mxu0 0.0
    %803 = vmatpush2.msra.mxu0 0.0
    %804 = vmatprep.subr.mxu0 0.0
    %805 = vmatpush2.msra.mxu0 0.0
    %806 = vmatprep.subr.mxu0 0.0
    %807 = vmatpush2.msra.mxu0 0.0
    %808 = vmatprep.subr.mxu0 0.0
    %809 = vmatpush2.msra.mxu0 0.0
    %810 = vmatprep.subr.mxu0 0.0
    %811 = vmatpush2.msra.mxu0 0.0
    %812 = vmatprep.subr.mxu0 0.0
    %813 = vmatpush2.msra.mxu0 0.0
    %814 = vmatprep.subr.mxu0 0.0
    %815 = vmatpush2.msra.mxu0 0.0
    %816 = vmatprep.subr.mxu0 0.0
    %817 = vmatpush2.msra.mxu0 0.0
    %818 = vmatprep.subr.mxu0 0.0
    %819 = vmatpush2.msra.mxu0 0.0
    %820 = vmatprep.subr.mxu0 0.0
    %821 = vmatpush2.msra.mxu0 0.0
    %822 = vmatprep.subr.mxu0 0.0
    %823 = vmatpush2.msra.mxu0 0.0
    %824 = vmatprep.subr.mxu0 0.0
    %825 = vmatpush2.msra.mxu0 0.0
    %826 = vmatprep.subr.mxu0 0.0
    %827 = vmatpush2.msra.mxu0 0.0
    %828 = vmatprep.subr.mxu0 0.0
    %829 = vmatpush2.msra.mxu0 0.0
    %830 = vmatprep.subr.mxu0 0.0
    %831 = vmatpush2.msra.mxu0 0.0
    %832 = vmatprep.subr.mxu0 0.0
    %833 = vmatpush2.msra.mxu0 0.0
    %834 = vmatprep.mubr.f32.mxu0 0.0
    %835 = vmatmul.mubr.f32.gmra.mxu0 %v768
    %v836 = vpop.f32.mrf.mxu0
    %v837 = vadd.f32 0.0, %v836
    %v838 = vpop.f32.mrf.mxu0
    %839 = vdwg.mxu0
    %v841 = vrot.slane %v837, 6
    %v843 = vadd.f32 %v218, %v841
    %v844 = vadd.f32 %v843, %v410
    %v845 = vxor.u32 %v844, 2147483648
    %v846 = vmul.f32 %v845, 1.442695
    %v847 = vpow.pop %v846
    %v848 = vadd.f32 %v847, 1.0
    %v849 = vrcp.pop %v848
    %v850 = vmul.f32 1.0, %v849
    %v851 = vtanh.pop %v844
    %v853 = vrot.slane %v758, 6
    %v855 = vmul.f32 %v850, %v853
    %857 = vrot.lane.b32.xlu0 %v851, 32
    %v858 = vpop.permute.xlu0 %857
    %v860 = vmul.f32 %v850, %v858
    %862 = vrot.lane.b32.xlu0 %v860, 32
    %v863 = vpop.permute.xlu0 %862
    %v865 = vadd.f32 %v855, %v863
    %v866 = vtanh.pop %v865
    %868 = vrot.lane.b32.xlu0 %v866, 32
    %v869 = vpop.permute.xlu0 %868
    %v871 = vmul.f32 %v850, %v869
    %v873 = vrot.slane %v871, 2
    %874 = vrot.lane.b32.xlu0 %v873, 64
    %v875 = vpop.permute.xlu0 %874
    %v876 = vsel %vm139, %v875, 0
    %878 = vmatprep.subr.mxu0 0.0
    %879 = vmatpush1.msra.mxu0 0.0
    %880 = vmatprep.subr.mxu0 0.0
    %881 = vmatpush1.msra.mxu0 0.0
    %882 = vmatprep.subr.mxu0 0.0
    %883 = vmatpush1.msra.mxu0 0.0
    %884 = vmatprep.subr.mxu0 0.0
    %885 = vmatpush1.msra.mxu0 0.0
    %886 = vmatprep.subr.mxu0 0.0
    %887 = vmatpush1.msra.mxu0 0.0
    %888 = vmatprep.subr.mxu0 0.0
    %889 = vmatpush1.msra.mxu0 0.0
    %890 = vmatprep.subr.mxu0 0.0
    %891 = vmatpush1.msra.mxu0 0.0
    %892 = vmatprep.subr.mxu0 0.0
    %893 = vmatpush1.msra.mxu0 0.0
    %894 = vmatprep.subr.mxu0 0.0
    %895 = vmatpush1.msra.mxu0 0.0
    %896 = vmatprep.subr.mxu0 0.0
    %897 = vmatpush1.msra.mxu0 0.0
    %898 = vmatprep.subr.mxu0 0.0
    %899 = vmatpush1.msra.mxu0 0.0
    %900 = vmatprep.subr.mxu0 0.0
    %901 = vmatpush1.msra.mxu0 0.0
    %902 = vmatprep.subr.mxu0 0.0
    %903 = vmatpush1.msra.mxu0 %v224
    %904 = vmatprep.subr.mxu0 0.0
    %905 = vmatpush1.msra.mxu0 %v223
    %906 = vmatprep.subr.mxu0 0.0
    %907 = vmatpush1.msra.mxu0 %v222
    %908 = vmatprep.subr.mxu0 0.0
    %909 = vmatpush1.msra.mxu0 %v221
    %910 = vmatprep.subr.mxu0 0.0
    %911 = vmatpush2.msra.mxu0 0.0
    %912 = vmatprep.subr.mxu0 0.0
    %913 = vmatpush2.msra.mxu0 0.0
    %914 = vmatprep.subr.mxu0 0.0
    %915 = vmatpush2.msra.mxu0 0.0
    %916 = vmatprep.subr.mxu0 0.0
    %917 = vmatpush2.msra.mxu0 0.0
    %918 = vmatprep.subr.mxu0 0.0
    %919 = vmatpush2.msra.mxu0 0.0
    %920 = vmatprep.subr.mxu0 0.0
    %921 = vmatpush2.msra.mxu0 0.0
    %922 = vmatprep.subr.mxu0 0.0
    %923 = vmatpush2.msra.mxu0 0.0
    %924 = vmatprep.subr.mxu0 0.0
    %925 = vmatpush2.msra.mxu0 0.0
    %926 = vmatprep.subr.mxu0 0.0
    %927 = vmatpush2.msra.mxu0 0.0
    %928 = vmatprep.subr.mxu0 0.0
    %929 = vmatpush2.msra.mxu0 0.0
    %930 = vmatprep.subr.mxu0 0.0
    %931 = vmatpush2.msra.mxu0 0.0
    %932 = vmatprep.subr.mxu0 0.0
    %933 = vmatpush2.msra.mxu0 0.0
    %934 = vmatprep.subr.mxu0 0.0
    %935 = vmatpush2.msra.mxu0 0.0
    %936 = vmatprep.subr.mxu0 0.0
    %937 = vmatpush2.msra.mxu0 0.0
    %938 = vmatprep.subr.mxu0 0.0
    %939 = vmatpush2.msra.mxu0 0.0
    %940 = vmatprep.subr.mxu0 0.0
    %941 = vmatpush2.msra.mxu0 0.0
    %942 = vmatprep.mubr.f32.mxu0 0.0
    %943 = vmatmul.mubr.f32.gmra.mxu0 %v876
    %v944 = vpop.f32.mrf.mxu0
    %v945 = vadd.f32 0.0, %v944
    %v946 = vpop.f32.mrf.mxu0
    %947 = vdwg.mxu0
    %v949 = vrot.slane %v945, 4
    %v951 = vadd.f32 %v218, %v949
    %v952 = vadd.f32 %v951, %v520
    %v953 = vxor.u32 %v952, 2147483648
    %v954 = vmul.f32 %v953, 1.442695
    %v955 = vpow.pop %v954
    %v956 = vadd.f32 %v955, 1.0
    %v957 = vrcp.pop %v956
    %v958 = vmul.f32 1.0, %v957
    %v959 = vtanh.pop %v952
    %v961 = vrot.slane %v865, 6
    %v963 = vmul.f32 %v958, %v961
    %965 = vrot.lane.b32.xlu0 %v959, 32
    %v966 = vpop.permute.xlu0 %965
    %v968 = vmul.f32 %v958, %v966
    %970 = vrot.lane.b32.xlu0 %v968, 32
    %v971 = vpop.permute.xlu0 %970
    %v973 = vadd.f32 %v963, %v971
    %v974 = vtanh.pop %v973
    %976 = vrot.lane.b32.xlu0 %v974, 32
    %v977 = vpop.permute.xlu0 %976
    %v979 = vmul.f32 %v958, %v977
    %v981 = vrot.slane %v979, 4
    %982 = vrot.lane.b32.xlu0 %v981, 64
    %v983 = vpop.permute.xlu0 %982
    %v984 = vsel %vm139, %v983, 0
    %986 = vmatprep.subr.mxu0 0.0
    %987 = vmatpush1.msra.mxu0 0.0
    %988 = vmatprep.subr.mxu0 0.0
    %989 = vmatpush1.msra.mxu0 0.0
    %990 = vmatprep.subr.mxu0 0.0
    %991 = vmatpush1.msra.mxu0 0.0
    %992 = vmatprep.subr.mxu0 0.0
    %993 = vmatpush1.msra.mxu0 0.0
    %994 = vmatprep.subr.mxu0 0.0
    %995 = vmatpush1.msra.mxu0 0.0
    %996 = vmatprep.subr.mxu0 0.0
    %997 = vmatpush1.msra.mxu0 0.0
    %998 = vmatprep.subr.mxu0 0.0
    %999 = vmatpush1.msra.mxu0 0.0
    %1000 = vmatprep.subr.mxu0 0.0
    %1001 = vmatpush1.msra.mxu0 0.0
    %1002 = vmatprep.subr.mxu0 0.0
    %1003 = vmatpush1.msra.mxu0 0.0
    %1004 = vmatprep.subr.mxu0 0.0
    %1005 = vmatpush1.msra.mxu0 0.0
    %1006 = vmatprep.subr.mxu0 0.0
    %1007 = vmatpush1.msra.mxu0 0.0
    %1008 = vmatprep.subr.mxu0 0.0
    %1009 = vmatpush1.msra.mxu0 0.0
    %1010 = vmatprep.subr.mxu0 0.0
    %1011 = vmatpush1.msra.mxu0 %v224
    %1012 = vmatprep.subr.mxu0 0.0
    %1013 = vmatpush1.msra.mxu0 %v223
    %1014 = vmatprep.subr.mxu0 0.0
    %1015 = vmatpush1.msra.mxu0 %v222
    %1016 = vmatprep.subr.mxu0 0.0
    %1017 = vmatpush1.msra.mxu0 %v221
    %1018 = vmatprep.subr.mxu0 0.0
    %1019 = vmatpush2.msra.mxu0 0.0
    %1020 = vmatprep.subr.mxu0 0.0
    %1021 = vmatpush2.msra.mxu0 0.0
    %1022 = vmatprep.subr.mxu0 0.0
    %1023 = vmatpush2.msra.mxu0 0.0
    %1024 = vmatprep.subr.mxu0 0.0
    %1025 = vmatpush2.msra.mxu0 0.0
    %1026 = vmatprep.subr.mxu0 0.0
    %1027 = vmatpush2.msra.mxu0 0.0
    %1028 = vmatprep.subr.mxu0 0.0
    %1029 = vmatpush2.msra.mxu0 0.0
    %1030 = vmatprep.subr.mxu0 0.0
    %1031 = vmatpush2.msra.mxu0 0.0
    %1032 = vmatprep.subr.mxu0 0.0
    %1033 = vmatpush2.msra.mxu0 0.0
    %1034 = vmatprep.subr.mxu0 0.0
    %1035 = vmatpush2.msra.mxu0 0.0
    %1036 = vmatprep.subr.mxu0 0.0
    %1037 = vmatpush2.msra.mxu0 0.0
    %1038 = vmatprep.subr.mxu0 0.0
    %1039 = vmatpush2.msra.mxu0 0.0
    %1040 = vmatprep.subr.mxu0 0.0
    %1041 = vmatpush2.msra.mxu0 0.0
    %1042 = vmatprep.subr.mxu0 0.0
    %1043 = vmatpush2.msra.mxu0 0.0
    %1044 = vmatprep.subr.mxu0 0.0
    %1045 = vmatpush2.msra.mxu0 0.0
    %1046 = vmatprep.subr.mxu0 0.0
    %1047 = vmatpush2.msra.mxu0 0.0
    %1048 = vmatprep.subr.mxu0 0.0
    %1049 = vmatpush2.msra.mxu0 0.0
    %1050 = vmatprep.mubr.f32.mxu0 0.0
    %1051 = vmatmul.mubr.f32.gmra.mxu0 %v984
    %v1052 = vpop.f32.mrf.mxu0
    %v1053 = vadd.f32 0.0, %v1052
    %v1054 = vpop.f32.mrf.mxu0
    %1055 = vdwg.mxu0
    %v1057 = vrot.slane %v1053, 2
    %v1059 = vadd.f32 %v218, %v1057
    %v1060 = vadd.f32 %v1059, %v630
    %v1061 = vxor.u32 %v1060, 2147483648
    %v1062 = vmul.f32 %v1061, 1.442695
    %v1063 = vpow.pop %v1062
    %v1064 = vadd.f32 %v1063, 1.0
    %v1065 = vrcp.pop %v1064
    %v1066 = vmul.f32 1.0, %v1065
    %v1067 = vtanh.pop %v1060
    %v1069 = vrot.slane %v973, 6
    %v1071 = vmul.f32 %v1066, %v1069
    %1073 = vrot.lane.b32.xlu0 %v1067, 32
    %v1074 = vpop.permute.xlu0 %1073
    %v1076 = vmul.f32 %v1066, %v1074
    %1078 = vrot.lane.b32.xlu0 %v1076, 32
    %v1079 = vpop.permute.xlu0 %1078
    %v1081 = vadd.f32 %v1071, %v1079
    %v1082 = vtanh.pop %v1081
    %1084 = vrot.lane.b32.xlu0 %v1082, 32
    %v1085 = vpop.permute.xlu0 %1084
    %v1087 = vmul.f32 %v1066, %v1085
    %1089 = vrot.lane.b32.xlu0 %v1087, 64
    %v1090 = vpop.permute.xlu0 %1089
    %vm1092 = vcmask 261126
    %1093 = vst.msk [vmem:[#allocation2 - $0x6] sm:$0xc0] %vm1092, %v1090
    %1095 = vrot.lane.b32.xlu0 %v1081, 96
    %v1096 = vpop.permute.xlu0 %1095
    %1098 = vst.msk [vmem:[#allocation4 - $0x6] sm:$0xc0] %vm1092, %v1096
    %vm1099 = vcmask 1041408
    %v1100 = vsel %vm1099, %v329, %v439
    %vm1101 = vcmask 1043456
    %v1102 = vsel %vm1101, %v1100, %v549
    %vm1103 = vcmask 1045504
    %v1104 = vsel %vm1103, %v1102, %v659
    %v1105 = vsel %vm1099, %v764, %v871
    %v1106 = vsel %vm1101, %v1105, %v979
    %v1107 = vsel %vm1103, %v1106, %v1087
    %v1108 = vld [vmem:[%s6] sm:$0xff]
    %v1109 = vld [vmem:[%s6 + $0x8] sm:$0xff]
    %v1110 = vld [vmem:[%s6 + $0x10] sm:$0xff]
    %v1111 = vld [vmem:[%s6 + $0x18] sm:$0xff]
    %v1112 = vld [vmem:[%s8] sm:$0x1]
    %v1114 = vlaneseq
    %v1115 = vshrl.u32 %v1114, 7
    %v1116 = vsub.s32 0, %v1115
    %v1117 = vrot.slane %v1112, %v1116
    %1121 = vrot.lane.b32.xlu0 %v1104, 64
    %v1122 = vpop.permute.xlu0 %1121
    %1123 = vrot.lane.b32.xlu0 %v1107, 64
    %v1124 = vpop.permute.xlu0 %1123
    %v1125 = vsel %vm139, %v1122, 0
    %v1127 = vsel %vm139, %v1124, 0
    %1129 = vmatprep.subr.mxu0 0.0
    %1130 = vmatpush1.msra.mxu0 0.0
    %1131 = vmatprep.subr.mxu0 0.0
    %1132 = vmatpush1.msra.mxu0 0.0
    %1133 = vmatprep.subr.mxu0 0.0
    %1134 = vmatpush1.msra.mxu0 0.0
    %1135 = vmatprep.subr.mxu0 0.0
    %1136 = vmatpush1.msra.mxu0 0.0
    %1137 = vmatprep.subr.mxu0 0.0
    %1138 = vmatpush1.msra.mxu0 0.0
    %1139 = vmatprep.subr.mxu0 0.0
    %1140 = vmatpush1.msra.mxu0 0.0
    %1141 = vmatprep.subr.mxu0 0.0
    %1142 = vmatpush1.msra.mxu0 0.0
    %1143 = vmatprep.subr.mxu0 0.0
    %1144 = vmatpush1.msra.mxu0 0.0
    %1145 = vmatprep.subr.mxu0 0.0
    %1146 = vmatpush1.msra.mxu0 0.0
    %1147 = vmatprep.subr.mxu0 0.0
    %1148 = vmatpush1.msra.mxu0 0.0
    %1149 = vmatprep.subr.mxu0 0.0
    %1150 = vmatpush1.msra.mxu0 0.0
    %1151 = vmatprep.subr.mxu0 0.0
    %1152 = vmatpush1.msra.mxu0 0.0
    %1153 = vmatprep.subr.mxu0 0.0
    %1154 = vmatpush1.msra.mxu0 %v1111
    %1155 = vmatprep.subr.mxu0 0.0
    %1156 = vmatpush1.msra.mxu0 %v1110
    %1157 = vmatprep.subr.mxu0 0.0
    %1158 = vmatpush1.msra.mxu0 %v1109
    %1159 = vmatprep.subr.mxu0 0.0
    %1160 = vmatpush1.msra.mxu0 %v1108
    %1161 = vmatprep.subr.mxu0 0.0
    %1162 = vmatpush2.msra.mxu0 0.0
    %1163 = vmatprep.subr.mxu0 0.0
    %1164 = vmatpush2.msra.mxu0 0.0
    %1165 = vmatprep.subr.mxu0 0.0
    %1166 = vmatpush2.msra.mxu0 0.0
    %1167 = vmatprep.subr.mxu0 0.0
    %1168 = vmatpush2.msra.mxu0 0.0
    %1169 = vmatprep.subr.mxu0 0.0
    %1170 = vmatpush2.msra.mxu0 0.0
    %1171 = vmatprep.subr.mxu0 0.0
    %1172 = vmatpush2.msra.mxu0 0.0
    %1173 = vmatprep.subr.mxu0 0.0
    %1174 = vmatpush2.msra.mxu0 0.0
    %1175 = vmatprep.subr.mxu0 0.0
    %1176 = vmatpush2.msra.mxu0 0.0
    %1177 = vmatprep.subr.mxu0 0.0
    %1178 = vmatpush2.msra.mxu0 0.0
    %1179 = vmatprep.subr.mxu0 0.0
    %1180 = vmatpush2.msra.mxu0 0.0
    %1181 = vmatprep.subr.mxu0 0.0
    %1182 = vmatpush2.msra.mxu0 0.0
    %1183 = vmatprep.subr.mxu0 0.0
    %1184 = vmatpush2.msra.mxu0 0.0
    %1185 = vmatprep.subr.mxu0 0.0
    %1186 = vmatpush2.msra.mxu0 0.0
    %1187 = vmatprep.subr.mxu0 0.0
    %1188 = vmatpush2.msra.mxu0 0.0
    %1189 = vmatprep.subr.mxu0 0.0
    %1190 = vmatpush2.msra.mxu0 0.0
    %1191 = vmatprep.subr.mxu0 0.0
    %1192 = vmatpush2.msra.mxu0 0.0
    %1193 = vmatprep.mubr.f32.mxu0 0.0
    %1194 = vmatmul.mubr.f32.gmra.mxu0 %v1125
    %v1195 = vpop.f32.mrf.mxu0
    %v1196 = vadd.f32 %v1117, %v1195
    %v1197 = vpop.f32.mrf.mxu0
    %1198 = vmatprep.mubr.f32.mxu0 0.0
    %1199 = vmatmul.mubr.f32.gmra.mxu0 %v1127
    %v1200 = vpop.f32.mrf.mxu0
    %v1201 = vadd.f32 %v1117, %v1200
    %v1202 = vpop.f32.mrf.mxu0
    %1203 = vdwg.mxu0
    %v1204 = vld [vmem:[%s7] sm:$0xff]
    %v1205 = vld [vmem:[%s7 + $0x8] sm:$0xff]
    %v1206 = vld [vmem:[%s7 + $0x10] sm:$0xff]
    %v1207 = vld [vmem:[%s7 + $0x18] sm:$0xff]
    %s1208 = scalar_lea.vmem %s11, 2
    %v1209 = vld [vmem:[%s1208] sm:$0x3]
    %s1210 = scalar_lea.vmem %s12, 2
    %v1211 = vld [vmem:[%s1210] sm:$0x3]
    %v1213 = vsel %vm139, %v1209, 0
    %1215 = vmatprep.subr.mxu0 0.0
    %1216 = vmatpush1.msra.mxu0 0.0
    %1217 = vmatprep.subr.mxu0 0.0
    %1218 = vmatpush1.msra.mxu0 0.0
    %1219 = vmatprep.subr.mxu0 0.0
    %1220 = vmatpush1.msra.mxu0 0.0
    %1221 = vmatprep.subr.mxu0 0.0
    %1222 = vmatpush1.msra.mxu0 0.0
    %1223 = vmatprep.subr.mxu0 0.0
    %1224 = vmatpush1.msra.mxu0 0.0
    %1225 = vmatprep.subr.mxu0 0.0
    %1226 = vmatpush1.msra.mxu0 0.0
    %1227 = vmatprep.subr.mxu0 0.0
    %1228 = vmatpush1.msra.mxu0 0.0
    %1229 = vmatprep.subr.mxu0 0.0
    %1230 = vmatpush1.msra.mxu0 0.0
    %1231 = vmatprep.subr.mxu0 0.0
    %1232 = vmatpush1.msra.mxu0 0.0
    %1233 = vmatprep.subr.mxu0 0.0
    %1234 = vmatpush1.msra.mxu0 0.0
    %1235 = vmatprep.subr.mxu0 0.0
    %1236 = vmatpush1.msra.mxu0 0.0
    %1237 = vmatprep.subr.mxu0 0.0
    %1238 = vmatpush1.msra.mxu0 0.0
    %1239 = vmatprep.subr.mxu0 0.0
    %1240 = vmatpush1.msra.mxu0 %v1207
    %1241 = vmatprep.subr.mxu0 0.0
    %1242 = vmatpush1.msra.mxu0 %v1206
    %1243 = vmatprep.subr.mxu0 0.0
    %1244 = vmatpush1.msra.mxu0 %v1205
    %1245 = vmatprep.subr.mxu0 0.0
    %1246 = vmatpush1.msra.mxu0 %v1204
    %1247 = vmatprep.subr.mxu0 0.0
    %1248 = vmatpush2.msra.mxu0 0.0
    %1249 = vmatprep.subr.mxu0 0.0
    %1250 = vmatpush2.msra.mxu0 0.0
    %1251 = vmatprep.subr.mxu0 0.0
    %1252 = vmatpush2.msra.mxu0 0.0
    %1253 = vmatprep.subr.mxu0 0.0
    %1254 = vmatpush2.msra.mxu0 0.0
    %1255 = vmatprep.subr.mxu0 0.0
    %1256 = vmatpush2.msra.mxu0 0.0
    %1257 = vmatprep.subr.mxu0 0.0
    %1258 = vmatpush2.msra.mxu0 0.0
    %1259 = vmatprep.subr.mxu0 0.0
    %1260 = vmatpush2.msra.mxu0 0.0
    %1261 = vmatprep.subr.mxu0 0.0
    %1262 = vmatpush2.msra.mxu0 0.0
    %1263 = vmatprep.subr.mxu0 0.0
    %1264 = vmatpush2.msra.mxu0 0.0
    %1265 = vmatprep.subr.mxu0 0.0
    %1266 = vmatpush2.msra.mxu0 0.0
    %1267 = vmatprep.subr.mxu0 0.0
    %1268 = vmatpush2.msra.mxu0 0.0
    %1269 = vmatprep.subr.mxu0 0.0
    %1270 = vmatpush2.msra.mxu0 0.0
    %1271 = vmatprep.subr.mxu0 0.0
    %1272 = vmatpush2.msra.mxu0 0.0
    %1273 = vmatprep.subr.mxu0 0.0
    %1274 = vmatpush2.msra.mxu0 0.0
    %1275 = vmatprep.subr.mxu0 0.0
    %1276 = vmatpush2.msra.mxu0 0.0
    %1277 = vmatprep.subr.mxu0 0.0
    %1278 = vmatpush2.msra.mxu0 0.0
    %1279 = vmatprep.mubr.f32.mxu0 0.0
    %1280 = vmatmul.mubr.f32.gmra.mxu0 %v1213
    %v1281 = vpop.f32.mrf.mxu0
    %v1282 = vadd.f32 0.0, %v1281
    %v1283 = vpop.f32.mrf.mxu0
    %1284 = vdwg.mxu0
    %v1285 = vadd.f32 %v1196, %v1282
    %v1286 = vxor.u32 %v1285, 2147483648
    %v1287 = vmul.f32 %v1286, 1.442695
    %v1288 = vpow.pop %v1287
    %v1289 = vadd.f32 %v1288, 1.0
    %v1290 = vrcp.pop %v1289
    %v1291 = vmul.f32 1.0, %v1290
    %v1292 = vtanh.pop %v1285
    %1294 = vrot.lane.b32.xlu0 %v1211, 32
    %v1295 = vpop.permute.xlu0 %1294
    %v1297 = vmul.f32 %v1291, %v1295
    %1299 = vrot.lane.b32.xlu0 %v1292, 32
    %v1300 = vpop.permute.xlu0 %1299
    %v1302 = vmul.f32 %v1291, %v1300
    %1304 = vrot.lane.b32.xlu0 %v1302, 32
    %v1305 = vpop.permute.xlu0 %1304
    %v1307 = vadd.f32 %v1297, %v1305
    %v1308 = vtanh.pop %v1307
    %1310 = vrot.lane.b32.xlu0 %v1308, 32
    %v1311 = vpop.permute.xlu0 %1310
    %v1313 = vmul.f32 %v1291, %v1311
    %1315 = vrot.lane.b32.xlu0 %v1313, 64
    %v1316 = vpop.permute.xlu0 %1315
    %v1317 = vsel %vm139, %v1316, 0
    %1319 = vmatprep.subr.mxu0 0.0
    %1320 = vmatpush1.msra.mxu0 0.0
    %1321 = vmatprep.subr.mxu0 0.0
    %1322 = vmatpush1.msra.mxu0 0.0
    %1323 = vmatprep.subr.mxu0 0.0
    %1324 = vmatpush1.msra.mxu0 0.0
    %1325 = vmatprep.subr.mxu0 0.0
    %1326 = vmatpush1.msra.mxu0 0.0
    %1327 = vmatprep.subr.mxu0 0.0
    %1328 = vmatpush1.msra.mxu0 0.0
    %1329 = vmatprep.subr.mxu0 0.0
    %1330 = vmatpush1.msra.mxu0 0.0
    %1331 = vmatprep.subr.mxu0 0.0
    %1332 = vmatpush1.msra.mxu0 0.0
    %1333 = vmatprep.subr.mxu0 0.0
    %1334 = vmatpush1.msra.mxu0 0.0
    %1335 = vmatprep.subr.mxu0 0.0
    %1336 = vmatpush1.msra.mxu0 0.0
    %1337 = vmatprep.subr.mxu0 0.0
    %1338 = vmatpush1.msra.mxu0 0.0
    %1339 = vmatprep.subr.mxu0 0.0
    %1340 = vmatpush1.msra.mxu0 0.0
    %1341 = vmatprep.subr.mxu0 0.0
    %1342 = vmatpush1.msra.mxu0 0.0
    %1343 = vmatprep.subr.mxu0 0.0
    %1344 = vmatpush1.msra.mxu0 %v1207
    %1345 = vmatprep.subr.mxu0 0.0
    %1346 = vmatpush1.msra.mxu0 %v1206
    %1347 = vmatprep.subr.mxu0 0.0
    %1348 = vmatpush1.msra.mxu0 %v1205
    %1349 = vmatprep.subr.mxu0 0.0
    %1350 = vmatpush1.msra.mxu0 %v1204
    %1351 = vmatprep.subr.mxu0 0.0
    %1352 = vmatpush2.msra.mxu0 0.0
    %1353 = vmatprep.subr.mxu0 0.0
    %1354 = vmatpush2.msra.mxu0 0.0
    %1355 = vmatprep.subr.mxu0 0.0
    %1356 = vmatpush2.msra.mxu0 0.0
    %1357 = vmatprep.subr.mxu0 0.0
    %1358 = vmatpush2.msra.mxu0 0.0
    %1359 = vmatprep.subr.mxu0 0.0
    %1360 = vmatpush2.msra.mxu0 0.0
    %1361 = vmatprep.subr.mxu0 0.0
    %1362 = vmatpush2.msra.mxu0 0.0
    %1363 = vmatprep.subr.mxu0 0.0
    %1364 = vmatpush2.msra.mxu0 0.0
    %1365 = vmatprep.subr.mxu0 0.0
    %1366 = vmatpush2.msra.mxu0 0.0
    %1367 = vmatprep.subr.mxu0 0.0
    %1368 = vmatpush2.msra.mxu0 0.0
    %1369 = vmatprep.subr.mxu0 0.0
    %1370 = vmatpush2.msra.mxu0 0.0
    %1371 = vmatprep.subr.mxu0 0.0
    %1372 = vmatpush2.msra.mxu0 0.0
    %1373 = vmatprep.subr.mxu0 0.0
    %1374 = vmatpush2.msra.mxu0 0.0
    %1375 = vmatprep.subr.mxu0 0.0
    %1376 = vmatpush2.msra.mxu0 0.0
    %1377 = vmatprep.subr.mxu0 0.0
    %1378 = vmatpush2.msra.mxu0 0.0
    %1379 = vmatprep.subr.mxu0 0.0
    %1380 = vmatpush2.msra.mxu0 0.0
    %1381 = vmatprep.subr.mxu0 0.0
    %1382 = vmatpush2.msra.mxu0 0.0
    %1383 = vmatprep.mubr.f32.mxu0 0.0
    %1384 = vmatmul.mubr.f32.gmra.mxu0 %v1317
    %v1385 = vpop.f32.mrf.mxu0
    %v1386 = vadd.f32 0.0, %v1385
    %v1387 = vpop.f32.mrf.mxu0
    %1388 = vdwg.mxu0
    %v1390 = vrot.slane %v1386, 6
    %v1392 = vadd.f32 %v1196, %v1390
    %v1393 = vxor.u32 %v1392, 2147483648
    %v1394 = vmul.f32 %v1393, 1.442695
    %v1395 = vpow.pop %v1394
    %v1396 = vadd.f32 %v1395, 1.0
    %v1397 = vrcp.pop %v1396
    %v1398 = vmul.f32 1.0, %v1397
    %v1399 = vtanh.pop %v1392
    %v1401 = vrot.slane %v1307, 6
    %v1403 = vmul.f32 %v1398, %v1401
    %1405 = vrot.lane.b32.xlu0 %v1399, 32
    %v1406 = vpop.permute.xlu0 %1405
    %v1408 = vmul.f32 %v1398, %v1406
    %1410 = vrot.lane.b32.xlu0 %v1408, 32
    %v1411 = vpop.permute.xlu0 %1410
    %v1413 = vadd.f32 %v1403, %v1411
    %v1414 = vtanh.pop %v1413
    %1416 = vrot.lane.b32.xlu0 %v1414, 32
    %v1417 = vpop.permute.xlu0 %1416
    %v1419 = vmul.f32 %v1398, %v1417
    %v1421 = vrot.slane %v1419, 2
    %1422 = vrot.lane.b32.xlu0 %v1421, 64
    %v1423 = vpop.permute.xlu0 %1422
    %v1424 = vsel %vm139, %v1423, 0
    %1426 = vmatprep.subr.mxu0 0.0
    %1427 = vmatpush1.msra.mxu0 0.0
    %1428 = vmatprep.subr.mxu0 0.0
    %1429 = vmatpush1.msra.mxu0 0.0
    %1430 = vmatprep.subr.mxu0 0.0
    %1431 = vmatpush1.msra.mxu0 0.0
    %1432 = vmatprep.subr.mxu0 0.0
    %1433 = vmatpush1.msra.mxu0 0.0
    %1434 = vmatprep.subr.mxu0 0.0
    %1435 = vmatpush1.msra.mxu0 0.0
    %1436 = vmatprep.subr.mxu0 0.0
    %1437 = vmatpush1.msra.mxu0 0.0
    %1438 = vmatprep.subr.mxu0 0.0
    %1439 = vmatpush1.msra.mxu0 0.0
    %1440 = vmatprep.subr.mxu0 0.0
    %1441 = vmatpush1.msra.mxu0 0.0
    %1442 = vmatprep.subr.mxu0 0.0
    %1443 = vmatpush1.msra.mxu0 0.0
    %1444 = vmatprep.subr.mxu0 0.0
    %1445 = vmatpush1.msra.mxu0 0.0
    %1446 = vmatprep.subr.mxu0 0.0
    %1447 = vmatpush1.msra.mxu0 0.0
    %1448 = vmatprep.subr.mxu0 0.0
    %1449 = vmatpush1.msra.mxu0 0.0
    %1450 = vmatprep.subr.mxu0 0.0
    %1451 = vmatpush1.msra.mxu0 %v1207
    %1452 = vmatprep.subr.mxu0 0.0
    %1453 = vmatpush1.msra.mxu0 %v1206
    %1454 = vmatprep.subr.mxu0 0.0
    %1455 = vmatpush1.msra.mxu0 %v1205
    %1456 = vmatprep.subr.mxu0 0.0
    %1457 = vmatpush1.msra.mxu0 %v1204
    %1458 = vmatprep.subr.mxu0 0.0
    %1459 = vmatpush2.msra.mxu0 0.0
    %1460 = vmatprep.subr.mxu0 0.0
    %1461 = vmatpush2.msra.mxu0 0.0
    %1462 = vmatprep.subr.mxu0 0.0
    %1463 = vmatpush2.msra.mxu0 0.0
    %1464 = vmatprep.subr.mxu0 0.0
    %1465 = vmatpush2.msra.mxu0 0.0
    %1466 = vmatprep.subr.mxu0 0.0
    %1467 = vmatpush2.msra.mxu0 0.0
    %1468 = vmatprep.subr.mxu0 0.0
    %1469 = vmatpush2.msra.mxu0 0.0
    %1470 = vmatprep.subr.mxu0 0.0
    %1471 = vmatpush2.msra.mxu0 0.0
    %1472 = vmatprep.subr.mxu0 0.0
    %1473 = vmatpush2.msra.mxu0 0.0
    %1474 = vmatprep.subr.mxu0 0.0
    %1475 = vmatpush2.msra.mxu0 0.0
    %1476 = vmatprep.subr.mxu0 0.0
    %1477 = vmatpush2.msra.mxu0 0.0
    %1478 = vmatprep.subr.mxu0 0.0
    %1479 = vmatpush2.msra.mxu0 0.0
    %1480 = vmatprep.subr.mxu0 0.0
    %1481 = vmatpush2.msra.mxu0 0.0
    %1482 = vmatprep.subr.mxu0 0.0
    %1483 = vmatpush2.msra.mxu0 0.0
    %1484 = vmatprep.subr.mxu0 0.0
    %1485 = vmatpush2.msra.mxu0 0.0
    %1486 = vmatprep.subr.mxu0 0.0
    %1487 = vmatpush2.msra.mxu0 0.0
    %1488 = vmatprep.subr.mxu0 0.0
    %1489 = vmatpush2.msra.mxu0 0.0
    %1490 = vmatprep.mubr.f32.mxu0 0.0
    %1491 = vmatmul.mubr.f32.gmra.mxu0 %v1424
    %v1492 = vpop.f32.mrf.mxu0
    %v1493 = vadd.f32 0.0, %v1492
    %v1494 = vpop.f32.mrf.mxu0
    %1495 = vdwg.mxu0
    %v1497 = vrot.slane %v1493, 4
    %v1499 = vadd.f32 %v1196, %v1497
    %v1500 = vxor.u32 %v1499, 2147483648
    %v1501 = vmul.f32 %v1500, 1.442695
    %v1502 = vpow.pop %v1501
    %v1503 = vadd.f32 %v1502, 1.0
    %v1504 = vrcp.pop %v1503
    %v1505 = vmul.f32 1.0, %v1504
    %v1506 = vtanh.pop %v1499
    %v1508 = vrot.slane %v1413, 6
    %v1510 = vmul.f32 %v1505, %v1508
    %1512 = vrot.lane.b32.xlu0 %v1506, 32
    %v1513 = vpop.permute.xlu0 %1512
    %v1515 = vmul.f32 %v1505, %v1513
    %1517 = vrot.lane.b32.xlu0 %v1515, 32
    %v1518 = vpop.permute.xlu0 %1517
    %v1520 = vadd.f32 %v1510, %v1518
    %v1521 = vtanh.pop %v1520
    %1523 = vrot.lane.b32.xlu0 %v1521, 32
    %v1524 = vpop.permute.xlu0 %1523
    %v1526 = vmul.f32 %v1505, %v1524
    %v1528 = vrot.slane %v1526, 4
    %1529 = vrot.lane.b32.xlu0 %v1528, 64
    %v1530 = vpop.permute.xlu0 %1529
    %v1531 = vsel %vm139, %v1530, 0
    %1533 = vmatprep.subr.mxu0 0.0
    %1534 = vmatpush1.msra.mxu0 0.0
    %1535 = vmatprep.subr.mxu0 0.0
    %1536 = vmatpush1.msra.mxu0 0.0
    %1537 = vmatprep.subr.mxu0 0.0
    %1538 = vmatpush1.msra.mxu0 0.0
    %1539 = vmatprep.subr.mxu0 0.0
    %1540 = vmatpush1.msra.mxu0 0.0
    %1541 = vmatprep.subr.mxu0 0.0
    %1542 = vmatpush1.msra.mxu0 0.0
    %1543 = vmatprep.subr.mxu0 0.0
    %1544 = vmatpush1.msra.mxu0 0.0
    %1545 = vmatprep.subr.mxu0 0.0
    %1546 = vmatpush1.msra.mxu0 0.0
    %1547 = vmatprep.subr.mxu0 0.0
    %1548 = vmatpush1.msra.mxu0 0.0
    %1549 = vmatprep.subr.mxu0 0.0
    %1550 = vmatpush1.msra.mxu0 0.0
    %1551 = vmatprep.subr.mxu0 0.0
    %1552 = vmatpush1.msra.mxu0 0.0
    %1553 = vmatprep.subr.mxu0 0.0
    %1554 = vmatpush1.msra.mxu0 0.0
    %1555 = vmatprep.subr.mxu0 0.0
    %1556 = vmatpush1.msra.mxu0 0.0
    %1557 = vmatprep.subr.mxu0 0.0
    %1558 = vmatpush1.msra.mxu0 %v1207
    %1559 = vmatprep.subr.mxu0 0.0
    %1560 = vmatpush1.msra.mxu0 %v1206
    %1561 = vmatprep.subr.mxu0 0.0
    %1562 = vmatpush1.msra.mxu0 %v1205
    %1563 = vmatprep.subr.mxu0 0.0
    %1564 = vmatpush1.msra.mxu0 %v1204
    %1565 = vmatprep.subr.mxu0 0.0
    %1566 = vmatpush2.msra.mxu0 0.0
    %1567 = vmatprep.subr.mxu0 0.0
    %1568 = vmatpush2.msra.mxu0 0.0
    %1569 = vmatprep.subr.mxu0 0.0
    %1570 = vmatpush2.msra.mxu0 0.0
    %1571 = vmatprep.subr.mxu0 0.0
    %1572 = vmatpush2.msra.mxu0 0.0
    %1573 = vmatprep.subr.mxu0 0.0
    %1574 = vmatpush2.msra.mxu0 0.0
    %1575 = vmatprep.subr.mxu0 0.0
    %1576 = vmatpush2.msra.mxu0 0.0
    %1577 = vmatprep.subr.mxu0 0.0
    %1578 = vmatpush2.msra.mxu0 0.0
    %1579 = vmatprep.subr.mxu0 0.0
    %1580 = vmatpush2.msra.mxu0 0.0
    %1581 = vmatprep.subr.mxu0 0.0
    %1582 = vmatpush2.msra.mxu0 0.0
    %1583 = vmatprep.subr.mxu0 0.0
    %1584 = vmatpush2.msra.mxu0 0.0
    %1585 = vmatprep.subr.mxu0 0.0
    %1586 = vmatpush2.msra.mxu0 0.0
    %1587 = vmatprep.subr.mxu0 0.0
    %1588 = vmatpush2.msra.mxu0 0.0
    %1589 = vmatprep.subr.mxu0 0.0
    %1590 = vmatpush2.msra.mxu0 0.0
    %1591 = vmatprep.subr.mxu0 0.0
    %1592 = vmatpush2.msra.mxu0 0.0
    %1593 = vmatprep.subr.mxu0 0.0
    %1594 = vmatpush2.msra.mxu0 0.0
    %1595 = vmatprep.subr.mxu0 0.0
    %1596 = vmatpush2.msra.mxu0 0.0
    %1597 = vmatprep.mubr.f32.mxu0 0.0
    %1598 = vmatmul.mubr.f32.gmra.mxu0 %v1531
    %v1599 = vpop.f32.mrf.mxu0
    %v1600 = vadd.f32 0.0, %v1599
    %v1601 = vpop.f32.mrf.mxu0
    %1602 = vdwg.mxu0
    %v1604 = vrot.slane %v1600, 2
    %v1606 = vadd.f32 %v1196, %v1604
    %v1607 = vxor.u32 %v1606, 2147483648
    %v1608 = vmul.f32 %v1607, 1.442695
    %v1609 = vpow.pop %v1608
    %v1610 = vadd.f32 %v1609, 1.0
    %v1611 = vrcp.pop %v1610
    %v1612 = vmul.f32 1.0, %v1611
    %v1613 = vtanh.pop %v1606
    %v1615 = vrot.slane %v1520, 6
    %v1617 = vmul.f32 %v1612, %v1615
    %1619 = vrot.lane.b32.xlu0 %v1613, 32
    %v1620 = vpop.permute.xlu0 %1619
    %v1622 = vmul.f32 %v1612, %v1620
    %1624 = vrot.lane.b32.xlu0 %v1622, 32
    %v1625 = vpop.permute.xlu0 %1624
    %v1627 = vadd.f32 %v1617, %v1625
    %v1628 = vtanh.pop %v1627
    %1630 = vrot.lane.b32.xlu0 %v1628, 32
    %v1631 = vpop.permute.xlu0 %1630
    %v1633 = vmul.f32 %v1612, %v1631
    %v1635 = vrot.slane %v1633, 6
    %1636 = vrot.lane.b32.xlu0 %v1635, 64
    %v1637 = vpop.permute.xlu0 %1636
    %v1638 = vsel %vm139, %v1637, 0
    %1640 = vmatprep.subr.mxu0 0.0
    %1641 = vmatpush1.msra.mxu0 0.0
    %1642 = vmatprep.subr.mxu0 0.0
    %1643 = vmatpush1.msra.mxu0 0.0
    %1644 = vmatprep.subr.mxu0 0.0
    %1645 = vmatpush1.msra.mxu0 0.0
    %1646 = vmatprep.subr.mxu0 0.0
    %1647 = vmatpush1.msra.mxu0 0.0
    %1648 = vmatprep.subr.mxu0 0.0
    %1649 = vmatpush1.msra.mxu0 0.0
    %1650 = vmatprep.subr.mxu0 0.0
    %1651 = vmatpush1.msra.mxu0 0.0
    %1652 = vmatprep.subr.mxu0 0.0
    %1653 = vmatpush1.msra.mxu0 0.0
    %1654 = vmatprep.subr.mxu0 0.0
    %1655 = vmatpush1.msra.mxu0 0.0
    %1656 = vmatprep.subr.mxu0 0.0
    %1657 = vmatpush1.msra.mxu0 0.0
    %1658 = vmatprep.subr.mxu0 0.0
    %1659 = vmatpush1.msra.mxu0 0.0
    %1660 = vmatprep.subr.mxu0 0.0
    %1661 = vmatpush1.msra.mxu0 0.0
    %1662 = vmatprep.subr.mxu0 0.0
    %1663 = vmatpush1.msra.mxu0 0.0
    %1664 = vmatprep.subr.mxu0 0.0
    %1665 = vmatpush1.msra.mxu0 %v1207
    %1666 = vmatprep.subr.mxu0 0.0
    %1667 = vmatpush1.msra.mxu0 %v1206
    %1668 = vmatprep.subr.mxu0 0.0
    %1669 = vmatpush1.msra.mxu0 %v1205
    %1670 = vmatprep.subr.mxu0 0.0
    %1671 = vmatpush1.msra.mxu0 %v1204
    %1672 = vmatprep.subr.mxu0 0.0
    %1673 = vmatpush2.msra.mxu0 0.0
    %1674 = vmatprep.subr.mxu0 0.0
    %1675 = vmatpush2.msra.mxu0 0.0
    %1676 = vmatprep.subr.mxu0 0.0
    %1677 = vmatpush2.msra.mxu0 0.0
    %1678 = vmatprep.subr.mxu0 0.0
    %1679 = vmatpush2.msra.mxu0 0.0
    %1680 = vmatprep.subr.mxu0 0.0
    %1681 = vmatpush2.msra.mxu0 0.0
    %1682 = vmatprep.subr.mxu0 0.0
    %1683 = vmatpush2.msra.mxu0 0.0
    %1684 = vmatprep.subr.mxu0 0.0
    %1685 = vmatpush2.msra.mxu0 0.0
    %1686 = vmatprep.subr.mxu0 0.0
    %1687 = vmatpush2.msra.mxu0 0.0
    %1688 = vmatprep.subr.mxu0 0.0
    %1689 = vmatpush2.msra.mxu0 0.0
    %1690 = vmatprep.subr.mxu0 0.0
    %1691 = vmatpush2.msra.mxu0 0.0
    %1692 = vmatprep.subr.mxu0 0.0
    %1693 = vmatpush2.msra.mxu0 0.0
    %1694 = vmatprep.subr.mxu0 0.0
    %1695 = vmatpush2.msra.mxu0 0.0
    %1696 = vmatprep.subr.mxu0 0.0
    %1697 = vmatpush2.msra.mxu0 0.0
    %1698 = vmatprep.subr.mxu0 0.0
    %1699 = vmatpush2.msra.mxu0 0.0
    %1700 = vmatprep.subr.mxu0 0.0
    %1701 = vmatpush2.msra.mxu0 0.0
    %1702 = vmatprep.subr.mxu0 0.0
    %1703 = vmatpush2.msra.mxu0 0.0
    %1704 = vmatprep.mubr.f32.mxu0 0.0
    %1705 = vmatmul.mubr.f32.gmra.mxu0 %v1638
    %v1706 = vpop.f32.mrf.mxu0
    %v1707 = vadd.f32 0.0, %v1706
    %v1708 = vpop.f32.mrf.mxu0
    %1709 = vdwg.mxu0
    %v1710 = vadd.f32 %v1201, %v1707
    %v1711 = vxor.u32 %v1710, 2147483648
    %v1712 = vmul.f32 %v1711, 1.442695
    %v1713 = vpow.pop %v1712
    %v1714 = vadd.f32 %v1713, 1.0
    %v1715 = vrcp.pop %v1714
    %v1716 = vmul.f32 1.0, %v1715
    %v1717 = vtanh.pop %v1710
    %v1719 = vrot.slane %v1627, 6
    %v1721 = vmul.f32 %v1716, %v1719
    %1723 = vrot.lane.b32.xlu0 %v1717, 32
    %v1724 = vpop.permute.xlu0 %1723
    %v1726 = vmul.f32 %v1716, %v1724
    %1728 = vrot.lane.b32.xlu0 %v1726, 32
    %v1729 = vpop.permute.xlu0 %1728
    %v1731 = vadd.f32 %v1721, %v1729
    %v1732 = vtanh.pop %v1731
    %1734 = vrot.lane.b32.xlu0 %v1732, 32
    %v1735 = vpop.permute.xlu0 %1734
    %v1737 = vmul.f32 %v1716, %v1735
    %1739 = vrot.lane.b32.xlu0 %v1737, 64
    %v1740 = vpop.permute.xlu0 %1739
    %v1741 = vsel %vm139, %v1740, 0
    %1743 = vmatprep.subr.mxu0 0.0
    %1744 = vmatpush1.msra.mxu0 0.0
    %1745 = vmatprep.subr.mxu0 0.0
    %1746 = vmatpush1.msra.mxu0 0.0
    %1747 = vmatprep.subr.mxu0 0.0
    %1748 = vmatpush1.msra.mxu0 0.0
    %1749 = vmatprep.subr.mxu0 0.0
    %1750 = vmatpush1.msra.mxu0 0.0
    %1751 = vmatprep.subr.mxu0 0.0
    %1752 = vmatpush1.msra.mxu0 0.0
    %1753 = vmatprep.subr.mxu0 0.0
    %1754 = vmatpush1.msra.mxu0 0.0
    %1755 = vmatprep.subr.mxu0 0.0
    %1756 = vmatpush1.msra.mxu0 0.0
    %1757 = vmatprep.subr.mxu0 0.0
    %1758 = vmatpush1.msra.mxu0 0.0
    %1759 = vmatprep.subr.mxu0 0.0
    %1760 = vmatpush1.msra.mxu0 0.0
    %1761 = vmatprep.subr.mxu0 0.0
    %1762 = vmatpush1.msra.mxu0 0.0
    %1763 = vmatprep.subr.mxu0 0.0
    %1764 = vmatpush1.msra.mxu0 0.0
    %1765 = vmatprep.subr.mxu0 0.0
    %1766 = vmatpush1.msra.mxu0 0.0
    %1767 = vmatprep.subr.mxu0 0.0
    %1768 = vmatpush1.msra.mxu0 %v1207
    %1769 = vmatprep.subr.mxu0 0.0
    %1770 = vmatpush1.msra.mxu0 %v1206
    %1771 = vmatprep.subr.mxu0 0.0
    %1772 = vmatpush1.msra.mxu0 %v1205
    %1773 = vmatprep.subr.mxu0 0.0
    %1774 = vmatpush1.msra.mxu0 %v1204
    %1775 = vmatprep.subr.mxu0 0.0
    %1776 = vmatpush2.msra.mxu0 0.0
    %1777 = vmatprep.subr.mxu0 0.0
    %1778 = vmatpush2.msra.mxu0 0.0
    %1779 = vmatprep.subr.mxu0 0.0
    %1780 = vmatpush2.msra.mxu0 0.0
    %1781 = vmatprep.subr.mxu0 0.0
    %1782 = vmatpush2.msra.mxu0 0.0
    %1783 = vmatprep.subr.mxu0 0.0
    %1784 = vmatpush2.msra.mxu0 0.0
    %1785 = vmatprep.subr.mxu0 0.0
    %1786 = vmatpush2.msra.mxu0 0.0
    %1787 = vmatprep.subr.mxu0 0.0
    %1788 = vmatpush2.msra.mxu0 0.0
    %1789 = vmatprep.subr.mxu0 0.0
    %1790 = vmatpush2.msra.mxu0 0.0
    %1791 = vmatprep.subr.mxu0 0.0
    %1792 = vmatpush2.msra.mxu0 0.0
    %1793 = vmatprep.subr.mxu0 0.0
    %1794 = vmatpush2.msra.mxu0 0.0
    %1795 = vmatprep.subr.mxu0 0.0
    %1796 = vmatpush2.msra.mxu0 0.0
    %1797 = vmatprep.subr.mxu0 0.0
    %1798 = vmatpush2.msra.mxu0 0.0
    %1799 = vmatprep.subr.mxu0 0.0
    %1800 = vmatpush2.msra.mxu0 0.0
    %1801 = vmatprep.subr.mxu0 0.0
    %1802 = vmatpush2.msra.mxu0 0.0
    %1803 = vmatprep.subr.mxu0 0.0
    %1804 = vmatpush2.msra.mxu0 0.0
    %1805 = vmatprep.subr.mxu0 0.0
    %1806 = vmatpush2.msra.mxu0 0.0
    %1807 = vmatprep.mubr.f32.mxu0 0.0
    %1808 = vmatmul.mubr.f32.gmra.mxu0 %v1741
    %v1809 = vpop.f32.mrf.mxu0
    %v1810 = vadd.f32 0.0, %v1809
    %v1811 = vpop.f32.mrf.mxu0
    %1812 = vdwg.mxu0
    %v1814 = vrot.slane %v1810, 6
    %v1816 = vadd.f32 %v1201, %v1814
    %v1817 = vxor.u32 %v1816, 2147483648
    %v1818 = vmul.f32 %v1817, 1.442695
    %v1819 = vpow.pop %v1818
    %v1820 = vadd.f32 %v1819, 1.0
    %v1821 = vrcp.pop %v1820
    %v1822 = vmul.f32 1.0, %v1821
    %v1823 = vtanh.pop %v1816
    %v1825 = vrot.slane %v1731, 6
    %v1827 = vmul.f32 %v1822, %v1825
    %1829 = vrot.lane.b32.xlu0 %v1823, 32
    %v1830 = vpop.permute.xlu0 %1829
    %v1832 = vmul.f32 %v1822, %v1830
    %1834 = vrot.lane.b32.xlu0 %v1832, 32
    %v1835 = vpop.permute.xlu0 %1834
    %v1837 = vadd.f32 %v1827, %v1835
    %v1838 = vtanh.pop %v1837
    %1840 = vrot.lane.b32.xlu0 %v1838, 32
    %v1841 = vpop.permute.xlu0 %1840
    %v1843 = vmul.f32 %v1822, %v1841
    %v1845 = vrot.slane %v1843, 2
    %1846 = vrot.lane.b32.xlu0 %v1845, 64
    %v1847 = vpop.permute.xlu0 %1846
    %v1848 = vsel %vm139, %v1847, 0
    %1850 = vmatprep.subr.mxu0 0.0
    %1851 = vmatpush1.msra.mxu0 0.0
    %1852 = vmatprep.subr.mxu0 0.0
    %1853 = vmatpush1.msra.mxu0 0.0
    %1854 = vmatprep.subr.mxu0 0.0
    %1855 = vmatpush1.msra.mxu0 0.0
    %1856 = vmatprep.subr.mxu0 0.0
    %1857 = vmatpush1.msra.mxu0 0.0
    %1858 = vmatprep.subr.mxu0 0.0
    %1859 = vmatpush1.msra.mxu0 0.0
    %1860 = vmatprep.subr.mxu0 0.0
    %1861 = vmatpush1.msra.mxu0 0.0
    %1862 = vmatprep.subr.mxu0 0.0
    %1863 = vmatpush1.msra.mxu0 0.0
    %1864 = vmatprep.subr.mxu0 0.0
    %1865 = vmatpush1.msra.mxu0 0.0
    %1866 = vmatprep.subr.mxu0 0.0
    %1867 = vmatpush1.msra.mxu0 0.0
    %1868 = vmatprep.subr.mxu0 0.0
    %1869 = vmatpush1.msra.mxu0 0.0
    %1870 = vmatprep.subr.mxu0 0.0
    %1871 = vmatpush1.msra.mxu0 0.0
    %1872 = vmatprep.subr.mxu0 0.0
    %1873 = vmatpush1.msra.mxu0 0.0
    %1874 = vmatprep.subr.mxu0 0.0
    %1875 = vmatpush1.msra.mxu0 %v1207
    %1876 = vmatprep.subr.mxu0 0.0
    %1877 = vmatpush1.msra.mxu0 %v1206
    %1878 = vmatprep.subr.mxu0 0.0
    %1879 = vmatpush1.msra.mxu0 %v1205
    %1880 = vmatprep.subr.mxu0 0.0
    %1881 = vmatpush1.msra.mxu0 %v1204
    %1882 = vmatprep.subr.mxu0 0.0
    %1883 = vmatpush2.msra.mxu0 0.0
    %1884 = vmatprep.subr.mxu0 0.0
    %1885 = vmatpush2.msra.mxu0 0.0
    %1886 = vmatprep.subr.mxu0 0.0
    %1887 = vmatpush2.msra.mxu0 0.0
    %1888 = vmatprep.subr.mxu0 0.0
    %1889 = vmatpush2.msra.mxu0 0.0
    %1890 = vmatprep.subr.mxu0 0.0
    %1891 = vmatpush2.msra.mxu0 0.0
    %1892 = vmatprep.subr.mxu0 0.0
    %1893 = vmatpush2.msra.mxu0 0.0
    %1894 = vmatprep.subr.mxu0 0.0
    %1895 = vmatpush2.msra.mxu0 0.0
    %1896 = vmatprep.subr.mxu0 0.0
    %1897 = vmatpush2.msra.mxu0 0.0
    %1898 = vmatprep.subr.mxu0 0.0
    %1899 = vmatpush2.msra.mxu0 0.0
    %1900 = vmatprep.subr.mxu0 0.0
    %1901 = vmatpush2.msra.mxu0 0.0
    %1902 = vmatprep.subr.mxu0 0.0
    %1903 = vmatpush2.msra.mxu0 0.0
    %1904 = vmatprep.subr.mxu0 0.0
    %1905 = vmatpush2.msra.mxu0 0.0
    %1906 = vmatprep.subr.mxu0 0.0
    %1907 = vmatpush2.msra.mxu0 0.0
    %1908 = vmatprep.subr.mxu0 0.0
    %1909 = vmatpush2.msra.mxu0 0.0
    %1910 = vmatprep.subr.mxu0 0.0
    %1911 = vmatpush2.msra.mxu0 0.0
    %1912 = vmatprep.subr.mxu0 0.0
    %1913 = vmatpush2.msra.mxu0 0.0
    %1914 = vmatprep.mubr.f32.mxu0 0.0
    %1915 = vmatmul.mubr.f32.gmra.mxu0 %v1848
    %v1916 = vpop.f32.mrf.mxu0
    %v1917 = vadd.f32 0.0, %v1916
    %v1918 = vpop.f32.mrf.mxu0
    %1919 = vdwg.mxu0
    %v1921 = vrot.slane %v1917, 4
    %v1923 = vadd.f32 %v1201, %v1921
    %v1924 = vxor.u32 %v1923, 2147483648
    %v1925 = vmul.f32 %v1924, 1.442695
    %v1926 = vpow.pop %v1925
    %v1927 = vadd.f32 %v1926, 1.0
    %v1928 = vrcp.pop %v1927
    %v1929 = vmul.f32 1.0, %v1928
    %v1930 = vtanh.pop %v1923
    %v1932 = vrot.slane %v1837, 6
    %v1934 = vmul.f32 %v1929, %v1932
    %1936 = vrot.lane.b32.xlu0 %v1930, 32
    %v1937 = vpop.permute.xlu0 %1936
    %v1939 = vmul.f32 %v1929, %v1937
    %1941 = vrot.lane.b32.xlu0 %v1939, 32
    %v1942 = vpop.permute.xlu0 %1941
    %v1944 = vadd.f32 %v1934, %v1942
    %v1945 = vtanh.pop %v1944
    %1947 = vrot.lane.b32.xlu0 %v1945, 32
    %v1948 = vpop.permute.xlu0 %1947
    %v1950 = vmul.f32 %v1929, %v1948
    %v1952 = vrot.slane %v1950, 4
    %1953 = vrot.lane.b32.xlu0 %v1952, 64
    %v1954 = vpop.permute.xlu0 %1953
    %v1955 = vsel %vm139, %v1954, 0
    %1957 = vmatprep.subr.mxu0 0.0
    %1958 = vmatpush1.msra.mxu0 0.0
    %1959 = vmatprep.subr.mxu0 0.0
    %1960 = vmatpush1.msra.mxu0 0.0
    %1961 = vmatprep.subr.mxu0 0.0
    %1962 = vmatpush1.msra.mxu0 0.0
    %1963 = vmatprep.subr.mxu0 0.0
    %1964 = vmatpush1.msra.mxu0 0.0
    %1965 = vmatprep.subr.mxu0 0.0
    %1966 = vmatpush1.msra.mxu0 0.0
    %1967 = vmatprep.subr.mxu0 0.0
    %1968 = vmatpush1.msra.mxu0 0.0
    %1969 = vmatprep.subr.mxu0 0.0
    %1970 = vmatpush1.msra.mxu0 0.0
    %1971 = vmatprep.subr.mxu0 0.0
    %1972 = vmatpush1.msra.mxu0 0.0
    %1973 = vmatprep.subr.mxu0 0.0
    %1974 = vmatpush1.msra.mxu0 0.0
    %1975 = vmatprep.subr.mxu0 0.0
    %1976 = vmatpush1.msra.mxu0 0.0
    %1977 = vmatprep.subr.mxu0 0.0
    %1978 = vmatpush1.msra.mxu0 0.0
    %1979 = vmatprep.subr.mxu0 0.0
    %1980 = vmatpush1.msra.mxu0 0.0
    %1981 = vmatprep.subr.mxu0 0.0
    %1982 = vmatpush1.msra.mxu0 %v1207
    %1983 = vmatprep.subr.mxu0 0.0
    %1984 = vmatpush1.msra.mxu0 %v1206
    %1985 = vmatprep.subr.mxu0 0.0
    %1986 = vmatpush1.msra.mxu0 %v1205
    %1987 = vmatprep.subr.mxu0 0.0
    %1988 = vmatpush1.msra.mxu0 %v1204
    %1989 = vmatprep.subr.mxu0 0.0
    %1990 = vmatpush2.msra.mxu0 0.0
    %1991 = vmatprep.subr.mxu0 0.0
    %1992 = vmatpush2.msra.mxu0 0.0
    %1993 = vmatprep.subr.mxu0 0.0
    %1994 = vmatpush2.msra.mxu0 0.0
    %1995 = vmatprep.subr.mxu0 0.0
    %1996 = vmatpush2.msra.mxu0 0.0
    %1997 = vmatprep.subr.mxu0 0.0
    %1998 = vmatpush2.msra.mxu0 0.0
    %1999 = vmatprep.subr.mxu0 0.0
    %2000 = vmatpush2.msra.mxu0 0.0
    %2001 = vmatprep.subr.mxu0 0.0
    %2002 = vmatpush2.msra.mxu0 0.0
    %2003 = vmatprep.subr.mxu0 0.0
    %2004 = vmatpush2.msra.mxu0 0.0
    %2005 = vmatprep.subr.mxu0 0.0
    %2006 = vmatpush2.msra.mxu0 0.0
    %2007 = vmatprep.subr.mxu0 0.0
    %2008 = vmatpush2.msra.mxu0 0.0
    %2009 = vmatprep.subr.mxu0 0.0
    %2010 = vmatpush2.msra.mxu0 0.0
    %2011 = vmatprep.subr.mxu0 0.0
    %2012 = vmatpush2.msra.mxu0 0.0
    %2013 = vmatprep.subr.mxu0 0.0
    %2014 = vmatpush2.msra.mxu0 0.0
    %2015 = vmatprep.subr.mxu0 0.0
    %2016 = vmatpush2.msra.mxu0 0.0
    %2017 = vmatprep.subr.mxu0 0.0
    %2018 = vmatpush2.msra.mxu0 0.0
    %2019 = vmatprep.subr.mxu0 0.0
    %2020 = vmatpush2.msra.mxu0 0.0
    %2021 = vmatprep.mubr.f32.mxu0 0.0
    %2022 = vmatmul.mubr.f32.gmra.mxu0 %v1955
    %v2023 = vpop.f32.mrf.mxu0
    %v2024 = vadd.f32 0.0, %v2023
    %v2025 = vpop.f32.mrf.mxu0
    %2026 = vdwg.mxu0
    %v2028 = vrot.slane %v2024, 2
    %v2030 = vadd.f32 %v1201, %v2028
    %v2031 = vxor.u32 %v2030, 2147483648
    %v2032 = vmul.f32 %v2031, 1.442695
    %v2033 = vpow.pop %v2032
    %v2034 = vadd.f32 %v2033, 1.0
    %v2035 = vrcp.pop %v2034
    %v2036 = vmul.f32 1.0, %v2035
    %v2037 = vtanh.pop %v2030
    %v2039 = vrot.slane %v1944, 6
    %v2041 = vmul.f32 %v2036, %v2039
    %2043 = vrot.lane.b32.xlu0 %v2037, 32
    %v2044 = vpop.permute.xlu0 %2043
    %v2046 = vmul.f32 %v2036, %v2044
    %2048 = vrot.lane.b32.xlu0 %v2046, 32
    %v2049 = vpop.permute.xlu0 %2048
    %v2051 = vadd.f32 %v2041, %v2049
    %v2052 = vtanh.pop %v2051
    %2054 = vrot.lane.b32.xlu0 %v2052, 32
    %v2055 = vpop.permute.xlu0 %2054
    %v2057 = vmul.f32 %v2036, %v2055
    %2059 = vrot.lane.b32.xlu0 %v2057, 64
    %v2060 = vpop.permute.xlu0 %2059
    %s2062 = scalar_lea.vmem [#allocation2], 2
    %2063 = vst.msk [vmem:[%s2062 - $0x6] sm:$0xc0] %vm1092, %v2060
    %2065 = vrot.lane.b32.xlu0 %v2051, 96
    %v2066 = vpop.permute.xlu0 %2065
    %s2068 = scalar_lea.vmem [#allocation4], 2
    %2069 = vst.msk [vmem:[%s2068 - $0x6] sm:$0xc0] %vm1092, %v2066
    %v2070 = vsel %vm1099, %v1313, %v1419
    %v2071 = vsel %vm1101, %v2070, %v1526
    %v2072 = vsel %vm1103, %v2071, %v1633
    %v2073 = vsel %vm1099, %v1737, %v1843
    %v2074 = vsel %vm1101, %v2073, %v1950
    %v2075 = vsel %vm1103, %v2074, %v2057
    %v2076 = vld [vmem:[%s9] sm:$0xff]
    %v2077 = vld [vmem:[%s9 + $0x8] sm:$0xff]
    %v2078 = vld [vmem:[%s9 + $0x10] sm:$0xff]
    %v2079 = vld [vmem:[%s9 + $0x18] sm:$0xff]
    %v2080 = vld [vmem:[%s10] sm:$0x1]
    %v2082 = vlaneseq
    %v2083 = vshrl.u32 %v2082, 7
    %v2084 = vsub.s32 0, %v2083
    %v2085 = vrot.slane %v2080, %v2084
    %2089 = vrot.lane.b32.xlu0 %v2072, 64
    %v2090 = vpop.permute.xlu0 %2089
    %2091 = vrot.lane.b32.xlu0 %v2075, 64
    %v2092 = vpop.permute.xlu0 %2091
    %v2093 = vsel %vm139, %v2090, 0
    %v2095 = vsel %vm139, %v2092, 0
    %2097 = vmatprep.subr.mxu0 0.0
    %2098 = vmatpush1.msra.mxu0 0.0
    %2099 = vmatprep.subr.mxu0 0.0
    %2100 = vmatpush1.msra.mxu0 0.0
    %2101 = vmatprep.subr.mxu0 0.0
    %2102 = vmatpush1.msra.mxu0 0.0
    %2103 = vmatprep.subr.mxu0 0.0
    %2104 = vmatpush1.msra.mxu0 0.0
    %2105 = vmatprep.subr.mxu0 0.0
    %2106 = vmatpush1.msra.mxu0 0.0
    %2107 = vmatprep.subr.mxu0 0.0
    %2108 = vmatpush1.msra.mxu0 0.0
    %2109 = vmatprep.subr.mxu0 0.0
    %2110 = vmatpush1.msra.mxu0 0.0
    %2111 = vmatprep.subr.mxu0 0.0
    %2112 = vmatpush1.msra.mxu0 0.0
    %2113 = vmatprep.subr.mxu0 0.0
    %2114 = vmatpush1.msra.mxu0 0.0
    %2115 = vmatprep.subr.mxu0 0.0
    %2116 = vmatpush1.msra.mxu0 0.0
    %2117 = vmatprep.subr.mxu0 0.0
    %2118 = vmatpush1.msra.mxu0 0.0
    %2119 = vmatprep.subr.mxu0 0.0
    %2120 = vmatpush1.msra.mxu0 0.0
    %2121 = vmatprep.subr.mxu0 0.0
    %2122 = vmatpush1.msra.mxu0 %v2079
    %2123 = vmatprep.subr.mxu0 0.0
    %2124 = vmatpush1.msra.mxu0 %v2078
    %2125 = vmatprep.subr.mxu0 0.0
    %2126 = vmatpush1.msra.mxu0 %v2077
    %2127 = vmatprep.subr.mxu0 0.0
    %2128 = vmatpush1.msra.mxu0 %v2076
    %2129 = vmatprep.subr.mxu0 0.0
    %2130 = vmatpush2.msra.mxu0 0.0
    %2131 = vmatprep.subr.mxu0 0.0
    %2132 = vmatpush2.msra.mxu0 0.0
    %2133 = vmatprep.subr.mxu0 0.0
    %2134 = vmatpush2.msra.mxu0 0.0
    %2135 = vmatprep.subr.mxu0 0.0
    %2136 = vmatpush2.msra.mxu0 0.0
    %2137 = vmatprep.subr.mxu0 0.0
    %2138 = vmatpush2.msra.mxu0 0.0
    %2139 = vmatprep.subr.mxu0 0.0
    %2140 = vmatpush2.msra.mxu0 0.0
    %2141 = vmatprep.subr.mxu0 0.0
    %2142 = vmatpush2.msra.mxu0 0.0
    %2143 = vmatprep.subr.mxu0 0.0
    %2144 = vmatpush2.msra.mxu0 0.0
    %2145 = vmatprep.subr.mxu0 0.0
    %2146 = vmatpush2.msra.mxu0 0.0
    %2147 = vmatprep.subr.mxu0 0.0
    %2148 = vmatpush2.msra.mxu0 0.0
    %2149 = vmatprep.subr.mxu0 0.0
    %2150 = vmatpush2.msra.mxu0 0.0
    %2151 = vmatprep.subr.mxu0 0.0
    %2152 = vmatpush2.msra.mxu0 0.0
    %2153 = vmatprep.subr.mxu0 0.0
    %2154 = vmatpush2.msra.mxu0 0.0
    %2155 = vmatprep.subr.mxu0 0.0
    %2156 = vmatpush2.msra.mxu0 0.0
    %2157 = vmatprep.subr.mxu0 0.0
    %2158 = vmatpush2.msra.mxu0 0.0
    %2159 = vmatprep.subr.mxu0 0.0
    %2160 = vmatpush2.msra.mxu0 0.0
    %2161 = vmatprep.mubr.f32.mxu0 0.0
    %2162 = vmatmul.mubr.f32.gmra.mxu0 %v2093
    %v2163 = vpop.f32.mrf.mxu0
    %v2164 = vadd.f32 %v2085, %v2163
    %v2165 = vpop.f32.mrf.mxu0
    %2166 = vmatprep.mubr.f32.mxu0 0.0
    %2167 = vmatmul.mubr.f32.gmra.mxu0 %v2095
    %v2168 = vpop.f32.mrf.mxu0
    %v2169 = vadd.f32 %v2085, %v2168
    %v2170 = vpop.f32.mrf.mxu0
    %2171 = vdwg.mxu0
    %vm2172 = vcmask 523264
    %2173 = vst.msk [vmem:[%s13] sm:$0xff] %vm2172, %v2164
    %2174 = vst.msk [vmem:[%s13 + $0x8] sm:$0xff] %vm2172, %v2169
    // Predicated region
    $region54: #{_lambda_.3} parent=1 // pred_check
      _
    $region55: #{_lambda_.3} parent=1 // pred_check_branch
      %2176 = sbr.rel (0) target = $region57
    $region56: #{_lambda_.3} parent=1 // pred_region
      _
    $region57: #{_lambda_.3} parent=1 // pred_fallthru
      _
    // Predicated region
    $region58: #{_lambda_.3} parent=1 // pred_check
      _
    $region59: #{_lambda_.3} parent=1 // pred_check_branch
      %2178 = sbr.rel (0) target = $region61
    $region60: #{_lambda_.3} parent=1 // pred_region
      %s2180 = ssub.s32 64, 64
      %2181 = vsyncadd [#allocation3], %s2180
      %s2182 = sshll.u32 [#allocation2], 4
      %s2183 = int_to_ptr.vmem [resolvable:$true] %s2182
      %2188 = dma.vmem_to_hbm [thread:$0]  %s2183, 64, %s14, [#allocation3], 32, 32, 2
    $region61: #{_lambda_.3} parent=1 // pred_fallthru
      _
    // Predicated region
    $region62: #{_lambda_.3} parent=1 // pred_check
      _
    $region63: #{_lambda_.3} parent=1 // pred_check_branch
      %2190 = sbr.rel (0) target = $region65
    $region64: #{_lambda_.3} parent=1 // pred_region
      %s2192 = ssub.s32 64, 64
      %2193 = vsyncadd [#allocation5], %s2192
      %s2194 = sshll.u32 [#allocation4], 4
      %s2195 = int_to_ptr.vmem [resolvable:$true] %s2194
      %2200 = dma.vmem_to_hbm [thread:$0]  %s2195, 64, %s15, [#allocation5], 32, 32, 2
    $region65: #{_lambda_.3} parent=1 // pred_fallthru
      _
    // Predicated region
    $region66: #{_lambda_.3} parent=1 // pred_check
      _
    $region67: #{_lambda_.3} parent=1 // pred_check_branch
      %2202 = sbr.rel (0) target = $region69
    $region68: #{_lambda_.3} parent=1 // pred_region
      _
    $region69: #{_lambda_.3} parent=1 // pred_fallthru
      _
    // Predicated region
    $region70: #{_lambda_.3} parent=1 // pred_check
      _
    $region71: #{_lambda_.3} parent=1 // pred_check_branch
      %2204 = sbr.rel (0) target = $region73
    $region72: #{_lambda_.3} parent=1 // pred_region
      %2205 = dma.done [#allocation3], 64
    $region73: #{_lambda_.3} parent=1 // pred_fallthru
      _
    // Predicated region
    $region74: #{_lambda_.3} parent=1 // pred_check
      _
    $region75: #{_lambda_.3} parent=1 // pred_check_branch
      %2207 = sbr.rel (0) target = $region77
    $region76: #{_lambda_.3} parent=1 // pred_region
      %2208 = dma.done [#allocation5], 64
    $region77: #{_lambda_.3} parent=1 // pred_fallthru
      _
    %2209 = vsyncpa [#allocation3], 1
    %2210 = vsyncpa [#allocation5], 1

// kernel: _lambda_.2
$region0: #{_lambda_.2}
  #allocation0 [shape = 'u32[]', space=smem, size = 0x4, offset = 0x4, fixed_abs, tag = 'smem constant byte address 0x4 - core index']
  #allocation1 [shape = 'u32[144,128]{1,0:T(1,128)}', space=vmem, size = 0x12000, scoped, tag = 'internal scratch']
  %s0 = inlined_call_operand.vmem [shape: f32[16,32], index: 0, kind: input, shape index: {}]
  %s1 = inlined_call_operand.hbm [shape: f32[32,64], index: 1, kind: input, shape index: {}]
  %s2 = inlined_call_operand.vmem [shape: f32[1,64], index: 2, kind: input, shape index: {}]
  %s3 = inlined_call_operand.hbm [shape: f32[32,256], index: 3, kind: input, shape index: {}]
  %s4 = inlined_call_operand.hbm [shape: f32[64,256], index: 4, kind: input, shape index: {}]
  %s5 = inlined_call_operand.vmem [shape: f32[1,256], index: 5, kind: input, shape index: {}]
  %s6 = inlined_call_operand.hbm [shape: f32[64,256], index: 6, kind: input, shape index: {}]
  %s7 = inlined_call_operand.hbm [shape: f32[64,256], index: 7, kind: input, shape index: {}]
  %s8 = inlined_call_operand.hbm [shape: f32[1,256], index: 8, kind: input, shape index: {}]
  %s9 = inlined_call_operand.vmem [shape: f32[64,64], index: 9, kind: input, shape index: {}]
  %s10 = inlined_call_operand.hbm [shape: f32[1,64], index: 10, kind: input, shape index: {}]
  %s11 = inlined_call_operand.vmem [shape: f32[2,2,32], index: 11, kind: output, shape index: {0}]
  %s12 = inlined_call_operand.vmem [shape: f32[2,2,32], index: 12, kind: output, shape index: {1}]
  %13 = xla_tuple %s11, %s12
  %s14 = sld [smem:[#allocation0]]
  $region90: #{_lambda_.2} parent=0
    _
  %s16 = ssub.s32 1, %s14
  %s17 = scalar_select 0, %s16, %s14
  $region1: #{_lambda_.2} parent=0
    #allocation2 [shape = 'u8[16384]{0}', space=vmem, size = 0x4000, scoped, tag = 'input window, operand 1, single buffered']
    #allocation3 [shape = 's32[1]{0}', space=sflag, size = 0x4, scoped, tag = 'scoped memory for _lambda_.2']
    #allocation4 [shape = 'u8[32768]{0}', space=vmem, size = 0x8000, scoped, tag = 'input window, operand 3, single buffered']
    #allocation5 [shape = 's32[1]{0}', space=sflag, size = 0x4, scoped, tag = 'scoped memory for _lambda_.2']
    #allocation6 [shape = 'u8[65536]{0}', space=vmem, size = 0x10000, scoped, tag = 'input window, operand 4, single buffered']
    #allocation7 [shape = 'u8[65536]{0}', space=vmem, size = 0x10000, scoped, tag = 'input window, operand 6, single buffered']
    #allocation8 [shape = 's32[1]{0}', space=sflag, size = 0x4, scoped, tag = 'scoped memory for _lambda_.2']
    #allocation9 [shape = 'u8[65536]{0}', space=vmem, size = 0x10000, scoped, tag = 'input window, operand 7, single buffered']
    #allocation10 [shape = 'u8[1024]{0}', space=vmem, size = 0x400, scoped, tag = 'input window, operand 8, single buffered']
    #allocation11 [shape = 's32[1]{0}', space=sflag, size = 0x4, scoped, tag = 'scoped memory for _lambda_.2']
    #allocation12 [shape = 'u8[512]{0}', space=vmem, size = 0x400, scoped, tag = 'input window, operand 10, single buffered']
    %18 = vsyncpa [#allocation3], 0
    %19 = vsyncpa [#allocation5], 0
    %20 = vsyncpa [#allocation8], 0
    %21 = vsyncpa [#allocation11], 0
    // Predicated region
    $region2: #{_lambda_.2} parent=1 // pred_check
      _
    $region3: #{_lambda_.2} parent=1 // pred_check_branch
      %23 = sbr.rel (0) target = $region5
    $region4: #{_lambda_.2} parent=1 // pred_region
      _
    $region5: #{_lambda_.2} parent=1 // pred_fallthru
      _
    // Predicated region
    $region6: #{_lambda_.2} parent=1 // pred_check
      _
    $region7: #{_lambda_.2} parent=1 // pred_check_branch
      %25 = sbr.rel (0) target = $region9
    $region8: #{_lambda_.2} parent=1 // pred_region
      %s27 = ssub.s32 512, 512
      %28 = vsyncadd [#allocation3], %s27
      %s29 = sshll.u32 [#allocation2], 4
      %s30 = int_to_ptr.vmem [resolvable:$true] %s29
      %35 = dma.hbm_to_vmem [thread:$0]  %s1, 512, %s30, [#allocation3], 128, 128, 8
    $region9: #{_lambda_.2} parent=1 // pred_fallthru
      _
    // Predicated region
    $region10: #{_lambda_.2} parent=1 // pred_check
      _
    $region11: #{_lambda_.2} parent=1 // pred_check_branch
      %37 = sbr.rel (0) target = $region13
    $region12: #{_lambda_.2} parent=1 // pred_region
      _
    $region13: #{_lambda_.2} parent=1 // pred_fallthru
      _
    // Predicated region
    $region14: #{_lambda_.2} parent=1 // pred_check
      _
    $region15: #{_lambda_.2} parent=1 // pred_check_branch
      %39 = sbr.rel (0) target = $region17
    $region16: #{_lambda_.2} parent=1 // pred_region
      %s41 = ssub.s32 1024, 1024
      %42 = vsyncadd [#allocation5], %s41
      %s43 = sshll.u32 [#allocation4], 4
      %s44 = int_to_ptr.vmem [resolvable:$true] %s43
      %49 = dma.hbm_to_vmem [thread:$0]  %s3, 1024, %s44, [#allocation5], 256, 256, 16
    $region17: #{_lambda_.2} parent=1 // pred_fallthru
      _
    // Predicated region
    $region18: #{_lambda_.2} parent=1 // pred_check
      _
    $region19: #{_lambda_.2} parent=1 // pred_check_branch
      %51 = sbr.rel (0) target = $region21
    $region20: #{_lambda_.2} parent=1 // pred_region
      %s53 = ssub.s32 2048, 2048
      %54 = vsyncadd [#allocation5], %s53
      %s55 = sshll.u32 [#allocation6], 4
      %s56 = int_to_ptr.vmem [resolvable:$true] %s55
      %61 = dma.hbm_to_vmem [thread:$0]  %s4, 2048, %s56, [#allocation5], 256, 256, 16
    $region21: #{_lambda_.2} parent=1 // pred_fallthru
      _
    // Predicated region
    $region22: #{_lambda_.2} parent=1 // pred_check
      _
    $region23: #{_lambda_.2} parent=1 // pred_check_branch
      %63 = sbr.rel (0) target = $region25
    $region24: #{_lambda_.2} parent=1 // pred_region
      _
    $region25: #{_lambda_.2} parent=1 // pred_fallthru
      _
    // Predicated region
    $region26: #{_lambda_.2} parent=1 // pred_check
      _
    $region27: #{_lambda_.2} parent=1 // pred_check_branch
      %65 = sbr.rel (0) target = $region29
    $region28: #{_lambda_.2} parent=1 // pred_region
      %s67 = ssub.s32 2048, 2048
      %68 = vsyncadd [#allocation8], %s67
      %s69 = sshll.u32 [#allocation7], 4
      %s70 = int_to_ptr.vmem [resolvable:$true] %s69
      %75 = dma.hbm_to_vmem [thread:$0]  %s6, 2048, %s70, [#allocation8], 256, 256, 16
    $region29: #{_lambda_.2} parent=1 // pred_fallthru
      _
    // Predicated region
    $region30: #{_lambda_.2} parent=1 // pred_check
      _
    $region31: #{_lambda_.2} parent=1 // pred_check_branch
      %77 = sbr.rel (0) target = $region33
    $region32: #{_lambda_.2} parent=1 // pred_region
      %s79 = ssub.s32 2048, 2048
      %80 = vsyncadd [#allocation8], %s79
      %s81 = sshll.u32 [#allocation9], 4
      %s82 = int_to_ptr.vmem [resolvable:$true] %s81
      %87 = dma.hbm_to_vmem [thread:$0]  %s7, 2048, %s82, [#allocation8], 256, 256, 16
    $region33: #{_lambda_.2} parent=1 // pred_fallthru
      _
    // Predicated region
    $region34: #{_lambda_.2} parent=1 // pred_check
      _
    $region35: #{_lambda_.2} parent=1 // pred_check_branch
      %89 = sbr.rel (0) target = $region37
    $region36: #{_lambda_.2} parent=1 // pred_region
      %s91 = ssub.s32 32, 32
      %92 = vsyncadd [#allocation11], %s91
      %s94 = sshll.u32 [#allocation10], 4
      %s95 = int_to_ptr.vmem [resolvable:$true] %s94
      %97 = dma.hbm_to_vmem [thread:$0]  %s8, 32, %s95, [#allocation11]
    $region37: #{_lambda_.2} parent=1 // pred_fallthru
      _
    // Predicated region
    $region38: #{_lambda_.2} parent=1 // pred_check
      _
    $region39: #{_lambda_.2} parent=1 // pred_check_branch
      %99 = sbr.rel (0) target = $region41
    $region40: #{_lambda_.2} parent=1 // pred_region
      _
    $region41: #{_lambda_.2} parent=1 // pred_fallthru
      _
    // Predicated region
    $region42: #{_lambda_.2} parent=1 // pred_check
      _
    $region43: #{_lambda_.2} parent=1 // pred_check_branch
      %101 = sbr.rel (0) target = $region45
    $region44: #{_lambda_.2} parent=1 // pred_region
      %s103 = ssub.s32 16, 16
      %104 = vsyncadd [#allocation11], %s103
      %s106 = sshll.u32 [#allocation12], 4
      %s107 = int_to_ptr.vmem [resolvable:$true] %s106
      %109 = dma.hbm_to_vmem [thread:$0]  %s10, 16, %s107, [#allocation11]
    $region45: #{_lambda_.2} parent=1 // pred_fallthru
      _
    // Predicated region
    $region46: #{_lambda_.2} parent=1 // pred_check
      _
    $region47: #{_lambda_.2} parent=1 // pred_check_branch
      %111 = sbr.rel (0) target = $region49
    $region48: #{_lambda_.2} parent=1 // pred_region
      %112 = dma.done [#allocation3], 512
    $region49: #{_lambda_.2} parent=1 // pred_fallthru
      _
    // Predicated region
    $region50: #{_lambda_.2} parent=1 // pred_check
      _
    $region51: #{_lambda_.2} parent=1 // pred_check_branch
      %114 = sbr.rel (0) target = $region53
    $region52: #{_lambda_.2} parent=1 // pred_region
      %115 = dma.done [#allocation5], 1024
    $region53: #{_lambda_.2} parent=1 // pred_fallthru
      _
    // Predicated region
    $region54: #{_lambda_.2} parent=1 // pred_check
      _
    $region55: #{_lambda_.2} parent=1 // pred_check_branch
      %117 = sbr.rel (0) target = $region57
    $region56: #{_lambda_.2} parent=1 // pred_region
      %118 = dma.done [#allocation5], 2048
    $region57: #{_lambda_.2} parent=1 // pred_fallthru
      _
    // Predicated region
    $region58: #{_lambda_.2} parent=1 // pred_check
      _
    $region59: #{_lambda_.2} parent=1 // pred_check_branch
      %120 = sbr.rel (0) target = $region61
    $region60: #{_lambda_.2} parent=1 // pred_region
      %121 = dma.done [#allocation8], 2048
    $region61: #{_lambda_.2} parent=1 // pred_fallthru
      _
    // Predicated region
    $region62: #{_lambda_.2} parent=1 // pred_check
      _
    $region63: #{_lambda_.2} parent=1 // pred_check_branch
      %123 = sbr.rel (0) target = $region65
    $region64: #{_lambda_.2} parent=1 // pred_region
      %124 = dma.done [#allocation8], 2048
    $region65: #{_lambda_.2} parent=1 // pred_fallthru
      _
    // Predicated region
    $region66: #{_lambda_.2} parent=1 // pred_check
      _
    $region67: #{_lambda_.2} parent=1 // pred_check_branch
      %126 = sbr.rel (0) target = $region69
    $region68: #{_lambda_.2} parent=1 // pred_region
      %127 = dma.done [#allocation11], 32
    $region69: #{_lambda_.2} parent=1 // pred_fallthru
      _
    // Predicated region
    $region70: #{_lambda_.2} parent=1 // pred_check
      _
    $region71: #{_lambda_.2} parent=1 // pred_check_branch
      %129 = sbr.rel (0) target = $region73
    $region72: #{_lambda_.2} parent=1 // pred_region
      %130 = dma.done [#allocation11], 16
    $region73: #{_lambda_.2} parent=1 // pred_fallthru
      _
    %v131 = vld [vmem:[%s0] sm:$0xff]
    %v132 = vld [vmem:[%s0 + $0x8] sm:$0xff]
    %v133 = vld [vmem:[#allocation2] sm:$0xff]
    %v134 = vld [vmem:[#allocation2 + $0x8] sm:$0xff]
    %v135 = vld [vmem:[#allocation2 + $0x10] sm:$0xff]
    %v136 = vld [vmem:[#allocation2 + $0x18] sm:$0xff]
    %v137 = vld [vmem:[%s2] sm:$0x1]
    %v139 = vlaneseq
    %v140 = vshrl.u32 %v139, 7
    %v141 = vsub.s32 0, %v140
    %v142 = vrot.slane %v137, %v141
    %vm144 = vcmask 261120
    %v146 = vsel %vm144, %v131, 0
    %v149 = vsel %vm144, %v132, 0
    %151 = vmatprep.subr.mxu0 0.0
    %152 = vmatpush1.msra.mxu0 0.0
    %153 = vmatprep.subr.mxu0 0.0
    %154 = vmatpush1.msra.mxu0 0.0
    %155 = vmatprep.subr.mxu0 0.0
    %156 = vmatpush1.msra.mxu0 0.0
    %157 = vmatprep.subr.mxu0 0.0
    %158 = vmatpush1.msra.mxu0 0.0
    %159 = vmatprep.subr.mxu0 0.0
    %160 = vmatpush1.msra.mxu0 0.0
    %161 = vmatprep.subr.mxu0 0.0
    %162 = vmatpush1.msra.mxu0 0.0
    %163 = vmatprep.subr.mxu0 0.0
    %164 = vmatpush1.msra.mxu0 0.0
    %165 = vmatprep.subr.mxu0 0.0
    %166 = vmatpush1.msra.mxu0 0.0
    %167 = vmatprep.subr.mxu0 0.0
    %168 = vmatpush1.msra.mxu0 0.0
    %169 = vmatprep.subr.mxu0 0.0
    %170 = vmatpush1.msra.mxu0 0.0
    %171 = vmatprep.subr.mxu0 0.0
    %172 = vmatpush1.msra.mxu0 0.0
    %173 = vmatprep.subr.mxu0 0.0
    %174 = vmatpush1.msra.mxu0 0.0
    %175 = vmatprep.subr.mxu0 0.0
    %176 = vmatpush1.msra.mxu0 %v136
    %177 = vmatprep.subr.mxu0 0.0
    %178 = vmatpush1.msra.mxu0 %v135
    %179 = vmatprep.subr.mxu0 0.0
    %180 = vmatpush1.msra.mxu0 %v134
    %181 = vmatprep.subr.mxu0 0.0
    %182 = vmatpush1.msra.mxu0 %v133
    %183 = vmatprep.subr.mxu0 0.0
    %184 = vmatpush2.msra.mxu0 0.0
    %185 = vmatprep.subr.mxu0 0.0
    %186 = vmatpush2.msra.mxu0 0.0
    %187 = vmatprep.subr.mxu0 0.0
    %188 = vmatpush2.msra.mxu0 0.0
    %189 = vmatprep.subr.mxu0 0.0
    %190 = vmatpush2.msra.mxu0 0.0
    %191 = vmatprep.subr.mxu0 0.0
    %192 = vmatpush2.msra.mxu0 0.0
    %193 = vmatprep.subr.mxu0 0.0
    %194 = vmatpush2.msra.mxu0 0.0
    %195 = vmatprep.subr.mxu0 0.0
    %196 = vmatpush2.msra.mxu0 0.0
    %197 = vmatprep.subr.mxu0 0.0
    %198 = vmatpush2.msra.mxu0 0.0
    %199 = vmatprep.subr.mxu0 0.0
    %200 = vmatpush2.msra.mxu0 0.0
    %201 = vmatprep.subr.mxu0 0.0
    %202 = vmatpush2.msra.mxu0 0.0
    %203 = vmatprep.subr.mxu0 0.0
    %204 = vmatpush2.msra.mxu0 0.0
    %205 = vmatprep.subr.mxu0 0.0
    %206 = vmatpush2.msra.mxu0 0.0
    %207 = vmatprep.subr.mxu0 0.0
    %208 = vmatpush2.msra.mxu0 0.0
    %209 = vmatprep.subr.mxu0 0.0
    %210 = vmatpush2.msra.mxu0 0.0
    %211 = vmatprep.subr.mxu0 0.0
    %212 = vmatpush2.msra.mxu0 0.0
    %213 = vmatprep.subr.mxu0 0.0
    %214 = vmatpush2.msra.mxu0 0.0
    %215 = vmatprep.mubr.f32.mxu0 0.0
    %216 = vmatmul.mubr.f32.gmra.mxu0 %v146
    %v217 = vpop.f32.mrf.mxu0
    %v218 = vadd.f32 %v142, %v217
    %v219 = vpop.f32.mrf.mxu0
    %220 = vmatprep.mubr.f32.mxu0 0.0
    %221 = vmatmul.mubr.f32.gmra.mxu0 %v149
    %v222 = vpop.f32.mrf.mxu0
    %v223 = vadd.f32 %v142, %v222
    %v224 = vpop.f32.mrf.mxu0
    %225 = vdwg.mxu0
    %v226 = vxor.u32 %v218, 2147483648
    %v227 = vxor.u32 %v223, 2147483648
    %v228 = vmul.f32 %v226, 1.442695
    %v229 = vpow.pop %v228
    %v230 = vmul.f32 %v227, 1.442695
    %v231 = vpow.pop %v230
    %v232 = vadd.f32 %v229, 1.0
    %v233 = vadd.f32 %v231, 1.0
    %v234 = vrcp.pop %v232
    %v235 = vmul.f32 1.0, %v234
    %v236 = vrcp.pop %v233
    %v237 = vmul.f32 1.0, %v236
    %v238 = vmax.f32 %v218, 0.0
    %v239 = vmax.f32 %v223, 0.0
    %242 = vrot.lane.b32.xlu0 %v238, 96
    %v243 = vpop.permute.xlu0 %242
    %244 = vrot.lane.b32.xlu0 %v239, 96
    %v245 = vpop.permute.xlu0 %244
    %v248 = vmul.f32 %v235, %v243
    %v249 = vmul.f32 %v237, %v245
    %v250 = vsub.f32 1.0, %v235
    %v251 = vsub.f32 1.0, %v237
    %v252 = vmul.f32 %v250, %v131
    %v253 = vmul.f32 %v251, %v132
    %v254 = vadd.f32 %v248, %v252
    %v255 = vadd.f32 %v249, %v253
    %v256 = vld [vmem:[#allocation4] sm:$0xff]
    %v257 = vld [vmem:[#allocation4 + $0x8] sm:$0xff]
    %v258 = vld [vmem:[#allocation4 + $0x10] sm:$0xff]
    %v259 = vld [vmem:[#allocation4 + $0x18] sm:$0xff]
    %v260 = vld [vmem:[#allocation4 + $0x20] sm:$0xff]
    %v261 = vld [vmem:[#allocation4 + $0x28] sm:$0xff]
    %v262 = vld [vmem:[#allocation4 + $0x30] sm:$0xff]
    %v263 = vld [vmem:[#allocation4 + $0x38] sm:$0xff]
    %v264 = vld [vmem:[%s5] sm:$0x3]
    %v266 = vlaneseq
    %v267 = vshrl.u32 %v266, 7
    %v268 = vsub.s32 0, %v267
    %v269 = vrot.slane %v264, %v268
    %v270 = vlaneseq
    %v271 = vshrl.u32 %v270, 7
    %v272 = vsub.s32 1, %v271
    %v273 = vrot.slane %v264, %v272
    %v277 = vsel %vm144, %v254, 0
    %v280 = vsel %vm144, %v255, 0
    %282 = vmatprep.subr.mxu0 0.0
    %283 = vmatpush1.msra.mxu0 0.0
    %284 = vmatprep.subr.mxu0 0.0
    %285 = vmatpush1.msra.mxu0 0.0
    %286 = vmatprep.subr.mxu0 0.0
    %287 = vmatpush1.msra.mxu0 0.0
    %288 = vmatprep.subr.mxu0 0.0
    %289 = vmatpush1.msra.mxu0 0.0
    %290 = vmatprep.subr.mxu0 0.0
    %291 = vmatpush1.msra.mxu0 0.0
    %292 = vmatprep.subr.mxu0 0.0
    %293 = vmatpush1.msra.mxu0 0.0
    %294 = vmatprep.subr.mxu0 0.0
    %295 = vmatpush1.msra.mxu0 0.0
    %296 = vmatprep.subr.mxu0 0.0
    %297 = vmatpush1.msra.mxu0 0.0
    %298 = vmatprep.subr.mxu0 0.0
    %299 = vmatpush1.msra.mxu0 0.0
    %300 = vmatprep.subr.mxu0 0.0
    %301 = vmatpush1.msra.mxu0 0.0
    %302 = vmatprep.subr.mxu0 0.0
    %303 = vmatpush1.msra.mxu0 0.0
    %304 = vmatprep.subr.mxu0 0.0
    %305 = vmatpush1.msra.mxu0 0.0
    %306 = vmatprep.subr.mxu0 %v263
    %307 = vmatpush1.msra.mxu0 %v262
    %308 = vmatprep.subr.mxu0 %v261
    %309 = vmatpush1.msra.mxu0 %v260
    %310 = vmatprep.subr.mxu0 %v259
    %311 = vmatpush1.msra.mxu0 %v258
    %312 = vmatprep.subr.mxu0 %v257
    %313 = vmatpush1.msra.mxu0 %v256
    %314 = vmatprep.subr.mxu0 0.0
    %315 = vmatpush2.msra.mxu0 0.0
    %316 = vmatprep.subr.mxu0 0.0
    %317 = vmatpush2.msra.mxu0 0.0
    %318 = vmatprep.subr.mxu0 0.0
    %319 = vmatpush2.msra.mxu0 0.0
    %320 = vmatprep.subr.mxu0 0.0
    %321 = vmatpush2.msra.mxu0 0.0
    %322 = vmatprep.subr.mxu0 0.0
    %323 = vmatpush2.msra.mxu0 0.0
    %324 = vmatprep.subr.mxu0 0.0
    %325 = vmatpush2.msra.mxu0 0.0
    %326 = vmatprep.subr.mxu0 0.0
    %327 = vmatpush2.msra.mxu0 0.0
    %328 = vmatprep.subr.mxu0 0.0
    %329 = vmatpush2.msra.mxu0 0.0
    %330 = vmatprep.subr.mxu0 0.0
    %331 = vmatpush2.msra.mxu0 0.0
    %332 = vmatprep.subr.mxu0 0.0
    %333 = vmatpush2.msra.mxu0 0.0
    %334 = vmatprep.subr.mxu0 0.0
    %335 = vmatpush2.msra.mxu0 0.0
    %336 = vmatprep.subr.mxu0 0.0
    %337 = vmatpush2.msra.mxu0 0.0
    %338 = vmatprep.subr.mxu0 0.0
    %339 = vmatpush2.msra.mxu0 0.0
    %340 = vmatprep.subr.mxu0 0.0
    %341 = vmatpush2.msra.mxu0 0.0
    %342 = vmatprep.subr.mxu0 0.0
    %343 = vmatpush2.msra.mxu0 0.0
    %344 = vmatprep.subr.mxu0 0.0
    %345 = vmatpush2.msra.mxu0 0.0
    %346 = vmatprep.mubr.f32.mxu0 0.0
    %347 = vmatmul.mubr.f32.gmra.mxu0 %v277
    %v348 = vpop.f32.mrf.mxu0
    %v349 = vadd.f32 %v269, %v348
    %v350 = vpop.f32.mrf.mxu0
    %v351 = vadd.f32 %v273, %v350
    %352 = vmatprep.mubr.f32.mxu0 0.0
    %353 = vmatmul.mubr.f32.gmra.mxu0 %v280
    %v354 = vpop.f32.mrf.mxu0
    %v355 = vadd.f32 %v269, %v354
    %v356 = vpop.f32.mrf.mxu0
    %v357 = vadd.f32 %v273, %v356
    %358 = vdwg.mxu0
    %v359 = vld [vmem:[#allocation6] sm:$0xff]
    %v360 = vld [vmem:[#allocation6 + $0x8] sm:$0xff]
    %v361 = vld [vmem:[#allocation6 + $0x10] sm:$0xff]
    %v362 = vld [vmem:[#allocation6 + $0x18] sm:$0xff]
    %v363 = vld [vmem:[#allocation6 + $0x20] sm:$0xff]
    %v364 = vld [vmem:[#allocation6 + $0x28] sm:$0xff]
    %v365 = vld [vmem:[#allocation6 + $0x30] sm:$0xff]
    %v366 = vld [vmem:[#allocation6 + $0x38] sm:$0xff]
    %v367 = vld [vmem:[#allocation6 + $0x40] sm:$0xff]
    %v368 = vld [vmem:[#allocation6 + $0x48] sm:$0xff]
    %v369 = vld [vmem:[#allocation6 + $0x50] sm:$0xff]
    %v370 = vld [vmem:[#allocation6 + $0x58] sm:$0xff]
    %v371 = vld [vmem:[#allocation6 + $0x60] sm:$0xff]
    %v372 = vld [vmem:[#allocation6 + $0x68] sm:$0xff]
    %v373 = vld [vmem:[#allocation6 + $0x70] sm:$0xff]
    %v374 = vld [vmem:[#allocation6 + $0x78] sm:$0xff]
    %vm375 = vcmask 523264
    %v377 = vsel %vm375, 0.0, 0
    %379 = vmatprep.subr.mxu0 0.0
    %380 = vmatpush1.msra.mxu0 0.0
    %381 = vmatprep.subr.mxu0 0.0
    %382 = vmatpush1.msra.mxu0 0.0
    %383 = vmatprep.subr.mxu0 0.0
    %384 = vmatpush1.msra.mxu0 0.0
    %385 = vmatprep.subr.mxu0 0.0
    %386 = vmatpush1.msra.mxu0 0.0
    %387 = vmatprep.subr.mxu0 0.0
    %388 = vmatpush1.msra.mxu0 0.0
    %389 = vmatprep.subr.mxu0 0.0
    %390 = vmatpush1.msra.mxu0 0.0
    %391 = vmatprep.subr.mxu0 0.0
    %392 = vmatpush1.msra.mxu0 0.0
    %393 = vmatprep.subr.mxu0 0.0
    %394 = vmatpush1.msra.mxu0 0.0
    %395 = vmatprep.subr.mxu0 %v374
    %396 = vmatpush1.msra.mxu0 %v373
    %397 = vmatprep.subr.mxu0 %v372
    %398 = vmatpush1.msra.mxu0 %v371
    %399 = vmatprep.subr.mxu0 %v370
    %400 = vmatpush1.msra.mxu0 %v369
    %401 = vmatprep.subr.mxu0 %v368
    %402 = vmatpush1.msra.mxu0 %v367
    %403 = vmatprep.subr.mxu0 %v366
    %404 = vmatpush1.msra.mxu0 %v365
    %405 = vmatprep.subr.mxu0 %v364
    %406 = vmatpush1.msra.mxu0 %v363
    %407 = vmatprep.subr.mxu0 %v362
    %408 = vmatpush1.msra.mxu0 %v361
    %409 = vmatprep.subr.mxu0 %v360
    %410 = vmatpush1.msra.mxu0 %v359
    %411 = vmatprep.subr.mxu0 0.0
    %412 = vmatpush2.msra.mxu0 0.0
    %413 = vmatprep.subr.mxu0 0.0
    %414 = vmatpush2.msra.mxu0 0.0
    %415 = vmatprep.subr.mxu0 0.0
    %416 = vmatpush2.msra.mxu0 0.0
    %417 = vmatprep.subr.mxu0 0.0
    %418 = vmatpush2.msra.mxu0 0.0
    %419 = vmatprep.subr.mxu0 0.0
    %420 = vmatpush2.msra.mxu0 0.0
    %421 = vmatprep.subr.mxu0 0.0
    %422 = vmatpush2.msra.mxu0 0.0
    %423 = vmatprep.subr.mxu0 0.0
    %424 = vmatpush2.msra.mxu0 0.0
    %425 = vmatprep.subr.mxu0 0.0
    %426 = vmatpush2.msra.mxu0 0.0
    %427 = vmatprep.subr.mxu0 0.0
    %428 = vmatpush2.msra.mxu0 0.0
    %429 = vmatprep.subr.mxu0 0.0
    %430 = vmatpush2.msra.mxu0 0.0
    %431 = vmatprep.subr.mxu0 0.0
    %432 = vmatpush2.msra.mxu0 0.0
    %433 = vmatprep.subr.mxu0 0.0
    %434 = vmatpush2.msra.mxu0 0.0
    %435 = vmatprep.subr.mxu0 0.0
    %436 = vmatpush2.msra.mxu0 0.0
    %437 = vmatprep.subr.mxu0 0.0
    %438 = vmatpush2.msra.mxu0 0.0
    %439 = vmatprep.subr.mxu0 0.0
    %440 = vmatpush2.msra.mxu0 0.0
    %441 = vmatprep.subr.mxu0 0.0
    %442 = vmatpush2.msra.mxu0 0.0
    %443 = vmatprep.mubr.f32.mxu0 0.0
    %444 = vmatmul.mubr.f32.gmra.mxu0 %v377
    %v445 = vpop.f32.mrf.mxu0
    %v446 = vadd.f32 0.0, %v445
    %v447 = vpop.f32.mrf.mxu0
    %v448 = vadd.f32 0.0, %v447
    %449 = vdwg.mxu0
    %v450 = vadd.f32 %v349, %v446
    %v452 = vrot.slane %v448, 2
    %v454 = vadd.f32 %v357, %v452
    %v455 = vxor.u32 %v450, 2147483648
    %v456 = vmul.f32 %v455, 1.442695
    %v457 = vpow.pop %v456
    %v458 = vadd.f32 %v457, 1.0
    %v459 = vrcp.pop %v458
    %v460 = vmul.f32 1.0, %v459
    %v461 = vtanh.pop %v450
    %v462 = vxor.u32 %v454, 2147483648
    %v463 = vmul.f32 %v462, 1.442695
    %v464 = vpow.pop %v463
    %v465 = vadd.f32 %v464, 1.0
    %v466 = vrcp.pop %v465
    %v467 = vmul.f32 1.0, %v466
    %v468 = vtanh.pop %v454
    %v469 = vmul.f32 %v460, 0.0
    %471 = vrot.lane.b32.xlu0 %v461, 32
    %v472 = vpop.permute.xlu0 %471
    %v474 = vmul.f32 %v460, %v472
    %476 = vrot.lane.b32.xlu0 %v474, 32
    %v477 = vpop.permute.xlu0 %476
    %v479 = vadd.f32 %v469, %v477
    %v480 = vmul.f32 %v467, 0.0
    %482 = vrot.lane.b32.xlu0 %v468, 32
    %v483 = vpop.permute.xlu0 %482
    %v485 = vmul.f32 %v467, %v483
    %487 = vrot.lane.b32.xlu0 %v485, 32
    %v488 = vpop.permute.xlu0 %487
    %v490 = vadd.f32 %v480, %v488
    %v491 = vtanh.pop %v479
    %493 = vrot.lane.b32.xlu0 %v491, 32
    %v494 = vpop.permute.xlu0 %493
    %v496 = vmul.f32 %v460, %v494
    %v497 = vtanh.pop %v490
    %499 = vrot.lane.b32.xlu0 %v497, 32
    %v500 = vpop.permute.xlu0 %499
    %v502 = vmul.f32 %v467, %v500
    %504 = vrot.lane.b32.xlu0 %v496, 64
    %v505 = vpop.permute.xlu0 %504
    %v508 = vrot.slane %v502, 6
    %509 = vrot.lane.b32.xlu0 %v508, 96
    %v510 = vpop.permute.xlu0 %509
    %v512 = vsel %vm144, %v505, %v510
    %v514 = vsel %vm375, %v512, 0
    %516 = vmatprep.subr.mxu0 0.0
    %517 = vmatpush1.msra.mxu0 0.0
    %518 = vmatprep.subr.mxu0 0.0
    %519 = vmatpush1.msra.mxu0 0.0
    %520 = vmatprep.subr.mxu0 0.0
    %521 = vmatpush1.msra.mxu0 0.0
    %522 = vmatprep.subr.mxu0 0.0
    %523 = vmatpush1.msra.mxu0 0.0
    %524 = vmatprep.subr.mxu0 0.0
    %525 = vmatpush1.msra.mxu0 0.0
    %526 = vmatprep.subr.mxu0 0.0
    %527 = vmatpush1.msra.mxu0 0.0
    %528 = vmatprep.subr.mxu0 0.0
    %529 = vmatpush1.msra.mxu0 0.0
    %530 = vmatprep.subr.mxu0 0.0
    %531 = vmatpush1.msra.mxu0 0.0
    %532 = vmatprep.subr.mxu0 %v374
    %533 = vmatpush1.msra.mxu0 %v373
    %534 = vmatprep.subr.mxu0 %v372
    %535 = vmatpush1.msra.mxu0 %v371
    %536 = vmatprep.subr.mxu0 %v370
    %537 = vmatpush1.msra.mxu0 %v369
    %538 = vmatprep.subr.mxu0 %v368
    %539 = vmatpush1.msra.mxu0 %v367
    %540 = vmatprep.subr.mxu0 %v366
    %541 = vmatpush1.msra.mxu0 %v365
    %542 = vmatprep.subr.mxu0 %v364
    %543 = vmatpush1.msra.mxu0 %v363
    %544 = vmatprep.subr.mxu0 %v362
    %545 = vmatpush1.msra.mxu0 %v361
    %546 = vmatprep.subr.mxu0 %v360
    %547 = vmatpush1.msra.mxu0 %v359
    %548 = vmatprep.subr.mxu0 0.0
    %549 = vmatpush2.msra.mxu0 0.0
    %550 = vmatprep.subr.mxu0 0.0
    %551 = vmatpush2.msra.mxu0 0.0
    %552 = vmatprep.subr.mxu0 0.0
    %553 = vmatpush2.msra.mxu0 0.0
    %554 = vmatprep.subr.mxu0 0.0
    %555 = vmatpush2.msra.mxu0 0.0
    %556 = vmatprep.subr.mxu0 0.0
    %557 = vmatpush2.msra.mxu0 0.0
    %558 = vmatprep.subr.mxu0 0.0
    %559 = vmatpush2.msra.mxu0 0.0
    %560 = vmatprep.subr.mxu0 0.0
    %561 = vmatpush2.msra.mxu0 0.0
    %562 = vmatprep.subr.mxu0 0.0
    %563 = vmatpush2.msra.mxu0 0.0
    %564 = vmatprep.subr.mxu0 0.0
    %565 = vmatpush2.msra.mxu0 0.0
    %566 = vmatprep.subr.mxu0 0.0
    %567 = vmatpush2.msra.mxu0 0.0
    %568 = vmatprep.subr.mxu0 0.0
    %569 = vmatpush2.msra.mxu0 0.0
    %570 = vmatprep.subr.mxu0 0.0
    %571 = vmatpush2.msra.mxu0 0.0
    %572 = vmatprep.subr.mxu0 0.0
    %573 = vmatpush2.msra.mxu0 0.0
    %574 = vmatprep.subr.mxu0 0.0
    %575 = vmatpush2.msra.mxu0 0.0
    %576 = vmatprep.subr.mxu0 0.0
    %577 = vmatpush2.msra.mxu0 0.0
    %578 = vmatprep.subr.mxu0 0.0
    %579 = vmatpush2.msra.mxu0 0.0
    %580 = vmatprep.mubr.f32.mxu0 0.0
    %581 = vmatmul.mubr.f32.gmra.mxu0 %v514
    %v582 = vpop.f32.mrf.mxu0
    %v583 = vadd.f32 0.0, %v582
    %v584 = vpop.f32.mrf.mxu0
    %v585 = vadd.f32 0.0, %v584
    %586 = vdwg.mxu0
    %v588 = vrot.slane %v583, 6
    %v590 = vadd.f32 %v349, %v588
    %v592 = vrot.slane %v585, 4
    %v594 = vadd.f32 %v357, %v592
    %v595 = vxor.u32 %v590, 2147483648
    %v596 = vmul.f32 %v595, 1.442695
    %v597 = vpow.pop %v596
    %v598 = vadd.f32 %v597, 1.0
    %v599 = vrcp.pop %v598
    %v600 = vmul.f32 1.0, %v599
    %v601 = vtanh.pop %v590
    %v602 = vxor.u32 %v594, 2147483648
    %v603 = vmul.f32 %v602, 1.442695
    %v604 = vpow.pop %v603
    %v605 = vadd.f32 %v604, 1.0
    %v606 = vrcp.pop %v605
    %v607 = vmul.f32 1.0, %v606
    %v608 = vtanh.pop %v594
    %v610 = vrot.slane %v479, 6
    %v612 = vmul.f32 %v600, %v610
    %614 = vrot.lane.b32.xlu0 %v601, 32
    %v615 = vpop.permute.xlu0 %614
    %v617 = vmul.f32 %v600, %v615
    %619 = vrot.lane.b32.xlu0 %v617, 32
    %v620 = vpop.permute.xlu0 %619
    %v622 = vadd.f32 %v612, %v620
    %v624 = vrot.slane %v490, 2
    %v626 = vmul.f32 %v607, %v624
    %628 = vrot.lane.b32.xlu0 %v608, 32
    %v629 = vpop.permute.xlu0 %628
    %v631 = vmul.f32 %v607, %v629
    %633 = vrot.lane.b32.xlu0 %v631, 32
    %v634 = vpop.permute.xlu0 %633
    %v636 = vadd.f32 %v626, %v634
    %v637 = vtanh.pop %v622
    %639 = vrot.lane.b32.xlu0 %v637, 32
    %v640 = vpop.permute.xlu0 %639
    %v642 = vmul.f32 %v600, %v640
    %v643 = vtanh.pop %v636
    %645 = vrot.lane.b32.xlu0 %v643, 32
    %v646 = vpop.permute.xlu0 %645
    %v648 = vmul.f32 %v607, %v646
    %650 = vrot.lane.b32.xlu0 %v642, 64
    %v651 = vpop.permute.xlu0 %650
    %v654 = vrot.slane %v648, 2
    %655 = vrot.lane.b32.xlu0 %v654, 96
    %v656 = vpop.permute.xlu0 %655
    %v658 = vsel %vm144, %v651, %v656
    %v660 = vrot.slane %v658, 2
    %v661 = vsel %vm375, %v660, 0
    %663 = vmatprep.subr.mxu0 0.0
    %664 = vmatpush1.msra.mxu0 0.0
    %665 = vmatprep.subr.mxu0 0.0
    %666 = vmatpush1.msra.mxu0 0.0
    %667 = vmatprep.subr.mxu0 0.0
    %668 = vmatpush1.msra.mxu0 0.0
    %669 = vmatprep.subr.mxu0 0.0
    %670 = vmatpush1.msra.mxu0 0.0
    %671 = vmatprep.subr.mxu0 0.0
    %672 = vmatpush1.msra.mxu0 0.0
    %673 = vmatprep.subr.mxu0 0.0
    %674 = vmatpush1.msra.mxu0 0.0
    %675 = vmatprep.subr.mxu0 0.0
    %676 = vmatpush1.msra.mxu0 0.0
    %677 = vmatprep.subr.mxu0 0.0
    %678 = vmatpush1.msra.mxu0 0.0
    %679 = vmatprep.subr.mxu0 %v374
    %680 = vmatpush1.msra.mxu0 %v373
    %681 = vmatprep.subr.mxu0 %v372
    %682 = vmatpush1.msra.mxu0 %v371
    %683 = vmatprep.subr.mxu0 %v370
    %684 = vmatpush1.msra.mxu0 %v369
    %685 = vmatprep.subr.mxu0 %v368
    %686 = vmatpush1.msra.mxu0 %v367
    %687 = vmatprep.subr.mxu0 %v366
    %688 = vmatpush1.msra.mxu0 %v365
    %689 = vmatprep.subr.mxu0 %v364
    %690 = vmatpush1.msra.mxu0 %v363
    %691 = vmatprep.subr.mxu0 %v362
    %692 = vmatpush1.msra.mxu0 %v361
    %693 = vmatprep.subr.mxu0 %v360
    %694 = vmatpush1.msra.mxu0 %v359
    %695 = vmatprep.subr.mxu0 0.0
    %696 = vmatpush2.msra.mxu0 0.0
    %697 = vmatprep.subr.mxu0 0.0
    %698 = vmatpush2.msra.mxu0 0.0
    %699 = vmatprep.subr.mxu0 0.0
    %700 = vmatpush2.msra.mxu0 0.0
    %701 = vmatprep.subr.mxu0 0.0
    %702 = vmatpush2.msra.mxu0 0.0
    %703 = vmatprep.subr.mxu0 0.0
    %704 = vmatpush2.msra.mxu0 0.0
    %705 = vmatprep.subr.mxu0 0.0
    %706 = vmatpush2.msra.mxu0 0.0
    %707 = vmatprep.subr.mxu0 0.0
    %708 = vmatpush2.msra.mxu0 0.0
    %709 = vmatprep.subr.mxu0 0.0
    %710 = vmatpush2.msra.mxu0 0.0
    %711 = vmatprep.subr.mxu0 0.0
    %712 = vmatpush2.msra.mxu0 0.0
    %713 = vmatprep.subr.mxu0 0.0
    %714 = vmatpush2.msra.mxu0 0.0
    %715 = vmatprep.subr.mxu0 0.0
    %716 = vmatpush2.msra.mxu0 0.0
    %717 = vmatprep.subr.mxu0 0.0
    %718 = vmatpush2.msra.mxu0 0.0
    %719 = vmatprep.subr.mxu0 0.0
    %720 = vmatpush2.msra.mxu0 0.0
    %721 = vmatprep.subr.mxu0 0.0
    %722 = vmatpush2.msra.mxu0 0.0
    %723 = vmatprep.subr.mxu0 0.0
    %724 = vmatpush2.msra.mxu0 0.0
    %725 = vmatprep.subr.mxu0 0.0
    %726 = vmatpush2.msra.mxu0 0.0
    %727 = vmatprep.mubr.f32.mxu0 0.0
    %728 = vmatmul.mubr.f32.gmra.mxu0 %v661
    %v729 = vpop.f32.mrf.mxu0
    %v730 = vadd.f32 0.0, %v729
    %v731 = vpop.f32.mrf.mxu0
    %v732 = vadd.f32 0.0, %v731
    %733 = vdwg.mxu0
    %v735 = vrot.slane %v730, 4
    %v737 = vadd.f32 %v349, %v735
    %v739 = vrot.slane %v732, 6
    %v741 = vadd.f32 %v357, %v739
    %v742 = vxor.u32 %v737, 2147483648
    %v743 = vmul.f32 %v742, 1.442695
    %v744 = vpow.pop %v743
    %v745 = vadd.f32 %v744, 1.0
    %v746 = vrcp.pop %v745
    %v747 = vmul.f32 1.0, %v746
    %v748 = vtanh.pop %v737
    %v749 = vxor.u32 %v741, 2147483648
    %v750 = vmul.f32 %v749, 1.442695
    %v751 = vpow.pop %v750
    %v752 = vadd.f32 %v751, 1.0
    %v753 = vrcp.pop %v752
    %v754 = vmul.f32 1.0, %v753
    %v755 = vtanh.pop %v741
    %v757 = vrot.slane %v622, 6
    %v759 = vmul.f32 %v747, %v757
    %761 = vrot.lane.b32.xlu0 %v748, 32
    %v762 = vpop.permute.xlu0 %761
    %v764 = vmul.f32 %v747, %v762
    %766 = vrot.lane.b32.xlu0 %v764, 32
    %v767 = vpop.permute.xlu0 %766
    %v769 = vadd.f32 %v759, %v767
    %v771 = vrot.slane %v636, 2
    %v773 = vmul.f32 %v754, %v771
    %775 = vrot.lane.b32.xlu0 %v755, 32
    %v776 = vpop.permute.xlu0 %775
    %v778 = vmul.f32 %v754, %v776
    %780 = vrot.lane.b32.xlu0 %v778, 32
    %v781 = vpop.permute.xlu0 %780
    %v783 = vadd.f32 %v773, %v781
    %v784 = vtanh.pop %v769
    %786 = vrot.lane.b32.xlu0 %v784, 32
    %v787 = vpop.permute.xlu0 %786
    %v789 = vmul.f32 %v747, %v787
    %v790 = vtanh.pop %v783
    %792 = vrot.lane.b32.xlu0 %v790, 32
    %v793 = vpop.permute.xlu0 %792
    %v795 = vmul.f32 %v754, %v793
    %797 = vrot.lane.b32.xlu0 %v789, 64
    %v798 = vpop.permute.xlu0 %797
    %v801 = vrot.slane %v795, 6
    %802 = vrot.lane.b32.xlu0 %v801, 96
    %v803 = vpop.permute.xlu0 %802
    %v805 = vsel %vm144, %v798, %v803
    %v807 = vrot.slane %v805, 4
    %v808 = vsel %vm375, %v807, 0
    %810 = vmatprep.subr.mxu0 0.0
    %811 = vmatpush1.msra.mxu0 0.0
    %812 = vmatprep.subr.mxu0 0.0
    %813 = vmatpush1.msra.mxu0 0.0
    %814 = vmatprep.subr.mxu0 0.0
    %815 = vmatpush1.msra.mxu0 0.0
    %816 = vmatprep.subr.mxu0 0.0
    %817 = vmatpush1.msra.mxu0 0.0
    %818 = vmatprep.subr.mxu0 0.0
    %819 = vmatpush1.msra.mxu0 0.0
    %820 = vmatprep.subr.mxu0 0.0
    %821 = vmatpush1.msra.mxu0 0.0
    %822 = vmatprep.subr.mxu0 0.0
    %823 = vmatpush1.msra.mxu0 0.0
    %824 = vmatprep.subr.mxu0 0.0
    %825 = vmatpush1.msra.mxu0 0.0
    %826 = vmatprep.subr.mxu0 %v374
    %827 = vmatpush1.msra.mxu0 %v373
    %828 = vmatprep.subr.mxu0 %v372
    %829 = vmatpush1.msra.mxu0 %v371
    %830 = vmatprep.subr.mxu0 %v370
    %831 = vmatpush1.msra.mxu0 %v369
    %832 = vmatprep.subr.mxu0 %v368
    %833 = vmatpush1.msra.mxu0 %v367
    %834 = vmatprep.subr.mxu0 %v366
    %835 = vmatpush1.msra.mxu0 %v365
    %836 = vmatprep.subr.mxu0 %v364
    %837 = vmatpush1.msra.mxu0 %v363
    %838 = vmatprep.subr.mxu0 %v362
    %839 = vmatpush1.msra.mxu0 %v361
    %840 = vmatprep.subr.mxu0 %v360
    %841 = vmatpush1.msra.mxu0 %v359
    %842 = vmatprep.subr.mxu0 0.0
    %843 = vmatpush2.msra.mxu0 0.0
    %844 = vmatprep.subr.mxu0 0.0
    %845 = vmatpush2.msra.mxu0 0.0
    %846 = vmatprep.subr.mxu0 0.0
    %847 = vmatpush2.msra.mxu0 0.0
    %848 = vmatprep.subr.mxu0 0.0
    %849 = vmatpush2.msra.mxu0 0.0
    %850 = vmatprep.subr.mxu0 0.0
    %851 = vmatpush2.msra.mxu0 0.0
    %852 = vmatprep.subr.mxu0 0.0
    %853 = vmatpush2.msra.mxu0 0.0
    %854 = vmatprep.subr.mxu0 0.0
    %855 = vmatpush2.msra.mxu0 0.0
    %856 = vmatprep.subr.mxu0 0.0
    %857 = vmatpush2.msra.mxu0 0.0
    %858 = vmatprep.subr.mxu0 0.0
    %859 = vmatpush2.msra.mxu0 0.0
    %860 = vmatprep.subr.mxu0 0.0
    %861 = vmatpush2.msra.mxu0 0.0
    %862 = vmatprep.subr.mxu0 0.0
    %863 = vmatpush2.msra.mxu0 0.0
    %864 = vmatprep.subr.mxu0 0.0
    %865 = vmatpush2.msra.mxu0 0.0
    %866 = vmatprep.subr.mxu0 0.0
    %867 = vmatpush2.msra.mxu0 0.0
    %868 = vmatprep.subr.mxu0 0.0
    %869 = vmatpush2.msra.mxu0 0.0
    %870 = vmatprep.subr.mxu0 0.0
    %871 = vmatpush2.msra.mxu0 0.0
    %872 = vmatprep.subr.mxu0 0.0
    %873 = vmatpush2.msra.mxu0 0.0
    %874 = vmatprep.mubr.f32.mxu0 0.0
    %875 = vmatmul.mubr.f32.gmra.mxu0 %v808
    %v876 = vpop.f32.mrf.mxu0
    %v877 = vadd.f32 0.0, %v876
    %v878 = vpop.f32.mrf.mxu0
    %v879 = vadd.f32 0.0, %v878
    %880 = vdwg.mxu0
    %v882 = vrot.slane %v877, 2
    %v884 = vadd.f32 %v349, %v882
    %v885 = vadd.f32 %v357, %v879
    %v886 = vxor.u32 %v884, 2147483648
    %v887 = vmul.f32 %v886, 1.442695
    %v888 = vpow.pop %v887
    %v889 = vadd.f32 %v888, 1.0
    %v890 = vrcp.pop %v889
    %v891 = vmul.f32 1.0, %v890
    %v892 = vtanh.pop %v884
    %v893 = vxor.u32 %v885, 2147483648
    %v894 = vmul.f32 %v893, 1.442695
    %v895 = vpow.pop %v894
    %v896 = vadd.f32 %v895, 1.0
    %v897 = vrcp.pop %v896
    %v898 = vmul.f32 1.0, %v897
    %v899 = vtanh.pop %v885
    %v901 = vrot.slane %v769, 6
    %v903 = vmul.f32 %v891, %v901
    %905 = vrot.lane.b32.xlu0 %v892, 32
    %v906 = vpop.permute.xlu0 %905
    %v908 = vmul.f32 %v891, %v906
    %910 = vrot.lane.b32.xlu0 %v908, 32
    %v911 = vpop.permute.xlu0 %910
    %v913 = vadd.f32 %v903, %v911
    %v915 = vrot.slane %v783, 2
    %v917 = vmul.f32 %v898, %v915
    %919 = vrot.lane.b32.xlu0 %v899, 32
    %v920 = vpop.permute.xlu0 %919
    %v922 = vmul.f32 %v898, %v920
    %924 = vrot.lane.b32.xlu0 %v922, 32
    %v925 = vpop.permute.xlu0 %924
    %v927 = vadd.f32 %v917, %v925
    %v928 = vtanh.pop %v913
    %930 = vrot.lane.b32.xlu0 %v928, 32
    %v931 = vpop.permute.xlu0 %930
    %v933 = vmul.f32 %v891, %v931
    %v934 = vtanh.pop %v927
    %936 = vrot.lane.b32.xlu0 %v934, 32
    %v937 = vpop.permute.xlu0 %936
    %v939 = vmul.f32 %v898, %v937
    %941 = vrot.lane.b32.xlu0 %v933, 64
    %v942 = vpop.permute.xlu0 %941
    %v945 = vrot.slane %v939, 2
    %946 = vrot.lane.b32.xlu0 %v945, 96
    %v947 = vpop.permute.xlu0 %946
    %v949 = vsel %vm144, %v942, %v947
    %v951 = vrot.slane %v949, 6
    %v952 = vsel %vm375, %v951, 0
    %954 = vmatprep.subr.mxu0 0.0
    %955 = vmatpush1.msra.mxu0 0.0
    %956 = vmatprep.subr.mxu0 0.0
    %957 = vmatpush1.msra.mxu0 0.0
    %958 = vmatprep.subr.mxu0 0.0
    %959 = vmatpush1.msra.mxu0 0.0
    %960 = vmatprep.subr.mxu0 0.0
    %961 = vmatpush1.msra.mxu0 0.0
    %962 = vmatprep.subr.mxu0 0.0
    %963 = vmatpush1.msra.mxu0 0.0
    %964 = vmatprep.subr.mxu0 0.0
    %965 = vmatpush1.msra.mxu0 0.0
    %966 = vmatprep.subr.mxu0 0.0
    %967 = vmatpush1.msra.mxu0 0.0
    %968 = vmatprep.subr.mxu0 0.0
    %969 = vmatpush1.msra.mxu0 0.0
    %970 = vmatprep.subr.mxu0 %v374
    %971 = vmatpush1.msra.mxu0 %v373
    %972 = vmatprep.subr.mxu0 %v372
    %973 = vmatpush1.msra.mxu0 %v371
    %974 = vmatprep.subr.mxu0 %v370
    %975 = vmatpush1.msra.mxu0 %v369
    %976 = vmatprep.subr.mxu0 %v368
    %977 = vmatpush1.msra.mxu0 %v367
    %978 = vmatprep.subr.mxu0 %v366
    %979 = vmatpush1.msra.mxu0 %v365
    %980 = vmatprep.subr.mxu0 %v364
    %981 = vmatpush1.msra.mxu0 %v363
    %982 = vmatprep.subr.mxu0 %v362
    %983 = vmatpush1.msra.mxu0 %v361
    %984 = vmatprep.subr.mxu0 %v360
    %985 = vmatpush1.msra.mxu0 %v359
    %986 = vmatprep.subr.mxu0 0.0
    %987 = vmatpush2.msra.mxu0 0.0
    %988 = vmatprep.subr.mxu0 0.0
    %989 = vmatpush2.msra.mxu0 0.0
    %990 = vmatprep.subr.mxu0 0.0
    %991 = vmatpush2.msra.mxu0 0.0
    %992 = vmatprep.subr.mxu0 0.0
    %993 = vmatpush2.msra.mxu0 0.0
    %994 = vmatprep.subr.mxu0 0.0
    %995 = vmatpush2.msra.mxu0 0.0
    %996 = vmatprep.subr.mxu0 0.0
    %997 = vmatpush2.msra.mxu0 0.0
    %998 = vmatprep.subr.mxu0 0.0
    %999 = vmatpush2.msra.mxu0 0.0
    %1000 = vmatprep.subr.mxu0 0.0
    %1001 = vmatpush2.msra.mxu0 0.0
    %1002 = vmatprep.subr.mxu0 0.0
    %1003 = vmatpush2.msra.mxu0 0.0
    %1004 = vmatprep.subr.mxu0 0.0
    %1005 = vmatpush2.msra.mxu0 0.0
    %1006 = vmatprep.subr.mxu0 0.0
    %1007 = vmatpush2.msra.mxu0 0.0
    %1008 = vmatprep.subr.mxu0 0.0
    %1009 = vmatpush2.msra.mxu0 0.0
    %1010 = vmatprep.subr.mxu0 0.0
    %1011 = vmatpush2.msra.mxu0 0.0
    %1012 = vmatprep.subr.mxu0 0.0
    %1013 = vmatpush2.msra.mxu0 0.0
    %1014 = vmatprep.subr.mxu0 0.0
    %1015 = vmatpush2.msra.mxu0 0.0
    %1016 = vmatprep.subr.mxu0 0.0
    %1017 = vmatpush2.msra.mxu0 0.0
    %1018 = vmatprep.mubr.f32.mxu0 0.0
    %1019 = vmatmul.mubr.f32.gmra.mxu0 %v952
    %v1020 = vpop.f32.mrf.mxu0
    %v1021 = vadd.f32 0.0, %v1020
    %v1022 = vpop.f32.mrf.mxu0
    %v1023 = vadd.f32 0.0, %v1022
    %1024 = vdwg.mxu0
    %v1025 = vadd.f32 %v355, %v1021
    %v1027 = vrot.slane %v1023, 2
    %v1029 = vadd.f32 %v351, %v1027
    %v1030 = vxor.u32 %v1025, 2147483648
    %v1031 = vmul.f32 %v1030, 1.442695
    %v1032 = vpow.pop %v1031
    %v1033 = vadd.f32 %v1032, 1.0
    %v1034 = vrcp.pop %v1033
    %v1035 = vmul.f32 1.0, %v1034
    %v1036 = vtanh.pop %v1025
    %v1037 = vxor.u32 %v1029, 2147483648
    %v1038 = vmul.f32 %v1037, 1.442695
    %v1039 = vpow.pop %v1038
    %v1040 = vadd.f32 %v1039, 1.0
    %v1041 = vrcp.pop %v1040
    %v1042 = vmul.f32 1.0, %v1041
    %v1043 = vtanh.pop %v1029
    %v1045 = vrot.slane %v913, 6
    %v1047 = vmul.f32 %v1035, %v1045
    %1049 = vrot.lane.b32.xlu0 %v1036, 32
    %v1050 = vpop.permute.xlu0 %1049
    %v1052 = vmul.f32 %v1035, %v1050
    %1054 = vrot.lane.b32.xlu0 %v1052, 32
    %v1055 = vpop.permute.xlu0 %1054
    %v1057 = vadd.f32 %v1047, %v1055
    %v1059 = vrot.slane %v927, 2
    %v1061 = vmul.f32 %v1042, %v1059
    %1063 = vrot.lane.b32.xlu0 %v1043, 32
    %v1064 = vpop.permute.xlu0 %1063
    %v1066 = vmul.f32 %v1042, %v1064
    %1068 = vrot.lane.b32.xlu0 %v1066, 32
    %v1069 = vpop.permute.xlu0 %1068
    %v1071 = vadd.f32 %v1061, %v1069
    %v1072 = vtanh.pop %v1057
    %1074 = vrot.lane.b32.xlu0 %v1072, 32
    %v1075 = vpop.permute.xlu0 %1074
    %v1077 = vmul.f32 %v1035, %v1075
    %v1078 = vtanh.pop %v1071
    %1080 = vrot.lane.b32.xlu0 %v1078, 32
    %v1081 = vpop.permute.xlu0 %1080
    %v1083 = vmul.f32 %v1042, %v1081
    %1085 = vrot.lane.b32.xlu0 %v1077, 64
    %v1086 = vpop.permute.xlu0 %1085
    %v1089 = vrot.slane %v1083, 6
    %1090 = vrot.lane.b32.xlu0 %v1089, 96
    %v1091 = vpop.permute.xlu0 %1090
    %v1093 = vsel %vm144, %v1086, %v1091
    %v1095 = vsel %vm375, %v1093, 0
    %1097 = vmatprep.subr.mxu0 0.0
    %1098 = vmatpush1.msra.mxu0 0.0
    %1099 = vmatprep.subr.mxu0 0.0
    %1100 = vmatpush1.msra.mxu0 0.0
    %1101 = vmatprep.subr.mxu0 0.0
    %1102 = vmatpush1.msra.mxu0 0.0
    %1103 = vmatprep.subr.mxu0 0.0
    %1104 = vmatpush1.msra.mxu0 0.0
    %1105 = vmatprep.subr.mxu0 0.0
    %1106 = vmatpush1.msra.mxu0 0.0
    %1107 = vmatprep.subr.mxu0 0.0
    %1108 = vmatpush1.msra.mxu0 0.0
    %1109 = vmatprep.subr.mxu0 0.0
    %1110 = vmatpush1.msra.mxu0 0.0
    %1111 = vmatprep.subr.mxu0 0.0
    %1112 = vmatpush1.msra.mxu0 0.0
    %1113 = vmatprep.subr.mxu0 %v374
    %1114 = vmatpush1.msra.mxu0 %v373
    %1115 = vmatprep.subr.mxu0 %v372
    %1116 = vmatpush1.msra.mxu0 %v371
    %1117 = vmatprep.subr.mxu0 %v370
    %1118 = vmatpush1.msra.mxu0 %v369
    %1119 = vmatprep.subr.mxu0 %v368
    %1120 = vmatpush1.msra.mxu0 %v367
    %1121 = vmatprep.subr.mxu0 %v366
    %1122 = vmatpush1.msra.mxu0 %v365
    %1123 = vmatprep.subr.mxu0 %v364
    %1124 = vmatpush1.msra.mxu0 %v363
    %1125 = vmatprep.subr.mxu0 %v362
    %1126 = vmatpush1.msra.mxu0 %v361
    %1127 = vmatprep.subr.mxu0 %v360
    %1128 = vmatpush1.msra.mxu0 %v359
    %1129 = vmatprep.subr.mxu0 0.0
    %1130 = vmatpush2.msra.mxu0 0.0
    %1131 = vmatprep.subr.mxu0 0.0
    %1132 = vmatpush2.msra.mxu0 0.0
    %1133 = vmatprep.subr.mxu0 0.0
    %1134 = vmatpush2.msra.mxu0 0.0
    %1135 = vmatprep.subr.mxu0 0.0
    %1136 = vmatpush2.msra.mxu0 0.0
    %1137 = vmatprep.subr.mxu0 0.0
    %1138 = vmatpush2.msra.mxu0 0.0
    %1139 = vmatprep.subr.mxu0 0.0
    %1140 = vmatpush2.msra.mxu0 0.0
    %1141 = vmatprep.subr.mxu0 0.0
    %1142 = vmatpush2.msra.mxu0 0.0
    %1143 = vmatprep.subr.mxu0 0.0
    %1144 = vmatpush2.msra.mxu0 0.0
    %1145 = vmatprep.subr.mxu0 0.0
    %1146 = vmatpush2.msra.mxu0 0.0
    %1147 = vmatprep.subr.mxu0 0.0
    %1148 = vmatpush2.msra.mxu0 0.0
    %1149 = vmatprep.subr.mxu0 0.0
    %1150 = vmatpush2.msra.mxu0 0.0
    %1151 = vmatprep.subr.mxu0 0.0
    %1152 = vmatpush2.msra.mxu0 0.0
    %1153 = vmatprep.subr.mxu0 0.0
    %1154 = vmatpush2.msra.mxu0 0.0
    %1155 = vmatprep.subr.mxu0 0.0
    %1156 = vmatpush2.msra.mxu0 0.0
    %1157 = vmatprep.subr.mxu0 0.0
    %1158 = vmatpush2.msra.mxu0 0.0
    %1159 = vmatprep.subr.mxu0 0.0
    %1160 = vmatpush2.msra.mxu0 0.0
    %1161 = vmatprep.mubr.f32.mxu0 0.0
    %1162 = vmatmul.mubr.f32.gmra.mxu0 %v1095
    %v1163 = vpop.f32.mrf.mxu0
    %v1164 = vadd.f32 0.0, %v1163
    %v1165 = vpop.f32.mrf.mxu0
    %v1166 = vadd.f32 0.0, %v1165
    %1167 = vdwg.mxu0
    %v1169 = vrot.slane %v1164, 6
    %v1171 = vadd.f32 %v355, %v1169
    %v1173 = vrot.slane %v1166, 4
    %v1175 = vadd.f32 %v351, %v1173
    %v1176 = vxor.u32 %v1171, 2147483648
    %v1177 = vmul.f32 %v1176, 1.442695
    %v1178 = vpow.pop %v1177
    %v1179 = vadd.f32 %v1178, 1.0
    %v1180 = vrcp.pop %v1179
    %v1181 = vmul.f32 1.0, %v1180
    %v1182 = vtanh.pop %v1171
    %v1183 = vxor.u32 %v1175, 2147483648
    %v1184 = vmul.f32 %v1183, 1.442695
    %v1185 = vpow.pop %v1184
    %v1186 = vadd.f32 %v1185, 1.0
    %v1187 = vrcp.pop %v1186
    %v1188 = vmul.f32 1.0, %v1187
    %v1189 = vtanh.pop %v1175
    %v1191 = vrot.slane %v1057, 6
    %v1193 = vmul.f32 %v1181, %v1191
    %1195 = vrot.lane.b32.xlu0 %v1182, 32
    %v1196 = vpop.permute.xlu0 %1195
    %v1198 = vmul.f32 %v1181, %v1196
    %1200 = vrot.lane.b32.xlu0 %v1198, 32
    %v1201 = vpop.permute.xlu0 %1200
    %v1203 = vadd.f32 %v1193, %v1201
    %v1205 = vrot.slane %v1071, 2
    %v1207 = vmul.f32 %v1188, %v1205
    %1209 = vrot.lane.b32.xlu0 %v1189, 32
    %v1210 = vpop.permute.xlu0 %1209
    %v1212 = vmul.f32 %v1188, %v1210
    %1214 = vrot.lane.b32.xlu0 %v1212, 32
    %v1215 = vpop.permute.xlu0 %1214
    %v1217 = vadd.f32 %v1207, %v1215
    %v1218 = vtanh.pop %v1203
    %1220 = vrot.lane.b32.xlu0 %v1218, 32
    %v1221 = vpop.permute.xlu0 %1220
    %v1223 = vmul.f32 %v1181, %v1221
    %v1224 = vtanh.pop %v1217
    %1226 = vrot.lane.b32.xlu0 %v1224, 32
    %v1227 = vpop.permute.xlu0 %1226
    %v1229 = vmul.f32 %v1188, %v1227
    %1231 = vrot.lane.b32.xlu0 %v1223, 64
    %v1232 = vpop.permute.xlu0 %1231
    %v1235 = vrot.slane %v1229, 2
    %1236 = vrot.lane.b32.xlu0 %v1235, 96
    %v1237 = vpop.permute.xlu0 %1236
    %v1239 = vsel %vm144, %v1232, %v1237
    %v1241 = vrot.slane %v1239, 2
    %v1242 = vsel %vm375, %v1241, 0
    %1244 = vmatprep.subr.mxu0 0.0
    %1245 = vmatpush1.msra.mxu0 0.0
    %1246 = vmatprep.subr.mxu0 0.0
    %1247 = vmatpush1.msra.mxu0 0.0
    %1248 = vmatprep.subr.mxu0 0.0
    %1249 = vmatpush1.msra.mxu0 0.0
    %1250 = vmatprep.subr.mxu0 0.0
    %1251 = vmatpush1.msra.mxu0 0.0
    %1252 = vmatprep.subr.mxu0 0.0
    %1253 = vmatpush1.msra.mxu0 0.0
    %1254 = vmatprep.subr.mxu0 0.0
    %1255 = vmatpush1.msra.mxu0 0.0
    %1256 = vmatprep.subr.mxu0 0.0
    %1257 = vmatpush1.msra.mxu0 0.0
    %1258 = vmatprep.subr.mxu0 0.0
    %1259 = vmatpush1.msra.mxu0 0.0
    %1260 = vmatprep.subr.mxu0 %v374
    %1261 = vmatpush1.msra.mxu0 %v373
    %1262 = vmatprep.subr.mxu0 %v372
    %1263 = vmatpush1.msra.mxu0 %v371
    %1264 = vmatprep.subr.mxu0 %v370
    %1265 = vmatpush1.msra.mxu0 %v369
    %1266 = vmatprep.subr.mxu0 %v368
    %1267 = vmatpush1.msra.mxu0 %v367
    %1268 = vmatprep.subr.mxu0 %v366
    %1269 = vmatpush1.msra.mxu0 %v365
    %1270 = vmatprep.subr.mxu0 %v364
    %1271 = vmatpush1.msra.mxu0 %v363
    %1272 = vmatprep.subr.mxu0 %v362
    %1273 = vmatpush1.msra.mxu0 %v361
    %1274 = vmatprep.subr.mxu0 %v360
    %1275 = vmatpush1.msra.mxu0 %v359
    %1276 = vmatprep.subr.mxu0 0.0
    %1277 = vmatpush2.msra.mxu0 0.0
    %1278 = vmatprep.subr.mxu0 0.0
    %1279 = vmatpush2.msra.mxu0 0.0
    %1280 = vmatprep.subr.mxu0 0.0
    %1281 = vmatpush2.msra.mxu0 0.0
    %1282 = vmatprep.subr.mxu0 0.0
    %1283 = vmatpush2.msra.mxu0 0.0
    %1284 = vmatprep.subr.mxu0 0.0
    %1285 = vmatpush2.msra.mxu0 0.0
    %1286 = vmatprep.subr.mxu0 0.0
    %1287 = vmatpush2.msra.mxu0 0.0
    %1288 = vmatprep.subr.mxu0 0.0
    %1289 = vmatpush2.msra.mxu0 0.0
    %1290 = vmatprep.subr.mxu0 0.0
    %1291 = vmatpush2.msra.mxu0 0.0
    %1292 = vmatprep.subr.mxu0 0.0
    %1293 = vmatpush2.msra.mxu0 0.0
    %1294 = vmatprep.subr.mxu0 0.0
    %1295 = vmatpush2.msra.mxu0 0.0
    %1296 = vmatprep.subr.mxu0 0.0
    %1297 = vmatpush2.msra.mxu0 0.0
    %1298 = vmatprep.subr.mxu0 0.0
    %1299 = vmatpush2.msra.mxu0 0.0
    %1300 = vmatprep.subr.mxu0 0.0
    %1301 = vmatpush2.msra.mxu0 0.0
    %1302 = vmatprep.subr.mxu0 0.0
    %1303 = vmatpush2.msra.mxu0 0.0
    %1304 = vmatprep.subr.mxu0 0.0
    %1305 = vmatpush2.msra.mxu0 0.0
    %1306 = vmatprep.subr.mxu0 0.0
    %1307 = vmatpush2.msra.mxu0 0.0
    %1308 = vmatprep.mubr.f32.mxu0 0.0
    %1309 = vmatmul.mubr.f32.gmra.mxu0 %v1242
    %v1310 = vpop.f32.mrf.mxu0
    %v1311 = vadd.f32 0.0, %v1310
    %v1312 = vpop.f32.mrf.mxu0
    %v1313 = vadd.f32 0.0, %v1312
    %1314 = vdwg.mxu0
    %v1316 = vrot.slane %v1311, 4
    %v1318 = vadd.f32 %v355, %v1316
    %v1320 = vrot.slane %v1313, 6
    %v1322 = vadd.f32 %v351, %v1320
    %v1323 = vxor.u32 %v1318, 2147483648
    %v1324 = vmul.f32 %v1323, 1.442695
    %v1325 = vpow.pop %v1324
    %v1326 = vadd.f32 %v1325, 1.0
    %v1327 = vrcp.pop %v1326
    %v1328 = vmul.f32 1.0, %v1327
    %v1329 = vtanh.pop %v1318
    %v1330 = vxor.u32 %v1322, 2147483648
    %v1331 = vmul.f32 %v1330, 1.442695
    %v1332 = vpow.pop %v1331
    %v1333 = vadd.f32 %v1332, 1.0
    %v1334 = vrcp.pop %v1333
    %v1335 = vmul.f32 1.0, %v1334
    %v1336 = vtanh.pop %v1322
    %v1338 = vrot.slane %v1203, 6
    %v1340 = vmul.f32 %v1328, %v1338
    %1342 = vrot.lane.b32.xlu0 %v1329, 32
    %v1343 = vpop.permute.xlu0 %1342
    %v1345 = vmul.f32 %v1328, %v1343
    %1347 = vrot.lane.b32.xlu0 %v1345, 32
    %v1348 = vpop.permute.xlu0 %1347
    %v1350 = vadd.f32 %v1340, %v1348
    %v1352 = vrot.slane %v1217, 2
    %v1354 = vmul.f32 %v1335, %v1352
    %1356 = vrot.lane.b32.xlu0 %v1336, 32
    %v1357 = vpop.permute.xlu0 %1356
    %v1359 = vmul.f32 %v1335, %v1357
    %1361 = vrot.lane.b32.xlu0 %v1359, 32
    %v1362 = vpop.permute.xlu0 %1361
    %v1364 = vadd.f32 %v1354, %v1362
    %v1365 = vtanh.pop %v1350
    %1367 = vrot.lane.b32.xlu0 %v1365, 32
    %v1368 = vpop.permute.xlu0 %1367
    %v1370 = vmul.f32 %v1328, %v1368
    %v1371 = vtanh.pop %v1364
    %1373 = vrot.lane.b32.xlu0 %v1371, 32
    %v1374 = vpop.permute.xlu0 %1373
    %v1376 = vmul.f32 %v1335, %v1374
    %1378 = vrot.lane.b32.xlu0 %v1370, 64
    %v1379 = vpop.permute.xlu0 %1378
    %v1382 = vrot.slane %v1376, 6
    %1383 = vrot.lane.b32.xlu0 %v1382, 96
    %v1384 = vpop.permute.xlu0 %1383
    %v1386 = vsel %vm144, %v1379, %v1384
    %v1388 = vrot.slane %v1386, 4
    %v1389 = vsel %vm375, %v1388, 0
    %1391 = vmatprep.subr.mxu0 0.0
    %1392 = vmatpush1.msra.mxu0 0.0
    %1393 = vmatprep.subr.mxu0 0.0
    %1394 = vmatpush1.msra.mxu0 0.0
    %1395 = vmatprep.subr.mxu0 0.0
    %1396 = vmatpush1.msra.mxu0 0.0
    %1397 = vmatprep.subr.mxu0 0.0
    %1398 = vmatpush1.msra.mxu0 0.0
    %1399 = vmatprep.subr.mxu0 0.0
    %1400 = vmatpush1.msra.mxu0 0.0
    %1401 = vmatprep.subr.mxu0 0.0
    %1402 = vmatpush1.msra.mxu0 0.0
    %1403 = vmatprep.subr.mxu0 0.0
    %1404 = vmatpush1.msra.mxu0 0.0
    %1405 = vmatprep.subr.mxu0 0.0
    %1406 = vmatpush1.msra.mxu0 0.0
    %1407 = vmatprep.subr.mxu0 %v374
    %1408 = vmatpush1.msra.mxu0 %v373
    %1409 = vmatprep.subr.mxu0 %v372
    %1410 = vmatpush1.msra.mxu0 %v371
    %1411 = vmatprep.subr.mxu0 %v370
    %1412 = vmatpush1.msra.mxu0 %v369
    %1413 = vmatprep.subr.mxu0 %v368
    %1414 = vmatpush1.msra.mxu0 %v367
    %1415 = vmatprep.subr.mxu0 %v366
    %1416 = vmatpush1.msra.mxu0 %v365
    %1417 = vmatprep.subr.mxu0 %v364
    %1418 = vmatpush1.msra.mxu0 %v363
    %1419 = vmatprep.subr.mxu0 %v362
    %1420 = vmatpush1.msra.mxu0 %v361
    %1421 = vmatprep.subr.mxu0 %v360
    %1422 = vmatpush1.msra.mxu0 %v359
    %1423 = vmatprep.subr.mxu0 0.0
    %1424 = vmatpush2.msra.mxu0 0.0
    %1425 = vmatprep.subr.mxu0 0.0
    %1426 = vmatpush2.msra.mxu0 0.0
    %1427 = vmatprep.subr.mxu0 0.0
    %1428 = vmatpush2.msra.mxu0 0.0
    %1429 = vmatprep.subr.mxu0 0.0
    %1430 = vmatpush2.msra.mxu0 0.0
    %1431 = vmatprep.subr.mxu0 0.0
    %1432 = vmatpush2.msra.mxu0 0.0
    %1433 = vmatprep.subr.mxu0 0.0
    %1434 = vmatpush2.msra.mxu0 0.0
    %1435 = vmatprep.subr.mxu0 0.0
    %1436 = vmatpush2.msra.mxu0 0.0
    %1437 = vmatprep.subr.mxu0 0.0
    %1438 = vmatpush2.msra.mxu0 0.0
    %1439 = vmatprep.subr.mxu0 0.0
    %1440 = vmatpush2.msra.mxu0 0.0
    %1441 = vmatprep.subr.mxu0 0.0
    %1442 = vmatpush2.msra.mxu0 0.0
    %1443 = vmatprep.subr.mxu0 0.0
    %1444 = vmatpush2.msra.mxu0 0.0
    %1445 = vmatprep.subr.mxu0 0.0
    %1446 = vmatpush2.msra.mxu0 0.0
    %1447 = vmatprep.subr.mxu0 0.0
    %1448 = vmatpush2.msra.mxu0 0.0
    %1449 = vmatprep.subr.mxu0 0.0
    %1450 = vmatpush2.msra.mxu0 0.0
    %1451 = vmatprep.subr.mxu0 0.0
    %1452 = vmatpush2.msra.mxu0 0.0
    %1453 = vmatprep.subr.mxu0 0.0
    %1454 = vmatpush2.msra.mxu0 0.0
    %1455 = vmatprep.mubr.f32.mxu0 0.0
    %1456 = vmatmul.mubr.f32.gmra.mxu0 %v1389
    %v1457 = vpop.f32.mrf.mxu0
    %v1458 = vadd.f32 0.0, %v1457
    %v1459 = vpop.f32.mrf.mxu0
    %v1460 = vadd.f32 0.0, %v1459
    %1461 = vdwg.mxu0
    %v1463 = vrot.slane %v1458, 2
    %v1465 = vadd.f32 %v355, %v1463
    %v1466 = vadd.f32 %v351, %v1460
    %v1467 = vxor.u32 %v1465, 2147483648
    %v1468 = vmul.f32 %v1467, 1.442695
    %v1469 = vpow.pop %v1468
    %v1470 = vadd.f32 %v1469, 1.0
    %v1471 = vrcp.pop %v1470
    %v1472 = vmul.f32 1.0, %v1471
    %v1473 = vtanh.pop %v1465
    %v1474 = vxor.u32 %v1466, 2147483648
    %v1475 = vmul.f32 %v1474, 1.442695
    %v1476 = vpow.pop %v1475
    %v1477 = vadd.f32 %v1476, 1.0
    %v1478 = vrcp.pop %v1477
    %v1479 = vmul.f32 1.0, %v1478
    %v1480 = vtanh.pop %v1466
    %v1482 = vrot.slane %v1350, 6
    %v1484 = vmul.f32 %v1472, %v1482
    %1486 = vrot.lane.b32.xlu0 %v1473, 32
    %v1487 = vpop.permute.xlu0 %1486
    %v1489 = vmul.f32 %v1472, %v1487
    %1491 = vrot.lane.b32.xlu0 %v1489, 32
    %v1492 = vpop.permute.xlu0 %1491
    %v1494 = vadd.f32 %v1484, %v1492
    %v1496 = vrot.slane %v1364, 2
    %v1498 = vmul.f32 %v1479, %v1496
    %1500 = vrot.lane.b32.xlu0 %v1480, 32
    %v1501 = vpop.permute.xlu0 %1500
    %v1503 = vmul.f32 %v1479, %v1501
    %1505 = vrot.lane.b32.xlu0 %v1503, 32
    %v1506 = vpop.permute.xlu0 %1505
    %v1508 = vadd.f32 %v1498, %v1506
    %v1509 = vtanh.pop %v1494
    %1511 = vrot.lane.b32.xlu0 %v1509, 32
    %v1512 = vpop.permute.xlu0 %1511
    %v1514 = vmul.f32 %v1472, %v1512
    %v1515 = vtanh.pop %v1508
    %1517 = vrot.lane.b32.xlu0 %v1515, 32
    %v1518 = vpop.permute.xlu0 %1517
    %v1520 = vmul.f32 %v1479, %v1518
    %vm1521 = vcmask 1041408
    %v1522 = vsel %vm1521, %v496, %v642
    %vm1523 = vcmask 1043456
    %v1524 = vsel %vm1523, %v1522, %v789
    %vm1525 = vcmask 1045504
    %v1526 = vsel %vm1525, %v1524, %v933
    %v1527 = vsel %vm1521, %v1077, %v1223
    %v1528 = vsel %vm1523, %v1527, %v1370
    %v1529 = vsel %vm1525, %v1528, %v1514
    %v1530 = vsel %vm1521, %v1520, %v1376
    %v1531 = vsel %vm1523, %v1530, %v1229
    %v1532 = vsel %vm1525, %v1531, %v1083
    %v1533 = vsel %vm1521, %v939, %v795
    %v1534 = vsel %vm1523, %v1533, %v648
    %v1535 = vsel %vm1525, %v1534, %v502
    %1538 = vrot.lane.b32.xlu0 %v1526, 64
    %v1539 = vpop.permute.xlu0 %1538
    %1540 = vrot.lane.b32.xlu0 %v1529, 64
    %v1541 = vpop.permute.xlu0 %1540
    %1546 = vrot.lane.b32.xlu0 %v1532, 96
    %v1547 = vpop.permute.xlu0 %1546
    %1548 = vrot.lane.b32.xlu0 %v1535, 96
    %v1549 = vpop.permute.xlu0 %1548
    %v1552 = vsel %vm144, %v1539, %v1547
    %v1553 = vsel %vm144, %v1541, %v1549
    %v1554 = vld [vmem:[#allocation7] sm:$0xff]
    %v1555 = vld [vmem:[#allocation7 + $0x8] sm:$0xff]
    %v1556 = vld [vmem:[#allocation7 + $0x10] sm:$0xff]
    %v1557 = vld [vmem:[#allocation7 + $0x18] sm:$0xff]
    %v1558 = vld [vmem:[#allocation7 + $0x20] sm:$0xff]
    %v1559 = vld [vmem:[#allocation7 + $0x28] sm:$0xff]
    %v1560 = vld [vmem:[#allocation7 + $0x30] sm:$0xff]
    %v1561 = vld [vmem:[#allocation7 + $0x38] sm:$0xff]
    %v1562 = vld [vmem:[#allocation7 + $0x40] sm:$0xff]
    %v1563 = vld [vmem:[#allocation7 + $0x48] sm:$0xff]
    %v1564 = vld [vmem:[#allocation7 + $0x50] sm:$0xff]
    %v1565 = vld [vmem:[#allocation7 + $0x58] sm:$0xff]
    %v1566 = vld [vmem:[#allocation7 + $0x60] sm:$0xff]
    %v1567 = vld [vmem:[#allocation7 + $0x68] sm:$0xff]
    %v1568 = vld [vmem:[#allocation7 + $0x70] sm:$0xff]
    %v1569 = vld [vmem:[#allocation7 + $0x78] sm:$0xff]
    %v1570 = vld [vmem:[#allocation10] sm:$0x3]
    %v1572 = vlaneseq
    %v1573 = vshrl.u32 %v1572, 7
    %v1574 = vsub.s32 0, %v1573
    %v1575 = vrot.slane %v1570, %v1574
    %v1576 = vlaneseq
    %v1577 = vshrl.u32 %v1576, 7
    %v1578 = vsub.s32 1, %v1577
    %v1579 = vrot.slane %v1570, %v1578
    %v1583 = vsel %vm375, %v1552, 0
    %v1586 = vsel %vm375, %v1553, 0
    %1588 = vmatprep.subr.mxu0 0.0
    %1589 = vmatpush1.msra.mxu0 0.0
    %1590 = vmatprep.subr.mxu0 0.0
    %1591 = vmatpush1.msra.mxu0 0.0
    %1592 = vmatprep.subr.mxu0 0.0
    %1593 = vmatpush1.msra.mxu0 0.0
    %1594 = vmatprep.subr.mxu0 0.0
    %1595 = vmatpush1.msra.mxu0 0.0
    %1596 = vmatprep.subr.mxu0 0.0
    %1597 = vmatpush1.msra.mxu0 0.0
    %1598 = vmatprep.subr.mxu0 0.0
    %1599 = vmatpush1.msra.mxu0 0.0
    %1600 = vmatprep.subr.mxu0 0.0
    %1601 = vmatpush1.msra.mxu0 0.0
    %1602 = vmatprep.subr.mxu0 0.0
    %1603 = vmatpush1.msra.mxu0 0.0
    %1604 = vmatprep.subr.mxu0 %v1569
    %1605 = vmatpush1.msra.mxu0 %v1568
    %1606 = vmatprep.subr.mxu0 %v1567
    %1607 = vmatpush1.msra.mxu0 %v1566
    %1608 = vmatprep.subr.mxu0 %v1565
    %1609 = vmatpush1.msra.mxu0 %v1564
    %1610 = vmatprep.subr.mxu0 %v1563
    %1611 = vmatpush1.msra.mxu0 %v1562
    %1612 = vmatprep.subr.mxu0 %v1561
    %1613 = vmatpush1.msra.mxu0 %v1560
    %1614 = vmatprep.subr.mxu0 %v1559
    %1615 = vmatpush1.msra.mxu0 %v1558
    %1616 = vmatprep.subr.mxu0 %v1557
    %1617 = vmatpush1.msra.mxu0 %v1556
    %1618 = vmatprep.subr.mxu0 %v1555
    %1619 = vmatpush1.msra.mxu0 %v1554
    %1620 = vmatprep.subr.mxu0 0.0
    %1621 = vmatpush2.msra.mxu0 0.0
    %1622 = vmatprep.subr.mxu0 0.0
    %1623 = vmatpush2.msra.mxu0 0.0
    %1624 = vmatprep.subr.mxu0 0.0
    %1625 = vmatpush2.msra.mxu0 0.0
    %1626 = vmatprep.subr.mxu0 0.0
    %1627 = vmatpush2.msra.mxu0 0.0
    %1628 = vmatprep.subr.mxu0 0.0
    %1629 = vmatpush2.msra.mxu0 0.0
    %1630 = vmatprep.subr.mxu0 0.0
    %1631 = vmatpush2.msra.mxu0 0.0
    %1632 = vmatprep.subr.mxu0 0.0
    %1633 = vmatpush2.msra.mxu0 0.0
    %1634 = vmatprep.subr.mxu0 0.0
    %1635 = vmatpush2.msra.mxu0 0.0
    %1636 = vmatprep.subr.mxu0 0.0
    %1637 = vmatpush2.msra.mxu0 0.0
    %1638 = vmatprep.subr.mxu0 0.0
    %1639 = vmatpush2.msra.mxu0 0.0
    %1640 = vmatprep.subr.mxu0 0.0
    %1641 = vmatpush2.msra.mxu0 0.0
    %1642 = vmatprep.subr.mxu0 0.0
    %1643 = vmatpush2.msra.mxu0 0.0
    %1644 = vmatprep.subr.mxu0 0.0
    %1645 = vmatpush2.msra.mxu0 0.0
    %1646 = vmatprep.subr.mxu0 0.0
    %1647 = vmatpush2.msra.mxu0 0.0
    %1648 = vmatprep.subr.mxu0 0.0
    %1649 = vmatpush2.msra.mxu0 0.0
    %1650 = vmatprep.subr.mxu0 0.0
    %1651 = vmatpush2.msra.mxu0 0.0
    %1652 = vmatprep.mubr.f32.mxu0 0.0
    %1653 = vmatmul.mubr.f32.gmra.mxu0 %v1583
    %v1654 = vpop.f32.mrf.mxu0
    %v1655 = vadd.f32 %v1575, %v1654
    %v1656 = vpop.f32.mrf.mxu0
    %v1657 = vadd.f32 %v1579, %v1656
    %1658 = vmatprep.mubr.f32.mxu0 0.0
    %1659 = vmatmul.mubr.f32.gmra.mxu0 %v1586
    %v1660 = vpop.f32.mrf.mxu0
    %v1661 = vadd.f32 %v1575, %v1660
    %v1662 = vpop.f32.mrf.mxu0
    %v1663 = vadd.f32 %v1579, %v1662
    %1664 = vdwg.mxu0
    %v1665 = vld [vmem:[#allocation9] sm:$0xff]
    %v1666 = vld [vmem:[#allocation9 + $0x8] sm:$0xff]
    %v1667 = vld [vmem:[#allocation9 + $0x10] sm:$0xff]
    %v1668 = vld [vmem:[#allocation9 + $0x18] sm:$0xff]
    %v1669 = vld [vmem:[#allocation9 + $0x20] sm:$0xff]
    %v1670 = vld [vmem:[#allocation9 + $0x28] sm:$0xff]
    %v1671 = vld [vmem:[#allocation9 + $0x30] sm:$0xff]
    %v1672 = vld [vmem:[#allocation9 + $0x38] sm:$0xff]
    %v1673 = vld [vmem:[#allocation9 + $0x40] sm:$0xff]
    %v1674 = vld [vmem:[#allocation9 + $0x48] sm:$0xff]
    %v1675 = vld [vmem:[#allocation9 + $0x50] sm:$0xff]
    %v1676 = vld [vmem:[#allocation9 + $0x58] sm:$0xff]
    %v1677 = vld [vmem:[#allocation9 + $0x60] sm:$0xff]
    %v1678 = vld [vmem:[#allocation9 + $0x68] sm:$0xff]
    %v1679 = vld [vmem:[#allocation9 + $0x70] sm:$0xff]
    %v1680 = vld [vmem:[#allocation9 + $0x78] sm:$0xff]
    %1681 = vmatprep.subr.mxu0 0.0
    %1682 = vmatpush1.msra.mxu0 0.0
    %1683 = vmatprep.subr.mxu0 0.0
    %1684 = vmatpush1.msra.mxu0 0.0
    %1685 = vmatprep.subr.mxu0 0.0
    %1686 = vmatpush1.msra.mxu0 0.0
    %1687 = vmatprep.subr.mxu0 0.0
    %1688 = vmatpush1.msra.mxu0 0.0
    %1689 = vmatprep.subr.mxu0 0.0
    %1690 = vmatpush1.msra.mxu0 0.0
    %1691 = vmatprep.subr.mxu0 0.0
    %1692 = vmatpush1.msra.mxu0 0.0
    %1693 = vmatprep.subr.mxu0 0.0
    %1694 = vmatpush1.msra.mxu0 0.0
    %1695 = vmatprep.subr.mxu0 0.0
    %1696 = vmatpush1.msra.mxu0 0.0
    %1697 = vmatprep.subr.mxu0 %v1680
    %1698 = vmatpush1.msra.mxu0 %v1679
    %1699 = vmatprep.subr.mxu0 %v1678
    %1700 = vmatpush1.msra.mxu0 %v1677
    %1701 = vmatprep.subr.mxu0 %v1676
    %1702 = vmatpush1.msra.mxu0 %v1675
    %1703 = vmatprep.subr.mxu0 %v1674
    %1704 = vmatpush1.msra.mxu0 %v1673
    %1705 = vmatprep.subr.mxu0 %v1672
    %1706 = vmatpush1.msra.mxu0 %v1671
    %1707 = vmatprep.subr.mxu0 %v1670
    %1708 = vmatpush1.msra.mxu0 %v1669
    %1709 = vmatprep.subr.mxu0 %v1668
    %1710 = vmatpush1.msra.mxu0 %v1667
    %1711 = vmatprep.subr.mxu0 %v1666
    %1712 = vmatpush1.msra.mxu0 %v1665
    %1713 = vmatprep.subr.mxu0 0.0
    %1714 = vmatpush2.msra.mxu0 0.0
    %1715 = vmatprep.subr.mxu0 0.0
    %1716 = vmatpush2.msra.mxu0 0.0
    %1717 = vmatprep.subr.mxu0 0.0
    %1718 = vmatpush2.msra.mxu0 0.0
    %1719 = vmatprep.subr.mxu0 0.0
    %1720 = vmatpush2.msra.mxu0 0.0
    %1721 = vmatprep.subr.mxu0 0.0
    %1722 = vmatpush2.msra.mxu0 0.0
    %1723 = vmatprep.subr.mxu0 0.0
    %1724 = vmatpush2.msra.mxu0 0.0
    %1725 = vmatprep.subr.mxu0 0.0
    %1726 = vmatpush2.msra.mxu0 0.0
    %1727 = vmatprep.subr.mxu0 0.0
    %1728 = vmatpush2.msra.mxu0 0.0
    %1729 = vmatprep.subr.mxu0 0.0
    %1730 = vmatpush2.msra.mxu0 0.0
    %1731 = vmatprep.subr.mxu0 0.0
    %1732 = vmatpush2.msra.mxu0 0.0
    %1733 = vmatprep.subr.mxu0 0.0
    %1734 = vmatpush2.msra.mxu0 0.0
    %1735 = vmatprep.subr.mxu0 0.0
    %1736 = vmatpush2.msra.mxu0 0.0
    %1737 = vmatprep.subr.mxu0 0.0
    %1738 = vmatpush2.msra.mxu0 0.0
    %1739 = vmatprep.subr.mxu0 0.0
    %1740 = vmatpush2.msra.mxu0 0.0
    %1741 = vmatprep.subr.mxu0 0.0
    %1742 = vmatpush2.msra.mxu0 0.0
    %1743 = vmatprep.subr.mxu0 0.0
    %1744 = vmatpush2.msra.mxu0 0.0
    %1745 = vmatprep.mubr.f32.mxu0 0.0
    %1746 = vmatmul.mubr.f32.gmra.mxu0 %v377
    %v1747 = vpop.f32.mrf.mxu0
    %v1748 = vadd.f32 0.0, %v1747
    %v1749 = vpop.f32.mrf.mxu0
    %v1750 = vadd.f32 0.0, %v1749
    %1751 = vdwg.mxu0
    %v1752 = vadd.f32 %v1655, %v1748
    %v1754 = vrot.slane %v1750, 2
    %v1756 = vadd.f32 %v1663, %v1754
    %v1757 = vxor.u32 %v1752, 2147483648
    %v1758 = vmul.f32 %v1757, 1.442695
    %v1759 = vpow.pop %v1758
    %v1760 = vadd.f32 %v1759, 1.0
    %v1761 = vrcp.pop %v1760
    %v1762 = vmul.f32 1.0, %v1761
    %v1763 = vtanh.pop %v1752
    %v1764 = vxor.u32 %v1756, 2147483648
    %v1765 = vmul.f32 %v1764, 1.442695
    %v1766 = vpow.pop %v1765
    %v1767 = vadd.f32 %v1766, 1.0
    %v1768 = vrcp.pop %v1767
    %v1769 = vmul.f32 1.0, %v1768
    %v1770 = vtanh.pop %v1756
    %v1771 = vmul.f32 %v1762, 0.0
    %1773 = vrot.lane.b32.xlu0 %v1763, 32
    %v1774 = vpop.permute.xlu0 %1773
    %v1776 = vmul.f32 %v1762, %v1774
    %1778 = vrot.lane.b32.xlu0 %v1776, 32
    %v1779 = vpop.permute.xlu0 %1778
    %v1781 = vadd.f32 %v1771, %v1779
    %v1782 = vmul.f32 %v1769, 0.0
    %1784 = vrot.lane.b32.xlu0 %v1770, 32
    %v1785 = vpop.permute.xlu0 %1784
    %v1787 = vmul.f32 %v1769, %v1785
    %1789 = vrot.lane.b32.xlu0 %v1787, 32
    %v1790 = vpop.permute.xlu0 %1789
    %v1792 = vadd.f32 %v1782, %v1790
    %v1793 = vtanh.pop %v1781
    %1795 = vrot.lane.b32.xlu0 %v1793, 32
    %v1796 = vpop.permute.xlu0 %1795
    %v1798 = vmul.f32 %v1762, %v1796
    %v1799 = vtanh.pop %v1792
    %1801 = vrot.lane.b32.xlu0 %v1799, 32
    %v1802 = vpop.permute.xlu0 %1801
    %v1804 = vmul.f32 %v1769, %v1802
    %1806 = vrot.lane.b32.xlu0 %v1798, 64
    %v1807 = vpop.permute.xlu0 %1806
    %v1810 = vrot.slane %v1804, 6
    %1811 = vrot.lane.b32.xlu0 %v1810, 96
    %v1812 = vpop.permute.xlu0 %1811
    %v1814 = vsel %vm144, %v1807, %v1812
    %v1816 = vsel %vm375, %v1814, 0
    %1818 = vmatprep.subr.mxu0 0.0
    %1819 = vmatpush1.msra.mxu0 0.0
    %1820 = vmatprep.subr.mxu0 0.0
    %1821 = vmatpush1.msra.mxu0 0.0
    %1822 = vmatprep.subr.mxu0 0.0
    %1823 = vmatpush1.msra.mxu0 0.0
    %1824 = vmatprep.subr.mxu0 0.0
    %1825 = vmatpush1.msra.mxu0 0.0
    %1826 = vmatprep.subr.mxu0 0.0
    %1827 = vmatpush1.msra.mxu0 0.0
    %1828 = vmatprep.subr.mxu0 0.0
    %1829 = vmatpush1.msra.mxu0 0.0
    %1830 = vmatprep.subr.mxu0 0.0
    %1831 = vmatpush1.msra.mxu0 0.0
    %1832 = vmatprep.subr.mxu0 0.0
    %1833 = vmatpush1.msra.mxu0 0.0
    %1834 = vmatprep.subr.mxu0 %v1680
    %1835 = vmatpush1.msra.mxu0 %v1679
    %1836 = vmatprep.subr.mxu0 %v1678
    %1837 = vmatpush1.msra.mxu0 %v1677
    %1838 = vmatprep.subr.mxu0 %v1676
    %1839 = vmatpush1.msra.mxu0 %v1675
    %1840 = vmatprep.subr.mxu0 %v1674
    %1841 = vmatpush1.msra.mxu0 %v1673
    %1842 = vmatprep.subr.mxu0 %v1672
    %1843 = vmatpush1.msra.mxu0 %v1671
    %1844 = vmatprep.subr.mxu0 %v1670
    %1845 = vmatpush1.msra.mxu0 %v1669
    %1846 = vmatprep.subr.mxu0 %v1668
    %1847 = vmatpush1.msra.mxu0 %v1667
    %1848 = vmatprep.subr.mxu0 %v1666
    %1849 = vmatpush1.msra.mxu0 %v1665
    %1850 = vmatprep.subr.mxu0 0.0
    %1851 = vmatpush2.msra.mxu0 0.0
    %1852 = vmatprep.subr.mxu0 0.0
    %1853 = vmatpush2.msra.mxu0 0.0
    %1854 = vmatprep.subr.mxu0 0.0
    %1855 = vmatpush2.msra.mxu0 0.0
    %1856 = vmatprep.subr.mxu0 0.0
    %1857 = vmatpush2.msra.mxu0 0.0
    %1858 = vmatprep.subr.mxu0 0.0
    %1859 = vmatpush2.msra.mxu0 0.0
    %1860 = vmatprep.subr.mxu0 0.0
    %1861 = vmatpush2.msra.mxu0 0.0
    %1862 = vmatprep.subr.mxu0 0.0
    %1863 = vmatpush2.msra.mxu0 0.0
    %1864 = vmatprep.subr.mxu0 0.0
    %1865 = vmatpush2.msra.mxu0 0.0
    %1866 = vmatprep.subr.mxu0 0.0
    %1867 = vmatpush2.msra.mxu0 0.0
    %1868 = vmatprep.subr.mxu0 0.0
    %1869 = vmatpush2.msra.mxu0 0.0
    %1870 = vmatprep.subr.mxu0 0.0
    %1871 = vmatpush2.msra.mxu0 0.0
    %1872 = vmatprep.subr.mxu0 0.0
    %1873 = vmatpush2.msra.mxu0 0.0
    %1874 = vmatprep.subr.mxu0 0.0
    %1875 = vmatpush2.msra.mxu0 0.0
    %1876 = vmatprep.subr.mxu0 0.0
    %1877 = vmatpush2.msra.mxu0 0.0
    %1878 = vmatprep.subr.mxu0 0.0
    %1879 = vmatpush2.msra.mxu0 0.0
    %1880 = vmatprep.subr.mxu0 0.0
    %1881 = vmatpush2.msra.mxu0 0.0
    %1882 = vmatprep.mubr.f32.mxu0 0.0
    %1883 = vmatmul.mubr.f32.gmra.mxu0 %v1816
    %v1884 = vpop.f32.mrf.mxu0
    %v1885 = vadd.f32 0.0, %v1884
    %v1886 = vpop.f32.mrf.mxu0
    %v1887 = vadd.f32 0.0, %v1886
    %1888 = vdwg.mxu0
    %v1890 = vrot.slane %v1885, 6
    %v1892 = vadd.f32 %v1655, %v1890
    %v1894 = vrot.slane %v1887, 4
    %v1896 = vadd.f32 %v1663, %v1894
    %v1897 = vxor.u32 %v1892, 2147483648
    %v1898 = vmul.f32 %v1897, 1.442695
    %v1899 = vpow.pop %v1898
    %v1900 = vadd.f32 %v1899, 1.0
    %v1901 = vrcp.pop %v1900
    %v1902 = vmul.f32 1.0, %v1901
    %v1903 = vtanh.pop %v1892
    %v1904 = vxor.u32 %v1896, 2147483648
    %v1905 = vmul.f32 %v1904, 1.442695
    %v1906 = vpow.pop %v1905
    %v1907 = vadd.f32 %v1906, 1.0
    %v1908 = vrcp.pop %v1907
    %v1909 = vmul.f32 1.0, %v1908
    %v1910 = vtanh.pop %v1896
    %v1912 = vrot.slane %v1781, 6
    %v1914 = vmul.f32 %v1902, %v1912
    %1916 = vrot.lane.b32.xlu0 %v1903, 32
    %v1917 = vpop.permute.xlu0 %1916
    %v1919 = vmul.f32 %v1902, %v1917
    %1921 = vrot.lane.b32.xlu0 %v1919, 32
    %v1922 = vpop.permute.xlu0 %1921
    %v1924 = vadd.f32 %v1914, %v1922
    %v1926 = vrot.slane %v1792, 2
    %v1928 = vmul.f32 %v1909, %v1926
    %1930 = vrot.lane.b32.xlu0 %v1910, 32
    %v1931 = vpop.permute.xlu0 %1930
    %v1933 = vmul.f32 %v1909, %v1931
    %1935 = vrot.lane.b32.xlu0 %v1933, 32
    %v1936 = vpop.permute.xlu0 %1935
    %v1938 = vadd.f32 %v1928, %v1936
    %v1939 = vtanh.pop %v1924
    %1941 = vrot.lane.b32.xlu0 %v1939, 32
    %v1942 = vpop.permute.xlu0 %1941
    %v1944 = vmul.f32 %v1902, %v1942
    %v1945 = vtanh.pop %v1938
    %1947 = vrot.lane.b32.xlu0 %v1945, 32
    %v1948 = vpop.permute.xlu0 %1947
    %v1950 = vmul.f32 %v1909, %v1948
    %1952 = vrot.lane.b32.xlu0 %v1944, 64
    %v1953 = vpop.permute.xlu0 %1952
    %v1956 = vrot.slane %v1950, 2
    %1957 = vrot.lane.b32.xlu0 %v1956, 96
    %v1958 = vpop.permute.xlu0 %1957
    %v1960 = vsel %vm144, %v1953, %v1958
    %v1962 = vrot.slane %v1960, 2
    %v1963 = vsel %vm375, %v1962, 0
    %1965 = vmatprep.subr.mxu0 0.0
    %1966 = vmatpush1.msra.mxu0 0.0
    %1967 = vmatprep.subr.mxu0 0.0
    %1968 = vmatpush1.msra.mxu0 0.0
    %1969 = vmatprep.subr.mxu0 0.0
    %1970 = vmatpush1.msra.mxu0 0.0
    %1971 = vmatprep.subr.mxu0 0.0
    %1972 = vmatpush1.msra.mxu0 0.0
    %1973 = vmatprep.subr.mxu0 0.0
    %1974 = vmatpush1.msra.mxu0 0.0
    %1975 = vmatprep.subr.mxu0 0.0
    %1976 = vmatpush1.msra.mxu0 0.0
    %1977 = vmatprep.subr.mxu0 0.0
    %1978 = vmatpush1.msra.mxu0 0.0
    %1979 = vmatprep.subr.mxu0 0.0
    %1980 = vmatpush1.msra.mxu0 0.0
    %1981 = vmatprep.subr.mxu0 %v1680
    %1982 = vmatpush1.msra.mxu0 %v1679
    %1983 = vmatprep.subr.mxu0 %v1678
    %1984 = vmatpush1.msra.mxu0 %v1677
    %1985 = vmatprep.subr.mxu0 %v1676
    %1986 = vmatpush1.msra.mxu0 %v1675
    %1987 = vmatprep.subr.mxu0 %v1674
    %1988 = vmatpush1.msra.mxu0 %v1673
    %1989 = vmatprep.subr.mxu0 %v1672
    %1990 = vmatpush1.msra.mxu0 %v1671
    %1991 = vmatprep.subr.mxu0 %v1670
    %1992 = vmatpush1.msra.mxu0 %v1669
    %1993 = vmatprep.subr.mxu0 %v1668
    %1994 = vmatpush1.msra.mxu0 %v1667
    %1995 = vmatprep.subr.mxu0 %v1666
    %1996 = vmatpush1.msra.mxu0 %v1665
    %1997 = vmatprep.subr.mxu0 0.0
    %1998 = vmatpush2.msra.mxu0 0.0
    %1999 = vmatprep.subr.mxu0 0.0
    %2000 = vmatpush2.msra.mxu0 0.0
    %2001 = vmatprep.subr.mxu0 0.0
    %2002 = vmatpush2.msra.mxu0 0.0
    %2003 = vmatprep.subr.mxu0 0.0
    %2004 = vmatpush2.msra.mxu0 0.0
    %2005 = vmatprep.subr.mxu0 0.0
    %2006 = vmatpush2.msra.mxu0 0.0
    %2007 = vmatprep.subr.mxu0 0.0
    %2008 = vmatpush2.msra.mxu0 0.0
    %2009 = vmatprep.subr.mxu0 0.0
    %2010 = vmatpush2.msra.mxu0 0.0
    %2011 = vmatprep.subr.mxu0 0.0
    %2012 = vmatpush2.msra.mxu0 0.0
    %2013 = vmatprep.subr.mxu0 0.0
    %2014 = vmatpush2.msra.mxu0 0.0
    %2015 = vmatprep.subr.mxu0 0.0
    %2016 = vmatpush2.msra.mxu0 0.0
    %2017 = vmatprep.subr.mxu0 0.0
    %2018 = vmatpush2.msra.mxu0 0.0
    %2019 = vmatprep.subr.mxu0 0.0
    %2020 = vmatpush2.msra.mxu0 0.0
    %2021 = vmatprep.subr.mxu0 0.0
    %2022 = vmatpush2.msra.mxu0 0.0
    %2023 = vmatprep.subr.mxu0 0.0
    %2024 = vmatpush2.msra.mxu0 0.0
    %2025 = vmatprep.subr.mxu0 0.0
    %2026 = vmatpush2.msra.mxu0 0.0
    %2027 = vmatprep.subr.mxu0 0.0
    %2028 = vmatpush2.msra.mxu0 0.0
    %2029 = vmatprep.mubr.f32.mxu0 0.0
    %2030 = vmatmul.mubr.f32.gmra.mxu0 %v1963
    %v2031 = vpop.f32.mrf.mxu0
    %v2032 = vadd.f32 0.0, %v2031
    %v2033 = vpop.f32.mrf.mxu0
    %v2034 = vadd.f32 0.0, %v2033
    %2035 = vdwg.mxu0
    %v2037 = vrot.slane %v2032, 4
    %v2039 = vadd.f32 %v1655, %v2037
    %v2041 = vrot.slane %v2034, 6
    %v2043 = vadd.f32 %v1663, %v2041
    %v2044 = vxor.u32 %v2039, 2147483648
    %v2045 = vmul.f32 %v2044, 1.442695
    %v2046 = vpow.pop %v2045
    %v2047 = vadd.f32 %v2046, 1.0
    %v2048 = vrcp.pop %v2047
    %v2049 = vmul.f32 1.0, %v2048
    %v2050 = vtanh.pop %v2039
    %v2051 = vxor.u32 %v2043, 2147483648
    %v2052 = vmul.f32 %v2051, 1.442695
    %v2053 = vpow.pop %v2052
    %v2054 = vadd.f32 %v2053, 1.0
    %v2055 = vrcp.pop %v2054
    %v2056 = vmul.f32 1.0, %v2055
    %v2057 = vtanh.pop %v2043
    %v2059 = vrot.slane %v1924, 6
    %v2061 = vmul.f32 %v2049, %v2059
    %2063 = vrot.lane.b32.xlu0 %v2050, 32
    %v2064 = vpop.permute.xlu0 %2063
    %v2066 = vmul.f32 %v2049, %v2064
    %2068 = vrot.lane.b32.xlu0 %v2066, 32
    %v2069 = vpop.permute.xlu0 %2068
    %v2071 = vadd.f32 %v2061, %v2069
    %v2073 = vrot.slane %v1938, 2
    %v2075 = vmul.f32 %v2056, %v2073
    %2077 = vrot.lane.b32.xlu0 %v2057, 32
    %v2078 = vpop.permute.xlu0 %2077
    %v2080 = vmul.f32 %v2056, %v2078
    %2082 = vrot.lane.b32.xlu0 %v2080, 32
    %v2083 = vpop.permute.xlu0 %2082
    %v2085 = vadd.f32 %v2075, %v2083
    %v2086 = vtanh.pop %v2071
    %2088 = vrot.lane.b32.xlu0 %v2086, 32
    %v2089 = vpop.permute.xlu0 %2088
    %v2091 = vmul.f32 %v2049, %v2089
    %v2092 = vtanh.pop %v2085
    %2094 = vrot.lane.b32.xlu0 %v2092, 32
    %v2095 = vpop.permute.xlu0 %2094
    %v2097 = vmul.f32 %v2056, %v2095
    %2099 = vrot.lane.b32.xlu0 %v2091, 64
    %v2100 = vpop.permute.xlu0 %2099
    %v2103 = vrot.slane %v2097, 6
    %2104 = vrot.lane.b32.xlu0 %v2103, 96
    %v2105 = vpop.permute.xlu0 %2104
    %v2107 = vsel %vm144, %v2100, %v2105
    %v2109 = vrot.slane %v2107, 4
    %v2110 = vsel %vm375, %v2109, 0
    %2112 = vmatprep.subr.mxu0 0.0
    %2113 = vmatpush1.msra.mxu0 0.0
    %2114 = vmatprep.subr.mxu0 0.0
    %2115 = vmatpush1.msra.mxu0 0.0
    %2116 = vmatprep.subr.mxu0 0.0
    %2117 = vmatpush1.msra.mxu0 0.0
    %2118 = vmatprep.subr.mxu0 0.0
    %2119 = vmatpush1.msra.mxu0 0.0
    %2120 = vmatprep.subr.mxu0 0.0
    %2121 = vmatpush1.msra.mxu0 0.0
    %2122 = vmatprep.subr.mxu0 0.0
    %2123 = vmatpush1.msra.mxu0 0.0
    %2124 = vmatprep.subr.mxu0 0.0
    %2125 = vmatpush1.msra.mxu0 0.0
    %2126 = vmatprep.subr.mxu0 0.0
    %2127 = vmatpush1.msra.mxu0 0.0
    %2128 = vmatprep.subr.mxu0 %v1680
    %2129 = vmatpush1.msra.mxu0 %v1679
    %2130 = vmatprep.subr.mxu0 %v1678
    %2131 = vmatpush1.msra.mxu0 %v1677
    %2132 = vmatprep.subr.mxu0 %v1676
    %2133 = vmatpush1.msra.mxu0 %v1675
    %2134 = vmatprep.subr.mxu0 %v1674
    %2135 = vmatpush1.msra.mxu0 %v1673
    %2136 = vmatprep.subr.mxu0 %v1672
    %2137 = vmatpush1.msra.mxu0 %v1671
    %2138 = vmatprep.subr.mxu0 %v1670
    %2139 = vmatpush1.msra.mxu0 %v1669
    %2140 = vmatprep.subr.mxu0 %v1668
    %2141 = vmatpush1.msra.mxu0 %v1667
    %2142 = vmatprep.subr.mxu0 %v1666
    %2143 = vmatpush1.msra.mxu0 %v1665
    %2144 = vmatprep.subr.mxu0 0.0
    %2145 = vmatpush2.msra.mxu0 0.0
    %2146 = vmatprep.subr.mxu0 0.0
    %2147 = vmatpush2.msra.mxu0 0.0
    %2148 = vmatprep.subr.mxu0 0.0
    %2149 = vmatpush2.msra.mxu0 0.0
    %2150 = vmatprep.subr.mxu0 0.0
    %2151 = vmatpush2.msra.mxu0 0.0
    %2152 = vmatprep.subr.mxu0 0.0
    %2153 = vmatpush2.msra.mxu0 0.0
    %2154 = vmatprep.subr.mxu0 0.0
    %2155 = vmatpush2.msra.mxu0 0.0
    %2156 = vmatprep.subr.mxu0 0.0
    %2157 = vmatpush2.msra.mxu0 0.0
    %2158 = vmatprep.subr.mxu0 0.0
    %2159 = vmatpush2.msra.mxu0 0.0
    %2160 = vmatprep.subr.mxu0 0.0
    %2161 = vmatpush2.msra.mxu0 0.0
    %2162 = vmatprep.subr.mxu0 0.0
    %2163 = vmatpush2.msra.mxu0 0.0
    %2164 = vmatprep.subr.mxu0 0.0
    %2165 = vmatpush2.msra.mxu0 0.0
    %2166 = vmatprep.subr.mxu0 0.0
    %2167 = vmatpush2.msra.mxu0 0.0
    %2168 = vmatprep.subr.mxu0 0.0
    %2169 = vmatpush2.msra.mxu0 0.0
    %2170 = vmatprep.subr.mxu0 0.0
    %2171 = vmatpush2.msra.mxu0 0.0
    %2172 = vmatprep.subr.mxu0 0.0
    %2173 = vmatpush2.msra.mxu0 0.0
    %2174 = vmatprep.subr.mxu0 0.0
    %2175 = vmatpush2.msra.mxu0 0.0
    %2176 = vmatprep.mubr.f32.mxu0 0.0
    %2177 = vmatmul.mubr.f32.gmra.mxu0 %v2110
    %v2178 = vpop.f32.mrf.mxu0
    %v2179 = vadd.f32 0.0, %v2178
    %v2180 = vpop.f32.mrf.mxu0
    %v2181 = vadd.f32 0.0, %v2180
    %2182 = vdwg.mxu0
    %v2184 = vrot.slane %v2179, 2
    %v2186 = vadd.f32 %v1655, %v2184
    %v2187 = vadd.f32 %v1663, %v2181
    %v2188 = vxor.u32 %v2186, 2147483648
    %v2189 = vmul.f32 %v2188, 1.442695
    %v2190 = vpow.pop %v2189
    %v2191 = vadd.f32 %v2190, 1.0
    %v2192 = vrcp.pop %v2191
    %v2193 = vmul.f32 1.0, %v2192
    %v2194 = vtanh.pop %v2186
    %v2195 = vxor.u32 %v2187, 2147483648
    %v2196 = vmul.f32 %v2195, 1.442695
    %v2197 = vpow.pop %v2196
    %v2198 = vadd.f32 %v2197, 1.0
    %v2199 = vrcp.pop %v2198
    %v2200 = vmul.f32 1.0, %v2199
    %v2201 = vtanh.pop %v2187
    %v2203 = vrot.slane %v2071, 6
    %v2205 = vmul.f32 %v2193, %v2203
    %2207 = vrot.lane.b32.xlu0 %v2194, 32
    %v2208 = vpop.permute.xlu0 %2207
    %v2210 = vmul.f32 %v2193, %v2208
    %2212 = vrot.lane.b32.xlu0 %v2210, 32
    %v2213 = vpop.permute.xlu0 %2212
    %v2215 = vadd.f32 %v2205, %v2213
    %v2217 = vrot.slane %v2085, 2
    %v2219 = vmul.f32 %v2200, %v2217
    %2221 = vrot.lane.b32.xlu0 %v2201, 32
    %v2222 = vpop.permute.xlu0 %2221
    %v2224 = vmul.f32 %v2200, %v2222
    %2226 = vrot.lane.b32.xlu0 %v2224, 32
    %v2227 = vpop.permute.xlu0 %2226
    %v2229 = vadd.f32 %v2219, %v2227
    %v2230 = vtanh.pop %v2215
    %2232 = vrot.lane.b32.xlu0 %v2230, 32
    %v2233 = vpop.permute.xlu0 %2232
    %v2235 = vmul.f32 %v2193, %v2233
    %v2236 = vtanh.pop %v2229
    %2238 = vrot.lane.b32.xlu0 %v2236, 32
    %v2239 = vpop.permute.xlu0 %2238
    %v2241 = vmul.f32 %v2200, %v2239
    %2243 = vrot.lane.b32.xlu0 %v2235, 64
    %v2244 = vpop.permute.xlu0 %2243
    %v2247 = vrot.slane %v2241, 2
    %2248 = vrot.lane.b32.xlu0 %v2247, 96
    %v2249 = vpop.permute.xlu0 %2248
    %v2251 = vsel %vm144, %v2244, %v2249
    %v2253 = vrot.slane %v2251, 6
    %v2254 = vsel %vm375, %v2253, 0
    %2256 = vmatprep.subr.mxu0 0.0
    %2257 = vmatpush1.msra.mxu0 0.0
    %2258 = vmatprep.subr.mxu0 0.0
    %2259 = vmatpush1.msra.mxu0 0.0
    %2260 = vmatprep.subr.mxu0 0.0
    %2261 = vmatpush1.msra.mxu0 0.0
    %2262 = vmatprep.subr.mxu0 0.0
    %2263 = vmatpush1.msra.mxu0 0.0
    %2264 = vmatprep.subr.mxu0 0.0
    %2265 = vmatpush1.msra.mxu0 0.0
    %2266 = vmatprep.subr.mxu0 0.0
    %2267 = vmatpush1.msra.mxu0 0.0
    %2268 = vmatprep.subr.mxu0 0.0
    %2269 = vmatpush1.msra.mxu0 0.0
    %2270 = vmatprep.subr.mxu0 0.0
    %2271 = vmatpush1.msra.mxu0 0.0
    %2272 = vmatprep.subr.mxu0 %v1680
    %2273 = vmatpush1.msra.mxu0 %v1679
    %2274 = vmatprep.subr.mxu0 %v1678
    %2275 = vmatpush1.msra.mxu0 %v1677
    %2276 = vmatprep.subr.mxu0 %v1676
    %2277 = vmatpush1.msra.mxu0 %v1675
    %2278 = vmatprep.subr.mxu0 %v1674
    %2279 = vmatpush1.msra.mxu0 %v1673
    %2280 = vmatprep.subr.mxu0 %v1672
    %2281 = vmatpush1.msra.mxu0 %v1671
    %2282 = vmatprep.subr.mxu0 %v1670
    %2283 = vmatpush1.msra.mxu0 %v1669
    %2284 = vmatprep.subr.mxu0 %v1668
    %2285 = vmatpush1.msra.mxu0 %v1667
    %2286 = vmatprep.subr.mxu0 %v1666
    %2287 = vmatpush1.msra.mxu0 %v1665
    %2288 = vmatprep.subr.mxu0 0.0
    %2289 = vmatpush2.msra.mxu0 0.0
    %2290 = vmatprep.subr.mxu0 0.0
    %2291 = vmatpush2.msra.mxu0 0.0
    %2292 = vmatprep.subr.mxu0 0.0
    %2293 = vmatpush2.msra.mxu0 0.0
    %2294 = vmatprep.subr.mxu0 0.0
    %2295 = vmatpush2.msra.mxu0 0.0
    %2296 = vmatprep.subr.mxu0 0.0
    %2297 = vmatpush2.msra.mxu0 0.0
    %2298 = vmatprep.subr.mxu0 0.0
    %2299 = vmatpush2.msra.mxu0 0.0
    %2300 = vmatprep.subr.mxu0 0.0
    %2301 = vmatpush2.msra.mxu0 0.0
    %2302 = vmatprep.subr.mxu0 0.0
    %2303 = vmatpush2.msra.mxu0 0.0
    %2304 = vmatprep.subr.mxu0 0.0
    %2305 = vmatpush2.msra.mxu0 0.0
    %2306 = vmatprep.subr.mxu0 0.0
    %2307 = vmatpush2.msra.mxu0 0.0
    %2308 = vmatprep.subr.mxu0 0.0
    %2309 = vmatpush2.msra.mxu0 0.0
    %2310 = vmatprep.subr.mxu0 0.0
    %2311 = vmatpush2.msra.mxu0 0.0
    %2312 = vmatprep.subr.mxu0 0.0
    %2313 = vmatpush2.msra.mxu0 0.0
    %2314 = vmatprep.subr.mxu0 0.0
    %2315 = vmatpush2.msra.mxu0 0.0
    %2316 = vmatprep.subr.mxu0 0.0
    %2317 = vmatpush2.msra.mxu0 0.0
    %2318 = vmatprep.subr.mxu0 0.0
    %2319 = vmatpush2.msra.mxu0 0.0
    %2320 = vmatprep.mubr.f32.mxu0 0.0
    %2321 = vmatmul.mubr.f32.gmra.mxu0 %v2254
    %v2322 = vpop.f32.mrf.mxu0
    %v2323 = vadd.f32 0.0, %v2322
    %v2324 = vpop.f32.mrf.mxu0
    %v2325 = vadd.f32 0.0, %v2324
    %2326 = vdwg.mxu0
    %v2327 = vadd.f32 %v1661, %v2323
    %v2329 = vrot.slane %v2325, 2
    %v2331 = vadd.f32 %v1657, %v2329
    %v2332 = vxor.u32 %v2327, 2147483648
    %v2333 = vmul.f32 %v2332, 1.442695
    %v2334 = vpow.pop %v2333
    %v2335 = vadd.f32 %v2334, 1.0
    %v2336 = vrcp.pop %v2335
    %v2337 = vmul.f32 1.0, %v2336
    %v2338 = vtanh.pop %v2327
    %v2339 = vxor.u32 %v2331, 2147483648
    %v2340 = vmul.f32 %v2339, 1.442695
    %v2341 = vpow.pop %v2340
    %v2342 = vadd.f32 %v2341, 1.0
    %v2343 = vrcp.pop %v2342
    %v2344 = vmul.f32 1.0, %v2343
    %v2345 = vtanh.pop %v2331
    %v2347 = vrot.slane %v2215, 6
    %v2349 = vmul.f32 %v2337, %v2347
    %2351 = vrot.lane.b32.xlu0 %v2338, 32
    %v2352 = vpop.permute.xlu0 %2351
    %v2354 = vmul.f32 %v2337, %v2352
    %2356 = vrot.lane.b32.xlu0 %v2354, 32
    %v2357 = vpop.permute.xlu0 %2356
    %v2359 = vadd.f32 %v2349, %v2357
    %v2361 = vrot.slane %v2229, 2
    %v2363 = vmul.f32 %v2344, %v2361
    %2365 = vrot.lane.b32.xlu0 %v2345, 32
    %v2366 = vpop.permute.xlu0 %2365
    %v2368 = vmul.f32 %v2344, %v2366
    %2370 = vrot.lane.b32.xlu0 %v2368, 32
    %v2371 = vpop.permute.xlu0 %2370
    %v2373 = vadd.f32 %v2363, %v2371
    %v2374 = vtanh.pop %v2359
    %2376 = vrot.lane.b32.xlu0 %v2374, 32
    %v2377 = vpop.permute.xlu0 %2376
    %v2379 = vmul.f32 %v2337, %v2377
    %v2380 = vtanh.pop %v2373
    %2382 = vrot.lane.b32.xlu0 %v2380, 32
    %v2383 = vpop.permute.xlu0 %2382
    %v2385 = vmul.f32 %v2344, %v2383
    %2387 = vrot.lane.b32.xlu0 %v2379, 64
    %v2388 = vpop.permute.xlu0 %2387
    %v2391 = vrot.slane %v2385, 6
    %2392 = vrot.lane.b32.xlu0 %v2391, 96
    %v2393 = vpop.permute.xlu0 %2392
    %v2395 = vsel %vm144, %v2388, %v2393
    %v2397 = vsel %vm375, %v2395, 0
    %2399 = vmatprep.subr.mxu0 0.0
    %2400 = vmatpush1.msra.mxu0 0.0
    %2401 = vmatprep.subr.mxu0 0.0
    %2402 = vmatpush1.msra.mxu0 0.0
    %2403 = vmatprep.subr.mxu0 0.0
    %2404 = vmatpush1.msra.mxu0 0.0
    %2405 = vmatprep.subr.mxu0 0.0
    %2406 = vmatpush1.msra.mxu0 0.0
    %2407 = vmatprep.subr.mxu0 0.0
    %2408 = vmatpush1.msra.mxu0 0.0
    %2409 = vmatprep.subr.mxu0 0.0
    %2410 = vmatpush1.msra.mxu0 0.0
    %2411 = vmatprep.subr.mxu0 0.0
    %2412 = vmatpush1.msra.mxu0 0.0
    %2413 = vmatprep.subr.mxu0 0.0
    %2414 = vmatpush1.msra.mxu0 0.0
    %2415 = vmatprep.subr.mxu0 %v1680
    %2416 = vmatpush1.msra.mxu0 %v1679
    %2417 = vmatprep.subr.mxu0 %v1678
    %2418 = vmatpush1.msra.mxu0 %v1677
    %2419 = vmatprep.subr.mxu0 %v1676
    %2420 = vmatpush1.msra.mxu0 %v1675
    %2421 = vmatprep.subr.mxu0 %v1674
    %2422 = vmatpush1.msra.mxu0 %v1673
    %2423 = vmatprep.subr.mxu0 %v1672
    %2424 = vmatpush1.msra.mxu0 %v1671
    %2425 = vmatprep.subr.mxu0 %v1670
    %2426 = vmatpush1.msra.mxu0 %v1669
    %2427 = vmatprep.subr.mxu0 %v1668
    %2428 = vmatpush1.msra.mxu0 %v1667
    %2429 = vmatprep.subr.mxu0 %v1666
    %2430 = vmatpush1.msra.mxu0 %v1665
    %2431 = vmatprep.subr.mxu0 0.0
    %2432 = vmatpush2.msra.mxu0 0.0
    %2433 = vmatprep.subr.mxu0 0.0
    %2434 = vmatpush2.msra.mxu0 0.0
    %2435 = vmatprep.subr.mxu0 0.0
    %2436 = vmatpush2.msra.mxu0 0.0
    %2437 = vmatprep.subr.mxu0 0.0
    %2438 = vmatpush2.msra.mxu0 0.0
    %2439 = vmatprep.subr.mxu0 0.0
    %2440 = vmatpush2.msra.mxu0 0.0
    %2441 = vmatprep.subr.mxu0 0.0
    %2442 = vmatpush2.msra.mxu0 0.0
    %2443 = vmatprep.subr.mxu0 0.0
    %2444 = vmatpush2.msra.mxu0 0.0
    %2445 = vmatprep.subr.mxu0 0.0
    %2446 = vmatpush2.msra.mxu0 0.0
    %2447 = vmatprep.subr.mxu0 0.0
    %2448 = vmatpush2.msra.mxu0 0.0
    %2449 = vmatprep.subr.mxu0 0.0
    %2450 = vmatpush2.msra.mxu0 0.0
    %2451 = vmatprep.subr.mxu0 0.0
    %2452 = vmatpush2.msra.mxu0 0.0
    %2453 = vmatprep.subr.mxu0 0.0
    %2454 = vmatpush2.msra.mxu0 0.0
    %2455 = vmatprep.subr.mxu0 0.0
    %2456 = vmatpush2.msra.mxu0 0.0
    %2457 = vmatprep.subr.mxu0 0.0
    %2458 = vmatpush2.msra.mxu0 0.0
    %2459 = vmatprep.subr.mxu0 0.0
    %2460 = vmatpush2.msra.mxu0 0.0
    %2461 = vmatprep.subr.mxu0 0.0
    %2462 = vmatpush2.msra.mxu0 0.0
    %2463 = vmatprep.mubr.f32.mxu0 0.0
    %2464 = vmatmul.mubr.f32.gmra.mxu0 %v2397
    %v2465 = vpop.f32.mrf.mxu0
    %v2466 = vadd.f32 0.0, %v2465
    %v2467 = vpop.f32.mrf.mxu0
    %v2468 = vadd.f32 0.0, %v2467
    %2469 = vdwg.mxu0
    %v2471 = vrot.slane %v2466, 6
    %v2473 = vadd.f32 %v1661, %v2471
    %v2475 = vrot.slane %v2468, 4
    %v2477 = vadd.f32 %v1657, %v2475
    %v2478 = vxor.u32 %v2473, 2147483648
    %v2479 = vmul.f32 %v2478, 1.442695
    %v2480 = vpow.pop %v2479
    %v2481 = vadd.f32 %v2480, 1.0
    %v2482 = vrcp.pop %v2481
    %v2483 = vmul.f32 1.0, %v2482
    %v2484 = vtanh.pop %v2473
    %v2485 = vxor.u32 %v2477, 2147483648
    %v2486 = vmul.f32 %v2485, 1.442695
    %v2487 = vpow.pop %v2486
    %v2488 = vadd.f32 %v2487, 1.0
    %v2489 = vrcp.pop %v2488
    %v2490 = vmul.f32 1.0, %v2489
    %v2491 = vtanh.pop %v2477
    %v2493 = vrot.slane %v2359, 6
    %v2495 = vmul.f32 %v2483, %v2493
    %2497 = vrot.lane.b32.xlu0 %v2484, 32
    %v2498 = vpop.permute.xlu0 %2497
    %v2500 = vmul.f32 %v2483, %v2498
    %2502 = vrot.lane.b32.xlu0 %v2500, 32
    %v2503 = vpop.permute.xlu0 %2502
    %v2505 = vadd.f32 %v2495, %v2503
    %v2507 = vrot.slane %v2373, 2
    %v2509 = vmul.f32 %v2490, %v2507
    %2511 = vrot.lane.b32.xlu0 %v2491, 32
    %v2512 = vpop.permute.xlu0 %2511
    %v2514 = vmul.f32 %v2490, %v2512
    %2516 = vrot.lane.b32.xlu0 %v2514, 32
    %v2517 = vpop.permute.xlu0 %2516
    %v2519 = vadd.f32 %v2509, %v2517
    %v2520 = vtanh.pop %v2505
    %2522 = vrot.lane.b32.xlu0 %v2520, 32
    %v2523 = vpop.permute.xlu0 %2522
    %v2525 = vmul.f32 %v2483, %v2523
    %v2526 = vtanh.pop %v2519
    %2528 = vrot.lane.b32.xlu0 %v2526, 32
    %v2529 = vpop.permute.xlu0 %2528
    %v2531 = vmul.f32 %v2490, %v2529
    %2533 = vrot.lane.b32.xlu0 %v2525, 64
    %v2534 = vpop.permute.xlu0 %2533
    %v2537 = vrot.slane %v2531, 2
    %2538 = vrot.lane.b32.xlu0 %v2537, 96
    %v2539 = vpop.permute.xlu0 %2538
    %v2541 = vsel %vm144, %v2534, %v2539
    %v2543 = vrot.slane %v2541, 2
    %v2544 = vsel %vm375, %v2543, 0
    %2546 = vmatprep.subr.mxu0 0.0
    %2547 = vmatpush1.msra.mxu0 0.0
    %2548 = vmatprep.subr.mxu0 0.0
    %2549 = vmatpush1.msra.mxu0 0.0
    %2550 = vmatprep.subr.mxu0 0.0
    %2551 = vmatpush1.msra.mxu0 0.0
    %2552 = vmatprep.subr.mxu0 0.0
    %2553 = vmatpush1.msra.mxu0 0.0
    %2554 = vmatprep.subr.mxu0 0.0
    %2555 = vmatpush1.msra.mxu0 0.0
    %2556 = vmatprep.subr.mxu0 0.0
    %2557 = vmatpush1.msra.mxu0 0.0
    %2558 = vmatprep.subr.mxu0 0.0
    %2559 = vmatpush1.msra.mxu0 0.0
    %2560 = vmatprep.subr.mxu0 0.0
    %2561 = vmatpush1.msra.mxu0 0.0
    %2562 = vmatprep.subr.mxu0 %v1680
    %2563 = vmatpush1.msra.mxu0 %v1679
    %2564 = vmatprep.subr.mxu0 %v1678
    %2565 = vmatpush1.msra.mxu0 %v1677
    %2566 = vmatprep.subr.mxu0 %v1676
    %2567 = vmatpush1.msra.mxu0 %v1675
    %2568 = vmatprep.subr.mxu0 %v1674
    %2569 = vmatpush1.msra.mxu0 %v1673
    %2570 = vmatprep.subr.mxu0 %v1672
    %2571 = vmatpush1.msra.mxu0 %v1671
    %2572 = vmatprep.subr.mxu0 %v1670
    %2573 = vmatpush1.msra.mxu0 %v1669
    %2574 = vmatprep.subr.mxu0 %v1668
    %2575 = vmatpush1.msra.mxu0 %v1667
    %2576 = vmatprep.subr.mxu0 %v1666
    %2577 = vmatpush1.msra.mxu0 %v1665
    %2578 = vmatprep.subr.mxu0 0.0
    %2579 = vmatpush2.msra.mxu0 0.0
    %2580 = vmatprep.subr.mxu0 0.0
    %2581 = vmatpush2.msra.mxu0 0.0
    %2582 = vmatprep.subr.mxu0 0.0
    %2583 = vmatpush2.msra.mxu0 0.0
    %2584 = vmatprep.subr.mxu0 0.0
    %2585 = vmatpush2.msra.mxu0 0.0
    %2586 = vmatprep.subr.mxu0 0.0
    %2587 = vmatpush2.msra.mxu0 0.0
    %2588 = vmatprep.subr.mxu0 0.0
    %2589 = vmatpush2.msra.mxu0 0.0
    %2590 = vmatprep.subr.mxu0 0.0
    %2591 = vmatpush2.msra.mxu0 0.0
    %2592 = vmatprep.subr.mxu0 0.0
    %2593 = vmatpush2.msra.mxu0 0.0
    %2594 = vmatprep.subr.mxu0 0.0
    %2595 = vmatpush2.msra.mxu0 0.0
    %2596 = vmatprep.subr.mxu0 0.0
    %2597 = vmatpush2.msra.mxu0 0.0
    %2598 = vmatprep.subr.mxu0 0.0
    %2599 = vmatpush2.msra.mxu0 0.0
    %2600 = vmatprep.subr.mxu0 0.0
    %2601 = vmatpush2.msra.mxu0 0.0
    %2602 = vmatprep.subr.mxu0 0.0
    %2603 = vmatpush2.msra.mxu0 0.0
    %2604 = vmatprep.subr.mxu0 0.0
    %2605 = vmatpush2.msra.mxu0 0.0
    %2606 = vmatprep.subr.mxu0 0.0
    %2607 = vmatpush2.msra.mxu0 0.0
    %2608 = vmatprep.subr.mxu0 0.0
    %2609 = vmatpush2.msra.mxu0 0.0
    %2610 = vmatprep.mubr.f32.mxu0 0.0
    %2611 = vmatmul.mubr.f32.gmra.mxu0 %v2544
    %v2612 = vpop.f32.mrf.mxu0
    %v2613 = vadd.f32 0.0, %v2612
    %v2614 = vpop.f32.mrf.mxu0
    %v2615 = vadd.f32 0.0, %v2614
    %2616 = vdwg.mxu0
    %v2618 = vrot.slane %v2613, 4
    %v2620 = vadd.f32 %v1661, %v2618
    %v2622 = vrot.slane %v2615, 6
    %v2624 = vadd.f32 %v1657, %v2622
    %v2625 = vxor.u32 %v2620, 2147483648
    %v2626 = vmul.f32 %v2625, 1.442695
    %v2627 = vpow.pop %v2626
    %v2628 = vadd.f32 %v2627, 1.0
    %v2629 = vrcp.pop %v2628
    %v2630 = vmul.f32 1.0, %v2629
    %v2631 = vtanh.pop %v2620
    %v2632 = vxor.u32 %v2624, 2147483648
    %v2633 = vmul.f32 %v2632, 1.442695
    %v2634 = vpow.pop %v2633
    %v2635 = vadd.f32 %v2634, 1.0
    %v2636 = vrcp.pop %v2635
    %v2637 = vmul.f32 1.0, %v2636
    %v2638 = vtanh.pop %v2624
    %v2640 = vrot.slane %v2505, 6
    %v2642 = vmul.f32 %v2630, %v2640
    %2644 = vrot.lane.b32.xlu0 %v2631, 32
    %v2645 = vpop.permute.xlu0 %2644
    %v2647 = vmul.f32 %v2630, %v2645
    %2649 = vrot.lane.b32.xlu0 %v2647, 32
    %v2650 = vpop.permute.xlu0 %2649
    %v2652 = vadd.f32 %v2642, %v2650
    %v2654 = vrot.slane %v2519, 2
    %v2656 = vmul.f32 %v2637, %v2654
    %2658 = vrot.lane.b32.xlu0 %v2638, 32
    %v2659 = vpop.permute.xlu0 %2658
    %v2661 = vmul.f32 %v2637, %v2659
    %2663 = vrot.lane.b32.xlu0 %v2661, 32
    %v2664 = vpop.permute.xlu0 %2663
    %v2666 = vadd.f32 %v2656, %v2664
    %v2667 = vtanh.pop %v2652
    %2669 = vrot.lane.b32.xlu0 %v2667, 32
    %v2670 = vpop.permute.xlu0 %2669
    %v2672 = vmul.f32 %v2630, %v2670
    %v2673 = vtanh.pop %v2666
    %2675 = vrot.lane.b32.xlu0 %v2673, 32
    %v2676 = vpop.permute.xlu0 %2675
    %v2678 = vmul.f32 %v2637, %v2676
    %2680 = vrot.lane.b32.xlu0 %v2672, 64
    %v2681 = vpop.permute.xlu0 %2680
    %v2684 = vrot.slane %v2678, 6
    %2685 = vrot.lane.b32.xlu0 %v2684, 96
    %v2686 = vpop.permute.xlu0 %2685
    %v2688 = vsel %vm144, %v2681, %v2686
    %v2690 = vrot.slane %v2688, 4
    %v2691 = vsel %vm375, %v2690, 0
    %2693 = vmatprep.subr.mxu0 0.0
    %2694 = vmatpush1.msra.mxu0 0.0
    %2695 = vmatprep.subr.mxu0 0.0
    %2696 = vmatpush1.msra.mxu0 0.0
    %2697 = vmatprep.subr.mxu0 0.0
    %2698 = vmatpush1.msra.mxu0 0.0
    %2699 = vmatprep.subr.mxu0 0.0
    %2700 = vmatpush1.msra.mxu0 0.0
    %2701 = vmatprep.subr.mxu0 0.0
    %2702 = vmatpush1.msra.mxu0 0.0
    %2703 = vmatprep.subr.mxu0 0.0
    %2704 = vmatpush1.msra.mxu0 0.0
    %2705 = vmatprep.subr.mxu0 0.0
    %2706 = vmatpush1.msra.mxu0 0.0
    %2707 = vmatprep.subr.mxu0 0.0
    %2708 = vmatpush1.msra.mxu0 0.0
    %2709 = vmatprep.subr.mxu0 %v1680
    %2710 = vmatpush1.msra.mxu0 %v1679
    %2711 = vmatprep.subr.mxu0 %v1678
    %2712 = vmatpush1.msra.mxu0 %v1677
    %2713 = vmatprep.subr.mxu0 %v1676
    %2714 = vmatpush1.msra.mxu0 %v1675
    %2715 = vmatprep.subr.mxu0 %v1674
    %2716 = vmatpush1.msra.mxu0 %v1673
    %2717 = vmatprep.subr.mxu0 %v1672
    %2718 = vmatpush1.msra.mxu0 %v1671
    %2719 = vmatprep.subr.mxu0 %v1670
    %2720 = vmatpush1.msra.mxu0 %v1669
    %2721 = vmatprep.subr.mxu0 %v1668
    %2722 = vmatpush1.msra.mxu0 %v1667
    %2723 = vmatprep.subr.mxu0 %v1666
    %2724 = vmatpush1.msra.mxu0 %v1665
    %2725 = vmatprep.subr.mxu0 0.0
    %2726 = vmatpush2.msra.mxu0 0.0
    %2727 = vmatprep.subr.mxu0 0.0
    %2728 = vmatpush2.msra.mxu0 0.0
    %2729 = vmatprep.subr.mxu0 0.0
    %2730 = vmatpush2.msra.mxu0 0.0
    %2731 = vmatprep.subr.mxu0 0.0
    %2732 = vmatpush2.msra.mxu0 0.0
    %2733 = vmatprep.subr.mxu0 0.0
    %2734 = vmatpush2.msra.mxu0 0.0
    %2735 = vmatprep.subr.mxu0 0.0
    %2736 = vmatpush2.msra.mxu0 0.0
    %2737 = vmatprep.subr.mxu0 0.0
    %2738 = vmatpush2.msra.mxu0 0.0
    %2739 = vmatprep.subr.mxu0 0.0
    %2740 = vmatpush2.msra.mxu0 0.0
    %2741 = vmatprep.subr.mxu0 0.0
    %2742 = vmatpush2.msra.mxu0 0.0
    %2743 = vmatprep.subr.mxu0 0.0
    %2744 = vmatpush2.msra.mxu0 0.0
    %2745 = vmatprep.subr.mxu0 0.0
    %2746 = vmatpush2.msra.mxu0 0.0
    %2747 = vmatprep.subr.mxu0 0.0
    %2748 = vmatpush2.msra.mxu0 0.0
    %2749 = vmatprep.subr.mxu0 0.0
    %2750 = vmatpush2.msra.mxu0 0.0
    %2751 = vmatprep.subr.mxu0 0.0
    %2752 = vmatpush2.msra.mxu0 0.0
    %2753 = vmatprep.subr.mxu0 0.0
    %2754 = vmatpush2.msra.mxu0 0.0
    %2755 = vmatprep.subr.mxu0 0.0
    %2756 = vmatpush2.msra.mxu0 0.0
    %2757 = vmatprep.mubr.f32.mxu0 0.0
    %2758 = vmatmul.mubr.f32.gmra.mxu0 %v2691
    %v2759 = vpop.f32.mrf.mxu0
    %v2760 = vadd.f32 0.0, %v2759
    %v2761 = vpop.f32.mrf.mxu0
    %v2762 = vadd.f32 0.0, %v2761
    %2763 = vdwg.mxu0
    %v2765 = vrot.slane %v2760, 2
    %v2767 = vadd.f32 %v1661, %v2765
    %v2768 = vadd.f32 %v1657, %v2762
    %v2769 = vxor.u32 %v2767, 2147483648
    %v2770 = vmul.f32 %v2769, 1.442695
    %v2771 = vpow.pop %v2770
    %v2772 = vadd.f32 %v2771, 1.0
    %v2773 = vrcp.pop %v2772
    %v2774 = vmul.f32 1.0, %v2773
    %v2775 = vtanh.pop %v2767
    %v2776 = vxor.u32 %v2768, 2147483648
    %v2777 = vmul.f32 %v2776, 1.442695
    %v2778 = vpow.pop %v2777
    %v2779 = vadd.f32 %v2778, 1.0
    %v2780 = vrcp.pop %v2779
    %v2781 = vmul.f32 1.0, %v2780
    %v2782 = vtanh.pop %v2768
    %v2784 = vrot.slane %v2652, 6
    %v2786 = vmul.f32 %v2774, %v2784
    %2788 = vrot.lane.b32.xlu0 %v2775, 32
    %v2789 = vpop.permute.xlu0 %2788
    %v2791 = vmul.f32 %v2774, %v2789
    %2793 = vrot.lane.b32.xlu0 %v2791, 32
    %v2794 = vpop.permute.xlu0 %2793
    %v2796 = vadd.f32 %v2786, %v2794
    %v2798 = vrot.slane %v2666, 2
    %v2800 = vmul.f32 %v2781, %v2798
    %2802 = vrot.lane.b32.xlu0 %v2782, 32
    %v2803 = vpop.permute.xlu0 %2802
    %v2805 = vmul.f32 %v2781, %v2803
    %2807 = vrot.lane.b32.xlu0 %v2805, 32
    %v2808 = vpop.permute.xlu0 %2807
    %v2810 = vadd.f32 %v2800, %v2808
    %v2811 = vtanh.pop %v2796
    %2813 = vrot.lane.b32.xlu0 %v2811, 32
    %v2814 = vpop.permute.xlu0 %2813
    %v2816 = vmul.f32 %v2774, %v2814
    %v2817 = vtanh.pop %v2810
    %2819 = vrot.lane.b32.xlu0 %v2817, 32
    %v2820 = vpop.permute.xlu0 %2819
    %v2822 = vmul.f32 %v2781, %v2820
    %2824 = vrot.lane.b32.xlu0 %v2816, 64
    %v2825 = vpop.permute.xlu0 %2824
    %v2828 = vrot.slane %v2822, 2
    %2829 = vrot.lane.b32.xlu0 %v2828, 96
    %v2830 = vpop.permute.xlu0 %2829
    %v2832 = vsel %vm144, %v2825, %v2830
    %2834 = vrot.lane.b32.xlu0 %v2796, 96
    %v2835 = vpop.permute.xlu0 %2834
    %v2838 = vrot.slane %v2810, 2
    %v2840 = vsel %vm144, %v2835, %v2838
    %v2842 = vrot.slane %v2832, 6
    %v2845 = vrot.slane %v2840, 4
    %v2847 = vsel %vm1521, %v2842, %v2845
    %v2848 = vld [vmem:[%s9] sm:$0xff]
    %v2849 = vld [vmem:[%s9 + $0x8] sm:$0xff]
    %v2850 = vld [vmem:[%s9 + $0x10] sm:$0xff]
    %v2851 = vld [vmem:[%s9 + $0x18] sm:$0xff]
    %v2852 = vld [vmem:[%s9 + $0x20] sm:$0xff]
    %v2853 = vld [vmem:[%s9 + $0x28] sm:$0xff]
    %v2854 = vld [vmem:[%s9 + $0x30] sm:$0xff]
    %v2855 = vld [vmem:[%s9 + $0x38] sm:$0xff]
    %v2856 = vld [vmem:[#allocation12] sm:$0x1]
    %v2858 = vlaneseq
    %v2859 = vshrl.u32 %v2858, 7
    %v2860 = vsub.s32 0, %v2859
    %v2861 = vrot.slane %v2856, %v2860
    %v2864 = vsel %vm375, %v2847, 0
    %2866 = vmatprep.subr.mxu0 0.0
    %2867 = vmatpush1.msra.mxu0 0.0
    %2868 = vmatprep.subr.mxu0 0.0
    %2869 = vmatpush1.msra.mxu0 0.0
    %2870 = vmatprep.subr.mxu0 0.0
    %2871 = vmatpush1.msra.mxu0 0.0
    %2872 = vmatprep.subr.mxu0 0.0
    %2873 = vmatpush1.msra.mxu0 0.0
    %2874 = vmatprep.subr.mxu0 0.0
    %2875 = vmatpush1.msra.mxu0 0.0
    %2876 = vmatprep.subr.mxu0 0.0
    %2877 = vmatpush1.msra.mxu0 0.0
    %2878 = vmatprep.subr.mxu0 0.0
    %2879 = vmatpush1.msra.mxu0 0.0
    %2880 = vmatprep.subr.mxu0 0.0
    %2881 = vmatpush1.msra.mxu0 0.0
    %2882 = vmatprep.subr.mxu0 0.0
    %2883 = vmatpush1.msra.mxu0 %v2855
    %2884 = vmatprep.subr.mxu0 0.0
    %2885 = vmatpush1.msra.mxu0 %v2854
    %2886 = vmatprep.subr.mxu0 0.0
    %2887 = vmatpush1.msra.mxu0 %v2853
    %2888 = vmatprep.subr.mxu0 0.0
    %2889 = vmatpush1.msra.mxu0 %v2852
    %2890 = vmatprep.subr.mxu0 0.0
    %2891 = vmatpush1.msra.mxu0 %v2851
    %2892 = vmatprep.subr.mxu0 0.0
    %2893 = vmatpush1.msra.mxu0 %v2850
    %2894 = vmatprep.subr.mxu0 0.0
    %2895 = vmatpush1.msra.mxu0 %v2849
    %2896 = vmatprep.subr.mxu0 0.0
    %2897 = vmatpush1.msra.mxu0 %v2848
    %2898 = vmatprep.subr.mxu0 0.0
    %2899 = vmatpush2.msra.mxu0 0.0
    %2900 = vmatprep.subr.mxu0 0.0
    %2901 = vmatpush2.msra.mxu0 0.0
    %2902 = vmatprep.subr.mxu0 0.0
    %2903 = vmatpush2.msra.mxu0 0.0
    %2904 = vmatprep.subr.mxu0 0.0
    %2905 = vmatpush2.msra.mxu0 0.0
    %2906 = vmatprep.subr.mxu0 0.0
    %2907 = vmatpush2.msra.mxu0 0.0
    %2908 = vmatprep.subr.mxu0 0.0
    %2909 = vmatpush2.msra.mxu0 0.0
    %2910 = vmatprep.subr.mxu0 0.0
    %2911 = vmatpush2.msra.mxu0 0.0
    %2912 = vmatprep.subr.mxu0 0.0
    %2913 = vmatpush2.msra.mxu0 0.0
    %2914 = vmatprep.subr.mxu0 0.0
    %2915 = vmatpush2.msra.mxu0 0.0
    %2916 = vmatprep.subr.mxu0 0.0
    %2917 = vmatpush2.msra.mxu0 0.0
    %2918 = vmatprep.subr.mxu0 0.0
    %2919 = vmatpush2.msra.mxu0 0.0
    %2920 = vmatprep.subr.mxu0 0.0
    %2921 = vmatpush2.msra.mxu0 0.0
    %2922 = vmatprep.subr.mxu0 0.0
    %2923 = vmatpush2.msra.mxu0 0.0
    %2924 = vmatprep.subr.mxu0 0.0
    %2925 = vmatpush2.msra.mxu0 0.0
    %2926 = vmatprep.subr.mxu0 0.0
    %2927 = vmatpush2.msra.mxu0 0.0
    %2928 = vmatprep.subr.mxu0 0.0
    %2929 = vmatpush2.msra.mxu0 0.0
    %2930 = vmatprep.mubr.f32.mxu0 0.0
    %2931 = vmatmul.mubr.f32.gmra.mxu0 %v2864
    %v2932 = vpop.f32.mrf.mxu0
    %v2933 = vadd.f32 %v2861, %v2932
    %v2934 = vpop.f32.mrf.mxu0
    %2935 = vdwg.mxu0
    %vm2936 = vcmask 254976
    %2937 = vst.msk [vmem:[%s11] sm:$0x3] %vm2936, %v2933
    %vm2938 = vcmask 257026
    %2939 = vst.msk [vmem:[%s12 - $0x2] sm:$0xc] %vm2938, %v2933
    %2941 = vrot.lane.b32.xlu0 %v2933, 96
    %v2942 = vpop.permute.xlu0 %2941
    %s2944 = scalar_lea.vmem %s11, 2
    %2945 = vst.msk [vmem:[%s2944] sm:$0x3] %vm2936, %v2942
    %s2946 = scalar_lea.vmem %s12, 2
    %2947 = vst.msk [vmem:[%s2946 - $0x2] sm:$0xc] %vm2938, %v2942
    // Predicated region
    $region74: #{_lambda_.2} parent=1 // pred_check
      _
    $region75: #{_lambda_.2} parent=1 // pred_check_branch
      %2949 = sbr.rel (0) target = $region77
    $region76: #{_lambda_.2} parent=1 // pred_region
      _
    $region77: #{_lambda_.2} parent=1 // pred_fallthru
      _
    // Predicated region
    $region78: #{_lambda_.2} parent=1 // pred_check
      _
    $region79: #{_lambda_.2} parent=1 // pred_check_branch
      %2951 = sbr.rel (0) target = $region81
    $region80: #{_lambda_.2} parent=1 // pred_region
      _
    $region81: #{_lambda_.2} parent=1 // pred_fallthru
      _
    // Predicated region
    $region82: #{_lambda_.2} parent=1 // pred_check
      _
    $region83: #{_lambda_.2} parent=1 // pred_check_branch
      %2953 = sbr.rel (0) target = $region85
    $region84: #{_lambda_.2} parent=1 // pred_region
      _
    $region85: #{_lambda_.2} parent=1 // pred_fallthru
      _
    // Predicated region
    $region86: #{_lambda_.2} parent=1 // pred_check
      _
    $region87: #{_lambda_.2} parent=1 // pred_check_branch
      %2955 = sbr.rel (0) target = $region89
    $region88: #{_lambda_.2} parent=1 // pred_region
      _
    $region89: #{_lambda_.2} parent=1 // pred_fallthru
      _
    %2956 = vsyncpa [#allocation3], 1
    %2957 = vsyncpa [#allocation5], 1
    %2958 = vsyncpa [#allocation8], 1
    %2959 = vsyncpa [#allocation11], 1

</llo_original>
